<compile_context>
chip_gen: v5e
topology: v5e:2x2
jax: 0.10.0
libtpu: 0.0.40
codegen_flags: <defaults>
</compile_context>

<pallas_src>
import functools

import jax
import jax.numpy as jnp
from jax import lax
from jax.experimental import pallas as pl
from jax.experimental.pallas import tpu as pltpu

_BN_EPS = 1e-5


def _fold_bn(gamma, beta, mean, var, eps=_BN_EPS):
    scale = gamma / jnp.sqrt(var + eps)
    shift = beta - mean * scale
    return scale.astype(jnp.float32), shift.astype(jnp.float32)


# ---------------------------------------------------------------------------
# Fused BasicBlock kernel (one grid step == one image)
# ---------------------------------------------------------------------------
def _basic_block_kernel(*refs, H, W, Cin, Cp, has_conv0, lane_dense_out):
    if has_conv0:
        (x_ref, w0_ref, b0_ref, w1_ref, a1_ref, c1_ref, a2_ref, c2_ref,
         out_ref, xpad0_ref, patch0_ref, xpad_ref, patch_ref) = refs
    else:
        (x_ref, w1_ref, a1_ref, c1_ref, a2_ref, c2_ref,
         out_ref, xpad_ref, patch_ref) = refs
        w0_ref = b0_ref = xpad0_ref = patch0_ref = None

    # Zero the halo slabs (1-pixel zero border == pad=1); interiors get
    # rewritten per conv, so this replaces the old external jnp.pad HBM pass.
    xpad_ref[...] = jnp.zeros(xpad_ref.shape, xpad_ref.dtype)
    if has_conv0:
        xpad0_ref[...] = jnp.zeros(xpad0_ref.shape, xpad0_ref.dtype)

    def conv3x3(xp_ref, pt_ref, act3d, w_ref):
        """3x3/s1/p1 conv: act3d (H, W, cin) f32 -> (H*W, Cp) f32.

        im2col patch matrix (H*W, 9*cin) in bf16 scratch + a single MXU
        matmul with f32 accumulation (no per-tap matmul push/drain, no
        zero-init accumulator)."""
        cin = act3d.shape[-1]
        xp_ref[1:H + 1, 1:W + 1, :] = act3d          # interior of padded slab
        for dh in range(3):
            for dw in range(3):
                t = dh * 3 + dw
                slab = xp_ref[dh:dh + H, dw:dw + W, :]            # (H, W, cin)
                pt_ref[:, t * cin:(t + 1) * cin] = (
                    slab.reshape(H * W, cin).astype(pt_ref.dtype))
        return jnp.dot(pt_ref[...], w_ref[...],
                       preferred_element_type=jnp.float32)

    x3d = x_ref[0]                                    # (H, W, Cin) f32

    if has_conv0:
        y0 = conv3x3(xpad0_ref, patch0_ref, x3d, w0_ref)          # (H*W, Cp)
        x_res = jnp.maximum(y0 + b0_ref[...], 0.0)                # bias + relu
        act = x_res.reshape(H, W, Cp)
    else:
        x_res = x3d.reshape(H * W, Cp)
        act = x3d

    # conv1 + bn1 + relu   (BN folded: y*a1 + c1, with c1 = conv_b*a1 + shift1)
    h1 = conv3x3(xpad_ref, patch_ref, act, w1_ref)
    h1 = jnp.maximum(h1 * a1_ref[...] + c1_ref[...], 0.0)
    # Dropout2d(p=0.25) is identity in eval mode.

    # conv1 (weights reused, as in the PyTorch module) + bn2 + residual + relu
    h2 = conv3x3(xpad_ref, patch_ref, h1.reshape(H, W, Cp), w1_ref)
    h2 = h2 * a2_ref[...] + c2_ref[...]
    out = jnp.maximum(h2 + x_res, 0.0)                # (H*W, Cp) f32
    out3d = out.reshape(H, W, Cp)

    if lane_dense_out:
        # Present a lane-dense (H, W*Cp) slab so the final store / writeback
        # DMA uses full 128-lane vst instead of Cp/128-lane masked stores.
        dense = jnp.concatenate([out3d[:, w, :] for w in range(W)], axis=-1)
        out_ref[0] = dense.astype(out_ref.dtype)
    else:
        out_ref[0] = out3d.astype(out_ref.dtype)


def basic_block_nhwc(x, params):
    """Fused BasicBlock forward (eval mode), NHWC in / NHWC out, one pallas_call."""
    N, H, W, Cin = x.shape
    Cp = params["conv1_w"].shape[-1]
    has_conv0 = (Cin != Cp)
    # lane-dense output layout only when Cout itself is not already lane-dense
    # and W*Cout lines up with the 128-lane vreg width
    lane_dense_out = (Cp < 128) and ((W * Cp) % 128 == 0) and (W <= 64)

    x = x.astype(jnp.float32)

    s1, sh1 = _fold_bn(params["bn1_gamma"], params["bn1_beta"],
                       params["bn1_mean"], params["bn1_var"])
    s2, sh2 = _fold_bn(params["bn2_gamma"], params["bn2_beta"],
                       params["bn2_mean"], params["bn2_var"])
    b1 = params["conv1_b"].astype(jnp.float32)
    a1 = s1.reshape(1, Cp)
    c1 = (b1 * s1 + sh1).reshape(1, Cp)        # fused conv bias + BN shift
    a2 = s2.reshape(1, Cp)
    c2 = (b1 * s2 + sh2).reshape(1, Cp)
    w1 = params["conv1_w"].astype(jnp.bfloat16).reshape(9 * Cp, Cp)

    inputs = [x]
    in_specs = [pl.BlockSpec((1, H, W, Cin), lambda n: (n, 0, 0, 0))]
    if has_conv0:
        w0 = params["conv0_w"].astype(jnp.bfloat16).reshape(9 * Cin, Cp)
        b0 = params["conv0_b"].astype(jnp.float32).reshape(1, Cp)
        inputs += [w0, b0]
        in_specs += [pl.BlockSpec((9 * Cin, Cp), lambda n: (0, 0)),
                     pl.BlockSpec((1, Cp), lambda n: (0, 0))]
    inputs += [w1, a1, c1, a2, c2]
    in_specs += [pl.BlockSpec((9 * Cp, Cp), lambda n: (0, 0))]
    in_specs += [pl.BlockSpec((1, Cp), lambda n: (0, 0))] * 4

    scratch = []
    if has_conv0:
        scratch += [pltpu.VMEM((H + 2, W + 2, Cin), jnp.float32),
                    pltpu.VMEM((H * W, 9 * Cin), jnp.bfloat16)]
    scratch += [pltpu.VMEM((H + 2, W + 2, Cp), jnp.float32),
                pltpu.VMEM((H * W, 9 * Cp), jnp.bfloat16)]

    if lane_dense_out:
        out_shape = jax.ShapeDtypeStruct((N, H, W * Cp), jnp.float32)
        out_spec = pl.BlockSpec((1, H, W * Cp), lambda n: (n, 0, 0))
    else:
        out_shape = jax.ShapeDtypeStruct((N, H, W, Cp), jnp.float32)
        out_spec = pl.BlockSpec((1, H, W, Cp), lambda n: (n, 0, 0, 0))

    # Explicit VMEM budget (double-buffered blocks + weights + scratch +
    # headroom for live f32 temporaries), kept well under v7x's 64 MiB.
    blk_bytes = H * W * Cin * 4 + H * W * Cp * 4
    wgt_bytes = 9 * Cp * Cp * 2 + 4 * Cp * 4
    scr_bytes = (H + 2) * (W + 2) * Cp * 4 + H * W * 9 * Cp * 2
    if has_conv0:
        wgt_bytes += 9 * Cin * Cp * 2 + Cp * 4
        scr_bytes += (H + 2) * (W + 2) * Cin * 4 + H * W * 9 * Cin * 2
    tmp_bytes = 8 * H * W * Cp * 4
    vmem_limit = int(min(48 * 2 ** 20,
                         max(8 * 2 ** 20,
                             2 * (2 * (blk_bytes + wgt_bytes)
                                  + scr_bytes + tmp_bytes))))

    out = pl.pallas_call(
        functools.partial(_basic_block_kernel, H=H, W=W, Cin=Cin, Cp=Cp,
                          has_conv0=has_conv0, lane_dense_out=lane_dense_out),
        out_shape=out_shape,
        grid=(N,),
        in_specs=in_specs,
        out_specs=out_spec,
        scratch_shapes=scratch,
        compiler_params=pltpu.CompilerParams(
            dimension_semantics=("parallel",),
            vmem_limit_bytes=vmem_limit),
    )(*inputs)

    if lane_dense_out:
        out = out.reshape(N, H, W, Cp)     # contiguous metadata reshape (free)
    return out


# ---------------------------------------------------------------------------
# LadderBlock composed from the fused BasicBlock kernel
# ---------------------------------------------------------------------------
def ladder_block_forward(x_list_nchw, params, block_fn):
    """LadderBlock.forward; block_fn is the BasicBlock impl (NHWC in/out)."""
    xs = [jnp.transpose(t, (0, 2, 3, 1)).astype(jnp.float32)
          for t in x_list_nchw]
    layers = len(params["down_convs"]) + 1

    out = block_fn(xs[-1], params["inconv"])
    down_out = []
    for i in range(layers - 1):
        out = out + xs[-i - 1]
        out = block_fn(out, params["down_blocks"][i])
        down_out.append(out)
        w, b = params["down_convs"][i]
        # TODO(synk): stride-2 down conv kept as a plain XLA conv (not Pallas).
        out = lax.conv_general_dilated(
            out, w, window_strides=(2, 2), padding=((1, 1), (1, 1)),
            dimension_numbers=("NHWC", "HWIO", "NHWC")) + b.reshape(1, 1, 1, -1)
        out = jnp.maximum(out, 0.0)

    out = block_fn(out, params["bottom"])
    up_out = [out]
    for j in range(layers - 1):
        w, b = params["up_convs"][j]
        # TODO(synk): ConvTranspose2d(k3, s2, p1, output_padding=1) kept as a
        # plain XLA dilated conv (not Pallas).
        up = lax.conv_general_dilated(
            out, w, window_strides=(1, 1), padding=((1, 2), (1, 2)),
            lhs_dilation=(2, 2),
            dimension_numbers=("NHWC", "HWIO", "NHWC")) + b.reshape(1, 1, 1, -1)
        out = up + down_out[layers - j - 2]
        out = block_fn(out, params["up_blocks"][j])
        up_out.append(out)

    return [jnp.transpose(t, (0, 3, 1, 2)) for t in up_out]


# ---------------------------------------------------------------------------
# Pure-JAX references (for checking)
# ---------------------------------------------------------------------------
def _conv3x3_ref(x, w, b, mxu_dtype):
    """3x3/s1/p1 conv + bias; matmul inputs rounded to mxu_dtype, f32 accum
    (mirrors the bf16 MXU inputs used inside the Pallas kernel)."""
    y = lax.conv_general_dilated(
        x.astype(mxu_dtype), w.astype(mxu_dtype),
        window_strides=(1, 1), padding=((1, 1), (1, 1)),
        dimension_numbers=("NHWC", "HWIO", "NHWC"),
        preferred_element_type=jnp.float32)
    return y + b.reshape(1, 1, 1, -1).astype(jnp.float32)


def basic_block_reference_nhwc(x, params, mxu_dtype=jnp.bfloat16):
    x = x.astype(jnp.float32)
    Cin = x.shape[-1]
    Cp = params["conv1_w"].shape[-1]
    if Cin != Cp:
        x = jnp.maximum(
            _conv3x3_ref(x, params["conv0_w"], params["conv0_b"], mxu_dtype),
            0.0)
    s1, sh1 = _fold_bn(params["bn1_gamma"], params["bn1_beta"],
                       params["bn1_mean"], params["bn1_var"])
    out = _conv3x3_ref(x, params["conv1_w"], params["conv1_b"], mxu_dtype)
    out = jnp.maximum(out * s1 + sh1, 0.0)
    s2, sh2 = _fold_bn(params["bn2_gamma"], params["bn2_beta"],
                       params["bn2_mean"], params["bn2_var"])
    out1 = _conv3x3_ref(out, params["conv1_w"], params["conv1_b"], mxu_dtype)
    out1 = out1 * s2 + sh2
    return jnp.maximum(out1 + x, 0.0)


# ---------------------------------------------------------------------------
# Parameter builders
# ---------------------------------------------------------------------------
def _make_basic_block_params(key, inplanes, planes):
    ks = jax.random.split(key, 14)
    p = {
        "conv1_w": 0.2 * jax.random.normal(ks[2], (3, 3, planes, planes), jnp.float32),
        "conv1_b": 0.1 * jax.random.normal(ks[3], (planes,), jnp.float32),
        "bn1_gamma": 1.0 + 0.1 * jax.random.normal(ks[4], (planes,), jnp.float32),
        "bn1_beta": 0.1 * jax.random.normal(ks[5], (planes,), jnp.float32),
        "bn1_mean": 0.1 * jax.random.normal(ks[6], (planes,), jnp.float32),
        "bn1_var": jax.random.uniform(ks[7], (planes,), jnp.float32, 0.5, 1.5),
        "bn2_gamma": 1.0 + 0.1 * jax.random.normal(ks[8], (planes,), jnp.float32),
        "bn2_beta": 0.1 * jax.random.normal(ks[9], (planes,), jnp.float32),
        "bn2_mean": 0.1 * jax.random.normal(ks[10], (planes,), jnp.float32),
        "bn2_var": jax.random.uniform(ks[11], (planes,), jnp.float32, 0.5, 1.5),
    }
    if inplanes != planes:
        p["conv0_w"] = 0.2 * jax.random.normal(
            ks[0], (3, 3, inplanes, planes), jnp.float32)
        p["conv0_b"] = 0.1 * jax.random.normal(ks[1], (planes,), jnp.float32)
    return p


def _make_ladder_params(key, planes, layers):
    keys = iter(jax.random.split(key, 4 * layers + 4))
    params = {"inconv": _make_basic_block_params(next(keys), planes, planes),
              "down_blocks": [], "down_convs": [],
              "up_convs": [], "up_blocks": []}
    for i in range(layers - 1):
        ci = planes * 2 ** i
        params["down_blocks"].append(_make_basic_block_params(next(keys), ci, ci))
        params["down_convs"].append(
            (0.2 * jax.random.normal(next(keys), (3, 3, ci, 2 * ci), jnp.float32),
             0.05 * jnp.ones((2 * ci,), jnp.float32)))
    cb = planes * 2 ** (layers - 1)
    params["bottom"] = _make_basic_block_params(next(keys), cb, cb)
    for j in range(layers - 1):
        cin = planes * 2 ** (layers - j - 1)
        cout = planes * 2 ** max(0, layers - j - 2)
        params["up_convs"].append(
            (0.15 * jax.random.normal(next(keys), (3, 3, cin, cout), jnp.float32),
             0.05 * jnp.ones((cout,), jnp.float32)))
        params["up_blocks"].append(_make_basic_block_params(next(keys), cout, cout))
    return params


if __name__ == "__main__":
    key = jax.random.PRNGKey(0)
    k_bb, k_x1, k_lad, k_x2 = jax.random.split(key, 4)

    # --- 1) standalone BasicBlock with inplanes != planes (exercises conv0) ---
    N, inplanes, planes, H, W = 2, 4, 8, 16, 16
    bb_params = _make_basic_block_params(k_bb, inplanes, planes)
    x_nchw = jax.random.normal(k_x1, (N, inplanes, H, W), jnp.float32)
    x_nhwc = jnp.transpose(x_nchw, (0, 2, 3, 1))

    y = jax.block_until_ready(basic_block_nhwc(x_nhwc, bb_params))
    y_ref = basic_block_reference_nhwc(x_nhwc, bb_params)                   # bf16 MXU mirror
    y_f32 = basic_block_reference_nhwc(x_nhwc, bb_params, jnp.float32)      # full f32

    assert y.shape == (N, H, W, planes), y.shape
    err = float(jnp.max(jnp.abs(y - y_ref)))
    assert err < 3e-2, f"BasicBlock mismatch vs bf16-matmul reference: {err}"
    err_f32 = float(jnp.max(jnp.abs(y - y_f32)))   # bf16 MXU rounding only
    assert err_f32 < 0.5, f"BasicBlock grossly off vs f32 reference: {err_f32}"

    # --- 2) LadderBlock (planes=8, layers=2) built from the fused kernel -----
    P, L = 8, 2
    lad_params = _make_ladder_params(k_lad, P, L)
    x0 = jax.random.normal(k_x2, (N, P, H, W), jnp.float32)
    x_list = [x0]                        # LadderBlock.forward indexes x[-1]

    outs = jax.block_until_ready(
        ladder_block_forward(x_list, lad_params, basic_block_nhwc))
    refs = ladder_block_forward(x_list, lad_params, basic_block_reference_nhwc)

    assert outs[0].shape == (N, 2 * P, H // 2, W // 2), outs[0].shape
    assert outs[1].shape == (N, P, H, W), outs[1].shape
    lerr = max(float(jnp.max(jnp.abs(a - b))) for a, b in zip(outs, refs))
    assert lerr < 3e-2, f"LadderBlock mismatch vs reference: {lerr}"

    print("KERNEL_OK")
</pallas_src>

<mosaic_0001>
module attributes {stable_mosaic.version = 11 : i64} {
  func.func @_basic_block_kernel(%arg0: i32, %arg1: memref<1x16x16x4xf32, #tpu.memory_space<vmem>>, %arg2: memref<36x8xbf16, #tpu.memory_space<vmem>>, %arg3: memref<1x8xf32, #tpu.memory_space<vmem>>, %arg4: memref<72x8xbf16, #tpu.memory_space<vmem>>, %arg5: memref<1x8xf32, #tpu.memory_space<vmem>>, %arg6: memref<1x8xf32, #tpu.memory_space<vmem>>, %arg7: memref<1x8xf32, #tpu.memory_space<vmem>>, %arg8: memref<1x8xf32, #tpu.memory_space<vmem>>, %arg9: memref<1x16x128xf32, #tpu.memory_space<vmem>>, %arg10: memref<18x18x4xf32, #tpu.memory_space<vmem>>, %arg11: memref<256x36xbf16, #tpu.memory_space<vmem>>, %arg12: memref<18x18x8xf32, #tpu.memory_space<vmem>>, %arg13: memref<256x72xbf16, #tpu.memory_space<vmem>>) attributes {dimension_semantics = [#tpu.dimension_semantics<parallel>], iteration_bounds = array<i64: 2>, scalar_prefetch = 0 : i64, scratch_operands = 4 : i64, tpu.core_type = #tpu.core_type<tc>, window_params = [{transform_indices = @transform_0, window_bounds = array<i64: 1, 16, 16, 4>}, {pipeline_mode = #tpu.pipeline_mode<synchronous>, transform_indices = @transform_1, window_bounds = array<i64: 36, 8>}, {pipeline_mode = #tpu.pipeline_mode<synchronous>, transform_indices = @transform_2, window_bounds = array<i64: 1, 8>}, {pipeline_mode = #tpu.pipeline_mode<synchronous>, transform_indices = @transform_3, window_bounds = array<i64: 72, 8>}, {pipeline_mode = #tpu.pipeline_mode<synchronous>, transform_indices = @transform_4, window_bounds = array<i64: 1, 8>}, {pipeline_mode = #tpu.pipeline_mode<synchronous>, transform_indices = @transform_5, window_bounds = array<i64: 1, 8>}, {pipeline_mode = #tpu.pipeline_mode<synchronous>, transform_indices = @transform_6, window_bounds = array<i64: 1, 8>}, {pipeline_mode = #tpu.pipeline_mode<synchronous>, transform_indices = @transform_7, window_bounds = array<i64: 1, 8>}, {transform_indices = @transform_8, window_bounds = array<i64: 1, 16, 128>}]} {
    %cst = arith.constant 0.000000e+00 : f32
    %0 = vector.broadcast %cst : f32 to vector<18x18x8xf32>
    %c0 = arith.constant 0 : index
    %c0_0 = arith.constant 0 : index
    %c0_1 = arith.constant 0 : index
    %1 = vector.load %arg12[%c0, %c0_0, %c0_1] : memref<18x18x8xf32, #tpu.memory_space<vmem>>, vector<18x18x8xf32>
    tpu.vector_store %arg12[%c0, %c0_0, %c0_1], %0 {strides = array<i32>} : memref<18x18x8xf32, #tpu.memory_space<vmem>>, vector<18x18x8xf32>,
    %cst_2 = arith.constant 0.000000e+00 : f32
    %2 = vector.broadcast %cst_2 : f32 to vector<18x18x4xf32>
    %c0_3 = arith.constant 0 : index
    %c0_4 = arith.constant 0 : index
    %c0_5 = arith.constant 0 : index
    %3 = vector.load %arg10[%c0_3, %c0_4, %c0_5] : memref<18x18x4xf32, #tpu.memory_space<vmem>>, vector<18x18x4xf32>
    tpu.vector_store %arg10[%c0_3, %c0_4, %c0_5], %2 {strides = array<i32>} : memref<18x18x4xf32, #tpu.memory_space<vmem>>, vector<18x18x4xf32>,
    %c0_6 = arith.constant 0 : index
    %c0_7 = arith.constant 0 : index
    %c0_8 = arith.constant 0 : index
    %c0_9 = arith.constant 0 : index
    %4 = vector.load %arg1[%c0_6, %c0_7, %c0_8, %c0_9] : memref<1x16x16x4xf32, #tpu.memory_space<vmem>>, vector<1x16x16x4xf32>
    %5 = vector.shape_cast %4 : vector<1x16x16x4xf32> to vector<16x16x4xf32>
    %c1 = arith.constant 1 : index
    %c1_10 = arith.constant 1 : index
    %c0_11 = arith.constant 0 : index
    %6 = vector.load %arg10[%c1, %c1_10, %c0_11] : memref<18x18x4xf32, #tpu.memory_space<vmem>>, vector<16x16x4xf32>
    tpu.vector_store %arg10[%c1, %c1_10, %c0_11], %5 {strides = array<i32>} : memref<18x18x4xf32, #tpu.memory_space<vmem>>, vector<16x16x4xf32>,
    %c0_12 = arith.constant 0 : index
    %c0_13 = arith.constant 0 : index
    %c0_14 = arith.constant 0 : index
    %7 = vector.load %arg10[%c0_12, %c0_13, %c0_14] : memref<18x18x4xf32, #tpu.memory_space<vmem>>, vector<16x16x4xf32>
    %8 = vector.shape_cast %7 : vector<16x16x4xf32> to vector<256x4xf32>
    %9 = arith.truncf %8 : vector<256x4xf32> to vector<256x4xbf16>
    %c0_15 = arith.constant 0 : index
    %c0_16 = arith.constant 0 : index
    %10 = vector.load %arg11[%c0_15, %c0_16] : memref<256x36xbf16, #tpu.memory_space<vmem>>, vector<256x4xbf16>
    tpu.vector_store %arg11[%c0_15, %c0_16], %9 {strides = array<i32>} : memref<256x36xbf16, #tpu.memory_space<vmem>>, vector<256x4xbf16>,
    %c0_17 = arith.constant 0 : index
    %c1_18 = arith.constant 1 : index
    %c0_19 = arith.constant 0 : index
    %11 = vector.load %arg10[%c0_17, %c1_18, %c0_19] : memref<18x18x4xf32, #tpu.memory_space<vmem>>, vector<16x16x4xf32>
    %12 = vector.shape_cast %11 : vector<16x16x4xf32> to vector<256x4xf32>
    %13 = arith.truncf %12 : vector<256x4xf32> to vector<256x4xbf16>
    %c0_20 = arith.constant 0 : index
    %c4 = arith.constant 4 : index
    %14 = vector.load %arg11[%c0_20, %c4] : memref<256x36xbf16, #tpu.memory_space<vmem>>, vector<256x4xbf16>
    tpu.vector_store %arg11[%c0_20, %c4], %13 {strides = array<i32>} : memref<256x36xbf16, #tpu.memory_space<vmem>>, vector<256x4xbf16>,
    %c0_21 = arith.constant 0 : index
    %c2 = arith.constant 2 : index
    %c0_22 = arith.constant 0 : index
    %15 = vector.load %arg10[%c0_21, %c2, %c0_22] : memref<18x18x4xf32, #tpu.memory_space<vmem>>, vector<16x16x4xf32>
    %16 = vector.shape_cast %15 : vector<16x16x4xf32> to vector<256x4xf32>
    %17 = arith.truncf %16 : vector<256x4xf32> to vector<256x4xbf16>
    %c0_23 = arith.constant 0 : index
    %c8 = arith.constant 8 : index
    %18 = vector.load %arg11[%c0_23, %c8] : memref<256x36xbf16, #tpu.memory_space<vmem>>, vector<256x4xbf16>
    tpu.vector_store %arg11[%c0_23, %c8], %17 {strides = array<i32>} : memref<256x36xbf16, #tpu.memory_space<vmem>>, vector<256x4xbf16>,
    %c1_24 = arith.constant 1 : index
    %c0_25 = arith.constant 0 : index
    %c0_26 = arith.constant 0 : index
    %19 = vector.load %arg10[%c1_24, %c0_25, %c0_26] : memref<18x18x4xf32, #tpu.memory_space<vmem>>, vector<16x16x4xf32>
    %20 = vector.shape_cast %19 : vector<16x16x4xf32> to vector<256x4xf32>
    %21 = arith.truncf %20 : vector<256x4xf32> to vector<256x4xbf16>
    %c0_27 = arith.constant 0 : index
    %c12 = arith.constant 12 : index
    %22 = vector.load %arg11[%c0_27, %c12] : memref<256x36xbf16, #tpu.memory_space<vmem>>, vector<256x4xbf16>
    tpu.vector_store %arg11[%c0_27, %c12], %21 {strides = array<i32>} : memref<256x36xbf16, #tpu.memory_space<vmem>>, vector<256x4xbf16>,
    %c1_28 = arith.constant 1 : index
    %c1_29 = arith.constant 1 : index
    %c0_30 = arith.constant 0 : index
    %23 = vector.load %arg10[%c1_28, %c1_29, %c0_30] : memref<18x18x4xf32, #tpu.memory_space<vmem>>, vector<16x16x4xf32>
    %24 = vector.shape_cast %23 : vector<16x16x4xf32> to vector<256x4xf32>
    %25 = arith.truncf %24 : vector<256x4xf32> to vector<256x4xbf16>
    %c0_31 = arith.constant 0 : index
    %c16 = arith.constant 16 : index
    %26 = vector.load %arg11[%c0_31, %c16] : memref<256x36xbf16, #tpu.memory_space<vmem>>, vector<256x4xbf16>
    tpu.vector_store %arg11[%c0_31, %c16], %25 {strides = array<i32>} : memref<256x36xbf16, #tpu.memory_space<vmem>>, vector<256x4xbf16>,
    %c1_32 = arith.constant 1 : index
    %c2_33 = arith.constant 2 : index
    %c0_34 = arith.constant 0 : index
    %27 = vector.load %arg10[%c1_32, %c2_33, %c0_34] : memref<18x18x4xf32, #tpu.memory_space<vmem>>, vector<16x16x4xf32>
    %28 = vector.shape_cast %27 : vector<16x16x4xf32> to vector<256x4xf32>
    %29 = arith.truncf %28 : vector<256x4xf32> to vector<256x4xbf16>
    %c0_35 = arith.constant 0 : index
    %c20 = arith.constant 20 : index
    %30 = vector.load %arg11[%c0_35, %c20] : memref<256x36xbf16, #tpu.memory_space<vmem>>, vector<256x4xbf16>
    tpu.vector_store %arg11[%c0_35, %c20], %29 {strides = array<i32>} : memref<256x36xbf16, #tpu.memory_space<vmem>>, vector<256x4xbf16>,
    %c2_36 = arith.constant 2 : index
    %c0_37 = arith.constant 0 : index
    %c0_38 = arith.constant 0 : index
    %31 = vector.load %arg10[%c2_36, %c0_37, %c0_38] : memref<18x18x4xf32, #tpu.memory_space<vmem>>, vector<16x16x4xf32>
    %32 = vector.shape_cast %31 : vector<16x16x4xf32> to vector<256x4xf32>
    %33 = arith.truncf %32 : vector<256x4xf32> to vector<256x4xbf16>
    %c0_39 = arith.constant 0 : index
    %c24 = arith.constant 24 : index
    %34 = vector.load %arg11[%c0_39, %c24] : memref<256x36xbf16, #tpu.memory_space<vmem>>, vector<256x4xbf16>
    tpu.vector_store %arg11[%c0_39, %c24], %33 {strides = array<i32>} : memref<256x36xbf16, #tpu.memory_space<vmem>>, vector<256x4xbf16>,
    %c2_40 = arith.constant 2 : index
    %c1_41 = arith.constant 1 : index
    %c0_42 = arith.constant 0 : index
    %35 = vector.load %arg10[%c2_40, %c1_41, %c0_42] : memref<18x18x4xf32, #tpu.memory_space<vmem>>, vector<16x16x4xf32>
    %36 = vector.shape_cast %35 : vector<16x16x4xf32> to vector<256x4xf32>
    %37 = arith.truncf %36 : vector<256x4xf32> to vector<256x4xbf16>
    %c0_43 = arith.constant 0 : index
    %c28 = arith.constant 28 : index
    %38 = vector.load %arg11[%c0_43, %c28] : memref<256x36xbf16, #tpu.memory_space<vmem>>, vector<256x4xbf16>
    tpu.vector_store %arg11[%c0_43, %c28], %37 {strides = array<i32>} : memref<256x36xbf16, #tpu.memory_space<vmem>>, vector<256x4xbf16>,
    %c2_44 = arith.constant 2 : index
    %c2_45 = arith.constant 2 : index
    %c0_46 = arith.constant 0 : index
    %39 = vector.load %arg10[%c2_44, %c2_45, %c0_46] : memref<18x18x4xf32, #tpu.memory_space<vmem>>, vector<16x16x4xf32>
    %40 = vector.shape_cast %39 : vector<16x16x4xf32> to vector<256x4xf32>
    %41 = arith.truncf %40 : vector<256x4xf32> to vector<256x4xbf16>
    %c0_47 = arith.constant 0 : index
    %c32 = arith.constant 32 : index
    %42 = vector.load %arg11[%c0_47, %c32] : memref<256x36xbf16, #tpu.memory_space<vmem>>, vector<256x4xbf16>
    tpu.vector_store %arg11[%c0_47, %c32], %41 {strides = array<i32>} : memref<256x36xbf16, #tpu.memory_space<vmem>>, vector<256x4xbf16>,
    %c0_48 = arith.constant 0 : index
    %c0_49 = arith.constant 0 : index
    %43 = vector.load %arg11[%c0_48, %c0_49] : memref<256x36xbf16, #tpu.memory_space<vmem>>, vector<256x36xbf16>
    %c0_50 = arith.constant 0 : index
    %c0_51 = arith.constant 0 : index
    %44 = vector.load %arg2[%c0_50, %c0_51] : memref<36x8xbf16, #tpu.memory_space<vmem>>, vector<36x8xbf16>
    %cst_52 = arith.constant dense<0.000000e+00> : vector<256x8xf32>
    %45 = tpu.matmul %43, %44, %cst_52 {dimension_numbers = #tpu.dot_dimension_numbers<[1], [0], [0], [1], [0, 0, 1, 1], [], []>} : vector<256x36xbf16>, vector<36x8xbf16>, vector<256x8xf32> -> vector<256x8xf32>
    %c0_53 = arith.constant 0 : index
    %c0_54 = arith.constant 0 : index
    %46 = vector.load %arg3[%c0_53, %c0_54] : memref<1x8xf32, #tpu.memory_space<vmem>>, vector<1x8xf32>
    %47 = vector.broadcast %46 : vector<1x8xf32> to vector<256x8xf32>
    %48 = arith.addf %45, %47 : vector<256x8xf32>
    %cst_55 = arith.constant 0.000000e+00 : f32
    %49 = vector.broadcast %cst_55 : f32 to vector<256x8xf32>
    %50 = arith.maximumf %48, %49 : vector<256x8xf32>
    %51 = vector.shape_cast %50 : vector<256x8xf32> to vector<16x16x8xf32>
    %c1_56 = arith.constant 1 : index
    %c1_57 = arith.constant 1 : index
    %c0_58 = arith.constant 0 : index
    %52 = vector.load %arg12[%c1_56, %c1_57, %c0_58] : memref<18x18x8xf32, #tpu.memory_space<vmem>>, vector<16x16x8xf32>
    tpu.vector_store %arg12[%c1_56, %c1_57, %c0_58], %51 {strides = array<i32>} : memref<18x18x8xf32, #tpu.memory_space<vmem>>, vector<16x16x8xf32>,
    %c0_59 = arith.constant 0 : index
    %c0_60 = arith.constant 0 : index
    %c0_61 = arith.constant 0 : index
    %53 = vector.load %arg12[%c0_59, %c0_60, %c0_61] : memref<18x18x8xf32, #tpu.memory_space<vmem>>, vector<16x16x8xf32>
    %54 = vector.shape_cast %53 : vector<16x16x8xf32> to vector<256x8xf32>
    %55 = arith.truncf %54 : vector<256x8xf32> to vector<256x8xbf16>
    %c0_62 = arith.constant 0 : index
    %c0_63 = arith.constant 0 : index
    %56 = vector.load %arg13[%c0_62, %c0_63] : memref<256x72xbf16, #tpu.memory_space<vmem>>, vector<256x8xbf16>
    tpu.vector_store %arg13[%c0_62, %c0_63], %55 {strides = array<i32>} : memref<256x72xbf16, #tpu.memory_space<vmem>>, vector<256x8xbf16>,
    %c0_64 = arith.constant 0 : index
    %c1_65 = arith.constant 1 : index
    %c0_66 = arith.constant 0 : index
    %57 = vector.load %arg12[%c0_64, %c1_65, %c0_66] : memref<18x18x8xf32, #tpu.memory_space<vmem>>, vector<16x16x8xf32>
    %58 = vector.shape_cast %57 : vector<16x16x8xf32> to vector<256x8xf32>
    %59 = arith.truncf %58 : vector<256x8xf32> to vector<256x8xbf16>
    %c0_67 = arith.constant 0 : index
    %c8_68 = arith.constant 8 : index
    %60 = vector.load %arg13[%c0_67, %c8_68] : memref<256x72xbf16, #tpu.memory_space<vmem>>, vector<256x8xbf16>
    tpu.vector_store %arg13[%c0_67, %c8_68], %59 {strides = array<i32>} : memref<256x72xbf16, #tpu.memory_space<vmem>>, vector<256x8xbf16>,
    %c0_69 = arith.constant 0 : index
    %c2_70 = arith.constant 2 : index
    %c0_71 = arith.constant 0 : index
    %61 = vector.load %arg12[%c0_69, %c2_70, %c0_71] : memref<18x18x8xf32, #tpu.memory_space<vmem>>, vector<16x16x8xf32>
    %62 = vector.shape_cast %61 : vector<16x16x8xf32> to vector<256x8xf32>
    %63 = arith.truncf %62 : vector<256x8xf32> to vector<256x8xbf16>
    %c0_72 = arith.constant 0 : index
    %c16_73 = arith.constant 16 : index
    %64 = vector.load %arg13[%c0_72, %c16_73] : memref<256x72xbf16, #tpu.memory_space<vmem>>, vector<256x8xbf16>
    tpu.vector_store %arg13[%c0_72, %c16_73], %63 {strides = array<i32>} : memref<256x72xbf16, #tpu.memory_space<vmem>>, vector<256x8xbf16>,
    %c1_74 = arith.constant 1 : index
    %c0_75 = arith.constant 0 : index
    %c0_76 = arith.constant 0 : index
    %65 = vector.load %arg12[%c1_74, %c0_75, %c0_76] : memref<18x18x8xf32, #tpu.memory_space<vmem>>, vector<16x16x8xf32>
    %66 = vector.shape_cast %65 : vector<16x16x8xf32> to vector<256x8xf32>
    %67 = arith.truncf %66 : vector<256x8xf32> to vector<256x8xbf16>
    %c0_77 = arith.constant 0 : index
    %c24_78 = arith.constant 24 : index
    %68 = vector.load %arg13[%c0_77, %c24_78] : memref<256x72xbf16, #tpu.memory_space<vmem>>, vector<256x8xbf16>
    tpu.vector_store %arg13[%c0_77, %c24_78], %67 {strides = array<i32>} : memref<256x72xbf16, #tpu.memory_space<vmem>>, vector<256x8xbf16>,
    %c1_79 = arith.constant 1 : index
    %c1_80 = arith.constant 1 : index
    %c0_81 = arith.constant 0 : index
    %69 = vector.load %arg12[%c1_79, %c1_80, %c0_81] : memref<18x18x8xf32, #tpu.memory_space<vmem>>, vector<16x16x8xf32>
    %70 = vector.shape_cast %69 : vector<16x16x8xf32> to vector<256x8xf32>
    %71 = arith.truncf %70 : vector<256x8xf32> to vector<256x8xbf16>
    %c0_82 = arith.constant 0 : index
    %c32_83 = arith.constant 32 : index
    %72 = vector.load %arg13[%c0_82, %c32_83] : memref<256x72xbf16, #tpu.memory_space<vmem>>, vector<256x8xbf16>
    tpu.vector_store %arg13[%c0_82, %c32_83], %71 {strides = array<i32>} : memref<256x72xbf16, #tpu.memory_space<vmem>>, vector<256x8xbf16>,
    %c1_84 = arith.constant 1 : index
    %c2_85 = arith.constant 2 : index
    %c0_86 = arith.constant 0 : index
    %73 = vector.load %arg12[%c1_84, %c2_85, %c0_86] : memref<18x18x8xf32, #tpu.memory_space<vmem>>, vector<16x16x8xf32>
    %74 = vector.shape_cast %73 : vector<16x16x8xf32> to vector<256x8xf32>
    %75 = arith.truncf %74 : vector<256x8xf32> to vector<256x8xbf16>
    %c0_87 = arith.constant 0 : index
    %c40 = arith.constant 40 : index
    %76 = vector.load %arg13[%c0_87, %c40] : memref<256x72xbf16, #tpu.memory_space<vmem>>, vector<256x8xbf16>
    tpu.vector_store %arg13[%c0_87, %c40], %75 {strides = array<i32>} : memref<256x72xbf16, #tpu.memory_space<vmem>>, vector<256x8xbf16>,
    %c2_88 = arith.constant 2 : index
    %c0_89 = arith.constant 0 : index
    %c0_90 = arith.constant 0 : index
    %77 = vector.load %arg12[%c2_88, %c0_89, %c0_90] : memref<18x18x8xf32, #tpu.memory_space<vmem>>, vector<16x16x8xf32>
    %78 = vector.shape_cast %77 : vector<16x16x8xf32> to vector<256x8xf32>
    %79 = arith.truncf %78 : vector<256x8xf32> to vector<256x8xbf16>
    %c0_91 = arith.constant 0 : index
    %c48 = arith.constant 48 : index
    %80 = vector.load %arg13[%c0_91, %c48] : memref<256x72xbf16, #tpu.memory_space<vmem>>, vector<256x8xbf16>
    tpu.vector_store %arg13[%c0_91, %c48], %79 {strides = array<i32>} : memref<256x72xbf16, #tpu.memory_space<vmem>>, vector<256x8xbf16>,
    %c2_92 = arith.constant 2 : index
    %c1_93 = arith.constant 1 : index
    %c0_94 = arith.constant 0 : index
    %81 = vector.load %arg12[%c2_92, %c1_93, %c0_94] : memref<18x18x8xf32, #tpu.memory_space<vmem>>, vector<16x16x8xf32>
    %82 = vector.shape_cast %81 : vector<16x16x8xf32> to vector<256x8xf32>
    %83 = arith.truncf %82 : vector<256x8xf32> to vector<256x8xbf16>
    %c0_95 = arith.constant 0 : index
    %c56 = arith.constant 56 : index
    %84 = vector.load %arg13[%c0_95, %c56] : memref<256x72xbf16, #tpu.memory_space<vmem>>, vector<256x8xbf16>
    tpu.vector_store %arg13[%c0_95, %c56], %83 {strides = array<i32>} : memref<256x72xbf16, #tpu.memory_space<vmem>>, vector<256x8xbf16>,
    %c2_96 = arith.constant 2 : index
    %c2_97 = arith.constant 2 : index
    %c0_98 = arith.constant 0 : index
    %85 = vector.load %arg12[%c2_96, %c2_97, %c0_98] : memref<18x18x8xf32, #tpu.memory_space<vmem>>, vector<16x16x8xf32>
    %86 = vector.shape_cast %85 : vector<16x16x8xf32> to vector<256x8xf32>
    %87 = arith.truncf %86 : vector<256x8xf32> to vector<256x8xbf16>
    %c0_99 = arith.constant 0 : index
    %c64 = arith.constant 64 : index
    %88 = vector.load %arg13[%c0_99, %c64] : memref<256x72xbf16, #tpu.memory_space<vmem>>, vector<256x8xbf16>
    tpu.vector_store %arg13[%c0_99, %c64], %87 {strides = array<i32>} : memref<256x72xbf16, #tpu.memory_space<vmem>>, vector<256x8xbf16>,
    %c0_100 = arith.constant 0 : index
    %c0_101 = arith.constant 0 : index
    %89 = vector.load %arg13[%c0_100, %c0_101] : memref<256x72xbf16, #tpu.memory_space<vmem>>, vector<256x72xbf16>
    %c0_102 = arith.constant 0 : index
    %c0_103 = arith.constant 0 : index
    %90 = vector.load %arg4[%c0_102, %c0_103] : memref<72x8xbf16, #tpu.memory_space<vmem>>, vector<72x8xbf16>
    %cst_104 = arith.constant dense<0.000000e+00> : vector<256x8xf32>
    %91 = tpu.matmul %89, %90, %cst_104 {dimension_numbers = #tpu.dot_dimension_numbers<[1], [0], [0], [1], [0, 0, 1, 1], [], []>} : vector<256x72xbf16>, vector<72x8xbf16>, vector<256x8xf32> -> vector<256x8xf32>
    %c0_105 = arith.constant 0 : index
    %c0_106 = arith.constant 0 : index
    %92 = vector.load %arg5[%c0_105, %c0_106] : memref<1x8xf32, #tpu.memory_space<vmem>>, vector<1x8xf32>
    %93 = vector.broadcast %92 : vector<1x8xf32> to vector<256x8xf32>
    %94 = arith.mulf %91, %93 : vector<256x8xf32>
    %c0_107 = arith.constant 0 : index
    %c0_108 = arith.constant 0 : index
    %95 = vector.load %arg6[%c0_107, %c0_108] : memref<1x8xf32, #tpu.memory_space<vmem>>, vector<1x8xf32>
    %96 = vector.broadcast %95 : vector<1x8xf32> to vector<256x8xf32>
    %97 = arith.addf %94, %96 : vector<256x8xf32>
    %cst_109 = arith.constant 0.000000e+00 : f32
    %98 = vector.broadcast %cst_109 : f32 to vector<256x8xf32>
    %99 = arith.maximumf %97, %98 : vector<256x8xf32>
    %100 = vector.shape_cast %99 : vector<256x8xf32> to vector<16x16x8xf32>
    %c1_110 = arith.constant 1 : index
    %c1_111 = arith.constant 1 : index
    %c0_112 = arith.constant 0 : index
    %101 = vector.load %arg12[%c1_110, %c1_111, %c0_112] : memref<18x18x8xf32, #tpu.memory_space<vmem>>, vector<16x16x8xf32>
    tpu.vector_store %arg12[%c1_110, %c1_111, %c0_112], %100 {strides = array<i32>} : memref<18x18x8xf32, #tpu.memory_space<vmem>>, vector<16x16x8xf32>,
    %c0_113 = arith.constant 0 : index
    %c0_114 = arith.constant 0 : index
    %c0_115 = arith.constant 0 : index
    %102 = vector.load %arg12[%c0_113, %c0_114, %c0_115] : memref<18x18x8xf32, #tpu.memory_space<vmem>>, vector<16x16x8xf32>
    %103 = vector.shape_cast %102 : vector<16x16x8xf32> to vector<256x8xf32>
    %104 = arith.truncf %103 : vector<256x8xf32> to vector<256x8xbf16>
    %c0_116 = arith.constant 0 : index
    %c0_117 = arith.constant 0 : index
    %105 = vector.load %arg13[%c0_116, %c0_117] : memref<256x72xbf16, #tpu.memory_space<vmem>>, vector<256x8xbf16>
    tpu.vector_store %arg13[%c0_116, %c0_117], %104 {strides = array<i32>} : memref<256x72xbf16, #tpu.memory_space<vmem>>, vector<256x8xbf16>,
    %c0_118 = arith.constant 0 : index
    %c1_119 = arith.constant 1 : index
    %c0_120 = arith.constant 0 : index
    %106 = vector.load %arg12[%c0_118, %c1_119, %c0_120] : memref<18x18x8xf32, #tpu.memory_space<vmem>>, vector<16x16x8xf32>
    %107 = vector.shape_cast %106 : vector<16x16x8xf32> to vector<256x8xf32>
    %108 = arith.truncf %107 : vector<256x8xf32> to vector<256x8xbf16>
    %c0_121 = arith.constant 0 : index
    %c8_122 = arith.constant 8 : index
    %109 = vector.load %arg13[%c0_121, %c8_122] : memref<256x72xbf16, #tpu.memory_space<vmem>>, vector<256x8xbf16>
    tpu.vector_store %arg13[%c0_121, %c8_122], %108 {strides = array<i32>} : memref<256x72xbf16, #tpu.memory_space<vmem>>, vector<256x8xbf16>,
    %c0_123 = arith.constant 0 : index
    %c2_124 = arith.constant 2 : index
    %c0_125 = arith.constant 0 : index
    %110 = vector.load %arg12[%c0_123, %c2_124, %c0_125] : memref<18x18x8xf32, #tpu.memory_space<vmem>>, vector<16x16x8xf32>
    %111 = vector.shape_cast %110 : vector<16x16x8xf32> to vector<256x8xf32>
    %112 = arith.truncf %111 : vector<256x8xf32> to vector<256x8xbf16>
    %c0_126 = arith.constant 0 : index
    %c16_127 = arith.constant 16 : index
    %113 = vector.load %arg13[%c0_126, %c16_127] : memref<256x72xbf16, #tpu.memory_space<vmem>>, vector<256x8xbf16>
    tpu.vector_store %arg13[%c0_126, %c16_127], %112 {strides = array<i32>} : memref<256x72xbf16, #tpu.memory_space<vmem>>, vector<256x8xbf16>,
    %c1_128 = arith.constant 1 : index
    %c0_129 = arith.constant 0 : index
    %c0_130 = arith.constant 0 : index
    %114 = vector.load %arg12[%c1_128, %c0_129, %c0_130] : memref<18x18x8xf32, #tpu.memory_space<vmem>>, vector<16x16x8xf32>
    %115 = vector.shape_cast %114 : vector<16x16x8xf32> to vector<256x8xf32>
    %116 = arith.truncf %115 : vector<256x8xf32> to vector<256x8xbf16>
    %c0_131 = arith.constant 0 : index
    %c24_132 = arith.constant 24 : index
    %117 = vector.load %arg13[%c0_131, %c24_132] : memref<256x72xbf16, #tpu.memory_space<vmem>>, vector<256x8xbf16>
    tpu.vector_store %arg13[%c0_131, %c24_132], %116 {strides = array<i32>} : memref<256x72xbf16, #tpu.memory_space<vmem>>, vector<256x8xbf16>,
    %c1_133 = arith.constant 1 : index
    %c1_134 = arith.constant 1 : index
    %c0_135 = arith.constant 0 : index
    %118 = vector.load %arg12[%c1_133, %c1_134, %c0_135] : memref<18x18x8xf32, #tpu.memory_space<vmem>>, vector<16x16x8xf32>
    %119 = vector.shape_cast %118 : vector<16x16x8xf32> to vector<256x8xf32>
    %120 = arith.truncf %119 : vector<256x8xf32> to vector<256x8xbf16>
    %c0_136 = arith.constant 0 : index
    %c32_137 = arith.constant 32 : index
    %121 = vector.load %arg13[%c0_136, %c32_137] : memref<256x72xbf16, #tpu.memory_space<vmem>>, vector<256x8xbf16>
    tpu.vector_store %arg13[%c0_136, %c32_137], %120 {strides = array<i32>} : memref<256x72xbf16, #tpu.memory_space<vmem>>, vector<256x8xbf16>,
    %c1_138 = arith.constant 1 : index
    %c2_139 = arith.constant 2 : index
    %c0_140 = arith.constant 0 : index
    %122 = vector.load %arg12[%c1_138, %c2_139, %c0_140] : memref<18x18x8xf32, #tpu.memory_space<vmem>>, vector<16x16x8xf32>
    %123 = vector.shape_cast %122 : vector<16x16x8xf32> to vector<256x8xf32>
    %124 = arith.truncf %123 : vector<256x8xf32> to vector<256x8xbf16>
    %c0_141 = arith.constant 0 : index
    %c40_142 = arith.constant 40 : index
    %125 = vector.load %arg13[%c0_141, %c40_142] : memref<256x72xbf16, #tpu.memory_space<vmem>>, vector<256x8xbf16>
    tpu.vector_store %arg13[%c0_141, %c40_142], %124 {strides = array<i32>} : memref<256x72xbf16, #tpu.memory_space<vmem>>, vector<256x8xbf16>,
    %c2_143 = arith.constant 2 : index
    %c0_144 = arith.constant 0 : index
    %c0_145 = arith.constant 0 : index
    %126 = vector.load %arg12[%c2_143, %c0_144, %c0_145] : memref<18x18x8xf32, #tpu.memory_space<vmem>>, vector<16x16x8xf32>
    %127 = vector.shape_cast %126 : vector<16x16x8xf32> to vector<256x8xf32>
    %128 = arith.truncf %127 : vector<256x8xf32> to vector<256x8xbf16>
    %c0_146 = arith.constant 0 : index
    %c48_147 = arith.constant 48 : index
    %129 = vector.load %arg13[%c0_146, %c48_147] : memref<256x72xbf16, #tpu.memory_space<vmem>>, vector<256x8xbf16>
    tpu.vector_store %arg13[%c0_146, %c48_147], %128 {strides = array<i32>} : memref<256x72xbf16, #tpu.memory_space<vmem>>, vector<256x8xbf16>,
    %c2_148 = arith.constant 2 : index
    %c1_149 = arith.constant 1 : index
    %c0_150 = arith.constant 0 : index
    %130 = vector.load %arg12[%c2_148, %c1_149, %c0_150] : memref<18x18x8xf32, #tpu.memory_space<vmem>>, vector<16x16x8xf32>
    %131 = vector.shape_cast %130 : vector<16x16x8xf32> to vector<256x8xf32>
    %132 = arith.truncf %131 : vector<256x8xf32> to vector<256x8xbf16>
    %c0_151 = arith.constant 0 : index
    %c56_152 = arith.constant 56 : index
    %133 = vector.load %arg13[%c0_151, %c56_152] : memref<256x72xbf16, #tpu.memory_space<vmem>>, vector<256x8xbf16>
    tpu.vector_store %arg13[%c0_151, %c56_152], %132 {strides = array<i32>} : memref<256x72xbf16, #tpu.memory_space<vmem>>, vector<256x8xbf16>,
    %c2_153 = arith.constant 2 : index
    %c2_154 = arith.constant 2 : index
    %c0_155 = arith.constant 0 : index
    %134 = vector.load %arg12[%c2_153, %c2_154, %c0_155] : memref<18x18x8xf32, #tpu.memory_space<vmem>>, vector<16x16x8xf32>
    %135 = vector.shape_cast %134 : vector<16x16x8xf32> to vector<256x8xf32>
    %136 = arith.truncf %135 : vector<256x8xf32> to vector<256x8xbf16>
    %c0_156 = arith.constant 0 : index
    %c64_157 = arith.constant 64 : index
    %137 = vector.load %arg13[%c0_156, %c64_157] : memref<256x72xbf16, #tpu.memory_space<vmem>>, vector<256x8xbf16>
    tpu.vector_store %arg13[%c0_156, %c64_157], %136 {strides = array<i32>} : memref<256x72xbf16, #tpu.memory_space<vmem>>, vector<256x8xbf16>,
    %c0_158 = arith.constant 0 : index
    %c0_159 = arith.constant 0 : index
    %138 = vector.load %arg13[%c0_158, %c0_159] : memref<256x72xbf16, #tpu.memory_space<vmem>>, vector<256x72xbf16>
    %c0_160 = arith.constant 0 : index
    %c0_161 = arith.constant 0 : index
    %139 = vector.load %arg4[%c0_160, %c0_161] : memref<72x8xbf16, #tpu.memory_space<vmem>>, vector<72x8xbf16>
    %cst_162 = arith.constant dense<0.000000e+00> : vector<256x8xf32>
    %140 = tpu.matmul %138, %139, %cst_162 {dimension_numbers = #tpu.dot_dimension_numbers<[1], [0], [0], [1], [0, 0, 1, 1], [], []>} : vector<256x72xbf16>, vector<72x8xbf16>, vector<256x8xf32> -> vector<256x8xf32>
    %c0_163 = arith.constant 0 : index
    %c0_164 = arith.constant 0 : index
    %141 = vector.load %arg7[%c0_163, %c0_164] : memref<1x8xf32, #tpu.memory_space<vmem>>, vector<1x8xf32>
    %142 = vector.broadcast %141 : vector<1x8xf32> to vector<256x8xf32>
    %143 = arith.mulf %140, %142 : vector<256x8xf32>
    %c0_165 = arith.constant 0 : index
    %c0_166 = arith.constant 0 : index
    %144 = vector.load %arg8[%c0_165, %c0_166] : memref<1x8xf32, #tpu.memory_space<vmem>>, vector<1x8xf32>
    %145 = vector.broadcast %144 : vector<1x8xf32> to vector<256x8xf32>
    %146 = arith.addf %143, %145 : vector<256x8xf32>
    %147 = arith.addf %146, %50 : vector<256x8xf32>
    %cst_167 = arith.constant 0.000000e+00 : f32
    %148 = vector.broadcast %cst_167 : f32 to vector<256x8xf32>
    %149 = arith.maximumf %147, %148 : vector<256x8xf32>
    %150 = vector.shape_cast %149 : vector<256x8xf32> to vector<16x16x8xf32>
    %151 = vector.extract_strided_slice %150 {offsets = [0, 0, 0], sizes = [16, 1, 8], strides = [1, 1, 1]} : vector<16x16x8xf32> to vector<16x1x8xf32>
    %152 = vector.shape_cast %151 : vector<16x1x8xf32> to vector<16x8xf32>
    %153 = vector.extract_strided_slice %150 {offsets = [0, 1, 0], sizes = [16, 1, 8], strides = [1, 1, 1]} : vector<16x16x8xf32> to vector<16x1x8xf32>
    %154 = vector.shape_cast %153 : vector<16x1x8xf32> to vector<16x8xf32>
    %155 = vector.extract_strided_slice %150 {offsets = [0, 2, 0], sizes = [16, 1, 8], strides = [1, 1, 1]} : vector<16x16x8xf32> to vector<16x1x8xf32>
    %156 = vector.shape_cast %155 : vector<16x1x8xf32> to vector<16x8xf32>
    %157 = vector.extract_strided_slice %150 {offsets = [0, 3, 0], sizes = [16, 1, 8], strides = [1, 1, 1]} : vector<16x16x8xf32> to vector<16x1x8xf32>
    %158 = vector.shape_cast %157 : vector<16x1x8xf32> to vector<16x8xf32>
    %159 = vector.extract_strided_slice %150 {offsets = [0, 4, 0], sizes = [16, 1, 8], strides = [1, 1, 1]} : vector<16x16x8xf32> to vector<16x1x8xf32>
    %160 = vector.shape_cast %159 : vector<16x1x8xf32> to vector<16x8xf32>
    %161 = vector.extract_strided_slice %150 {offsets = [0, 5, 0], sizes = [16, 1, 8], strides = [1, 1, 1]} : vector<16x16x8xf32> to vector<16x1x8xf32>
    %162 = vector.shape_cast %161 : vector<16x1x8xf32> to vector<16x8xf32>
    %163 = vector.extract_strided_slice %150 {offsets = [0, 6, 0], sizes = [16, 1, 8], strides = [1, 1, 1]} : vector<16x16x8xf32> to vector<16x1x8xf32>
    %164 = vector.shape_cast %163 : vector<16x1x8xf32> to vector<16x8xf32>
    %165 = vector.extract_strided_slice %150 {offsets = [0, 7, 0], sizes = [16, 1, 8], strides = [1, 1, 1]} : vector<16x16x8xf32> to vector<16x1x8xf32>
    %166 = vector.shape_cast %165 : vector<16x1x8xf32> to vector<16x8xf32>
    %167 = vector.extract_strided_slice %150 {offsets = [0, 8, 0], sizes = [16, 1, 8], strides = [1, 1, 1]} : vector<16x16x8xf32> to vector<16x1x8xf32>
    %168 = vector.shape_cast %167 : vector<16x1x8xf32> to vector<16x8xf32>
    %169 = vector.extract_strided_slice %150 {offsets = [0, 9, 0], sizes = [16, 1, 8], strides = [1, 1, 1]} : vector<16x16x8xf32> to vector<16x1x8xf32>
    %170 = vector.shape_cast %169 : vector<16x1x8xf32> to vector<16x8xf32>
    %171 = vector.extract_strided_slice %150 {offsets = [0, 10, 0], sizes = [16, 1, 8], strides = [1, 1, 1]} : vector<16x16x8xf32> to vector<16x1x8xf32>
    %172 = vector.shape_cast %171 : vector<16x1x8xf32> to vector<16x8xf32>
    %173 = vector.extract_strided_slice %150 {offsets = [0, 11, 0], sizes = [16, 1, 8], strides = [1, 1, 1]} : vector<16x16x8xf32> to vector<16x1x8xf32>
    %174 = vector.shape_cast %173 : vector<16x1x8xf32> to vector<16x8xf32>
    %175 = vector.extract_strided_slice %150 {offsets = [0, 12, 0], sizes = [16, 1, 8], strides = [1, 1, 1]} : vector<16x16x8xf32> to vector<16x1x8xf32>
    %176 = vector.shape_cast %175 : vector<16x1x8xf32> to vector<16x8xf32>
    %177 = vector.extract_strided_slice %150 {offsets = [0, 13, 0], sizes = [16, 1, 8], strides = [1, 1, 1]} : vector<16x16x8xf32> to vector<16x1x8xf32>
    %178 = vector.shape_cast %177 : vector<16x1x8xf32> to vector<16x8xf32>
    %179 = vector.extract_strided_slice %150 {offsets = [0, 14, 0], sizes = [16, 1, 8], strides = [1, 1, 1]} : vector<16x16x8xf32> to vector<16x1x8xf32>
    %180 = vector.shape_cast %179 : vector<16x1x8xf32> to vector<16x8xf32>
    %181 = vector.extract_strided_slice %150 {offsets = [0, 15, 0], sizes = [16, 1, 8], strides = [1, 1, 1]} : vector<16x16x8xf32> to vector<16x1x8xf32>
    %182 = vector.shape_cast %181 : vector<16x1x8xf32> to vector<16x8xf32>
    %183 = tpu.concatenate %152, %154, %156, %158, %160, %162, %164, %166, %168, %170, %172, %174, %176, %178, %180, %182 in 1 : vector<16x8xf32>, vector<16x8xf32>, vector<16x8xf32>, vector<16x8xf32>, vector<16x8xf32>, vector<16x8xf32>, vector<16x8xf32>, vector<16x8xf32>, vector<16x8xf32>, vector<16x8xf32>, vector<16x8xf32>, vector<16x8xf32>, vector<16x8xf32>, vector<16x8xf32>, vector<16x8xf32>, vector<16x8xf32> -> vector<16x128xf32>
    %c0_168 = arith.constant 0 : index
    %c0_169 = arith.constant 0 : index
    %c0_170 = arith.constant 0 : index
    %184 = vector.load %arg9[%c0_168, %c0_169, %c0_170] : memref<1x16x128xf32, #tpu.memory_space<vmem>>, vector<1x16x128xf32>
    %185 = vector.shape_cast %184 : vector<1x16x128xf32> to vector<16x128xf32>
    %186 = vector.shape_cast %183 : vector<16x128xf32> to vector<1x16x128xf32>
    tpu.vector_store %arg9[%c0_168, %c0_169, %c0_170], %186 {strides = array<i32>} : memref<1x16x128xf32, #tpu.memory_space<vmem>>, vector<1x16x128xf32>,
    return
  }
  func.func @transform_0(%arg0: i32) -> (i32, i32, i32, i32) {
    %c0_i32 = arith.constant 0 : i32
    %c0_i32_0 = arith.constant 0 : i32
    %c0_i32_1 = arith.constant 0 : i32
    %c0_i32_2 = arith.constant 0 : i32
    return %arg0, %c0_i32, %c0_i32_0, %c0_i32_1 : i32, i32, i32, i32
  }
  func.func @transform_1(%arg0: i32) -> (i32, i32) {
    %c0_i32 = arith.constant 0 : i32
    %c0_i32_0 = arith.constant 0 : i32
    %c0_i32_1 = arith.constant 0 : i32
    return %c0_i32, %c0_i32_0 : i32, i32
  }
  func.func @transform_2(%arg0: i32) -> (i32, i32) {
    %c0_i32 = arith.constant 0 : i32
    %c0_i32_0 = arith.constant 0 : i32
    %c0_i32_1 = arith.constant 0 : i32
    return %c0_i32, %c0_i32_0 : i32, i32
  }
  func.func @transform_3(%arg0: i32) -> (i32, i32) {
    %c0_i32 = arith.constant 0 : i32
    %c0_i32_0 = arith.constant 0 : i32
    %c0_i32_1 = arith.constant 0 : i32
    return %c0_i32, %c0_i32_0 : i32, i32
  }
  func.func @transform_4(%arg0: i32) -> (i32, i32) {
    %c0_i32 = arith.constant 0 : i32
    %c0_i32_0 = arith.constant 0 : i32
    %c0_i32_1 = arith.constant 0 : i32
    return %c0_i32, %c0_i32_0 : i32, i32
  }
  func.func @transform_5(%arg0: i32) -> (i32, i32) {
    %c0_i32 = arith.constant 0 : i32
    %c0_i32_0 = arith.constant 0 : i32
    %c0_i32_1 = arith.constant 0 : i32
    return %c0_i32, %c0_i32_0 : i32, i32
  }
  func.func @transform_6(%arg0: i32) -> (i32, i32) {
    %c0_i32 = arith.constant 0 : i32
    %c0_i32_0 = arith.constant 0 : i32
    %c0_i32_1 = arith.constant 0 : i32
    return %c0_i32, %c0_i32_0 : i32, i32
  }
  func.func @transform_7(%arg0: i32) -> (i32, i32) {
    %c0_i32 = arith.constant 0 : i32
    %c0_i32_0 = arith.constant 0 : i32
    %c0_i32_1 = arith.constant 0 : i32
    return %c0_i32, %c0_i32_0 : i32, i32
  }
  func.func @transform_8(%arg0: i32) -> (i32, i32, i32) {
    %c0_i32 = arith.constant 0 : i32
    %c0_i32_0 = arith.constant 0 : i32
    %c0_i32_1 = arith.constant 0 : i32
    return %arg0, %c0_i32, %c0_i32_0 : i32, i32, i32
  }
}

</mosaic_0001>

<llo_original>
// kernel: tpu_custom_call.1
$region0: #{tpu_custom_call.1}
  #allocation0 [shape = 'u32[]', space=smem, size = 0x4, offset = 0x4, fixed_abs, tag = 'smem constant byte address 0x4 - core index']
  #allocation1 [shape = 'u32[72,128]{1,0:T(1,128)}', space=vmem, size = 0x9000, scoped, tag = 'internal scratch']
  #allocation2 [shape = 'f32[18,18,4]{2,1,0:T(8,128)}', space=vmem, size = 0x36000, scoped, tag = 'scratch operand']
  #allocation3 [shape = 'bf16[256,36]{1,0:T(8,128)(2,1)}', space=vmem, size = 0x10000, scoped, tag = 'scratch operand']
  #allocation4 [shape = 'f32[18,18,8]{2,1,0:T(8,128)}', space=vmem, size = 0x36000, scoped, tag = 'scratch operand']
  #allocation5 [shape = 'bf16[256,72]{1,0:T(8,128)(2,1)}', space=vmem, size = 0x10000, scoped, tag = 'scratch operand']
  %s0 = inlined_call_operand.vmem [shape: f32[2,16,16,4], index: 0, kind: input, shape index: {}]
  %s1 = inlined_call_operand.vmem [shape: bf16[36,8], index: 1, kind: input, shape index: {}]
  %s2 = inlined_call_operand.vmem [shape: f32[1,8], index: 2, kind: input, shape index: {}]
  %s3 = inlined_call_operand.vmem [shape: bf16[72,8], index: 3, kind: input, shape index: {}]
  %s4 = inlined_call_operand.vmem [shape: f32[1,8], index: 4, kind: input, shape index: {}]
  %s5 = inlined_call_operand.vmem [shape: f32[1,8], index: 5, kind: input, shape index: {}]
  %s6 = inlined_call_operand.vmem [shape: f32[1,8], index: 6, kind: input, shape index: {}]
  %s7 = inlined_call_operand.vmem [shape: f32[1,8], index: 7, kind: input, shape index: {}]
  %s8 = inlined_call_operand.hbm [shape: f32[2,16,128], index: 8, kind: output, shape index: {}]
  %s9 = sld [smem:[#allocation0]]
  $region65: #{tpu_custom_call.1} parent=0
    _
  %s11 = ssub.s32 1, %s9
  %s12 = scalar_select 0, %s11, %s9
  $region1: #{tpu_custom_call.1} parent=0
    #allocation6 [shape = 'u8[16384]{0}', space=vmem, size = 0x4000, scoped, tag = 'output window, operand 0']
    #allocation7 [shape = 's32[2]{0}', space=sflag, size = 0x8, scoped, tag = 'scoped memory for tpu_custom_call.1']
    %13 = vsyncpa [#allocation7], 0
    %s14 = scalar_lea.sflag [#allocation7], 1
    %15 = vsyncpa %s14, 0
    loop: start=0, step=1, limit=4
    $region2: #{tpu_custom_call.1} parent=1 // loop_pre_header
      _
    $region3: #{tpu_custom_call.1} parent=1 // loop_header
      %s17 = sphi 0, %s21
      %p18 = scmp.ge.s32.totalorder %s17, 4
      %s27 = sphi 0, %s29
      %s30 = sphi 0, %s27
      %s31 = sphi 0, %s30
      %s47 = sphi 0, %s31
      %s51 = sphi 0, %s51
      %s53 = sphi 0, %s51
      %s54 = sphi 0, %s53
      %s68 = sphi 0, %s54
      %s72 = sphi 0, %s72
      %s74 = sphi 0, %s72
      %s75 = sphi 0, %s74
      %s89 = sphi 0, %s75
      %s93 = sphi 0, %s93
      %s95 = sphi 0, %s93
      %s96 = sphi 0, %s95
      %s110 = sphi 0, %s96
      %s114 = sphi 0, %s114
      %s116 = sphi 0, %s114
      %s117 = sphi 0, %s116
      %s131 = sphi 0, %s117
      %s135 = sphi 0, %s135
      %s137 = sphi 0, %s135
      %s138 = sphi 0, %s137
      %s152 = sphi 0, %s138
      %s156 = sphi 0, %s156
      %s158 = sphi 0, %s156
      %s159 = sphi 0, %s158
      %s173 = sphi 0, %s159
      %s177 = sphi 0, %s177
      %s179 = sphi 0, %s177
      %s180 = sphi 0, %s179
      %s194 = sphi 0, %s180
      %s200 = sphi 0, %s202
      %s203 = sphi 0, %s200
      %s204 = sphi 0, %s203
      %s220 = sphi 0, %s204
    $region4: #{tpu_custom_call.1} parent=1 // loop_header_branch
      %20 = sbr.rel (%p18) target = $region8
    $region5: #{tpu_custom_call.1} parent=1 // loop_body
      %s22 = ssub.s32 %s17, 1
      %s23 = ssub.s32 %s17, 2
      %s24 = sadd.s32 %s17, 1
      %s25 = ssub.s32 %s17, %s24
      %p26 = scmp.eq.s32.totalorder %s25, 0
      %s28 = sadd.s32 %s27, 1
      %s29 = scalar_select %p26, %s27, %s28
      %p32 = pneg %p26
      %p33 = scmp.eq.s32.totalorder %s17, 1
      %p34 = por %p32, %p33
      %p35 = scmp.ne.s32.totalorder %s27, %s30
      %p36 = scmp.eq.s32.totalorder %s17, 0
      %p37 = por %p35, %p36
      %p38 = scmp.ne.s32.totalorder %s27, %s30
      %p39 = scmp.eq.s32.totalorder %s22, 1
      %p40 = por %p38, %p39
      %p41 = scmp.ne.s32.totalorder %s30, %s31
      %p42 = scmp.eq.s32.totalorder %s22, 0
      %p43 = por %p41, %p42
      %p44 = scmp.ne.s32.totalorder %s30, %s31
      %p45 = scmp.eq.s32.totalorder %s23, 1
      %p46 = por %p44, %p45
      %p48 = scmp.ne.s32.totalorder %s31, %s47
      %p49 = scmp.eq.s32.totalorder %s23, 0
      %p50 = por %p48, %p49
      %s52 = sadd.s32 %s51, 1
      %p55 = scmp.eq.s32.totalorder %s17, 1
      %p56 = scmp.ne.s32.totalorder %s51, %s53
      %p57 = scmp.eq.s32.totalorder %s17, 0
      %p58 = por %p56, %p57
      %p59 = scmp.ne.s32.totalorder %s51, %s53
      %p60 = scmp.eq.s32.totalorder %s22, 1
      %p61 = por %p59, %p60
      %p62 = scmp.ne.s32.totalorder %s53, %s54
      %p63 = scmp.eq.s32.totalorder %s22, 0
      %p64 = por %p62, %p63
      %p65 = scmp.ne.s32.totalorder %s53, %s54
      %p66 = scmp.eq.s32.totalorder %s23, 1
      %p67 = por %p65, %p66
      %p69 = scmp.ne.s32.totalorder %s54, %s68
      %p70 = scmp.eq.s32.totalorder %s23, 0
      %p71 = por %p69, %p70
      %s73 = sadd.s32 %s72, 1
      %p76 = scmp.eq.s32.totalorder %s17, 1
      %p77 = scmp.ne.s32.totalorder %s72, %s74
      %p78 = scmp.eq.s32.totalorder %s17, 0
      %p79 = por %p77, %p78
      %p80 = scmp.ne.s32.totalorder %s72, %s74
      %p81 = scmp.eq.s32.totalorder %s22, 1
      %p82 = por %p80, %p81
      %p83 = scmp.ne.s32.totalorder %s74, %s75
      %p84 = scmp.eq.s32.totalorder %s22, 0
      %p85 = por %p83, %p84
      %p86 = scmp.ne.s32.totalorder %s74, %s75
      %p87 = scmp.eq.s32.totalorder %s23, 1
      %p88 = por %p86, %p87
      %p90 = scmp.ne.s32.totalorder %s75, %s89
      %p91 = scmp.eq.s32.totalorder %s23, 0
      %p92 = por %p90, %p91
      %s94 = sadd.s32 %s93, 1
      %p97 = scmp.eq.s32.totalorder %s17, 1
      %p98 = scmp.ne.s32.totalorder %s93, %s95
      %p99 = scmp.eq.s32.totalorder %s17, 0
      %p100 = por %p98, %p99
      %p101 = scmp.ne.s32.totalorder %s93, %s95
      %p102 = scmp.eq.s32.totalorder %s22, 1
      %p103 = por %p101, %p102
      %p104 = scmp.ne.s32.totalorder %s95, %s96
      %p105 = scmp.eq.s32.totalorder %s22, 0
      %p106 = por %p104, %p105
      %p107 = scmp.ne.s32.totalorder %s95, %s96
      %p108 = scmp.eq.s32.totalorder %s23, 1
      %p109 = por %p107, %p108
      %p111 = scmp.ne.s32.totalorder %s96, %s110
      %p112 = scmp.eq.s32.totalorder %s23, 0
      %p113 = por %p111, %p112
      %s115 = sadd.s32 %s114, 1
      %p118 = scmp.eq.s32.totalorder %s17, 1
      %p119 = scmp.ne.s32.totalorder %s114, %s116
      %p120 = scmp.eq.s32.totalorder %s17, 0
      %p121 = por %p119, %p120
      %p122 = scmp.ne.s32.totalorder %s114, %s116
      %p123 = scmp.eq.s32.totalorder %s22, 1
      %p124 = por %p122, %p123
      %p125 = scmp.ne.s32.totalorder %s116, %s117
      %p126 = scmp.eq.s32.totalorder %s22, 0
      %p127 = por %p125, %p126
      %p128 = scmp.ne.s32.totalorder %s116, %s117
      %p129 = scmp.eq.s32.totalorder %s23, 1
      %p130 = por %p128, %p129
      %p132 = scmp.ne.s32.totalorder %s117, %s131
      %p133 = scmp.eq.s32.totalorder %s23, 0
      %p134 = por %p132, %p133
      %s136 = sadd.s32 %s135, 1
      %p139 = scmp.eq.s32.totalorder %s17, 1
      %p140 = scmp.ne.s32.totalorder %s135, %s137
      %p141 = scmp.eq.s32.totalorder %s17, 0
      %p142 = por %p140, %p141
      %p143 = scmp.ne.s32.totalorder %s135, %s137
      %p144 = scmp.eq.s32.totalorder %s22, 1
      %p145 = por %p143, %p144
      %p146 = scmp.ne.s32.totalorder %s137, %s138
      %p147 = scmp.eq.s32.totalorder %s22, 0
      %p148 = por %p146, %p147
      %p149 = scmp.ne.s32.totalorder %s137, %s138
      %p150 = scmp.eq.s32.totalorder %s23, 1
      %p151 = por %p149, %p150
      %p153 = scmp.ne.s32.totalorder %s138, %s152
      %p154 = scmp.eq.s32.totalorder %s23, 0
      %p155 = por %p153, %p154
      %s157 = sadd.s32 %s156, 1
      %p160 = scmp.eq.s32.totalorder %s17, 1
      %p161 = scmp.ne.s32.totalorder %s156, %s158
      %p162 = scmp.eq.s32.totalorder %s17, 0
      %p163 = por %p161, %p162
      %p164 = scmp.ne.s32.totalorder %s156, %s158
      %p165 = scmp.eq.s32.totalorder %s22, 1
      %p166 = por %p164, %p165
      %p167 = scmp.ne.s32.totalorder %s158, %s159
      %p168 = scmp.eq.s32.totalorder %s22, 0
      %p169 = por %p167, %p168
      %p170 = scmp.ne.s32.totalorder %s158, %s159
      %p171 = scmp.eq.s32.totalorder %s23, 1
      %p172 = por %p170, %p171
      %p174 = scmp.ne.s32.totalorder %s159, %s173
      %p175 = scmp.eq.s32.totalorder %s23, 0
      %p176 = por %p174, %p175
      %s178 = sadd.s32 %s177, 1
      %p181 = scmp.eq.s32.totalorder %s17, 1
      %p182 = scmp.ne.s32.totalorder %s177, %s179
      %p183 = scmp.eq.s32.totalorder %s17, 0
      %p184 = por %p182, %p183
      %p185 = scmp.ne.s32.totalorder %s177, %s179
      %p186 = scmp.eq.s32.totalorder %s22, 1
      %p187 = por %p185, %p186
      %p188 = scmp.ne.s32.totalorder %s179, %s180
      %p189 = scmp.eq.s32.totalorder %s22, 0
      %p190 = por %p188, %p189
      %p191 = scmp.ne.s32.totalorder %s179, %s180
      %p192 = scmp.eq.s32.totalorder %s23, 1
      %p193 = por %p191, %p192
      %p195 = scmp.ne.s32.totalorder %s180, %s194
      %p196 = scmp.eq.s32.totalorder %s23, 0
      %p197 = por %p195, %p196
      %s198 = ssub.s32 %s17, %s24
      %p199 = scmp.eq.s32.totalorder %s198, 0
      %s201 = sadd.s32 %s200, 1
      %s202 = scalar_select %p199, %s200, %s201
      %p205 = pneg %p199
      %p206 = scmp.eq.s32.totalorder %s17, 1
      %p207 = por %p205, %p206
      %p208 = scmp.ne.s32.totalorder %s200, %s203
      %p209 = scmp.eq.s32.totalorder %s17, 0
      %p210 = por %p208, %p209
      %p211 = scmp.ne.s32.totalorder %s200, %s203
      %p212 = scmp.eq.s32.totalorder %s22, 1
      %p213 = por %p211, %p212
      %p214 = scmp.ne.s32.totalorder %s203, %s204
      %p215 = scmp.eq.s32.totalorder %s22, 0
      %p216 = por %p214, %p215
      %p217 = scmp.ne.s32.totalorder %s203, %s204
      %p218 = scmp.eq.s32.totalorder %s23, 1
      %p219 = por %p217, %p218
      %p221 = scmp.ne.s32.totalorder %s204, %s220
      %p222 = scmp.eq.s32.totalorder %s23, 0
      %p223 = por %p221, %p222
      %p224 = scmp.le.s32.totalorder 1, %s17
      %p225 = scmp.lt.s32.totalorder %s17, 3
      %p226 = pnand %p224, %p225
      %p227 = pneg %p226
      // Predicated region
      $region9: #{tpu_custom_call.1} parent=5 // pred_check
        _
      $region10: #{tpu_custom_call.1} parent=5 // pred_check_branch
        %229 = sbr.rel (%p226) target = $region12
      $region11: #{tpu_custom_call.1} parent=5 // pred_region
        %s230 = ssub.s32 %s17, 1
        // Predicated region
        $region13: #{tpu_custom_call.1} parent=11 // pred_check
          %p231 = pneg %p64
        $region14: #{tpu_custom_call.1} parent=11 // pred_check_branch
          %233 = sbr.rel (%p231) target = $region16
        $region15: #{tpu_custom_call.1} parent=11 // pred_region
          _
        $region16: #{tpu_custom_call.1} parent=11 // pred_fallthru
          _
        // Predicated region
        $region17: #{tpu_custom_call.1} parent=11 // pred_check
          %p234 = pneg %p85
        $region18: #{tpu_custom_call.1} parent=11 // pred_check_branch
          %236 = sbr.rel (%p234) target = $region20
        $region19: #{tpu_custom_call.1} parent=11 // pred_region
          _
        $region20: #{tpu_custom_call.1} parent=11 // pred_fallthru
          _
        // Predicated region
        $region21: #{tpu_custom_call.1} parent=11 // pred_check
          %p237 = pneg %p106
        $region22: #{tpu_custom_call.1} parent=11 // pred_check_branch
          %239 = sbr.rel (%p237) target = $region24
        $region23: #{tpu_custom_call.1} parent=11 // pred_region
          _
        $region24: #{tpu_custom_call.1} parent=11 // pred_fallthru
          _
        // Predicated region
        $region25: #{tpu_custom_call.1} parent=11 // pred_check
          %p240 = pneg %p127
        $region26: #{tpu_custom_call.1} parent=11 // pred_check_branch
          %242 = sbr.rel (%p240) target = $region28
        $region27: #{tpu_custom_call.1} parent=11 // pred_region
          _
        $region28: #{tpu_custom_call.1} parent=11 // pred_fallthru
          _
        // Predicated region
        $region29: #{tpu_custom_call.1} parent=11 // pred_check
          %p243 = pneg %p148
        $region30: #{tpu_custom_call.1} parent=11 // pred_check_branch
          %245 = sbr.rel (%p243) target = $region32
        $region31: #{tpu_custom_call.1} parent=11 // pred_region
          _
        $region32: #{tpu_custom_call.1} parent=11 // pred_fallthru
          _
        // Predicated region
        $region33: #{tpu_custom_call.1} parent=11 // pred_check
          %p246 = pneg %p169
        $region34: #{tpu_custom_call.1} parent=11 // pred_check_branch
          %248 = sbr.rel (%p246) target = $region36
        $region35: #{tpu_custom_call.1} parent=11 // pred_region
          _
        $region36: #{tpu_custom_call.1} parent=11 // pred_fallthru
          _
        // Predicated region
        $region37: #{tpu_custom_call.1} parent=11 // pred_check
          %p249 = pneg %p190
        $region38: #{tpu_custom_call.1} parent=11 // pred_check_branch
          %251 = sbr.rel (%p249) target = $region40
        $region39: #{tpu_custom_call.1} parent=11 // pred_region
          _
        $region40: #{tpu_custom_call.1} parent=11 // pred_fallthru
          _
      $region12: #{tpu_custom_call.1} parent=5 // pred_fallthru
        _
      %p252 = scmp.lt.s32.totalorder %s17, 2
      // Predicated region
      $region41: #{tpu_custom_call.1} parent=5 // pred_check
        %p253 = pneg %p252
      $region42: #{tpu_custom_call.1} parent=5 // pred_check_branch
        %255 = sbr.rel (%p253) target = $region44
      $region43: #{tpu_custom_call.1} parent=5 // pred_region
        // Predicated region
        $region45: #{tpu_custom_call.1} parent=43 // pred_check
          %p256 = pneg %p37
        $region46: #{tpu_custom_call.1} parent=43 // pred_check_branch
          %258 = sbr.rel (%p256) target = $region48
        $region47: #{tpu_custom_call.1} parent=43 // pred_region
          %p259 = scmp.lt.s32.totalorder %s17, 1
          %s260 = scalar_select %p259, %s17, 1
          %s261 = smul.addr %s260, 32
          %s262 = smul.addr %s261, 8
          %s263 = scalar_lea.vmem %s0, %s262
        $region48: #{tpu_custom_call.1} parent=43 // pred_fallthru
          _
      $region44: #{tpu_custom_call.1} parent=5 // pred_fallthru
        _
      %p264 = scmp.le.s32.totalorder 1, %s17
      %p265 = scmp.lt.s32.totalorder %s17, 3
      %p266 = pnand %p264, %p265
      %p267 = pneg %p266
      // Predicated region
      $region49: #{tpu_custom_call.1} parent=5 // pred_check
        _
      $region50: #{tpu_custom_call.1} parent=5 // pred_check_branch
        %269 = sbr.rel (%p266) target = $region52
      $region51: #{tpu_custom_call.1} parent=5 // pred_region
        %s270 = ssub.s32 %s17, 1
        %p271 = scmp.lt.s32.totalorder %s22, 1
        %s272 = scalar_select %p271, %s22, 1
        %s273 = smul.addr %s272, 32
        %s274 = smul.addr %s273, 8
        %s275 = scalar_lea.vmem %s0, %s274
        %p276 = pneg %p43
        %p277 = pneg %p40
        %p278 = pneg %p64
        %p279 = pneg %p61
        %p280 = pneg %p85
        %p281 = pneg %p82
        %p282 = pneg %p106
        %p283 = pneg %p103
        %p284 = pneg %p127
        %p285 = pneg %p124
        %p286 = pneg %p148
        %p287 = pneg %p145
        %p288 = pneg %p169
        %p289 = pneg %p166
        %p290 = pneg %p190
        %p291 = pneg %p187
        %p292 = pneg %p216
        %p293 = pneg %p213
        %s294 = sand.u32 %s203, 1
        %s295 = scalar_lea.sflag [#allocation7], %s294
        %s296 = sand.u32 %s203, 1
        %s297 = smul.addr %s296, 16
        %s298 = scalar_lea.vmem [#allocation6], %s297
        %p299 = scmp.lt.s32.totalorder %s22, 1
        %s300 = scalar_select %p299, %s22, 1
        %s301 = smul.addr %s300, 32
        %s302 = smul.addr %s301, 8
        %s303 = scalar_lea.vmem %s0, %s302
        %vm305 = vcmask 64512
        %306 = vst.msk [vmem:[#allocation4] sm:$0xff] %vm305, 0.0
        %307 = vst.msk [vmem:[#allocation4 + $0x8] sm:$0xff] %vm305, 0.0
        %vm308 = vcmask 58368
        %309 = vst.msk [vmem:[#allocation4 + $0x10] sm:$0x3] %vm308, 0.0
        %310 = vst.msk [vmem:[#allocation4 + $0x18] sm:$0xff] %vm305, 0.0
        %311 = vst.msk [vmem:[#allocation4 + $0x20] sm:$0xff] %vm305, 0.0
        %312 = vst.msk [vmem:[#allocation4 + $0x28] sm:$0x3] %vm308, 0.0
        %313 = vst.msk [vmem:[#allocation4 + $0x30] sm:$0xff] %vm305, 0.0
        %314 = vst.msk [vmem:[#allocation4 + $0x38] sm:$0xff] %vm305, 0.0
        %315 = vst.msk [vmem:[#allocation4 + $0x40] sm:$0x3] %vm308, 0.0
        %316 = vst.msk [vmem:[#allocation4 + $0x48] sm:$0xff] %vm305, 0.0
        %317 = vst.msk [vmem:[#allocation4 + $0x50] sm:$0xff] %vm305, 0.0
        %318 = vst.msk [vmem:[#allocation4 + $0x58] sm:$0x3] %vm308, 0.0
        %319 = vst.msk [vmem:[#allocation4 + $0x60] sm:$0xff] %vm305, 0.0
        %320 = vst.msk [vmem:[#allocation4 + $0x68] sm:$0xff] %vm305, 0.0
        %321 = vst.msk [vmem:[#allocation4 + $0x70] sm:$0x3] %vm308, 0.0
        %322 = vst.msk [vmem:[#allocation4 + $0x78] sm:$0xff] %vm305, 0.0
        %323 = vst.msk [vmem:[#allocation4 + $0x80] sm:$0xff] %vm305, 0.0
        %324 = vst.msk [vmem:[#allocation4 + $0x88] sm:$0x3] %vm308, 0.0
        %325 = vst.msk [vmem:[#allocation4 + $0x90] sm:$0xff] %vm305, 0.0
        %326 = vst.msk [vmem:[#allocation4 + $0x98] sm:$0xff] %vm305, 0.0
        %327 = vst.msk [vmem:[#allocation4 + $0xa0] sm:$0x3] %vm308, 0.0
        %328 = vst.msk [vmem:[#allocation4 + $0xa8] sm:$0xff] %vm305, 0.0
        %329 = vst.msk [vmem:[#allocation4 + $0xb0] sm:$0xff] %vm305, 0.0
        %330 = vst.msk [vmem:[#allocation4 + $0xb8] sm:$0x3] %vm308, 0.0
        %331 = vst.msk [vmem:[#allocation4 + $0xc0] sm:$0xff] %vm305, 0.0
        %332 = vst.msk [vmem:[#allocation4 + $0xc8] sm:$0xff] %vm305, 0.0
        %333 = vst.msk [vmem:[#allocation4 + $0xd0] sm:$0x3] %vm308, 0.0
        %334 = vst.msk [vmem:[#allocation4 + $0xd8] sm:$0xff] %vm305, 0.0
        %335 = vst.msk [vmem:[#allocation4 + $0xe0] sm:$0xff] %vm305, 0.0
        %336 = vst.msk [vmem:[#allocation4 + $0xe8] sm:$0x3] %vm308, 0.0
        %337 = vst.msk [vmem:[#allocation4 + $0xf0] sm:$0xff] %vm305, 0.0
        %338 = vst.msk [vmem:[#allocation4 + $0xf8] sm:$0xff] %vm305, 0.0
        %339 = vst.msk [vmem:[#allocation4 + $0x100] sm:$0x3] %vm308, 0.0
        %340 = vst.msk [vmem:[#allocation4 + $0x108] sm:$0xff] %vm305, 0.0
        %341 = vst.msk [vmem:[#allocation4 + $0x110] sm:$0xff] %vm305, 0.0
        %342 = vst.msk [vmem:[#allocation4 + $0x118] sm:$0x3] %vm308, 0.0
        %343 = vst.msk [vmem:[#allocation4 + $0x120] sm:$0xff] %vm305, 0.0
        %344 = vst.msk [vmem:[#allocation4 + $0x128] sm:$0xff] %vm305, 0.0
        %345 = vst.msk [vmem:[#allocation4 + $0x130] sm:$0x3] %vm308, 0.0
        %346 = vst.msk [vmem:[#allocation4 + $0x138] sm:$0xff] %vm305, 0.0
        %347 = vst.msk [vmem:[#allocation4 + $0x140] sm:$0xff] %vm305, 0.0
        %348 = vst.msk [vmem:[#allocation4 + $0x148] sm:$0x3] %vm308, 0.0
        %349 = vst.msk [vmem:[#allocation4 + $0x150] sm:$0xff] %vm305, 0.0
        %350 = vst.msk [vmem:[#allocation4 + $0x158] sm:$0xff] %vm305, 0.0
        %351 = vst.msk [vmem:[#allocation4 + $0x160] sm:$0x3] %vm308, 0.0
        %352 = vst.msk [vmem:[#allocation4 + $0x168] sm:$0xff] %vm305, 0.0
        %353 = vst.msk [vmem:[#allocation4 + $0x170] sm:$0xff] %vm305, 0.0
        %354 = vst.msk [vmem:[#allocation4 + $0x178] sm:$0x3] %vm308, 0.0
        %355 = vst.msk [vmem:[#allocation4 + $0x180] sm:$0xff] %vm305, 0.0
        %356 = vst.msk [vmem:[#allocation4 + $0x188] sm:$0xff] %vm305, 0.0
        %357 = vst.msk [vmem:[#allocation4 + $0x190] sm:$0x3] %vm308, 0.0
        %358 = vst.msk [vmem:[#allocation4 + $0x198] sm:$0xff] %vm305, 0.0
        %359 = vst.msk [vmem:[#allocation4 + $0x1a0] sm:$0xff] %vm305, 0.0
        %360 = vst.msk [vmem:[#allocation4 + $0x1a8] sm:$0x3] %vm308, 0.0
        %vm361 = vcmask 31744
        %362 = vst.msk [vmem:[#allocation2] sm:$0xff] %vm361, 0.0
        %363 = vst.msk [vmem:[#allocation2 + $0x8] sm:$0xff] %vm361, 0.0
        %vm364 = vcmask 25600
        %365 = vst.msk [vmem:[#allocation2 + $0x10] sm:$0x3] %vm364, 0.0
        %366 = vst.msk [vmem:[#allocation2 + $0x18] sm:$0xff] %vm361, 0.0
        %367 = vst.msk [vmem:[#allocation2 + $0x20] sm:$0xff] %vm361, 0.0
        %368 = vst.msk [vmem:[#allocation2 + $0x28] sm:$0x3] %vm364, 0.0
        %369 = vst.msk [vmem:[#allocation2 + $0x30] sm:$0xff] %vm361, 0.0
        %370 = vst.msk [vmem:[#allocation2 + $0x38] sm:$0xff] %vm361, 0.0
        %371 = vst.msk [vmem:[#allocation2 + $0x40] sm:$0x3] %vm364, 0.0
        %372 = vst.msk [vmem:[#allocation2 + $0x48] sm:$0xff] %vm361, 0.0
        %373 = vst.msk [vmem:[#allocation2 + $0x50] sm:$0xff] %vm361, 0.0
        %374 = vst.msk [vmem:[#allocation2 + $0x58] sm:$0x3] %vm364, 0.0
        %375 = vst.msk [vmem:[#allocation2 + $0x60] sm:$0xff] %vm361, 0.0
        %376 = vst.msk [vmem:[#allocation2 + $0x68] sm:$0xff] %vm361, 0.0
        %377 = vst.msk [vmem:[#allocation2 + $0x70] sm:$0x3] %vm364, 0.0
        %378 = vst.msk [vmem:[#allocation2 + $0x78] sm:$0xff] %vm361, 0.0
        %379 = vst.msk [vmem:[#allocation2 + $0x80] sm:$0xff] %vm361, 0.0
        %380 = vst.msk [vmem:[#allocation2 + $0x88] sm:$0x3] %vm364, 0.0
        %381 = vst.msk [vmem:[#allocation2 + $0x90] sm:$0xff] %vm361, 0.0
        %382 = vst.msk [vmem:[#allocation2 + $0x98] sm:$0xff] %vm361, 0.0
        %383 = vst.msk [vmem:[#allocation2 + $0xa0] sm:$0x3] %vm364, 0.0
        %384 = vst.msk [vmem:[#allocation2 + $0xa8] sm:$0xff] %vm361, 0.0
        %385 = vst.msk [vmem:[#allocation2 + $0xb0] sm:$0xff] %vm361, 0.0
        %386 = vst.msk [vmem:[#allocation2 + $0xb8] sm:$0x3] %vm364, 0.0
        %387 = vst.msk [vmem:[#allocation2 + $0xc0] sm:$0xff] %vm361, 0.0
        %388 = vst.msk [vmem:[#allocation2 + $0xc8] sm:$0xff] %vm361, 0.0
        %389 = vst.msk [vmem:[#allocation2 + $0xd0] sm:$0x3] %vm364, 0.0
        %390 = vst.msk [vmem:[#allocation2 + $0xd8] sm:$0xff] %vm361, 0.0
        %391 = vst.msk [vmem:[#allocation2 + $0xe0] sm:$0xff] %vm361, 0.0
        %392 = vst.msk [vmem:[#allocation2 + $0xe8] sm:$0x3] %vm364, 0.0
        %393 = vst.msk [vmem:[#allocation2 + $0xf0] sm:$0xff] %vm361, 0.0
        %394 = vst.msk [vmem:[#allocation2 + $0xf8] sm:$0xff] %vm361, 0.0
        %395 = vst.msk [vmem:[#allocation2 + $0x100] sm:$0x3] %vm364, 0.0
        %396 = vst.msk [vmem:[#allocation2 + $0x108] sm:$0xff] %vm361, 0.0
        %397 = vst.msk [vmem:[#allocation2 + $0x110] sm:$0xff] %vm361, 0.0
        %398 = vst.msk [vmem:[#allocation2 + $0x118] sm:$0x3] %vm364, 0.0
        %399 = vst.msk [vmem:[#allocation2 + $0x120] sm:$0xff] %vm361, 0.0
        %400 = vst.msk [vmem:[#allocation2 + $0x128] sm:$0xff] %vm361, 0.0
        %401 = vst.msk [vmem:[#allocation2 + $0x130] sm:$0x3] %vm364, 0.0
        %402 = vst.msk [vmem:[#allocation2 + $0x138] sm:$0xff] %vm361, 0.0
        %403 = vst.msk [vmem:[#allocation2 + $0x140] sm:$0xff] %vm361, 0.0
        %404 = vst.msk [vmem:[#allocation2 + $0x148] sm:$0x3] %vm364, 0.0
        %405 = vst.msk [vmem:[#allocation2 + $0x150] sm:$0xff] %vm361, 0.0
        %406 = vst.msk [vmem:[#allocation2 + $0x158] sm:$0xff] %vm361, 0.0
        %407 = vst.msk [vmem:[#allocation2 + $0x160] sm:$0x3] %vm364, 0.0
        %408 = vst.msk [vmem:[#allocation2 + $0x168] sm:$0xff] %vm361, 0.0
        %409 = vst.msk [vmem:[#allocation2 + $0x170] sm:$0xff] %vm361, 0.0
        %410 = vst.msk [vmem:[#allocation2 + $0x178] sm:$0x3] %vm364, 0.0
        %411 = vst.msk [vmem:[#allocation2 + $0x180] sm:$0xff] %vm361, 0.0
        %412 = vst.msk [vmem:[#allocation2 + $0x188] sm:$0xff] %vm361, 0.0
        %413 = vst.msk [vmem:[#allocation2 + $0x190] sm:$0x3] %vm364, 0.0
        %414 = vst.msk [vmem:[#allocation2 + $0x198] sm:$0xff] %vm361, 0.0
        %415 = vst.msk [vmem:[#allocation2 + $0x1a0] sm:$0xff] %vm361, 0.0
        %416 = vst.msk [vmem:[#allocation2 + $0x1a8] sm:$0x3] %vm364, 0.0
        %v417 = vld [vmem:[%s303] sm:$0xff]
        %v418 = vld [vmem:[%s303 + $0x8] sm:$0xff]
        %v419 = vld [vmem:[%s303 + $0x10] sm:$0xff]
        %v420 = vld [vmem:[%s303 + $0x18] sm:$0xff]
        %v421 = vld [vmem:[%s303 + $0x20] sm:$0xff]
        %v422 = vld [vmem:[%s303 + $0x28] sm:$0xff]
        %v423 = vld [vmem:[%s303 + $0x30] sm:$0xff]
        %v424 = vld [vmem:[%s303 + $0x38] sm:$0xff]
        %v425 = vld [vmem:[%s303 + $0x40] sm:$0xff]
        %v426 = vld [vmem:[%s303 + $0x48] sm:$0xff]
        %v427 = vld [vmem:[%s303 + $0x50] sm:$0xff]
        %v428 = vld [vmem:[%s303 + $0x58] sm:$0xff]
        %v429 = vld [vmem:[%s303 + $0x60] sm:$0xff]
        %v430 = vld [vmem:[%s303 + $0x68] sm:$0xff]
        %v431 = vld [vmem:[%s303 + $0x70] sm:$0xff]
        %v432 = vld [vmem:[%s303 + $0x78] sm:$0xff]
        %v433 = vld [vmem:[%s303 + $0x80] sm:$0xff]
        %v434 = vld [vmem:[%s303 + $0x88] sm:$0xff]
        %v435 = vld [vmem:[%s303 + $0x90] sm:$0xff]
        %v436 = vld [vmem:[%s303 + $0x98] sm:$0xff]
        %v437 = vld [vmem:[%s303 + $0xa0] sm:$0xff]
        %v438 = vld [vmem:[%s303 + $0xa8] sm:$0xff]
        %v439 = vld [vmem:[%s303 + $0xb0] sm:$0xff]
        %v440 = vld [vmem:[%s303 + $0xb8] sm:$0xff]
        %v441 = vld [vmem:[%s303 + $0xc0] sm:$0xff]
        %v442 = vld [vmem:[%s303 + $0xc8] sm:$0xff]
        %v443 = vld [vmem:[%s303 + $0xd0] sm:$0xff]
        %v444 = vld [vmem:[%s303 + $0xd8] sm:$0xff]
        %v445 = vld [vmem:[%s303 + $0xe0] sm:$0xff]
        %v446 = vld [vmem:[%s303 + $0xe8] sm:$0xff]
        %v447 = vld [vmem:[%s303 + $0xf0] sm:$0xff]
        %v448 = vld [vmem:[%s303 + $0xf8] sm:$0xff]
        %s449 = scalar_lea.vmem [#allocation2], 24
        %450 = vst.msk [vmem:[%s449 + $0x1] sm:$0xff] %vm361, %v417
        %451 = vst.msk [vmem:[%s449 + $0x9] sm:$0xff] %vm361, %v418
        %452 = vst.msk [vmem:[%s449 + $0x19] sm:$0xff] %vm361, %v419
        %453 = vst.msk [vmem:[%s449 + $0x21] sm:$0xff] %vm361, %v420
        %454 = vst.msk [vmem:[%s449 + $0x31] sm:$0xff] %vm361, %v421
        %455 = vst.msk [vmem:[%s449 + $0x39] sm:$0xff] %vm361, %v422
        %456 = vst.msk [vmem:[%s449 + $0x49] sm:$0xff] %vm361, %v423
        %457 = vst.msk [vmem:[%s449 + $0x51] sm:$0xff] %vm361, %v424
        %458 = vst.msk [vmem:[%s449 + $0x61] sm:$0xff] %vm361, %v425
        %459 = vst.msk [vmem:[%s449 + $0x69] sm:$0xff] %vm361, %v426
        %460 = vst.msk [vmem:[%s449 + $0x79] sm:$0xff] %vm361, %v427
        %461 = vst.msk [vmem:[%s449 + $0x81] sm:$0xff] %vm361, %v428
        %462 = vst.msk [vmem:[%s449 + $0x91] sm:$0xff] %vm361, %v429
        %463 = vst.msk [vmem:[%s449 + $0x99] sm:$0xff] %vm361, %v430
        %464 = vst.msk [vmem:[%s449 + $0xa9] sm:$0xff] %vm361, %v431
        %465 = vst.msk [vmem:[%s449 + $0xb1] sm:$0xff] %vm361, %v432
        %466 = vst.msk [vmem:[%s449 + $0xc1] sm:$0xff] %vm361, %v433
        %467 = vst.msk [vmem:[%s449 + $0xc9] sm:$0xff] %vm361, %v434
        %468 = vst.msk [vmem:[%s449 + $0xd9] sm:$0xff] %vm361, %v435
        %469 = vst.msk [vmem:[%s449 + $0xe1] sm:$0xff] %vm361, %v436
        %470 = vst.msk [vmem:[%s449 + $0xf1] sm:$0xff] %vm361, %v437
        %471 = vst.msk [vmem:[%s449 + $0xf9] sm:$0xff] %vm361, %v438
        %472 = vst.msk [vmem:[%s449 + $0x109] sm:$0xff] %vm361, %v439
        %473 = vst.msk [vmem:[%s449 + $0x111] sm:$0xff] %vm361, %v440
        %474 = vst.msk [vmem:[%s449 + $0x121] sm:$0xff] %vm361, %v441
        %475 = vst.msk [vmem:[%s449 + $0x129] sm:$0xff] %vm361, %v442
        %476 = vst.msk [vmem:[%s449 + $0x139] sm:$0xff] %vm361, %v443
        %477 = vst.msk [vmem:[%s449 + $0x141] sm:$0xff] %vm361, %v444
        %478 = vst.msk [vmem:[%s449 + $0x151] sm:$0xff] %vm361, %v445
        %479 = vst.msk [vmem:[%s449 + $0x159] sm:$0xff] %vm361, %v446
        %480 = vst.msk [vmem:[%s449 + $0x169] sm:$0xff] %vm361, %v447
        %481 = vst.msk [vmem:[%s449 + $0x171] sm:$0xff] %vm361, %v448
        %v482 = vld [vmem:[#allocation2] sm:$0xff]
        %v483 = vld [vmem:[#allocation2 + $0x8] sm:$0xff]
        %v484 = vld [vmem:[#allocation2 + $0x18] sm:$0xff]
        %v485 = vld [vmem:[#allocation2 + $0x20] sm:$0xff]
        %v486 = vld [vmem:[#allocation2 + $0x30] sm:$0xff]
        %v487 = vld [vmem:[#allocation2 + $0x38] sm:$0xff]
        %v488 = vld [vmem:[#allocation2 + $0x48] sm:$0xff]
        %v489 = vld [vmem:[#allocation2 + $0x50] sm:$0xff]
        %v490 = vld [vmem:[#allocation2 + $0x60] sm:$0xff]
        %v491 = vld [vmem:[#allocation2 + $0x68] sm:$0xff]
        %v492 = vld [vmem:[#allocation2 + $0x78] sm:$0xff]
        %v493 = vld [vmem:[#allocation2 + $0x80] sm:$0xff]
        %v494 = vld [vmem:[#allocation2 + $0x90] sm:$0xff]
        %v495 = vld [vmem:[#allocation2 + $0x98] sm:$0xff]
        %v496 = vld [vmem:[#allocation2 + $0xa8] sm:$0xff]
        %v497 = vld [vmem:[#allocation2 + $0xb0] sm:$0xff]
        %v498 = vld [vmem:[#allocation2 + $0xc0] sm:$0xff]
        %v499 = vld [vmem:[#allocation2 + $0xc8] sm:$0xff]
        %v500 = vld [vmem:[#allocation2 + $0xd8] sm:$0xff]
        %v501 = vld [vmem:[#allocation2 + $0xe0] sm:$0xff]
        %v502 = vld [vmem:[#allocation2 + $0xf0] sm:$0xff]
        %v503 = vld [vmem:[#allocation2 + $0xf8] sm:$0xff]
        %v504 = vld [vmem:[#allocation2 + $0x108] sm:$0xff]
        %v505 = vld [vmem:[#allocation2 + $0x110] sm:$0xff]
        %v506 = vld [vmem:[#allocation2 + $0x120] sm:$0xff]
        %v507 = vld [vmem:[#allocation2 + $0x128] sm:$0xff]
        %v508 = vld [vmem:[#allocation2 + $0x138] sm:$0xff]
        %v509 = vld [vmem:[#allocation2 + $0x140] sm:$0xff]
        %v510 = vld [vmem:[#allocation2 + $0x150] sm:$0xff]
        %v511 = vld [vmem:[#allocation2 + $0x158] sm:$0xff]
        %v512 = vld [vmem:[#allocation2 + $0x168] sm:$0xff]
        %v513 = vld [vmem:[#allocation2 + $0x170] sm:$0xff]
        %v514 = vpack.c.bf16 %v482, %v482
        %v515 = vpack.c.bf16 %v483, %v483
        %v516 = vpack.c.bf16 %v484, %v484
        %v517 = vpack.c.bf16 %v485, %v485
        %v518 = vpack.c.bf16 %v486, %v486
        %v519 = vpack.c.bf16 %v487, %v487
        %v520 = vpack.c.bf16 %v488, %v488
        %v521 = vpack.c.bf16 %v489, %v489
        %v522 = vpack.c.bf16 %v490, %v490
        %v523 = vpack.c.bf16 %v491, %v491
        %v524 = vpack.c.bf16 %v492, %v492
        %v525 = vpack.c.bf16 %v493, %v493
        %v526 = vpack.c.bf16 %v494, %v494
        %v527 = vpack.c.bf16 %v495, %v495
        %v528 = vpack.c.bf16 %v496, %v496
        %v529 = vpack.c.bf16 %v497, %v497
        %v530 = vpack.c.bf16 %v498, %v498
        %v531 = vpack.c.bf16 %v499, %v499
        %v532 = vpack.c.bf16 %v500, %v500
        %v533 = vpack.c.bf16 %v501, %v501
        %v534 = vpack.c.bf16 %v502, %v502
        %v535 = vpack.c.bf16 %v503, %v503
        %v536 = vpack.c.bf16 %v504, %v504
        %v537 = vpack.c.bf16 %v505, %v505
        %v538 = vpack.c.bf16 %v506, %v506
        %v539 = vpack.c.bf16 %v507, %v507
        %v540 = vpack.c.bf16 %v508, %v508
        %v541 = vpack.c.bf16 %v509, %v509
        %v542 = vpack.c.bf16 %v510, %v510
        %v543 = vpack.c.bf16 %v511, %v511
        %v544 = vpack.c.bf16 %v512, %v512
        %v545 = vpack.c.bf16 %v513, %v513
        %vm546 = vcmask 27648
        %547 = vst.msk [vmem:[#allocation3] sm:$0xf] %vm546, %v514
        %548 = vst.msk [vmem:[#allocation3 + $0x4] sm:$0xf] %vm546, %v515
        %549 = vst.msk [vmem:[#allocation3 + $0x8] sm:$0xf] %vm546, %v516
        %550 = vst.msk [vmem:[#allocation3 + $0xc] sm:$0xf] %vm546, %v517
        %551 = vst.msk [vmem:[#allocation3 + $0x10] sm:$0xf] %vm546, %v518
        %552 = vst.msk [vmem:[#allocation3 + $0x14] sm:$0xf] %vm546, %v519
        %553 = vst.msk [vmem:[#allocation3 + $0x18] sm:$0xf] %vm546, %v520
        %554 = vst.msk [vmem:[#allocation3 + $0x1c] sm:$0xf] %vm546, %v521
        %555 = vst.msk [vmem:[#allocation3 + $0x20] sm:$0xf] %vm546, %v522
        %556 = vst.msk [vmem:[#allocation3 + $0x24] sm:$0xf] %vm546, %v523
        %557 = vst.msk [vmem:[#allocation3 + $0x28] sm:$0xf] %vm546, %v524
        %558 = vst.msk [vmem:[#allocation3 + $0x2c] sm:$0xf] %vm546, %v525
        %559 = vst.msk [vmem:[#allocation3 + $0x30] sm:$0xf] %vm546, %v526
        %560 = vst.msk [vmem:[#allocation3 + $0x34] sm:$0xf] %vm546, %v527
        %561 = vst.msk [vmem:[#allocation3 + $0x38] sm:$0xf] %vm546, %v528
        %562 = vst.msk [vmem:[#allocation3 + $0x3c] sm:$0xf] %vm546, %v529
        %563 = vst.msk [vmem:[#allocation3 + $0x40] sm:$0xf] %vm546, %v530
        %564 = vst.msk [vmem:[#allocation3 + $0x44] sm:$0xf] %vm546, %v531
        %565 = vst.msk [vmem:[#allocation3 + $0x48] sm:$0xf] %vm546, %v532
        %566 = vst.msk [vmem:[#allocation3 + $0x4c] sm:$0xf] %vm546, %v533
        %567 = vst.msk [vmem:[#allocation3 + $0x50] sm:$0xf] %vm546, %v534
        %568 = vst.msk [vmem:[#allocation3 + $0x54] sm:$0xf] %vm546, %v535
        %569 = vst.msk [vmem:[#allocation3 + $0x58] sm:$0xf] %vm546, %v536
        %570 = vst.msk [vmem:[#allocation3 + $0x5c] sm:$0xf] %vm546, %v537
        %571 = vst.msk [vmem:[#allocation3 + $0x60] sm:$0xf] %vm546, %v538
        %572 = vst.msk [vmem:[#allocation3 + $0x64] sm:$0xf] %vm546, %v539
        %573 = vst.msk [vmem:[#allocation3 + $0x68] sm:$0xf] %vm546, %v540
        %574 = vst.msk [vmem:[#allocation3 + $0x6c] sm:$0xf] %vm546, %v541
        %575 = vst.msk [vmem:[#allocation3 + $0x70] sm:$0xf] %vm546, %v542
        %576 = vst.msk [vmem:[#allocation3 + $0x74] sm:$0xf] %vm546, %v543
        %577 = vst.msk [vmem:[#allocation3 + $0x78] sm:$0xf] %vm546, %v544
        %578 = vst.msk [vmem:[#allocation3 + $0x7c] sm:$0xf] %vm546, %v545
        %v579 = vld [vmem:[#allocation2 + $0x1] sm:$0xff]
        %v580 = vld [vmem:[#allocation2 + $0x9] sm:$0xff]
        %v581 = vld [vmem:[#allocation2 + $0x19] sm:$0xff]
        %v582 = vld [vmem:[#allocation2 + $0x21] sm:$0xff]
        %v583 = vld [vmem:[#allocation2 + $0x31] sm:$0xff]
        %v584 = vld [vmem:[#allocation2 + $0x39] sm:$0xff]
        %v585 = vld [vmem:[#allocation2 + $0x49] sm:$0xff]
        %v586 = vld [vmem:[#allocation2 + $0x51] sm:$0xff]
        %v587 = vld [vmem:[#allocation2 + $0x61] sm:$0xff]
        %v588 = vld [vmem:[#allocation2 + $0x69] sm:$0xff]
        %v589 = vld [vmem:[#allocation2 + $0x79] sm:$0xff]
        %v590 = vld [vmem:[#allocation2 + $0x81] sm:$0xff]
        %v591 = vld [vmem:[#allocation2 + $0x91] sm:$0xff]
        %v592 = vld [vmem:[#allocation2 + $0x99] sm:$0xff]
        %v593 = vld [vmem:[#allocation2 + $0xa9] sm:$0xff]
        %v594 = vld [vmem:[#allocation2 + $0xb1] sm:$0xff]
        %v595 = vld [vmem:[#allocation2 + $0xc1] sm:$0xff]
        %v596 = vld [vmem:[#allocation2 + $0xc9] sm:$0xff]
        %v597 = vld [vmem:[#allocation2 + $0xd9] sm:$0xff]
        %v598 = vld [vmem:[#allocation2 + $0xe1] sm:$0xff]
        %v599 = vld [vmem:[#allocation2 + $0xf1] sm:$0xff]
        %v600 = vld [vmem:[#allocation2 + $0xf9] sm:$0xff]
        %v601 = vld [vmem:[#allocation2 + $0x109] sm:$0xff]
        %v602 = vld [vmem:[#allocation2 + $0x111] sm:$0xff]
        %v603 = vld [vmem:[#allocation2 + $0x121] sm:$0xff]
        %v604 = vld [vmem:[#allocation2 + $0x129] sm:$0xff]
        %v605 = vld [vmem:[#allocation2 + $0x139] sm:$0xff]
        %v606 = vld [vmem:[#allocation2 + $0x141] sm:$0xff]
        %v607 = vld [vmem:[#allocation2 + $0x151] sm:$0xff]
        %v608 = vld [vmem:[#allocation2 + $0x159] sm:$0xff]
        %v609 = vld [vmem:[#allocation2 + $0x169] sm:$0xff]
        %v610 = vld [vmem:[#allocation2 + $0x171] sm:$0xff]
        %v611 = vpack.c.bf16 %v579, %v579
        %v612 = vpack.c.bf16 %v580, %v580
        %v613 = vpack.c.bf16 %v581, %v581
        %v614 = vpack.c.bf16 %v582, %v582
        %v615 = vpack.c.bf16 %v583, %v583
        %v616 = vpack.c.bf16 %v584, %v584
        %v617 = vpack.c.bf16 %v585, %v585
        %v618 = vpack.c.bf16 %v586, %v586
        %v619 = vpack.c.bf16 %v587, %v587
        %v620 = vpack.c.bf16 %v588, %v588
        %v621 = vpack.c.bf16 %v589, %v589
        %v622 = vpack.c.bf16 %v590, %v590
        %v623 = vpack.c.bf16 %v591, %v591
        %v624 = vpack.c.bf16 %v592, %v592
        %v625 = vpack.c.bf16 %v593, %v593
        %v626 = vpack.c.bf16 %v594, %v594
        %v627 = vpack.c.bf16 %v595, %v595
        %v628 = vpack.c.bf16 %v596, %v596
        %v629 = vpack.c.bf16 %v597, %v597
        %v630 = vpack.c.bf16 %v598, %v598
        %v631 = vpack.c.bf16 %v599, %v599
        %v632 = vpack.c.bf16 %v600, %v600
        %v633 = vpack.c.bf16 %v601, %v601
        %v634 = vpack.c.bf16 %v602, %v602
        %v635 = vpack.c.bf16 %v603, %v603
        %v636 = vpack.c.bf16 %v604, %v604
        %v637 = vpack.c.bf16 %v605, %v605
        %v638 = vpack.c.bf16 %v606, %v606
        %v639 = vpack.c.bf16 %v607, %v607
        %v640 = vpack.c.bf16 %v608, %v608
        %v641 = vpack.c.bf16 %v609, %v609
        %v642 = vpack.c.bf16 %v610, %v610
        %675 = vrot.lane.b32.xlu0 %v611, 4
        %v676 = vpop.permute.xlu0 %675
        %677 = vrot.lane.b32.xlu0 %v612, 4
        %v678 = vpop.permute.xlu0 %677
        %679 = vrot.lane.b32.xlu0 %v613, 4
        %v680 = vpop.permute.xlu0 %679
        %681 = vrot.lane.b32.xlu0 %v614, 4
        %v682 = vpop.permute.xlu0 %681
        %683 = vrot.lane.b32.xlu0 %v615, 4
        %v684 = vpop.permute.xlu0 %683
        %685 = vrot.lane.b32.xlu0 %v616, 4
        %v686 = vpop.permute.xlu0 %685
        %687 = vrot.lane.b32.xlu0 %v617, 4
        %v688 = vpop.permute.xlu0 %687
        %689 = vrot.lane.b32.xlu0 %v618, 4
        %v690 = vpop.permute.xlu0 %689
        %691 = vrot.lane.b32.xlu0 %v619, 4
        %v692 = vpop.permute.xlu0 %691
        %693 = vrot.lane.b32.xlu0 %v620, 4
        %v694 = vpop.permute.xlu0 %693
        %695 = vrot.lane.b32.xlu0 %v621, 4
        %v696 = vpop.permute.xlu0 %695
        %697 = vrot.lane.b32.xlu0 %v622, 4
        %v698 = vpop.permute.xlu0 %697
        %699 = vrot.lane.b32.xlu0 %v623, 4
        %v700 = vpop.permute.xlu0 %699
        %701 = vrot.lane.b32.xlu0 %v624, 4
        %v702 = vpop.permute.xlu0 %701
        %703 = vrot.lane.b32.xlu0 %v625, 4
        %v704 = vpop.permute.xlu0 %703
        %705 = vrot.lane.b32.xlu0 %v626, 4
        %v706 = vpop.permute.xlu0 %705
        %707 = vrot.lane.b32.xlu0 %v627, 4
        %v708 = vpop.permute.xlu0 %707
        %709 = vrot.lane.b32.xlu0 %v628, 4
        %v710 = vpop.permute.xlu0 %709
        %711 = vrot.lane.b32.xlu0 %v629, 4
        %v712 = vpop.permute.xlu0 %711
        %713 = vrot.lane.b32.xlu0 %v630, 4
        %v714 = vpop.permute.xlu0 %713
        %715 = vrot.lane.b32.xlu0 %v631, 4
        %v716 = vpop.permute.xlu0 %715
        %717 = vrot.lane.b32.xlu0 %v632, 4
        %v718 = vpop.permute.xlu0 %717
        %719 = vrot.lane.b32.xlu0 %v633, 4
        %v720 = vpop.permute.xlu0 %719
        %721 = vrot.lane.b32.xlu0 %v634, 4
        %v722 = vpop.permute.xlu0 %721
        %723 = vrot.lane.b32.xlu0 %v635, 4
        %v724 = vpop.permute.xlu0 %723
        %725 = vrot.lane.b32.xlu0 %v636, 4
        %v726 = vpop.permute.xlu0 %725
        %727 = vrot.lane.b32.xlu0 %v637, 4
        %v728 = vpop.permute.xlu0 %727
        %729 = vrot.lane.b32.xlu0 %v638, 4
        %v730 = vpop.permute.xlu0 %729
        %731 = vrot.lane.b32.xlu0 %v639, 4
        %v732 = vpop.permute.xlu0 %731
        %733 = vrot.lane.b32.xlu0 %v640, 4
        %v734 = vpop.permute.xlu0 %733
        %735 = vrot.lane.b32.xlu0 %v641, 4
        %v736 = vpop.permute.xlu0 %735
        %737 = vrot.lane.b32.xlu0 %v642, 4
        %v738 = vpop.permute.xlu0 %737
        %vm771 = vcmask 60448
        %772 = vst.msk [vmem:[#allocation3] sm:$0xf] %vm771, %v676
        %773 = vst.msk [vmem:[#allocation3 + $0x4] sm:$0xf] %vm771, %v678
        %774 = vst.msk [vmem:[#allocation3 + $0x8] sm:$0xf] %vm771, %v680
        %775 = vst.msk [vmem:[#allocation3 + $0xc] sm:$0xf] %vm771, %v682
        %776 = vst.msk [vmem:[#allocation3 + $0x10] sm:$0xf] %vm771, %v684
        %777 = vst.msk [vmem:[#allocation3 + $0x14] sm:$0xf] %vm771, %v686
        %778 = vst.msk [vmem:[#allocation3 + $0x18] sm:$0xf] %vm771, %v688
        %779 = vst.msk [vmem:[#allocation3 + $0x1c] sm:$0xf] %vm771, %v690
        %780 = vst.msk [vmem:[#allocation3 + $0x20] sm:$0xf] %vm771, %v692
        %781 = vst.msk [vmem:[#allocation3 + $0x24] sm:$0xf] %vm771, %v694
        %782 = vst.msk [vmem:[#allocation3 + $0x28] sm:$0xf] %vm771, %v696
        %783 = vst.msk [vmem:[#allocation3 + $0x2c] sm:$0xf] %vm771, %v698
        %784 = vst.msk [vmem:[#allocation3 + $0x30] sm:$0xf] %vm771, %v700
        %785 = vst.msk [vmem:[#allocation3 + $0x34] sm:$0xf] %vm771, %v702
        %786 = vst.msk [vmem:[#allocation3 + $0x38] sm:$0xf] %vm771, %v704
        %787 = vst.msk [vmem:[#allocation3 + $0x3c] sm:$0xf] %vm771, %v706
        %788 = vst.msk [vmem:[#allocation3 + $0x40] sm:$0xf] %vm771, %v708
        %789 = vst.msk [vmem:[#allocation3 + $0x44] sm:$0xf] %vm771, %v710
        %790 = vst.msk [vmem:[#allocation3 + $0x48] sm:$0xf] %vm771, %v712
        %791 = vst.msk [vmem:[#allocation3 + $0x4c] sm:$0xf] %vm771, %v714
        %792 = vst.msk [vmem:[#allocation3 + $0x50] sm:$0xf] %vm771, %v716
        %793 = vst.msk [vmem:[#allocation3 + $0x54] sm:$0xf] %vm771, %v718
        %794 = vst.msk [vmem:[#allocation3 + $0x58] sm:$0xf] %vm771, %v720
        %795 = vst.msk [vmem:[#allocation3 + $0x5c] sm:$0xf] %vm771, %v722
        %796 = vst.msk [vmem:[#allocation3 + $0x60] sm:$0xf] %vm771, %v724
        %797 = vst.msk [vmem:[#allocation3 + $0x64] sm:$0xf] %vm771, %v726
        %798 = vst.msk [vmem:[#allocation3 + $0x68] sm:$0xf] %vm771, %v728
        %799 = vst.msk [vmem:[#allocation3 + $0x6c] sm:$0xf] %vm771, %v730
        %800 = vst.msk [vmem:[#allocation3 + $0x70] sm:$0xf] %vm771, %v732
        %801 = vst.msk [vmem:[#allocation3 + $0x74] sm:$0xf] %vm771, %v734
        %802 = vst.msk [vmem:[#allocation3 + $0x78] sm:$0xf] %vm771, %v736
        %803 = vst.msk [vmem:[#allocation3 + $0x7c] sm:$0xf] %vm771, %v738
        %v804 = vld [vmem:[#allocation2 + $0x2] sm:$0xff]
        %v805 = vld [vmem:[#allocation2 + $0xa] sm:$0xff]
        %v806 = vld [vmem:[#allocation2 + $0x1a] sm:$0xff]
        %v807 = vld [vmem:[#allocation2 + $0x22] sm:$0xff]
        %v808 = vld [vmem:[#allocation2 + $0x32] sm:$0xff]
        %v809 = vld [vmem:[#allocation2 + $0x3a] sm:$0xff]
        %v810 = vld [vmem:[#allocation2 + $0x4a] sm:$0xff]
        %v811 = vld [vmem:[#allocation2 + $0x52] sm:$0xff]
        %v812 = vld [vmem:[#allocation2 + $0x62] sm:$0xff]
        %v813 = vld [vmem:[#allocation2 + $0x6a] sm:$0xff]
        %v814 = vld [vmem:[#allocation2 + $0x7a] sm:$0xff]
        %v815 = vld [vmem:[#allocation2 + $0x82] sm:$0xff]
        %v816 = vld [vmem:[#allocation2 + $0x92] sm:$0xff]
        %v817 = vld [vmem:[#allocation2 + $0x9a] sm:$0xff]
        %v818 = vld [vmem:[#allocation2 + $0xaa] sm:$0xff]
        %v819 = vld [vmem:[#allocation2 + $0xb2] sm:$0xff]
        %v820 = vld [vmem:[#allocation2 + $0xc2] sm:$0xff]
        %v821 = vld [vmem:[#allocation2 + $0xca] sm:$0xff]
        %v822 = vld [vmem:[#allocation2 + $0xda] sm:$0xff]
        %v823 = vld [vmem:[#allocation2 + $0xe2] sm:$0xff]
        %v824 = vld [vmem:[#allocation2 + $0xf2] sm:$0xff]
        %v825 = vld [vmem:[#allocation2 + $0xfa] sm:$0xff]
        %v826 = vld [vmem:[#allocation2 + $0x10a] sm:$0xff]
        %v827 = vld [vmem:[#allocation2 + $0x112] sm:$0xff]
        %v828 = vld [vmem:[#allocation2 + $0x122] sm:$0xff]
        %v829 = vld [vmem:[#allocation2 + $0x12a] sm:$0xff]
        %v830 = vld [vmem:[#allocation2 + $0x13a] sm:$0xff]
        %v831 = vld [vmem:[#allocation2 + $0x142] sm:$0xff]
        %v832 = vld [vmem:[#allocation2 + $0x152] sm:$0xff]
        %v833 = vld [vmem:[#allocation2 + $0x15a] sm:$0xff]
        %v834 = vld [vmem:[#allocation2 + $0x16a] sm:$0xff]
        %v835 = vld [vmem:[#allocation2 + $0x172] sm:$0xff]
        %v836 = vpack.c.bf16 %v804, %v804
        %v837 = vpack.c.bf16 %v805, %v805
        %v838 = vpack.c.bf16 %v806, %v806
        %v839 = vpack.c.bf16 %v807, %v807
        %v840 = vpack.c.bf16 %v808, %v808
        %v841 = vpack.c.bf16 %v809, %v809
        %v842 = vpack.c.bf16 %v810, %v810
        %v843 = vpack.c.bf16 %v811, %v811
        %v844 = vpack.c.bf16 %v812, %v812
        %v845 = vpack.c.bf16 %v813, %v813
        %v846 = vpack.c.bf16 %v814, %v814
        %v847 = vpack.c.bf16 %v815, %v815
        %v848 = vpack.c.bf16 %v816, %v816
        %v849 = vpack.c.bf16 %v817, %v817
        %v850 = vpack.c.bf16 %v818, %v818
        %v851 = vpack.c.bf16 %v819, %v819
        %v852 = vpack.c.bf16 %v820, %v820
        %v853 = vpack.c.bf16 %v821, %v821
        %v854 = vpack.c.bf16 %v822, %v822
        %v855 = vpack.c.bf16 %v823, %v823
        %v856 = vpack.c.bf16 %v824, %v824
        %v857 = vpack.c.bf16 %v825, %v825
        %v858 = vpack.c.bf16 %v826, %v826
        %v859 = vpack.c.bf16 %v827, %v827
        %v860 = vpack.c.bf16 %v828, %v828
        %v861 = vpack.c.bf16 %v829, %v829
        %v862 = vpack.c.bf16 %v830, %v830
        %v863 = vpack.c.bf16 %v831, %v831
        %v864 = vpack.c.bf16 %v832, %v832
        %v865 = vpack.c.bf16 %v833, %v833
        %v866 = vpack.c.bf16 %v834, %v834
        %v867 = vpack.c.bf16 %v835, %v835
        %900 = vrot.lane.b32.xlu0 %v836, 8
        %v901 = vpop.permute.xlu0 %900
        %902 = vrot.lane.b32.xlu0 %v837, 8
        %v903 = vpop.permute.xlu0 %902
        %904 = vrot.lane.b32.xlu0 %v838, 8
        %v905 = vpop.permute.xlu0 %904
        %906 = vrot.lane.b32.xlu0 %v839, 8
        %v907 = vpop.permute.xlu0 %906
        %908 = vrot.lane.b32.xlu0 %v840, 8
        %v909 = vpop.permute.xlu0 %908
        %910 = vrot.lane.b32.xlu0 %v841, 8
        %v911 = vpop.permute.xlu0 %910
        %912 = vrot.lane.b32.xlu0 %v842, 8
        %v913 = vpop.permute.xlu0 %912
        %914 = vrot.lane.b32.xlu0 %v843, 8
        %v915 = vpop.permute.xlu0 %914
        %916 = vrot.lane.b32.xlu0 %v844, 8
        %v917 = vpop.permute.xlu0 %916
        %918 = vrot.lane.b32.xlu0 %v845, 8
        %v919 = vpop.permute.xlu0 %918
        %920 = vrot.lane.b32.xlu0 %v846, 8
        %v921 = vpop.permute.xlu0 %920
        %922 = vrot.lane.b32.xlu0 %v847, 8
        %v923 = vpop.permute.xlu0 %922
        %924 = vrot.lane.b32.xlu0 %v848, 8
        %v925 = vpop.permute.xlu0 %924
        %926 = vrot.lane.b32.xlu0 %v849, 8
        %v927 = vpop.permute.xlu0 %926
        %928 = vrot.lane.b32.xlu0 %v850, 8
        %v929 = vpop.permute.xlu0 %928
        %930 = vrot.lane.b32.xlu0 %v851, 8
        %v931 = vpop.permute.xlu0 %930
        %932 = vrot.lane.b32.xlu0 %v852, 8
        %v933 = vpop.permute.xlu0 %932
        %934 = vrot.lane.b32.xlu0 %v853, 8
        %v935 = vpop.permute.xlu0 %934
        %936 = vrot.lane.b32.xlu0 %v854, 8
        %v937 = vpop.permute.xlu0 %936
        %938 = vrot.lane.b32.xlu0 %v855, 8
        %v939 = vpop.permute.xlu0 %938
        %940 = vrot.lane.b32.xlu0 %v856, 8
        %v941 = vpop.permute.xlu0 %940
        %942 = vrot.lane.b32.xlu0 %v857, 8
        %v943 = vpop.permute.xlu0 %942
        %944 = vrot.lane.b32.xlu0 %v858, 8
        %v945 = vpop.permute.xlu0 %944
        %946 = vrot.lane.b32.xlu0 %v859, 8
        %v947 = vpop.permute.xlu0 %946
        %948 = vrot.lane.b32.xlu0 %v860, 8
        %v949 = vpop.permute.xlu0 %948
        %950 = vrot.lane.b32.xlu0 %v861, 8
        %v951 = vpop.permute.xlu0 %950
        %952 = vrot.lane.b32.xlu0 %v862, 8
        %v953 = vpop.permute.xlu0 %952
        %954 = vrot.lane.b32.xlu0 %v863, 8
        %v955 = vpop.permute.xlu0 %954
        %956 = vrot.lane.b32.xlu0 %v864, 8
        %v957 = vpop.permute.xlu0 %956
        %958 = vrot.lane.b32.xlu0 %v865, 8
        %v959 = vpop.permute.xlu0 %958
        %960 = vrot.lane.b32.xlu0 %v866, 8
        %v961 = vpop.permute.xlu0 %960
        %962 = vrot.lane.b32.xlu0 %v867, 8
        %v963 = vpop.permute.xlu0 %962
        %vm996 = vcmask 93248
        %997 = vst.msk [vmem:[#allocation3] sm:$0xf] %vm996, %v901
        %998 = vst.msk [vmem:[#allocation3 + $0x4] sm:$0xf] %vm996, %v903
        %999 = vst.msk [vmem:[#allocation3 + $0x8] sm:$0xf] %vm996, %v905
        %1000 = vst.msk [vmem:[#allocation3 + $0xc] sm:$0xf] %vm996, %v907
        %1001 = vst.msk [vmem:[#allocation3 + $0x10] sm:$0xf] %vm996, %v909
        %1002 = vst.msk [vmem:[#allocation3 + $0x14] sm:$0xf] %vm996, %v911
        %1003 = vst.msk [vmem:[#allocation3 + $0x18] sm:$0xf] %vm996, %v913
        %1004 = vst.msk [vmem:[#allocation3 + $0x1c] sm:$0xf] %vm996, %v915
        %1005 = vst.msk [vmem:[#allocation3 + $0x20] sm:$0xf] %vm996, %v917
        %1006 = vst.msk [vmem:[#allocation3 + $0x24] sm:$0xf] %vm996, %v919
        %1007 = vst.msk [vmem:[#allocation3 + $0x28] sm:$0xf] %vm996, %v921
        %1008 = vst.msk [vmem:[#allocation3 + $0x2c] sm:$0xf] %vm996, %v923
        %1009 = vst.msk [vmem:[#allocation3 + $0x30] sm:$0xf] %vm996, %v925
        %1010 = vst.msk [vmem:[#allocation3 + $0x34] sm:$0xf] %vm996, %v927
        %1011 = vst.msk [vmem:[#allocation3 + $0x38] sm:$0xf] %vm996, %v929
        %1012 = vst.msk [vmem:[#allocation3 + $0x3c] sm:$0xf] %vm996, %v931
        %1013 = vst.msk [vmem:[#allocation3 + $0x40] sm:$0xf] %vm996, %v933
        %1014 = vst.msk [vmem:[#allocation3 + $0x44] sm:$0xf] %vm996, %v935
        %1015 = vst.msk [vmem:[#allocation3 + $0x48] sm:$0xf] %vm996, %v937
        %1016 = vst.msk [vmem:[#allocation3 + $0x4c] sm:$0xf] %vm996, %v939
        %1017 = vst.msk [vmem:[#allocation3 + $0x50] sm:$0xf] %vm996, %v941
        %1018 = vst.msk [vmem:[#allocation3 + $0x54] sm:$0xf] %vm996, %v943
        %1019 = vst.msk [vmem:[#allocation3 + $0x58] sm:$0xf] %vm996, %v945
        %1020 = vst.msk [vmem:[#allocation3 + $0x5c] sm:$0xf] %vm996, %v947
        %1021 = vst.msk [vmem:[#allocation3 + $0x60] sm:$0xf] %vm996, %v949
        %1022 = vst.msk [vmem:[#allocation3 + $0x64] sm:$0xf] %vm996, %v951
        %1023 = vst.msk [vmem:[#allocation3 + $0x68] sm:$0xf] %vm996, %v953
        %1024 = vst.msk [vmem:[#allocation3 + $0x6c] sm:$0xf] %vm996, %v955
        %1025 = vst.msk [vmem:[#allocation3 + $0x70] sm:$0xf] %vm996, %v957
        %1026 = vst.msk [vmem:[#allocation3 + $0x74] sm:$0xf] %vm996, %v959
        %1027 = vst.msk [vmem:[#allocation3 + $0x78] sm:$0xf] %vm996, %v961
        %1028 = vst.msk [vmem:[#allocation3 + $0x7c] sm:$0xf] %vm996, %v963
        %v1029 = vld [vmem:[%s449] sm:$0xff]
        %v1030 = vld [vmem:[%s449 + $0x8] sm:$0xff]
        %v1031 = vld [vmem:[%s449 + $0x18] sm:$0xff]
        %v1032 = vld [vmem:[%s449 + $0x20] sm:$0xff]
        %v1033 = vld [vmem:[%s449 + $0x30] sm:$0xff]
        %v1034 = vld [vmem:[%s449 + $0x38] sm:$0xff]
        %v1035 = vld [vmem:[%s449 + $0x48] sm:$0xff]
        %v1036 = vld [vmem:[%s449 + $0x50] sm:$0xff]
        %v1037 = vld [vmem:[%s449 + $0x60] sm:$0xff]
        %v1038 = vld [vmem:[%s449 + $0x68] sm:$0xff]
        %v1039 = vld [vmem:[%s449 + $0x78] sm:$0xff]
        %v1040 = vld [vmem:[%s449 + $0x80] sm:$0xff]
        %v1041 = vld [vmem:[%s449 + $0x90] sm:$0xff]
        %v1042 = vld [vmem:[%s449 + $0x98] sm:$0xff]
        %v1043 = vld [vmem:[%s449 + $0xa8] sm:$0xff]
        %v1044 = vld [vmem:[%s449 + $0xb0] sm:$0xff]
        %v1045 = vld [vmem:[%s449 + $0xc0] sm:$0xff]
        %v1046 = vld [vmem:[%s449 + $0xc8] sm:$0xff]
        %v1047 = vld [vmem:[%s449 + $0xd8] sm:$0xff]
        %v1048 = vld [vmem:[%s449 + $0xe0] sm:$0xff]
        %v1049 = vld [vmem:[%s449 + $0xf0] sm:$0xff]
        %v1050 = vld [vmem:[%s449 + $0xf8] sm:$0xff]
        %v1051 = vld [vmem:[%s449 + $0x108] sm:$0xff]
        %v1052 = vld [vmem:[%s449 + $0x110] sm:$0xff]
        %v1053 = vld [vmem:[%s449 + $0x120] sm:$0xff]
        %v1054 = vld [vmem:[%s449 + $0x128] sm:$0xff]
        %v1055 = vld [vmem:[%s449 + $0x138] sm:$0xff]
        %v1056 = vld [vmem:[%s449 + $0x140] sm:$0xff]
        %v1057 = vld [vmem:[%s449 + $0x150] sm:$0xff]
        %v1058 = vld [vmem:[%s449 + $0x158] sm:$0xff]
        %v1059 = vld [vmem:[%s449 + $0x168] sm:$0xff]
        %v1060 = vld [vmem:[%s449 + $0x170] sm:$0xff]
        %v1061 = vpack.c.bf16 %v1029, %v1029
        %v1062 = vpack.c.bf16 %v1030, %v1030
        %v1063 = vpack.c.bf16 %v1031, %v1031
        %v1064 = vpack.c.bf16 %v1032, %v1032
        %v1065 = vpack.c.bf16 %v1033, %v1033
        %v1066 = vpack.c.bf16 %v1034, %v1034
        %v1067 = vpack.c.bf16 %v1035, %v1035
        %v1068 = vpack.c.bf16 %v1036, %v1036
        %v1069 = vpack.c.bf16 %v1037, %v1037
        %v1070 = vpack.c.bf16 %v1038, %v1038
        %v1071 = vpack.c.bf16 %v1039, %v1039
        %v1072 = vpack.c.bf16 %v1040, %v1040
        %v1073 = vpack.c.bf16 %v1041, %v1041
        %v1074 = vpack.c.bf16 %v1042, %v1042
        %v1075 = vpack.c.bf16 %v1043, %v1043
        %v1076 = vpack.c.bf16 %v1044, %v1044
        %v1077 = vpack.c.bf16 %v1045, %v1045
        %v1078 = vpack.c.bf16 %v1046, %v1046
        %v1079 = vpack.c.bf16 %v1047, %v1047
        %v1080 = vpack.c.bf16 %v1048, %v1048
        %v1081 = vpack.c.bf16 %v1049, %v1049
        %v1082 = vpack.c.bf16 %v1050, %v1050
        %v1083 = vpack.c.bf16 %v1051, %v1051
        %v1084 = vpack.c.bf16 %v1052, %v1052
        %v1085 = vpack.c.bf16 %v1053, %v1053
        %v1086 = vpack.c.bf16 %v1054, %v1054
        %v1087 = vpack.c.bf16 %v1055, %v1055
        %v1088 = vpack.c.bf16 %v1056, %v1056
        %v1089 = vpack.c.bf16 %v1057, %v1057
        %v1090 = vpack.c.bf16 %v1058, %v1058
        %v1091 = vpack.c.bf16 %v1059, %v1059
        %v1092 = vpack.c.bf16 %v1060, %v1060
        %1125 = vrot.lane.b32.xlu0 %v1061, 12
        %v1126 = vpop.permute.xlu0 %1125
        %1127 = vrot.lane.b32.xlu0 %v1062, 12
        %v1128 = vpop.permute.xlu0 %1127
        %1129 = vrot.lane.b32.xlu0 %v1063, 12
        %v1130 = vpop.permute.xlu0 %1129
        %1131 = vrot.lane.b32.xlu0 %v1064, 12
        %v1132 = vpop.permute.xlu0 %1131
        %1133 = vrot.lane.b32.xlu0 %v1065, 12
        %v1134 = vpop.permute.xlu0 %1133
        %1135 = vrot.lane.b32.xlu0 %v1066, 12
        %v1136 = vpop.permute.xlu0 %1135
        %1137 = vrot.lane.b32.xlu0 %v1067, 12
        %v1138 = vpop.permute.xlu0 %1137
        %1139 = vrot.lane.b32.xlu0 %v1068, 12
        %v1140 = vpop.permute.xlu0 %1139
        %1141 = vrot.lane.b32.xlu0 %v1069, 12
        %v1142 = vpop.permute.xlu0 %1141
        %1143 = vrot.lane.b32.xlu0 %v1070, 12
        %v1144 = vpop.permute.xlu0 %1143
        %1145 = vrot.lane.b32.xlu0 %v1071, 12
        %v1146 = vpop.permute.xlu0 %1145
        %1147 = vrot.lane.b32.xlu0 %v1072, 12
        %v1148 = vpop.permute.xlu0 %1147
        %1149 = vrot.lane.b32.xlu0 %v1073, 12
        %v1150 = vpop.permute.xlu0 %1149
        %1151 = vrot.lane.b32.xlu0 %v1074, 12
        %v1152 = vpop.permute.xlu0 %1151
        %1153 = vrot.lane.b32.xlu0 %v1075, 12
        %v1154 = vpop.permute.xlu0 %1153
        %1155 = vrot.lane.b32.xlu0 %v1076, 12
        %v1156 = vpop.permute.xlu0 %1155
        %1157 = vrot.lane.b32.xlu0 %v1077, 12
        %v1158 = vpop.permute.xlu0 %1157
        %1159 = vrot.lane.b32.xlu0 %v1078, 12
        %v1160 = vpop.permute.xlu0 %1159
        %1161 = vrot.lane.b32.xlu0 %v1079, 12
        %v1162 = vpop.permute.xlu0 %1161
        %1163 = vrot.lane.b32.xlu0 %v1080, 12
        %v1164 = vpop.permute.xlu0 %1163
        %1165 = vrot.lane.b32.xlu0 %v1081, 12
        %v1166 = vpop.permute.xlu0 %1165
        %1167 = vrot.lane.b32.xlu0 %v1082, 12
        %v1168 = vpop.permute.xlu0 %1167
        %1169 = vrot.lane.b32.xlu0 %v1083, 12
        %v1170 = vpop.permute.xlu0 %1169
        %1171 = vrot.lane.b32.xlu0 %v1084, 12
        %v1172 = vpop.permute.xlu0 %1171
        %1173 = vrot.lane.b32.xlu0 %v1085, 12
        %v1174 = vpop.permute.xlu0 %1173
        %1175 = vrot.lane.b32.xlu0 %v1086, 12
        %v1176 = vpop.permute.xlu0 %1175
        %1177 = vrot.lane.b32.xlu0 %v1087, 12
        %v1178 = vpop.permute.xlu0 %1177
        %1179 = vrot.lane.b32.xlu0 %v1088, 12
        %v1180 = vpop.permute.xlu0 %1179
        %1181 = vrot.lane.b32.xlu0 %v1089, 12
        %v1182 = vpop.permute.xlu0 %1181
        %1183 = vrot.lane.b32.xlu0 %v1090, 12
        %v1184 = vpop.permute.xlu0 %1183
        %1185 = vrot.lane.b32.xlu0 %v1091, 12
        %v1186 = vpop.permute.xlu0 %1185
        %1187 = vrot.lane.b32.xlu0 %v1092, 12
        %v1188 = vpop.permute.xlu0 %1187
        %vm1221 = vcmask 126048
        %1222 = vst.msk [vmem:[#allocation3] sm:$0xf] %vm1221, %v1126
        %1223 = vst.msk [vmem:[#allocation3 + $0x4] sm:$0xf] %vm1221, %v1128
        %1224 = vst.msk [vmem:[#allocation3 + $0x8] sm:$0xf] %vm1221, %v1130
        %1225 = vst.msk [vmem:[#allocation3 + $0xc] sm:$0xf] %vm1221, %v1132
        %1226 = vst.msk [vmem:[#allocation3 + $0x10] sm:$0xf] %vm1221, %v1134
        %1227 = vst.msk [vmem:[#allocation3 + $0x14] sm:$0xf] %vm1221, %v1136
        %1228 = vst.msk [vmem:[#allocation3 + $0x18] sm:$0xf] %vm1221, %v1138
        %1229 = vst.msk [vmem:[#allocation3 + $0x1c] sm:$0xf] %vm1221, %v1140
        %1230 = vst.msk [vmem:[#allocation3 + $0x20] sm:$0xf] %vm1221, %v1142
        %1231 = vst.msk [vmem:[#allocation3 + $0x24] sm:$0xf] %vm1221, %v1144
        %1232 = vst.msk [vmem:[#allocation3 + $0x28] sm:$0xf] %vm1221, %v1146
        %1233 = vst.msk [vmem:[#allocation3 + $0x2c] sm:$0xf] %vm1221, %v1148
        %1234 = vst.msk [vmem:[#allocation3 + $0x30] sm:$0xf] %vm1221, %v1150
        %1235 = vst.msk [vmem:[#allocation3 + $0x34] sm:$0xf] %vm1221, %v1152
        %1236 = vst.msk [vmem:[#allocation3 + $0x38] sm:$0xf] %vm1221, %v1154
        %1237 = vst.msk [vmem:[#allocation3 + $0x3c] sm:$0xf] %vm1221, %v1156
        %1238 = vst.msk [vmem:[#allocation3 + $0x40] sm:$0xf] %vm1221, %v1158
        %1239 = vst.msk [vmem:[#allocation3 + $0x44] sm:$0xf] %vm1221, %v1160
        %1240 = vst.msk [vmem:[#allocation3 + $0x48] sm:$0xf] %vm1221, %v1162
        %1241 = vst.msk [vmem:[#allocation3 + $0x4c] sm:$0xf] %vm1221, %v1164
        %1242 = vst.msk [vmem:[#allocation3 + $0x50] sm:$0xf] %vm1221, %v1166
        %1243 = vst.msk [vmem:[#allocation3 + $0x54] sm:$0xf] %vm1221, %v1168
        %1244 = vst.msk [vmem:[#allocation3 + $0x58] sm:$0xf] %vm1221, %v1170
        %1245 = vst.msk [vmem:[#allocation3 + $0x5c] sm:$0xf] %vm1221, %v1172
        %1246 = vst.msk [vmem:[#allocation3 + $0x60] sm:$0xf] %vm1221, %v1174
        %1247 = vst.msk [vmem:[#allocation3 + $0x64] sm:$0xf] %vm1221, %v1176
        %1248 = vst.msk [vmem:[#allocation3 + $0x68] sm:$0xf] %vm1221, %v1178
        %1249 = vst.msk [vmem:[#allocation3 + $0x6c] sm:$0xf] %vm1221, %v1180
        %1250 = vst.msk [vmem:[#allocation3 + $0x70] sm:$0xf] %vm1221, %v1182
        %1251 = vst.msk [vmem:[#allocation3 + $0x74] sm:$0xf] %vm1221, %v1184
        %1252 = vst.msk [vmem:[#allocation3 + $0x78] sm:$0xf] %vm1221, %v1186
        %1253 = vst.msk [vmem:[#allocation3 + $0x7c] sm:$0xf] %vm1221, %v1188
        %v1254 = vld [vmem:[%s449 + $0x1] sm:$0xff]
        %v1255 = vld [vmem:[%s449 + $0x9] sm:$0xff]
        %v1256 = vld [vmem:[%s449 + $0x19] sm:$0xff]
        %v1257 = vld [vmem:[%s449 + $0x21] sm:$0xff]
        %v1258 = vld [vmem:[%s449 + $0x31] sm:$0xff]
        %v1259 = vld [vmem:[%s449 + $0x39] sm:$0xff]
        %v1260 = vld [vmem:[%s449 + $0x49] sm:$0xff]
        %v1261 = vld [vmem:[%s449 + $0x51] sm:$0xff]
        %v1262 = vld [vmem:[%s449 + $0x61] sm:$0xff]
        %v1263 = vld [vmem:[%s449 + $0x69] sm:$0xff]
        %v1264 = vld [vmem:[%s449 + $0x79] sm:$0xff]
        %v1265 = vld [vmem:[%s449 + $0x81] sm:$0xff]
        %v1266 = vld [vmem:[%s449 + $0x91] sm:$0xff]
        %v1267 = vld [vmem:[%s449 + $0x99] sm:$0xff]
        %v1268 = vld [vmem:[%s449 + $0xa9] sm:$0xff]
        %v1269 = vld [vmem:[%s449 + $0xb1] sm:$0xff]
        %v1270 = vld [vmem:[%s449 + $0xc1] sm:$0xff]
        %v1271 = vld [vmem:[%s449 + $0xc9] sm:$0xff]
        %v1272 = vld [vmem:[%s449 + $0xd9] sm:$0xff]
        %v1273 = vld [vmem:[%s449 + $0xe1] sm:$0xff]
        %v1274 = vld [vmem:[%s449 + $0xf1] sm:$0xff]
        %v1275 = vld [vmem:[%s449 + $0xf9] sm:$0xff]
        %v1276 = vld [vmem:[%s449 + $0x109] sm:$0xff]
        %v1277 = vld [vmem:[%s449 + $0x111] sm:$0xff]
        %v1278 = vld [vmem:[%s449 + $0x121] sm:$0xff]
        %v1279 = vld [vmem:[%s449 + $0x129] sm:$0xff]
        %v1280 = vld [vmem:[%s449 + $0x139] sm:$0xff]
        %v1281 = vld [vmem:[%s449 + $0x141] sm:$0xff]
        %v1282 = vld [vmem:[%s449 + $0x151] sm:$0xff]
        %v1283 = vld [vmem:[%s449 + $0x159] sm:$0xff]
        %v1284 = vld [vmem:[%s449 + $0x169] sm:$0xff]
        %v1285 = vld [vmem:[%s449 + $0x171] sm:$0xff]
        %v1286 = vpack.c.bf16 %v1254, %v1254
        %v1287 = vpack.c.bf16 %v1255, %v1255
        %v1288 = vpack.c.bf16 %v1256, %v1256
        %v1289 = vpack.c.bf16 %v1257, %v1257
        %v1290 = vpack.c.bf16 %v1258, %v1258
        %v1291 = vpack.c.bf16 %v1259, %v1259
        %v1292 = vpack.c.bf16 %v1260, %v1260
        %v1293 = vpack.c.bf16 %v1261, %v1261
        %v1294 = vpack.c.bf16 %v1262, %v1262
        %v1295 = vpack.c.bf16 %v1263, %v1263
        %v1296 = vpack.c.bf16 %v1264, %v1264
        %v1297 = vpack.c.bf16 %v1265, %v1265
        %v1298 = vpack.c.bf16 %v1266, %v1266
        %v1299 = vpack.c.bf16 %v1267, %v1267
        %v1300 = vpack.c.bf16 %v1268, %v1268
        %v1301 = vpack.c.bf16 %v1269, %v1269
        %v1302 = vpack.c.bf16 %v1270, %v1270
        %v1303 = vpack.c.bf16 %v1271, %v1271
        %v1304 = vpack.c.bf16 %v1272, %v1272
        %v1305 = vpack.c.bf16 %v1273, %v1273
        %v1306 = vpack.c.bf16 %v1274, %v1274
        %v1307 = vpack.c.bf16 %v1275, %v1275
        %v1308 = vpack.c.bf16 %v1276, %v1276
        %v1309 = vpack.c.bf16 %v1277, %v1277
        %v1310 = vpack.c.bf16 %v1278, %v1278
        %v1311 = vpack.c.bf16 %v1279, %v1279
        %v1312 = vpack.c.bf16 %v1280, %v1280
        %v1313 = vpack.c.bf16 %v1281, %v1281
        %v1314 = vpack.c.bf16 %v1282, %v1282
        %v1315 = vpack.c.bf16 %v1283, %v1283
        %v1316 = vpack.c.bf16 %v1284, %v1284
        %v1317 = vpack.c.bf16 %v1285, %v1285
        %1350 = vrot.lane.b32.xlu0 %v1286, 16
        %v1351 = vpop.permute.xlu0 %1350
        %1352 = vrot.lane.b32.xlu0 %v1287, 16
        %v1353 = vpop.permute.xlu0 %1352
        %1354 = vrot.lane.b32.xlu0 %v1288, 16
        %v1355 = vpop.permute.xlu0 %1354
        %1356 = vrot.lane.b32.xlu0 %v1289, 16
        %v1357 = vpop.permute.xlu0 %1356
        %1358 = vrot.lane.b32.xlu0 %v1290, 16
        %v1359 = vpop.permute.xlu0 %1358
        %1360 = vrot.lane.b32.xlu0 %v1291, 16
        %v1361 = vpop.permute.xlu0 %1360
        %1362 = vrot.lane.b32.xlu0 %v1292, 16
        %v1363 = vpop.permute.xlu0 %1362
        %1364 = vrot.lane.b32.xlu0 %v1293, 16
        %v1365 = vpop.permute.xlu0 %1364
        %1366 = vrot.lane.b32.xlu0 %v1294, 16
        %v1367 = vpop.permute.xlu0 %1366
        %1368 = vrot.lane.b32.xlu0 %v1295, 16
        %v1369 = vpop.permute.xlu0 %1368
        %1370 = vrot.lane.b32.xlu0 %v1296, 16
        %v1371 = vpop.permute.xlu0 %1370
        %1372 = vrot.lane.b32.xlu0 %v1297, 16
        %v1373 = vpop.permute.xlu0 %1372
        %1374 = vrot.lane.b32.xlu0 %v1298, 16
        %v1375 = vpop.permute.xlu0 %1374
        %1376 = vrot.lane.b32.xlu0 %v1299, 16
        %v1377 = vpop.permute.xlu0 %1376
        %1378 = vrot.lane.b32.xlu0 %v1300, 16
        %v1379 = vpop.permute.xlu0 %1378
        %1380 = vrot.lane.b32.xlu0 %v1301, 16
        %v1381 = vpop.permute.xlu0 %1380
        %1382 = vrot.lane.b32.xlu0 %v1302, 16
        %v1383 = vpop.permute.xlu0 %1382
        %1384 = vrot.lane.b32.xlu0 %v1303, 16
        %v1385 = vpop.permute.xlu0 %1384
        %1386 = vrot.lane.b32.xlu0 %v1304, 16
        %v1387 = vpop.permute.xlu0 %1386
        %1388 = vrot.lane.b32.xlu0 %v1305, 16
        %v1389 = vpop.permute.xlu0 %1388
        %1390 = vrot.lane.b32.xlu0 %v1306, 16
        %v1391 = vpop.permute.xlu0 %1390
        %1392 = vrot.lane.b32.xlu0 %v1307, 16
        %v1393 = vpop.permute.xlu0 %1392
        %1394 = vrot.lane.b32.xlu0 %v1308, 16
        %v1395 = vpop.permute.xlu0 %1394
        %1396 = vrot.lane.b32.xlu0 %v1309, 16
        %v1397 = vpop.permute.xlu0 %1396
        %1398 = vrot.lane.b32.xlu0 %v1310, 16
        %v1399 = vpop.permute.xlu0 %1398
        %1400 = vrot.lane.b32.xlu0 %v1311, 16
        %v1401 = vpop.permute.xlu0 %1400
        %1402 = vrot.lane.b32.xlu0 %v1312, 16
        %v1403 = vpop.permute.xlu0 %1402
        %1404 = vrot.lane.b32.xlu0 %v1313, 16
        %v1405 = vpop.permute.xlu0 %1404
        %1406 = vrot.lane.b32.xlu0 %v1314, 16
        %v1407 = vpop.permute.xlu0 %1406
        %1408 = vrot.lane.b32.xlu0 %v1315, 16
        %v1409 = vpop.permute.xlu0 %1408
        %1410 = vrot.lane.b32.xlu0 %v1316, 16
        %v1411 = vpop.permute.xlu0 %1410
        %1412 = vrot.lane.b32.xlu0 %v1317, 16
        %v1413 = vpop.permute.xlu0 %1412
        %vm1446 = vcmask 158848
        %1447 = vst.msk [vmem:[#allocation3] sm:$0xf] %vm1446, %v1351
        %1448 = vst.msk [vmem:[#allocation3 + $0x4] sm:$0xf] %vm1446, %v1353
        %1449 = vst.msk [vmem:[#allocation3 + $0x8] sm:$0xf] %vm1446, %v1355
        %1450 = vst.msk [vmem:[#allocation3 + $0xc] sm:$0xf] %vm1446, %v1357
        %1451 = vst.msk [vmem:[#allocation3 + $0x10] sm:$0xf] %vm1446, %v1359
        %1452 = vst.msk [vmem:[#allocation3 + $0x14] sm:$0xf] %vm1446, %v1361
        %1453 = vst.msk [vmem:[#allocation3 + $0x18] sm:$0xf] %vm1446, %v1363
        %1454 = vst.msk [vmem:[#allocation3 + $0x1c] sm:$0xf] %vm1446, %v1365
        %1455 = vst.msk [vmem:[#allocation3 + $0x20] sm:$0xf] %vm1446, %v1367
        %1456 = vst.msk [vmem:[#allocation3 + $0x24] sm:$0xf] %vm1446, %v1369
        %1457 = vst.msk [vmem:[#allocation3 + $0x28] sm:$0xf] %vm1446, %v1371
        %1458 = vst.msk [vmem:[#allocation3 + $0x2c] sm:$0xf] %vm1446, %v1373
        %1459 = vst.msk [vmem:[#allocation3 + $0x30] sm:$0xf] %vm1446, %v1375
        %1460 = vst.msk [vmem:[#allocation3 + $0x34] sm:$0xf] %vm1446, %v1377
        %1461 = vst.msk [vmem:[#allocation3 + $0x38] sm:$0xf] %vm1446, %v1379
        %1462 = vst.msk [vmem:[#allocation3 + $0x3c] sm:$0xf] %vm1446, %v1381
        %1463 = vst.msk [vmem:[#allocation3 + $0x40] sm:$0xf] %vm1446, %v1383
        %1464 = vst.msk [vmem:[#allocation3 + $0x44] sm:$0xf] %vm1446, %v1385
        %1465 = vst.msk [vmem:[#allocation3 + $0x48] sm:$0xf] %vm1446, %v1387
        %1466 = vst.msk [vmem:[#allocation3 + $0x4c] sm:$0xf] %vm1446, %v1389
        %1467 = vst.msk [vmem:[#allocation3 + $0x50] sm:$0xf] %vm1446, %v1391
        %1468 = vst.msk [vmem:[#allocation3 + $0x54] sm:$0xf] %vm1446, %v1393
        %1469 = vst.msk [vmem:[#allocation3 + $0x58] sm:$0xf] %vm1446, %v1395
        %1470 = vst.msk [vmem:[#allocation3 + $0x5c] sm:$0xf] %vm1446, %v1397
        %1471 = vst.msk [vmem:[#allocation3 + $0x60] sm:$0xf] %vm1446, %v1399
        %1472 = vst.msk [vmem:[#allocation3 + $0x64] sm:$0xf] %vm1446, %v1401
        %1473 = vst.msk [vmem:[#allocation3 + $0x68] sm:$0xf] %vm1446, %v1403
        %1474 = vst.msk [vmem:[#allocation3 + $0x6c] sm:$0xf] %vm1446, %v1405
        %1475 = vst.msk [vmem:[#allocation3 + $0x70] sm:$0xf] %vm1446, %v1407
        %1476 = vst.msk [vmem:[#allocation3 + $0x74] sm:$0xf] %vm1446, %v1409
        %1477 = vst.msk [vmem:[#allocation3 + $0x78] sm:$0xf] %vm1446, %v1411
        %1478 = vst.msk [vmem:[#allocation3 + $0x7c] sm:$0xf] %vm1446, %v1413
        %v1479 = vld [vmem:[%s449 + $0x2] sm:$0xff]
        %v1480 = vld [vmem:[%s449 + $0xa] sm:$0xff]
        %v1481 = vld [vmem:[%s449 + $0x1a] sm:$0xff]
        %v1482 = vld [vmem:[%s449 + $0x22] sm:$0xff]
        %v1483 = vld [vmem:[%s449 + $0x32] sm:$0xff]
        %v1484 = vld [vmem:[%s449 + $0x3a] sm:$0xff]
        %v1485 = vld [vmem:[%s449 + $0x4a] sm:$0xff]
        %v1486 = vld [vmem:[%s449 + $0x52] sm:$0xff]
        %v1487 = vld [vmem:[%s449 + $0x62] sm:$0xff]
        %v1488 = vld [vmem:[%s449 + $0x6a] sm:$0xff]
        %v1489 = vld [vmem:[%s449 + $0x7a] sm:$0xff]
        %v1490 = vld [vmem:[%s449 + $0x82] sm:$0xff]
        %v1491 = vld [vmem:[%s449 + $0x92] sm:$0xff]
        %v1492 = vld [vmem:[%s449 + $0x9a] sm:$0xff]
        %v1493 = vld [vmem:[%s449 + $0xaa] sm:$0xff]
        %v1494 = vld [vmem:[%s449 + $0xb2] sm:$0xff]
        %v1495 = vld [vmem:[%s449 + $0xc2] sm:$0xff]
        %v1496 = vld [vmem:[%s449 + $0xca] sm:$0xff]
        %v1497 = vld [vmem:[%s449 + $0xda] sm:$0xff]
        %v1498 = vld [vmem:[%s449 + $0xe2] sm:$0xff]
        %v1499 = vld [vmem:[%s449 + $0xf2] sm:$0xff]
        %v1500 = vld [vmem:[%s449 + $0xfa] sm:$0xff]
        %v1501 = vld [vmem:[%s449 + $0x10a] sm:$0xff]
        %v1502 = vld [vmem:[%s449 + $0x112] sm:$0xff]
        %v1503 = vld [vmem:[%s449 + $0x122] sm:$0xff]
        %v1504 = vld [vmem:[%s449 + $0x12a] sm:$0xff]
        %v1505 = vld [vmem:[%s449 + $0x13a] sm:$0xff]
        %v1506 = vld [vmem:[%s449 + $0x142] sm:$0xff]
        %v1507 = vld [vmem:[%s449 + $0x152] sm:$0xff]
        %v1508 = vld [vmem:[%s449 + $0x15a] sm:$0xff]
        %v1509 = vld [vmem:[%s449 + $0x16a] sm:$0xff]
        %v1510 = vld [vmem:[%s449 + $0x172] sm:$0xff]
        %v1511 = vpack.c.bf16 %v1479, %v1479
        %v1512 = vpack.c.bf16 %v1480, %v1480
        %v1513 = vpack.c.bf16 %v1481, %v1481
        %v1514 = vpack.c.bf16 %v1482, %v1482
        %v1515 = vpack.c.bf16 %v1483, %v1483
        %v1516 = vpack.c.bf16 %v1484, %v1484
        %v1517 = vpack.c.bf16 %v1485, %v1485
        %v1518 = vpack.c.bf16 %v1486, %v1486
        %v1519 = vpack.c.bf16 %v1487, %v1487
        %v1520 = vpack.c.bf16 %v1488, %v1488
        %v1521 = vpack.c.bf16 %v1489, %v1489
        %v1522 = vpack.c.bf16 %v1490, %v1490
        %v1523 = vpack.c.bf16 %v1491, %v1491
        %v1524 = vpack.c.bf16 %v1492, %v1492
        %v1525 = vpack.c.bf16 %v1493, %v1493
        %v1526 = vpack.c.bf16 %v1494, %v1494
        %v1527 = vpack.c.bf16 %v1495, %v1495
        %v1528 = vpack.c.bf16 %v1496, %v1496
        %v1529 = vpack.c.bf16 %v1497, %v1497
        %v1530 = vpack.c.bf16 %v1498, %v1498
        %v1531 = vpack.c.bf16 %v1499, %v1499
        %v1532 = vpack.c.bf16 %v1500, %v1500
        %v1533 = vpack.c.bf16 %v1501, %v1501
        %v1534 = vpack.c.bf16 %v1502, %v1502
        %v1535 = vpack.c.bf16 %v1503, %v1503
        %v1536 = vpack.c.bf16 %v1504, %v1504
        %v1537 = vpack.c.bf16 %v1505, %v1505
        %v1538 = vpack.c.bf16 %v1506, %v1506
        %v1539 = vpack.c.bf16 %v1507, %v1507
        %v1540 = vpack.c.bf16 %v1508, %v1508
        %v1541 = vpack.c.bf16 %v1509, %v1509
        %v1542 = vpack.c.bf16 %v1510, %v1510
        %1575 = vrot.lane.b32.xlu0 %v1511, 20
        %v1576 = vpop.permute.xlu0 %1575
        %1577 = vrot.lane.b32.xlu0 %v1512, 20
        %v1578 = vpop.permute.xlu0 %1577
        %1579 = vrot.lane.b32.xlu0 %v1513, 20
        %v1580 = vpop.permute.xlu0 %1579
        %1581 = vrot.lane.b32.xlu0 %v1514, 20
        %v1582 = vpop.permute.xlu0 %1581
        %1583 = vrot.lane.b32.xlu0 %v1515, 20
        %v1584 = vpop.permute.xlu0 %1583
        %1585 = vrot.lane.b32.xlu0 %v1516, 20
        %v1586 = vpop.permute.xlu0 %1585
        %1587 = vrot.lane.b32.xlu0 %v1517, 20
        %v1588 = vpop.permute.xlu0 %1587
        %1589 = vrot.lane.b32.xlu0 %v1518, 20
        %v1590 = vpop.permute.xlu0 %1589
        %1591 = vrot.lane.b32.xlu0 %v1519, 20
        %v1592 = vpop.permute.xlu0 %1591
        %1593 = vrot.lane.b32.xlu0 %v1520, 20
        %v1594 = vpop.permute.xlu0 %1593
        %1595 = vrot.lane.b32.xlu0 %v1521, 20
        %v1596 = vpop.permute.xlu0 %1595
        %1597 = vrot.lane.b32.xlu0 %v1522, 20
        %v1598 = vpop.permute.xlu0 %1597
        %1599 = vrot.lane.b32.xlu0 %v1523, 20
        %v1600 = vpop.permute.xlu0 %1599
        %1601 = vrot.lane.b32.xlu0 %v1524, 20
        %v1602 = vpop.permute.xlu0 %1601
        %1603 = vrot.lane.b32.xlu0 %v1525, 20
        %v1604 = vpop.permute.xlu0 %1603
        %1605 = vrot.lane.b32.xlu0 %v1526, 20
        %v1606 = vpop.permute.xlu0 %1605
        %1607 = vrot.lane.b32.xlu0 %v1527, 20
        %v1608 = vpop.permute.xlu0 %1607
        %1609 = vrot.lane.b32.xlu0 %v1528, 20
        %v1610 = vpop.permute.xlu0 %1609
        %1611 = vrot.lane.b32.xlu0 %v1529, 20
        %v1612 = vpop.permute.xlu0 %1611
        %1613 = vrot.lane.b32.xlu0 %v1530, 20
        %v1614 = vpop.permute.xlu0 %1613
        %1615 = vrot.lane.b32.xlu0 %v1531, 20
        %v1616 = vpop.permute.xlu0 %1615
        %1617 = vrot.lane.b32.xlu0 %v1532, 20
        %v1618 = vpop.permute.xlu0 %1617
        %1619 = vrot.lane.b32.xlu0 %v1533, 20
        %v1620 = vpop.permute.xlu0 %1619
        %1621 = vrot.lane.b32.xlu0 %v1534, 20
        %v1622 = vpop.permute.xlu0 %1621
        %1623 = vrot.lane.b32.xlu0 %v1535, 20
        %v1624 = vpop.permute.xlu0 %1623
        %1625 = vrot.lane.b32.xlu0 %v1536, 20
        %v1626 = vpop.permute.xlu0 %1625
        %1627 = vrot.lane.b32.xlu0 %v1537, 20
        %v1628 = vpop.permute.xlu0 %1627
        %1629 = vrot.lane.b32.xlu0 %v1538, 20
        %v1630 = vpop.permute.xlu0 %1629
        %1631 = vrot.lane.b32.xlu0 %v1539, 20
        %v1632 = vpop.permute.xlu0 %1631
        %1633 = vrot.lane.b32.xlu0 %v1540, 20
        %v1634 = vpop.permute.xlu0 %1633
        %1635 = vrot.lane.b32.xlu0 %v1541, 20
        %v1636 = vpop.permute.xlu0 %1635
        %1637 = vrot.lane.b32.xlu0 %v1542, 20
        %v1638 = vpop.permute.xlu0 %1637
        %vm1671 = vcmask 191648
        %1672 = vst.msk [vmem:[#allocation3] sm:$0xf] %vm1671, %v1576
        %1673 = vst.msk [vmem:[#allocation3 + $0x4] sm:$0xf] %vm1671, %v1578
        %1674 = vst.msk [vmem:[#allocation3 + $0x8] sm:$0xf] %vm1671, %v1580
        %1675 = vst.msk [vmem:[#allocation3 + $0xc] sm:$0xf] %vm1671, %v1582
        %1676 = vst.msk [vmem:[#allocation3 + $0x10] sm:$0xf] %vm1671, %v1584
        %1677 = vst.msk [vmem:[#allocation3 + $0x14] sm:$0xf] %vm1671, %v1586
        %1678 = vst.msk [vmem:[#allocation3 + $0x18] sm:$0xf] %vm1671, %v1588
        %1679 = vst.msk [vmem:[#allocation3 + $0x1c] sm:$0xf] %vm1671, %v1590
        %1680 = vst.msk [vmem:[#allocation3 + $0x20] sm:$0xf] %vm1671, %v1592
        %1681 = vst.msk [vmem:[#allocation3 + $0x24] sm:$0xf] %vm1671, %v1594
        %1682 = vst.msk [vmem:[#allocation3 + $0x28] sm:$0xf] %vm1671, %v1596
        %1683 = vst.msk [vmem:[#allocation3 + $0x2c] sm:$0xf] %vm1671, %v1598
        %1684 = vst.msk [vmem:[#allocation3 + $0x30] sm:$0xf] %vm1671, %v1600
        %1685 = vst.msk [vmem:[#allocation3 + $0x34] sm:$0xf] %vm1671, %v1602
        %1686 = vst.msk [vmem:[#allocation3 + $0x38] sm:$0xf] %vm1671, %v1604
        %1687 = vst.msk [vmem:[#allocation3 + $0x3c] sm:$0xf] %vm1671, %v1606
        %1688 = vst.msk [vmem:[#allocation3 + $0x40] sm:$0xf] %vm1671, %v1608
        %1689 = vst.msk [vmem:[#allocation3 + $0x44] sm:$0xf] %vm1671, %v1610
        %1690 = vst.msk [vmem:[#allocation3 + $0x48] sm:$0xf] %vm1671, %v1612
        %1691 = vst.msk [vmem:[#allocation3 + $0x4c] sm:$0xf] %vm1671, %v1614
        %1692 = vst.msk [vmem:[#allocation3 + $0x50] sm:$0xf] %vm1671, %v1616
        %1693 = vst.msk [vmem:[#allocation3 + $0x54] sm:$0xf] %vm1671, %v1618
        %1694 = vst.msk [vmem:[#allocation3 + $0x58] sm:$0xf] %vm1671, %v1620
        %1695 = vst.msk [vmem:[#allocation3 + $0x5c] sm:$0xf] %vm1671, %v1622
        %1696 = vst.msk [vmem:[#allocation3 + $0x60] sm:$0xf] %vm1671, %v1624
        %1697 = vst.msk [vmem:[#allocation3 + $0x64] sm:$0xf] %vm1671, %v1626
        %1698 = vst.msk [vmem:[#allocation3 + $0x68] sm:$0xf] %vm1671, %v1628
        %1699 = vst.msk [vmem:[#allocation3 + $0x6c] sm:$0xf] %vm1671, %v1630
        %1700 = vst.msk [vmem:[#allocation3 + $0x70] sm:$0xf] %vm1671, %v1632
        %1701 = vst.msk [vmem:[#allocation3 + $0x74] sm:$0xf] %vm1671, %v1634
        %1702 = vst.msk [vmem:[#allocation3 + $0x78] sm:$0xf] %vm1671, %v1636
        %1703 = vst.msk [vmem:[#allocation3 + $0x7c] sm:$0xf] %vm1671, %v1638
        %s1704 = scalar_lea.vmem [#allocation2], 48
        %v1705 = vld [vmem:[%s1704] sm:$0xff]
        %v1706 = vld [vmem:[%s1704 + $0x8] sm:$0xff]
        %v1707 = vld [vmem:[%s1704 + $0x18] sm:$0xff]
        %v1708 = vld [vmem:[%s1704 + $0x20] sm:$0xff]
        %v1709 = vld [vmem:[%s1704 + $0x30] sm:$0xff]
        %v1710 = vld [vmem:[%s1704 + $0x38] sm:$0xff]
        %v1711 = vld [vmem:[%s1704 + $0x48] sm:$0xff]
        %v1712 = vld [vmem:[%s1704 + $0x50] sm:$0xff]
        %v1713 = vld [vmem:[%s1704 + $0x60] sm:$0xff]
        %v1714 = vld [vmem:[%s1704 + $0x68] sm:$0xff]
        %v1715 = vld [vmem:[%s1704 + $0x78] sm:$0xff]
        %v1716 = vld [vmem:[%s1704 + $0x80] sm:$0xff]
        %v1717 = vld [vmem:[%s1704 + $0x90] sm:$0xff]
        %v1718 = vld [vmem:[%s1704 + $0x98] sm:$0xff]
        %v1719 = vld [vmem:[%s1704 + $0xa8] sm:$0xff]
        %v1720 = vld [vmem:[%s1704 + $0xb0] sm:$0xff]
        %v1721 = vld [vmem:[%s1704 + $0xc0] sm:$0xff]
        %v1722 = vld [vmem:[%s1704 + $0xc8] sm:$0xff]
        %v1723 = vld [vmem:[%s1704 + $0xd8] sm:$0xff]
        %v1724 = vld [vmem:[%s1704 + $0xe0] sm:$0xff]
        %v1725 = vld [vmem:[%s1704 + $0xf0] sm:$0xff]
        %v1726 = vld [vmem:[%s1704 + $0xf8] sm:$0xff]
        %v1727 = vld [vmem:[%s1704 + $0x108] sm:$0xff]
        %v1728 = vld [vmem:[%s1704 + $0x110] sm:$0xff]
        %v1729 = vld [vmem:[%s1704 + $0x120] sm:$0xff]
        %v1730 = vld [vmem:[%s1704 + $0x128] sm:$0xff]
        %v1731 = vld [vmem:[%s1704 + $0x138] sm:$0xff]
        %v1732 = vld [vmem:[%s1704 + $0x140] sm:$0xff]
        %v1733 = vld [vmem:[%s1704 + $0x150] sm:$0xff]
        %v1734 = vld [vmem:[%s1704 + $0x158] sm:$0xff]
        %v1735 = vld [vmem:[%s1704 + $0x168] sm:$0xff]
        %v1736 = vld [vmem:[%s1704 + $0x170] sm:$0xff]
        %v1737 = vpack.c.bf16 %v1705, %v1705
        %v1738 = vpack.c.bf16 %v1706, %v1706
        %v1739 = vpack.c.bf16 %v1707, %v1707
        %v1740 = vpack.c.bf16 %v1708, %v1708
        %v1741 = vpack.c.bf16 %v1709, %v1709
        %v1742 = vpack.c.bf16 %v1710, %v1710
        %v1743 = vpack.c.bf16 %v1711, %v1711
        %v1744 = vpack.c.bf16 %v1712, %v1712
        %v1745 = vpack.c.bf16 %v1713, %v1713
        %v1746 = vpack.c.bf16 %v1714, %v1714
        %v1747 = vpack.c.bf16 %v1715, %v1715
        %v1748 = vpack.c.bf16 %v1716, %v1716
        %v1749 = vpack.c.bf16 %v1717, %v1717
        %v1750 = vpack.c.bf16 %v1718, %v1718
        %v1751 = vpack.c.bf16 %v1719, %v1719
        %v1752 = vpack.c.bf16 %v1720, %v1720
        %v1753 = vpack.c.bf16 %v1721, %v1721
        %v1754 = vpack.c.bf16 %v1722, %v1722
        %v1755 = vpack.c.bf16 %v1723, %v1723
        %v1756 = vpack.c.bf16 %v1724, %v1724
        %v1757 = vpack.c.bf16 %v1725, %v1725
        %v1758 = vpack.c.bf16 %v1726, %v1726
        %v1759 = vpack.c.bf16 %v1727, %v1727
        %v1760 = vpack.c.bf16 %v1728, %v1728
        %v1761 = vpack.c.bf16 %v1729, %v1729
        %v1762 = vpack.c.bf16 %v1730, %v1730
        %v1763 = vpack.c.bf16 %v1731, %v1731
        %v1764 = vpack.c.bf16 %v1732, %v1732
        %v1765 = vpack.c.bf16 %v1733, %v1733
        %v1766 = vpack.c.bf16 %v1734, %v1734
        %v1767 = vpack.c.bf16 %v1735, %v1735
        %v1768 = vpack.c.bf16 %v1736, %v1736
        %1801 = vrot.lane.b32.xlu0 %v1737, 24
        %v1802 = vpop.permute.xlu0 %1801
        %1803 = vrot.lane.b32.xlu0 %v1738, 24
        %v1804 = vpop.permute.xlu0 %1803
        %1805 = vrot.lane.b32.xlu0 %v1739, 24
        %v1806 = vpop.permute.xlu0 %1805
        %1807 = vrot.lane.b32.xlu0 %v1740, 24
        %v1808 = vpop.permute.xlu0 %1807
        %1809 = vrot.lane.b32.xlu0 %v1741, 24
        %v1810 = vpop.permute.xlu0 %1809
        %1811 = vrot.lane.b32.xlu0 %v1742, 24
        %v1812 = vpop.permute.xlu0 %1811
        %1813 = vrot.lane.b32.xlu0 %v1743, 24
        %v1814 = vpop.permute.xlu0 %1813
        %1815 = vrot.lane.b32.xlu0 %v1744, 24
        %v1816 = vpop.permute.xlu0 %1815
        %1817 = vrot.lane.b32.xlu0 %v1745, 24
        %v1818 = vpop.permute.xlu0 %1817
        %1819 = vrot.lane.b32.xlu0 %v1746, 24
        %v1820 = vpop.permute.xlu0 %1819
        %1821 = vrot.lane.b32.xlu0 %v1747, 24
        %v1822 = vpop.permute.xlu0 %1821
        %1823 = vrot.lane.b32.xlu0 %v1748, 24
        %v1824 = vpop.permute.xlu0 %1823
        %1825 = vrot.lane.b32.xlu0 %v1749, 24
        %v1826 = vpop.permute.xlu0 %1825
        %1827 = vrot.lane.b32.xlu0 %v1750, 24
        %v1828 = vpop.permute.xlu0 %1827
        %1829 = vrot.lane.b32.xlu0 %v1751, 24
        %v1830 = vpop.permute.xlu0 %1829
        %1831 = vrot.lane.b32.xlu0 %v1752, 24
        %v1832 = vpop.permute.xlu0 %1831
        %1833 = vrot.lane.b32.xlu0 %v1753, 24
        %v1834 = vpop.permute.xlu0 %1833
        %1835 = vrot.lane.b32.xlu0 %v1754, 24
        %v1836 = vpop.permute.xlu0 %1835
        %1837 = vrot.lane.b32.xlu0 %v1755, 24
        %v1838 = vpop.permute.xlu0 %1837
        %1839 = vrot.lane.b32.xlu0 %v1756, 24
        %v1840 = vpop.permute.xlu0 %1839
        %1841 = vrot.lane.b32.xlu0 %v1757, 24
        %v1842 = vpop.permute.xlu0 %1841
        %1843 = vrot.lane.b32.xlu0 %v1758, 24
        %v1844 = vpop.permute.xlu0 %1843
        %1845 = vrot.lane.b32.xlu0 %v1759, 24
        %v1846 = vpop.permute.xlu0 %1845
        %1847 = vrot.lane.b32.xlu0 %v1760, 24
        %v1848 = vpop.permute.xlu0 %1847
        %1849 = vrot.lane.b32.xlu0 %v1761, 24
        %v1850 = vpop.permute.xlu0 %1849
        %1851 = vrot.lane.b32.xlu0 %v1762, 24
        %v1852 = vpop.permute.xlu0 %1851
        %1853 = vrot.lane.b32.xlu0 %v1763, 24
        %v1854 = vpop.permute.xlu0 %1853
        %1855 = vrot.lane.b32.xlu0 %v1764, 24
        %v1856 = vpop.permute.xlu0 %1855
        %1857 = vrot.lane.b32.xlu0 %v1765, 24
        %v1858 = vpop.permute.xlu0 %1857
        %1859 = vrot.lane.b32.xlu0 %v1766, 24
        %v1860 = vpop.permute.xlu0 %1859
        %1861 = vrot.lane.b32.xlu0 %v1767, 24
        %v1862 = vpop.permute.xlu0 %1861
        %1863 = vrot.lane.b32.xlu0 %v1768, 24
        %v1864 = vpop.permute.xlu0 %1863
        %vm1897 = vcmask 224448
        %1898 = vst.msk [vmem:[#allocation3] sm:$0xf] %vm1897, %v1802
        %1899 = vst.msk [vmem:[#allocation3 + $0x4] sm:$0xf] %vm1897, %v1804
        %1900 = vst.msk [vmem:[#allocation3 + $0x8] sm:$0xf] %vm1897, %v1806
        %1901 = vst.msk [vmem:[#allocation3 + $0xc] sm:$0xf] %vm1897, %v1808
        %1902 = vst.msk [vmem:[#allocation3 + $0x10] sm:$0xf] %vm1897, %v1810
        %1903 = vst.msk [vmem:[#allocation3 + $0x14] sm:$0xf] %vm1897, %v1812
        %1904 = vst.msk [vmem:[#allocation3 + $0x18] sm:$0xf] %vm1897, %v1814
        %1905 = vst.msk [vmem:[#allocation3 + $0x1c] sm:$0xf] %vm1897, %v1816
        %1906 = vst.msk [vmem:[#allocation3 + $0x20] sm:$0xf] %vm1897, %v1818
        %1907 = vst.msk [vmem:[#allocation3 + $0x24] sm:$0xf] %vm1897, %v1820
        %1908 = vst.msk [vmem:[#allocation3 + $0x28] sm:$0xf] %vm1897, %v1822
        %1909 = vst.msk [vmem:[#allocation3 + $0x2c] sm:$0xf] %vm1897, %v1824
        %1910 = vst.msk [vmem:[#allocation3 + $0x30] sm:$0xf] %vm1897, %v1826
        %1911 = vst.msk [vmem:[#allocation3 + $0x34] sm:$0xf] %vm1897, %v1828
        %1912 = vst.msk [vmem:[#allocation3 + $0x38] sm:$0xf] %vm1897, %v1830
        %1913 = vst.msk [vmem:[#allocation3 + $0x3c] sm:$0xf] %vm1897, %v1832
        %1914 = vst.msk [vmem:[#allocation3 + $0x40] sm:$0xf] %vm1897, %v1834
        %1915 = vst.msk [vmem:[#allocation3 + $0x44] sm:$0xf] %vm1897, %v1836
        %1916 = vst.msk [vmem:[#allocation3 + $0x48] sm:$0xf] %vm1897, %v1838
        %1917 = vst.msk [vmem:[#allocation3 + $0x4c] sm:$0xf] %vm1897, %v1840
        %1918 = vst.msk [vmem:[#allocation3 + $0x50] sm:$0xf] %vm1897, %v1842
        %1919 = vst.msk [vmem:[#allocation3 + $0x54] sm:$0xf] %vm1897, %v1844
        %1920 = vst.msk [vmem:[#allocation3 + $0x58] sm:$0xf] %vm1897, %v1846
        %1921 = vst.msk [vmem:[#allocation3 + $0x5c] sm:$0xf] %vm1897, %v1848
        %1922 = vst.msk [vmem:[#allocation3 + $0x60] sm:$0xf] %vm1897, %v1850
        %1923 = vst.msk [vmem:[#allocation3 + $0x64] sm:$0xf] %vm1897, %v1852
        %1924 = vst.msk [vmem:[#allocation3 + $0x68] sm:$0xf] %vm1897, %v1854
        %1925 = vst.msk [vmem:[#allocation3 + $0x6c] sm:$0xf] %vm1897, %v1856
        %1926 = vst.msk [vmem:[#allocation3 + $0x70] sm:$0xf] %vm1897, %v1858
        %1927 = vst.msk [vmem:[#allocation3 + $0x74] sm:$0xf] %vm1897, %v1860
        %1928 = vst.msk [vmem:[#allocation3 + $0x78] sm:$0xf] %vm1897, %v1862
        %1929 = vst.msk [vmem:[#allocation3 + $0x7c] sm:$0xf] %vm1897, %v1864
        %v1930 = vld [vmem:[%s1704 + $0x1] sm:$0xff]
        %v1931 = vld [vmem:[%s1704 + $0x9] sm:$0xff]
        %v1932 = vld [vmem:[%s1704 + $0x19] sm:$0xff]
        %v1933 = vld [vmem:[%s1704 + $0x21] sm:$0xff]
        %v1934 = vld [vmem:[%s1704 + $0x31] sm:$0xff]
        %v1935 = vld [vmem:[%s1704 + $0x39] sm:$0xff]
        %v1936 = vld [vmem:[%s1704 + $0x49] sm:$0xff]
        %v1937 = vld [vmem:[%s1704 + $0x51] sm:$0xff]
        %v1938 = vld [vmem:[%s1704 + $0x61] sm:$0xff]
        %v1939 = vld [vmem:[%s1704 + $0x69] sm:$0xff]
        %v1940 = vld [vmem:[%s1704 + $0x79] sm:$0xff]
        %v1941 = vld [vmem:[%s1704 + $0x81] sm:$0xff]
        %v1942 = vld [vmem:[%s1704 + $0x91] sm:$0xff]
        %v1943 = vld [vmem:[%s1704 + $0x99] sm:$0xff]
        %v1944 = vld [vmem:[%s1704 + $0xa9] sm:$0xff]
        %v1945 = vld [vmem:[%s1704 + $0xb1] sm:$0xff]
        %v1946 = vld [vmem:[%s1704 + $0xc1] sm:$0xff]
        %v1947 = vld [vmem:[%s1704 + $0xc9] sm:$0xff]
        %v1948 = vld [vmem:[%s1704 + $0xd9] sm:$0xff]
        %v1949 = vld [vmem:[%s1704 + $0xe1] sm:$0xff]
        %v1950 = vld [vmem:[%s1704 + $0xf1] sm:$0xff]
        %v1951 = vld [vmem:[%s1704 + $0xf9] sm:$0xff]
        %v1952 = vld [vmem:[%s1704 + $0x109] sm:$0xff]
        %v1953 = vld [vmem:[%s1704 + $0x111] sm:$0xff]
        %v1954 = vld [vmem:[%s1704 + $0x121] sm:$0xff]
        %v1955 = vld [vmem:[%s1704 + $0x129] sm:$0xff]
        %v1956 = vld [vmem:[%s1704 + $0x139] sm:$0xff]
        %v1957 = vld [vmem:[%s1704 + $0x141] sm:$0xff]
        %v1958 = vld [vmem:[%s1704 + $0x151] sm:$0xff]
        %v1959 = vld [vmem:[%s1704 + $0x159] sm:$0xff]
        %v1960 = vld [vmem:[%s1704 + $0x169] sm:$0xff]
        %v1961 = vld [vmem:[%s1704 + $0x171] sm:$0xff]
        %v1962 = vpack.c.bf16 %v1930, %v1930
        %v1963 = vpack.c.bf16 %v1931, %v1931
        %v1964 = vpack.c.bf16 %v1932, %v1932
        %v1965 = vpack.c.bf16 %v1933, %v1933
        %v1966 = vpack.c.bf16 %v1934, %v1934
        %v1967 = vpack.c.bf16 %v1935, %v1935
        %v1968 = vpack.c.bf16 %v1936, %v1936
        %v1969 = vpack.c.bf16 %v1937, %v1937
        %v1970 = vpack.c.bf16 %v1938, %v1938
        %v1971 = vpack.c.bf16 %v1939, %v1939
        %v1972 = vpack.c.bf16 %v1940, %v1940
        %v1973 = vpack.c.bf16 %v1941, %v1941
        %v1974 = vpack.c.bf16 %v1942, %v1942
        %v1975 = vpack.c.bf16 %v1943, %v1943
        %v1976 = vpack.c.bf16 %v1944, %v1944
        %v1977 = vpack.c.bf16 %v1945, %v1945
        %v1978 = vpack.c.bf16 %v1946, %v1946
        %v1979 = vpack.c.bf16 %v1947, %v1947
        %v1980 = vpack.c.bf16 %v1948, %v1948
        %v1981 = vpack.c.bf16 %v1949, %v1949
        %v1982 = vpack.c.bf16 %v1950, %v1950
        %v1983 = vpack.c.bf16 %v1951, %v1951
        %v1984 = vpack.c.bf16 %v1952, %v1952
        %v1985 = vpack.c.bf16 %v1953, %v1953
        %v1986 = vpack.c.bf16 %v1954, %v1954
        %v1987 = vpack.c.bf16 %v1955, %v1955
        %v1988 = vpack.c.bf16 %v1956, %v1956
        %v1989 = vpack.c.bf16 %v1957, %v1957
        %v1990 = vpack.c.bf16 %v1958, %v1958
        %v1991 = vpack.c.bf16 %v1959, %v1959
        %v1992 = vpack.c.bf16 %v1960, %v1960
        %v1993 = vpack.c.bf16 %v1961, %v1961
        %2026 = vrot.lane.b32.xlu0 %v1962, 28
        %v2027 = vpop.permute.xlu0 %2026
        %2028 = vrot.lane.b32.xlu0 %v1963, 28
        %v2029 = vpop.permute.xlu0 %2028
        %2030 = vrot.lane.b32.xlu0 %v1964, 28
        %v2031 = vpop.permute.xlu0 %2030
        %2032 = vrot.lane.b32.xlu0 %v1965, 28
        %v2033 = vpop.permute.xlu0 %2032
        %2034 = vrot.lane.b32.xlu0 %v1966, 28
        %v2035 = vpop.permute.xlu0 %2034
        %2036 = vrot.lane.b32.xlu0 %v1967, 28
        %v2037 = vpop.permute.xlu0 %2036
        %2038 = vrot.lane.b32.xlu0 %v1968, 28
        %v2039 = vpop.permute.xlu0 %2038
        %2040 = vrot.lane.b32.xlu0 %v1969, 28
        %v2041 = vpop.permute.xlu0 %2040
        %2042 = vrot.lane.b32.xlu0 %v1970, 28
        %v2043 = vpop.permute.xlu0 %2042
        %2044 = vrot.lane.b32.xlu0 %v1971, 28
        %v2045 = vpop.permute.xlu0 %2044
        %2046 = vrot.lane.b32.xlu0 %v1972, 28
        %v2047 = vpop.permute.xlu0 %2046
        %2048 = vrot.lane.b32.xlu0 %v1973, 28
        %v2049 = vpop.permute.xlu0 %2048
        %2050 = vrot.lane.b32.xlu0 %v1974, 28
        %v2051 = vpop.permute.xlu0 %2050
        %2052 = vrot.lane.b32.xlu0 %v1975, 28
        %v2053 = vpop.permute.xlu0 %2052
        %2054 = vrot.lane.b32.xlu0 %v1976, 28
        %v2055 = vpop.permute.xlu0 %2054
        %2056 = vrot.lane.b32.xlu0 %v1977, 28
        %v2057 = vpop.permute.xlu0 %2056
        %2058 = vrot.lane.b32.xlu0 %v1978, 28
        %v2059 = vpop.permute.xlu0 %2058
        %2060 = vrot.lane.b32.xlu0 %v1979, 28
        %v2061 = vpop.permute.xlu0 %2060
        %2062 = vrot.lane.b32.xlu0 %v1980, 28
        %v2063 = vpop.permute.xlu0 %2062
        %2064 = vrot.lane.b32.xlu0 %v1981, 28
        %v2065 = vpop.permute.xlu0 %2064
        %2066 = vrot.lane.b32.xlu0 %v1982, 28
        %v2067 = vpop.permute.xlu0 %2066
        %2068 = vrot.lane.b32.xlu0 %v1983, 28
        %v2069 = vpop.permute.xlu0 %2068
        %2070 = vrot.lane.b32.xlu0 %v1984, 28
        %v2071 = vpop.permute.xlu0 %2070
        %2072 = vrot.lane.b32.xlu0 %v1985, 28
        %v2073 = vpop.permute.xlu0 %2072
        %2074 = vrot.lane.b32.xlu0 %v1986, 28
        %v2075 = vpop.permute.xlu0 %2074
        %2076 = vrot.lane.b32.xlu0 %v1987, 28
        %v2077 = vpop.permute.xlu0 %2076
        %2078 = vrot.lane.b32.xlu0 %v1988, 28
        %v2079 = vpop.permute.xlu0 %2078
        %2080 = vrot.lane.b32.xlu0 %v1989, 28
        %v2081 = vpop.permute.xlu0 %2080
        %2082 = vrot.lane.b32.xlu0 %v1990, 28
        %v2083 = vpop.permute.xlu0 %2082
        %2084 = vrot.lane.b32.xlu0 %v1991, 28
        %v2085 = vpop.permute.xlu0 %2084
        %2086 = vrot.lane.b32.xlu0 %v1992, 28
        %v2087 = vpop.permute.xlu0 %2086
        %2088 = vrot.lane.b32.xlu0 %v1993, 28
        %v2089 = vpop.permute.xlu0 %2088
        %vm2122 = vcmask 257248
        %2123 = vst.msk [vmem:[#allocation3] sm:$0xf] %vm2122, %v2027
        %2124 = vst.msk [vmem:[#allocation3 + $0x4] sm:$0xf] %vm2122, %v2029
        %2125 = vst.msk [vmem:[#allocation3 + $0x8] sm:$0xf] %vm2122, %v2031
        %2126 = vst.msk [vmem:[#allocation3 + $0xc] sm:$0xf] %vm2122, %v2033
        %2127 = vst.msk [vmem:[#allocation3 + $0x10] sm:$0xf] %vm2122, %v2035
        %2128 = vst.msk [vmem:[#allocation3 + $0x14] sm:$0xf] %vm2122, %v2037
        %2129 = vst.msk [vmem:[#allocation3 + $0x18] sm:$0xf] %vm2122, %v2039
        %2130 = vst.msk [vmem:[#allocation3 + $0x1c] sm:$0xf] %vm2122, %v2041
        %2131 = vst.msk [vmem:[#allocation3 + $0x20] sm:$0xf] %vm2122, %v2043
        %2132 = vst.msk [vmem:[#allocation3 + $0x24] sm:$0xf] %vm2122, %v2045
        %2133 = vst.msk [vmem:[#allocation3 + $0x28] sm:$0xf] %vm2122, %v2047
        %2134 = vst.msk [vmem:[#allocation3 + $0x2c] sm:$0xf] %vm2122, %v2049
        %2135 = vst.msk [vmem:[#allocation3 + $0x30] sm:$0xf] %vm2122, %v2051
        %2136 = vst.msk [vmem:[#allocation3 + $0x34] sm:$0xf] %vm2122, %v2053
        %2137 = vst.msk [vmem:[#allocation3 + $0x38] sm:$0xf] %vm2122, %v2055
        %2138 = vst.msk [vmem:[#allocation3 + $0x3c] sm:$0xf] %vm2122, %v2057
        %2139 = vst.msk [vmem:[#allocation3 + $0x40] sm:$0xf] %vm2122, %v2059
        %2140 = vst.msk [vmem:[#allocation3 + $0x44] sm:$0xf] %vm2122, %v2061
        %2141 = vst.msk [vmem:[#allocation3 + $0x48] sm:$0xf] %vm2122, %v2063
        %2142 = vst.msk [vmem:[#allocation3 + $0x4c] sm:$0xf] %vm2122, %v2065
        %2143 = vst.msk [vmem:[#allocation3 + $0x50] sm:$0xf] %vm2122, %v2067
        %2144 = vst.msk [vmem:[#allocation3 + $0x54] sm:$0xf] %vm2122, %v2069
        %2145 = vst.msk [vmem:[#allocation3 + $0x58] sm:$0xf] %vm2122, %v2071
        %2146 = vst.msk [vmem:[#allocation3 + $0x5c] sm:$0xf] %vm2122, %v2073
        %2147 = vst.msk [vmem:[#allocation3 + $0x60] sm:$0xf] %vm2122, %v2075
        %2148 = vst.msk [vmem:[#allocation3 + $0x64] sm:$0xf] %vm2122, %v2077
        %2149 = vst.msk [vmem:[#allocation3 + $0x68] sm:$0xf] %vm2122, %v2079
        %2150 = vst.msk [vmem:[#allocation3 + $0x6c] sm:$0xf] %vm2122, %v2081
        %2151 = vst.msk [vmem:[#allocation3 + $0x70] sm:$0xf] %vm2122, %v2083
        %2152 = vst.msk [vmem:[#allocation3 + $0x74] sm:$0xf] %vm2122, %v2085
        %2153 = vst.msk [vmem:[#allocation3 + $0x78] sm:$0xf] %vm2122, %v2087
        %2154 = vst.msk [vmem:[#allocation3 + $0x7c] sm:$0xf] %vm2122, %v2089
        %v2155 = vld [vmem:[%s1704 + $0x2] sm:$0xff]
        %v2156 = vld [vmem:[%s1704 + $0xa] sm:$0xff]
        %v2157 = vld [vmem:[%s1704 + $0x1a] sm:$0xff]
        %v2158 = vld [vmem:[%s1704 + $0x22] sm:$0xff]
        %v2159 = vld [vmem:[%s1704 + $0x32] sm:$0xff]
        %v2160 = vld [vmem:[%s1704 + $0x3a] sm:$0xff]
        %v2161 = vld [vmem:[%s1704 + $0x4a] sm:$0xff]
        %v2162 = vld [vmem:[%s1704 + $0x52] sm:$0xff]
        %v2163 = vld [vmem:[%s1704 + $0x62] sm:$0xff]
        %v2164 = vld [vmem:[%s1704 + $0x6a] sm:$0xff]
        %v2165 = vld [vmem:[%s1704 + $0x7a] sm:$0xff]
        %v2166 = vld [vmem:[%s1704 + $0x82] sm:$0xff]
        %v2167 = vld [vmem:[%s1704 + $0x92] sm:$0xff]
        %v2168 = vld [vmem:[%s1704 + $0x9a] sm:$0xff]
        %v2169 = vld [vmem:[%s1704 + $0xaa] sm:$0xff]
        %v2170 = vld [vmem:[%s1704 + $0xb2] sm:$0xff]
        %v2171 = vld [vmem:[%s1704 + $0xc2] sm:$0xff]
        %v2172 = vld [vmem:[%s1704 + $0xca] sm:$0xff]
        %v2173 = vld [vmem:[%s1704 + $0xda] sm:$0xff]
        %v2174 = vld [vmem:[%s1704 + $0xe2] sm:$0xff]
        %v2175 = vld [vmem:[%s1704 + $0xf2] sm:$0xff]
        %v2176 = vld [vmem:[%s1704 + $0xfa] sm:$0xff]
        %v2177 = vld [vmem:[%s1704 + $0x10a] sm:$0xff]
        %v2178 = vld [vmem:[%s1704 + $0x112] sm:$0xff]
        %v2179 = vld [vmem:[%s1704 + $0x122] sm:$0xff]
        %v2180 = vld [vmem:[%s1704 + $0x12a] sm:$0xff]
        %v2181 = vld [vmem:[%s1704 + $0x13a] sm:$0xff]
        %v2182 = vld [vmem:[%s1704 + $0x142] sm:$0xff]
        %v2183 = vld [vmem:[%s1704 + $0x152] sm:$0xff]
        %v2184 = vld [vmem:[%s1704 + $0x15a] sm:$0xff]
        %v2185 = vld [vmem:[%s1704 + $0x16a] sm:$0xff]
        %v2186 = vld [vmem:[%s1704 + $0x172] sm:$0xff]
        %v2187 = vpack.c.bf16 %v2155, %v2155
        %v2188 = vpack.c.bf16 %v2156, %v2156
        %v2189 = vpack.c.bf16 %v2157, %v2157
        %v2190 = vpack.c.bf16 %v2158, %v2158
        %v2191 = vpack.c.bf16 %v2159, %v2159
        %v2192 = vpack.c.bf16 %v2160, %v2160
        %v2193 = vpack.c.bf16 %v2161, %v2161
        %v2194 = vpack.c.bf16 %v2162, %v2162
        %v2195 = vpack.c.bf16 %v2163, %v2163
        %v2196 = vpack.c.bf16 %v2164, %v2164
        %v2197 = vpack.c.bf16 %v2165, %v2165
        %v2198 = vpack.c.bf16 %v2166, %v2166
        %v2199 = vpack.c.bf16 %v2167, %v2167
        %v2200 = vpack.c.bf16 %v2168, %v2168
        %v2201 = vpack.c.bf16 %v2169, %v2169
        %v2202 = vpack.c.bf16 %v2170, %v2170
        %v2203 = vpack.c.bf16 %v2171, %v2171
        %v2204 = vpack.c.bf16 %v2172, %v2172
        %v2205 = vpack.c.bf16 %v2173, %v2173
        %v2206 = vpack.c.bf16 %v2174, %v2174
        %v2207 = vpack.c.bf16 %v2175, %v2175
        %v2208 = vpack.c.bf16 %v2176, %v2176
        %v2209 = vpack.c.bf16 %v2177, %v2177
        %v2210 = vpack.c.bf16 %v2178, %v2178
        %v2211 = vpack.c.bf16 %v2179, %v2179
        %v2212 = vpack.c.bf16 %v2180, %v2180
        %v2213 = vpack.c.bf16 %v2181, %v2181
        %v2214 = vpack.c.bf16 %v2182, %v2182
        %v2215 = vpack.c.bf16 %v2183, %v2183
        %v2216 = vpack.c.bf16 %v2184, %v2184
        %v2217 = vpack.c.bf16 %v2185, %v2185
        %v2218 = vpack.c.bf16 %v2186, %v2186
        %2251 = vrot.lane.b32.xlu0 %v2187, 32
        %v2252 = vpop.permute.xlu0 %2251
        %2253 = vrot.lane.b32.xlu0 %v2188, 32
        %v2254 = vpop.permute.xlu0 %2253
        %2255 = vrot.lane.b32.xlu0 %v2189, 32
        %v2256 = vpop.permute.xlu0 %2255
        %2257 = vrot.lane.b32.xlu0 %v2190, 32
        %v2258 = vpop.permute.xlu0 %2257
        %2259 = vrot.lane.b32.xlu0 %v2191, 32
        %v2260 = vpop.permute.xlu0 %2259
        %2261 = vrot.lane.b32.xlu0 %v2192, 32
        %v2262 = vpop.permute.xlu0 %2261
        %2263 = vrot.lane.b32.xlu0 %v2193, 32
        %v2264 = vpop.permute.xlu0 %2263
        %2265 = vrot.lane.b32.xlu0 %v2194, 32
        %v2266 = vpop.permute.xlu0 %2265
        %2267 = vrot.lane.b32.xlu0 %v2195, 32
        %v2268 = vpop.permute.xlu0 %2267
        %2269 = vrot.lane.b32.xlu0 %v2196, 32
        %v2270 = vpop.permute.xlu0 %2269
        %2271 = vrot.lane.b32.xlu0 %v2197, 32
        %v2272 = vpop.permute.xlu0 %2271
        %2273 = vrot.lane.b32.xlu0 %v2198, 32
        %v2274 = vpop.permute.xlu0 %2273
        %2275 = vrot.lane.b32.xlu0 %v2199, 32
        %v2276 = vpop.permute.xlu0 %2275
        %2277 = vrot.lane.b32.xlu0 %v2200, 32
        %v2278 = vpop.permute.xlu0 %2277
        %2279 = vrot.lane.b32.xlu0 %v2201, 32
        %v2280 = vpop.permute.xlu0 %2279
        %2281 = vrot.lane.b32.xlu0 %v2202, 32
        %v2282 = vpop.permute.xlu0 %2281
        %2283 = vrot.lane.b32.xlu0 %v2203, 32
        %v2284 = vpop.permute.xlu0 %2283
        %2285 = vrot.lane.b32.xlu0 %v2204, 32
        %v2286 = vpop.permute.xlu0 %2285
        %2287 = vrot.lane.b32.xlu0 %v2205, 32
        %v2288 = vpop.permute.xlu0 %2287
        %2289 = vrot.lane.b32.xlu0 %v2206, 32
        %v2290 = vpop.permute.xlu0 %2289
        %2291 = vrot.lane.b32.xlu0 %v2207, 32
        %v2292 = vpop.permute.xlu0 %2291
        %2293 = vrot.lane.b32.xlu0 %v2208, 32
        %v2294 = vpop.permute.xlu0 %2293
        %2295 = vrot.lane.b32.xlu0 %v2209, 32
        %v2296 = vpop.permute.xlu0 %2295
        %2297 = vrot.lane.b32.xlu0 %v2210, 32
        %v2298 = vpop.permute.xlu0 %2297
        %2299 = vrot.lane.b32.xlu0 %v2211, 32
        %v2300 = vpop.permute.xlu0 %2299
        %2301 = vrot.lane.b32.xlu0 %v2212, 32
        %v2302 = vpop.permute.xlu0 %2301
        %2303 = vrot.lane.b32.xlu0 %v2213, 32
        %v2304 = vpop.permute.xlu0 %2303
        %2305 = vrot.lane.b32.xlu0 %v2214, 32
        %v2306 = vpop.permute.xlu0 %2305
        %2307 = vrot.lane.b32.xlu0 %v2215, 32
        %v2308 = vpop.permute.xlu0 %2307
        %2309 = vrot.lane.b32.xlu0 %v2216, 32
        %v2310 = vpop.permute.xlu0 %2309
        %2311 = vrot.lane.b32.xlu0 %v2217, 32
        %v2312 = vpop.permute.xlu0 %2311
        %2313 = vrot.lane.b32.xlu0 %v2218, 32
        %v2314 = vpop.permute.xlu0 %2313
        %vm2347 = vcmask 290048
        %2348 = vst.msk [vmem:[#allocation3] sm:$0xf] %vm2347, %v2252
        %2349 = vst.msk [vmem:[#allocation3 + $0x4] sm:$0xf] %vm2347, %v2254
        %2350 = vst.msk [vmem:[#allocation3 + $0x8] sm:$0xf] %vm2347, %v2256
        %2351 = vst.msk [vmem:[#allocation3 + $0xc] sm:$0xf] %vm2347, %v2258
        %2352 = vst.msk [vmem:[#allocation3 + $0x10] sm:$0xf] %vm2347, %v2260
        %2353 = vst.msk [vmem:[#allocation3 + $0x14] sm:$0xf] %vm2347, %v2262
        %2354 = vst.msk [vmem:[#allocation3 + $0x18] sm:$0xf] %vm2347, %v2264
        %2355 = vst.msk [vmem:[#allocation3 + $0x1c] sm:$0xf] %vm2347, %v2266
        %2356 = vst.msk [vmem:[#allocation3 + $0x20] sm:$0xf] %vm2347, %v2268
        %2357 = vst.msk [vmem:[#allocation3 + $0x24] sm:$0xf] %vm2347, %v2270
        %2358 = vst.msk [vmem:[#allocation3 + $0x28] sm:$0xf] %vm2347, %v2272
        %2359 = vst.msk [vmem:[#allocation3 + $0x2c] sm:$0xf] %vm2347, %v2274
        %2360 = vst.msk [vmem:[#allocation3 + $0x30] sm:$0xf] %vm2347, %v2276
        %2361 = vst.msk [vmem:[#allocation3 + $0x34] sm:$0xf] %vm2347, %v2278
        %2362 = vst.msk [vmem:[#allocation3 + $0x38] sm:$0xf] %vm2347, %v2280
        %2363 = vst.msk [vmem:[#allocation3 + $0x3c] sm:$0xf] %vm2347, %v2282
        %2364 = vst.msk [vmem:[#allocation3 + $0x40] sm:$0xf] %vm2347, %v2284
        %2365 = vst.msk [vmem:[#allocation3 + $0x44] sm:$0xf] %vm2347, %v2286
        %2366 = vst.msk [vmem:[#allocation3 + $0x48] sm:$0xf] %vm2347, %v2288
        %2367 = vst.msk [vmem:[#allocation3 + $0x4c] sm:$0xf] %vm2347, %v2290
        %2368 = vst.msk [vmem:[#allocation3 + $0x50] sm:$0xf] %vm2347, %v2292
        %2369 = vst.msk [vmem:[#allocation3 + $0x54] sm:$0xf] %vm2347, %v2294
        %2370 = vst.msk [vmem:[#allocation3 + $0x58] sm:$0xf] %vm2347, %v2296
        %2371 = vst.msk [vmem:[#allocation3 + $0x5c] sm:$0xf] %vm2347, %v2298
        %2372 = vst.msk [vmem:[#allocation3 + $0x60] sm:$0xf] %vm2347, %v2300
        %2373 = vst.msk [vmem:[#allocation3 + $0x64] sm:$0xf] %vm2347, %v2302
        %2374 = vst.msk [vmem:[#allocation3 + $0x68] sm:$0xf] %vm2347, %v2304
        %2375 = vst.msk [vmem:[#allocation3 + $0x6c] sm:$0xf] %vm2347, %v2306
        %2376 = vst.msk [vmem:[#allocation3 + $0x70] sm:$0xf] %vm2347, %v2308
        %2377 = vst.msk [vmem:[#allocation3 + $0x74] sm:$0xf] %vm2347, %v2310
        %2378 = vst.msk [vmem:[#allocation3 + $0x78] sm:$0xf] %vm2347, %v2312
        %2379 = vst.msk [vmem:[#allocation3 + $0x7c] sm:$0xf] %vm2347, %v2314
        %v2380 = vld [vmem:[#allocation3] sm:$0xf]
        %v2381 = vld [vmem:[#allocation3 + $0x4] sm:$0xf]
        %v2382 = vld [vmem:[#allocation3 + $0x8] sm:$0xf]
        %v2383 = vld [vmem:[#allocation3 + $0xc] sm:$0xf]
        %v2384 = vld [vmem:[#allocation3 + $0x10] sm:$0xf]
        %v2385 = vld [vmem:[#allocation3 + $0x14] sm:$0xf]
        %v2386 = vld [vmem:[#allocation3 + $0x18] sm:$0xf]
        %v2387 = vld [vmem:[#allocation3 + $0x1c] sm:$0xf]
        %v2388 = vld [vmem:[#allocation3 + $0x20] sm:$0xf]
        %v2389 = vld [vmem:[#allocation3 + $0x24] sm:$0xf]
        %v2390 = vld [vmem:[#allocation3 + $0x28] sm:$0xf]
        %v2391 = vld [vmem:[#allocation3 + $0x2c] sm:$0xf]
        %v2392 = vld [vmem:[#allocation3 + $0x30] sm:$0xf]
        %v2393 = vld [vmem:[#allocation3 + $0x34] sm:$0xf]
        %v2394 = vld [vmem:[#allocation3 + $0x38] sm:$0xf]
        %v2395 = vld [vmem:[#allocation3 + $0x3c] sm:$0xf]
        %v2396 = vld [vmem:[#allocation3 + $0x40] sm:$0xf]
        %v2397 = vld [vmem:[#allocation3 + $0x44] sm:$0xf]
        %v2398 = vld [vmem:[#allocation3 + $0x48] sm:$0xf]
        %v2399 = vld [vmem:[#allocation3 + $0x4c] sm:$0xf]
        %v2400 = vld [vmem:[#allocation3 + $0x50] sm:$0xf]
        %v2401 = vld [vmem:[#allocation3 + $0x54] sm:$0xf]
        %v2402 = vld [vmem:[#allocation3 + $0x58] sm:$0xf]
        %v2403 = vld [vmem:[#allocation3 + $0x5c] sm:$0xf]
        %v2404 = vld [vmem:[#allocation3 + $0x60] sm:$0xf]
        %v2405 = vld [vmem:[#allocation3 + $0x64] sm:$0xf]
        %v2406 = vld [vmem:[#allocation3 + $0x68] sm:$0xf]
        %v2407 = vld [vmem:[#allocation3 + $0x6c] sm:$0xf]
        %v2408 = vld [vmem:[#allocation3 + $0x70] sm:$0xf]
        %v2409 = vld [vmem:[#allocation3 + $0x74] sm:$0xf]
        %v2410 = vld [vmem:[#allocation3 + $0x78] sm:$0xf]
        %v2411 = vld [vmem:[#allocation3 + $0x7c] sm:$0xf]
        %v2412 = vld [vmem:[%s1] sm:$0xf]
        %v2413 = vld [vmem:[%s1 + $0x4] sm:$0xf]
        %v2414 = vld [vmem:[%s1 + $0x8] sm:$0xf]
        %v2415 = vld [vmem:[%s1 + $0xc] sm:$0xf]
        %v2416 = vld [vmem:[%s1 + $0x10] sm:$0x3]
        %v2417 = vld [vmem:[%s2] sm:$0x1]
        %v2419 = vperm.slane %v2417, 0
        %v2453 = vunpack.c.l.b16 %v2380
        %v2454 = vunpack.c.l.b16 %v2381
        %v2455 = vunpack.c.l.b16 %v2382
        %v2456 = vunpack.c.l.b16 %v2383
        %v2457 = vunpack.c.l.b16 %v2384
        %v2458 = vunpack.c.l.b16 %v2385
        %v2459 = vunpack.c.l.b16 %v2386
        %v2460 = vunpack.c.l.b16 %v2387
        %v2461 = vunpack.c.l.b16 %v2388
        %v2462 = vunpack.c.l.b16 %v2389
        %v2463 = vunpack.c.l.b16 %v2390
        %v2464 = vunpack.c.l.b16 %v2391
        %v2465 = vunpack.c.l.b16 %v2392
        %v2466 = vunpack.c.l.b16 %v2393
        %v2467 = vunpack.c.l.b16 %v2394
        %v2468 = vunpack.c.l.b16 %v2395
        %v2469 = vunpack.c.l.b16 %v2396
        %v2470 = vunpack.c.l.b16 %v2397
        %v2471 = vunpack.c.l.b16 %v2398
        %v2472 = vunpack.c.l.b16 %v2399
        %v2473 = vunpack.c.l.b16 %v2400
        %v2474 = vunpack.c.l.b16 %v2401
        %v2475 = vunpack.c.l.b16 %v2402
        %v2476 = vunpack.c.l.b16 %v2403
        %v2477 = vunpack.c.l.b16 %v2404
        %v2478 = vunpack.c.l.b16 %v2405
        %v2479 = vunpack.c.l.b16 %v2406
        %v2480 = vunpack.c.l.b16 %v2407
        %v2481 = vunpack.c.l.b16 %v2408
        %v2482 = vunpack.c.l.b16 %v2409
        %v2483 = vunpack.c.l.b16 %v2410
        %v2484 = vunpack.c.l.b16 %v2411
        %v2485 = vpack.c.b16 %v2454, %v2453
        %v2486 = vpack.c.b16 %v2456, %v2455
        %v2487 = vpack.c.b16 %v2458, %v2457
        %v2488 = vpack.c.b16 %v2460, %v2459
        %v2489 = vpack.c.b16 %v2462, %v2461
        %v2490 = vpack.c.b16 %v2464, %v2463
        %v2491 = vpack.c.b16 %v2466, %v2465
        %v2492 = vpack.c.b16 %v2468, %v2467
        %v2493 = vpack.c.b16 %v2470, %v2469
        %v2494 = vpack.c.b16 %v2472, %v2471
        %v2495 = vpack.c.b16 %v2474, %v2473
        %v2496 = vpack.c.b16 %v2476, %v2475
        %v2497 = vpack.c.b16 %v2478, %v2477
        %v2498 = vpack.c.b16 %v2480, %v2479
        %v2499 = vpack.c.b16 %v2482, %v2481
        %v2500 = vpack.c.b16 %v2484, %v2483
        %v2506 = vunpack.c.l.b16 %v2412
        %v2507 = vunpack.c.l.b16 %v2413
        %v2508 = vunpack.c.l.b16 %v2414
        %v2509 = vunpack.c.l.b16 %v2415
        %v2510 = vunpack.c.l.b16 %v2416
        %v2511 = vpack.c.b16 %v2507, %v2506
        %v2512 = vpack.c.b16 %v2509, %v2508
        %v2513 = vpack.c.b16 %v2510, %v2510
        %vm2516 = vcmask 293888
        %v2518 = vsel %vm2516, %v2485, 0
        %v2521 = vsel %vm2516, %v2486, 0
        %v2524 = vsel %vm2516, %v2487, 0
        %v2527 = vsel %vm2516, %v2488, 0
        %v2530 = vsel %vm2516, %v2489, 0
        %v2533 = vsel %vm2516, %v2490, 0
        %v2536 = vsel %vm2516, %v2491, 0
        %v2539 = vsel %vm2516, %v2492, 0
        %v2542 = vsel %vm2516, %v2493, 0
        %v2545 = vsel %vm2516, %v2494, 0
        %v2548 = vsel %vm2516, %v2495, 0
        %v2551 = vsel %vm2516, %v2496, 0
        %v2554 = vsel %vm2516, %v2497, 0
        %v2557 = vsel %vm2516, %v2498, 0
        %v2560 = vsel %vm2516, %v2499, 0
        %v2563 = vsel %vm2516, %v2500, 0
        %vm2565 = vcmask 1041408
        %v2567 = vsel %vm2565, %v2513, 0
        %2569 = vmatpush.bf16.msra.mxu0 0
        %2570 = vmatpush.bf16.msra.mxu0 0
        %2571 = vmatpush.bf16.msra.mxu0 0
        %2572 = vmatpush.bf16.msra.mxu0 0
        %2573 = vmatpush.bf16.msra.mxu0 0
        %2574 = vmatpush.bf16.msra.mxu0 %v2567
        %2575 = vmatpush.bf16.msra.mxu0 %v2512
        %2576 = vmatpush.bf16.msra.mxu0 %v2511
        %2577 = vmatmul.bf16.gmra.mxu0 %v2518
        %v2578 = vpop.f32.mrf.mxu0
        %v2579 = vadd.f32 %v2419, %v2578
        %v2580 = vpop.f32.mrf.mxu0
        %v2581 = vadd.f32 %v2419, %v2580
        %2582 = vmatmul.bf16.gmra.mxu0 %v2521
        %v2583 = vpop.f32.mrf.mxu0
        %v2584 = vadd.f32 %v2419, %v2583
        %v2585 = vpop.f32.mrf.mxu0
        %v2586 = vadd.f32 %v2419, %v2585
        %2587 = vmatmul.bf16.gmra.mxu0 %v2524
        %v2588 = vpop.f32.mrf.mxu0
        %v2589 = vadd.f32 %v2419, %v2588
        %v2590 = vpop.f32.mrf.mxu0
        %v2591 = vadd.f32 %v2419, %v2590
        %2592 = vmatmul.bf16.gmra.mxu0 %v2527
        %v2593 = vpop.f32.mrf.mxu0
        %v2594 = vadd.f32 %v2419, %v2593
        %v2595 = vpop.f32.mrf.mxu0
        %v2596 = vadd.f32 %v2419, %v2595
        %2597 = vmatmul.bf16.gmra.mxu0 %v2530
        %v2598 = vpop.f32.mrf.mxu0
        %v2599 = vadd.f32 %v2419, %v2598
        %v2600 = vpop.f32.mrf.mxu0
        %v2601 = vadd.f32 %v2419, %v2600
        %2602 = vmatmul.bf16.gmra.mxu0 %v2533
        %v2603 = vpop.f32.mrf.mxu0
        %v2604 = vadd.f32 %v2419, %v2603
        %v2605 = vpop.f32.mrf.mxu0
        %v2606 = vadd.f32 %v2419, %v2605
        %2607 = vmatmul.bf16.gmra.mxu0 %v2536
        %v2608 = vpop.f32.mrf.mxu0
        %v2609 = vadd.f32 %v2419, %v2608
        %v2610 = vpop.f32.mrf.mxu0
        %v2611 = vadd.f32 %v2419, %v2610
        %2612 = vmatmul.bf16.gmra.mxu0 %v2539
        %v2613 = vpop.f32.mrf.mxu0
        %v2614 = vadd.f32 %v2419, %v2613
        %v2615 = vpop.f32.mrf.mxu0
        %v2616 = vadd.f32 %v2419, %v2615
        %2617 = vmatmul.bf16.gmra.mxu0 %v2542
        %v2618 = vpop.f32.mrf.mxu0
        %v2619 = vadd.f32 %v2419, %v2618
        %v2620 = vpop.f32.mrf.mxu0
        %v2621 = vadd.f32 %v2419, %v2620
        %2622 = vmatmul.bf16.gmra.mxu0 %v2545
        %v2623 = vpop.f32.mrf.mxu0
        %v2624 = vadd.f32 %v2419, %v2623
        %v2625 = vpop.f32.mrf.mxu0
        %v2626 = vadd.f32 %v2419, %v2625
        %2627 = vmatmul.bf16.gmra.mxu0 %v2548
        %v2628 = vpop.f32.mrf.mxu0
        %v2629 = vadd.f32 %v2419, %v2628
        %v2630 = vpop.f32.mrf.mxu0
        %v2631 = vadd.f32 %v2419, %v2630
        %2632 = vmatmul.bf16.gmra.mxu0 %v2551
        %v2633 = vpop.f32.mrf.mxu0
        %v2634 = vadd.f32 %v2419, %v2633
        %v2635 = vpop.f32.mrf.mxu0
        %v2636 = vadd.f32 %v2419, %v2635
        %2637 = vmatmul.bf16.gmra.mxu0 %v2554
        %v2638 = vpop.f32.mrf.mxu0
        %v2639 = vadd.f32 %v2419, %v2638
        %v2640 = vpop.f32.mrf.mxu0
        %v2641 = vadd.f32 %v2419, %v2640
        %2642 = vmatmul.bf16.gmra.mxu0 %v2557
        %v2643 = vpop.f32.mrf.mxu0
        %v2644 = vadd.f32 %v2419, %v2643
        %v2645 = vpop.f32.mrf.mxu0
        %v2646 = vadd.f32 %v2419, %v2645
        %2647 = vmatmul.bf16.gmra.mxu0 %v2560
        %v2648 = vpop.f32.mrf.mxu0
        %v2649 = vadd.f32 %v2419, %v2648
        %v2650 = vpop.f32.mrf.mxu0
        %v2651 = vadd.f32 %v2419, %v2650
        %2652 = vmatmul.bf16.gmra.mxu0 %v2563
        %v2653 = vpop.f32.mrf.mxu0
        %v2654 = vadd.f32 %v2419, %v2653
        %v2655 = vpop.f32.mrf.mxu0
        %v2656 = vadd.f32 %v2419, %v2655
        %2657 = vdwg.mxu0
        %v2658 = vmax.f32 %v2579, 0.0
        %v2659 = vmax.f32 %v2581, 0.0
        %v2660 = vmax.f32 %v2584, 0.0
        %v2661 = vmax.f32 %v2586, 0.0
        %v2662 = vmax.f32 %v2589, 0.0
        %v2663 = vmax.f32 %v2591, 0.0
        %v2664 = vmax.f32 %v2594, 0.0
        %v2665 = vmax.f32 %v2596, 0.0
        %v2666 = vmax.f32 %v2599, 0.0
        %v2667 = vmax.f32 %v2601, 0.0
        %v2668 = vmax.f32 %v2604, 0.0
        %v2669 = vmax.f32 %v2606, 0.0
        %v2670 = vmax.f32 %v2609, 0.0
        %v2671 = vmax.f32 %v2611, 0.0
        %v2672 = vmax.f32 %v2614, 0.0
        %v2673 = vmax.f32 %v2616, 0.0
        %v2674 = vmax.f32 %v2619, 0.0
        %v2675 = vmax.f32 %v2621, 0.0
        %v2676 = vmax.f32 %v2624, 0.0
        %v2677 = vmax.f32 %v2626, 0.0
        %v2678 = vmax.f32 %v2629, 0.0
        %v2679 = vmax.f32 %v2631, 0.0
        %v2680 = vmax.f32 %v2634, 0.0
        %v2681 = vmax.f32 %v2636, 0.0
        %v2682 = vmax.f32 %v2639, 0.0
        %v2683 = vmax.f32 %v2641, 0.0
        %v2684 = vmax.f32 %v2644, 0.0
        %v2685 = vmax.f32 %v2646, 0.0
        %v2686 = vmax.f32 %v2649, 0.0
        %v2687 = vmax.f32 %v2651, 0.0
        %v2688 = vmax.f32 %v2654, 0.0
        %v2689 = vmax.f32 %v2656, 0.0
        %s2690 = scalar_lea.vmem [#allocation4], 24
        %2691 = vst.msk [vmem:[%s2690 + $0x1] sm:$0xff] %vm305, %v2658
        %2692 = vst.msk [vmem:[%s2690 + $0x9] sm:$0xff] %vm305, %v2659
        %2693 = vst.msk [vmem:[%s2690 + $0x19] sm:$0xff] %vm305, %v2660
        %2694 = vst.msk [vmem:[%s2690 + $0x21] sm:$0xff] %vm305, %v2661
        %2695 = vst.msk [vmem:[%s2690 + $0x31] sm:$0xff] %vm305, %v2662
        %2696 = vst.msk [vmem:[%s2690 + $0x39] sm:$0xff] %vm305, %v2663
        %2697 = vst.msk [vmem:[%s2690 + $0x49] sm:$0xff] %vm305, %v2664
        %2698 = vst.msk [vmem:[%s2690 + $0x51] sm:$0xff] %vm305, %v2665
        %2699 = vst.msk [vmem:[%s2690 + $0x61] sm:$0xff] %vm305, %v2666
        %2700 = vst.msk [vmem:[%s2690 + $0x69] sm:$0xff] %vm305, %v2667
        %2701 = vst.msk [vmem:[%s2690 + $0x79] sm:$0xff] %vm305, %v2668
        %2702 = vst.msk [vmem:[%s2690 + $0x81] sm:$0xff] %vm305, %v2669
        %2703 = vst.msk [vmem:[%s2690 + $0x91] sm:$0xff] %vm305, %v2670
        %2704 = vst.msk [vmem:[%s2690 + $0x99] sm:$0xff] %vm305, %v2671
        %2705 = vst.msk [vmem:[%s2690 + $0xa9] sm:$0xff] %vm305, %v2672
        %2706 = vst.msk [vmem:[%s2690 + $0xb1] sm:$0xff] %vm305, %v2673
        %2707 = vst.msk [vmem:[%s2690 + $0xc1] sm:$0xff] %vm305, %v2674
        %2708 = vst.msk [vmem:[%s2690 + $0xc9] sm:$0xff] %vm305, %v2675
        %2709 = vst.msk [vmem:[%s2690 + $0xd9] sm:$0xff] %vm305, %v2676
        %2710 = vst.msk [vmem:[%s2690 + $0xe1] sm:$0xff] %vm305, %v2677
        %2711 = vst.msk [vmem:[%s2690 + $0xf1] sm:$0xff] %vm305, %v2678
        %2712 = vst.msk [vmem:[%s2690 + $0xf9] sm:$0xff] %vm305, %v2679
        %2713 = vst.msk [vmem:[%s2690 + $0x109] sm:$0xff] %vm305, %v2680
        %2714 = vst.msk [vmem:[%s2690 + $0x111] sm:$0xff] %vm305, %v2681
        %2715 = vst.msk [vmem:[%s2690 + $0x121] sm:$0xff] %vm305, %v2682
        %2716 = vst.msk [vmem:[%s2690 + $0x129] sm:$0xff] %vm305, %v2683
        %2717 = vst.msk [vmem:[%s2690 + $0x139] sm:$0xff] %vm305, %v2684
        %2718 = vst.msk [vmem:[%s2690 + $0x141] sm:$0xff] %vm305, %v2685
        %2719 = vst.msk [vmem:[%s2690 + $0x151] sm:$0xff] %vm305, %v2686
        %2720 = vst.msk [vmem:[%s2690 + $0x159] sm:$0xff] %vm305, %v2687
        %2721 = vst.msk [vmem:[%s2690 + $0x169] sm:$0xff] %vm305, %v2688
        %2722 = vst.msk [vmem:[%s2690 + $0x171] sm:$0xff] %vm305, %v2689
        %v2723 = vld [vmem:[#allocation4] sm:$0xff]
        %v2724 = vld [vmem:[#allocation4 + $0x8] sm:$0xff]
        %v2725 = vld [vmem:[#allocation4 + $0x18] sm:$0xff]
        %v2726 = vld [vmem:[#allocation4 + $0x20] sm:$0xff]
        %v2727 = vld [vmem:[#allocation4 + $0x30] sm:$0xff]
        %v2728 = vld [vmem:[#allocation4 + $0x38] sm:$0xff]
        %v2729 = vld [vmem:[#allocation4 + $0x48] sm:$0xff]
        %v2730 = vld [vmem:[#allocation4 + $0x50] sm:$0xff]
        %v2731 = vld [vmem:[#allocation4 + $0x60] sm:$0xff]
        %v2732 = vld [vmem:[#allocation4 + $0x68] sm:$0xff]
        %v2733 = vld [vmem:[#allocation4 + $0x78] sm:$0xff]
        %v2734 = vld [vmem:[#allocation4 + $0x80] sm:$0xff]
        %v2735 = vld [vmem:[#allocation4 + $0x90] sm:$0xff]
        %v2736 = vld [vmem:[#allocation4 + $0x98] sm:$0xff]
        %v2737 = vld [vmem:[#allocation4 + $0xa8] sm:$0xff]
        %v2738 = vld [vmem:[#allocation4 + $0xb0] sm:$0xff]
        %v2739 = vld [vmem:[#allocation4 + $0xc0] sm:$0xff]
        %v2740 = vld [vmem:[#allocation4 + $0xc8] sm:$0xff]
        %v2741 = vld [vmem:[#allocation4 + $0xd8] sm:$0xff]
        %v2742 = vld [vmem:[#allocation4 + $0xe0] sm:$0xff]
        %v2743 = vld [vmem:[#allocation4 + $0xf0] sm:$0xff]
        %v2744 = vld [vmem:[#allocation4 + $0xf8] sm:$0xff]
        %v2745 = vld [vmem:[#allocation4 + $0x108] sm:$0xff]
        %v2746 = vld [vmem:[#allocation4 + $0x110] sm:$0xff]
        %v2747 = vld [vmem:[#allocation4 + $0x120] sm:$0xff]
        %v2748 = vld [vmem:[#allocation4 + $0x128] sm:$0xff]
        %v2749 = vld [vmem:[#allocation4 + $0x138] sm:$0xff]
        %v2750 = vld [vmem:[#allocation4 + $0x140] sm:$0xff]
        %v2751 = vld [vmem:[#allocation4 + $0x150] sm:$0xff]
        %v2752 = vld [vmem:[#allocation4 + $0x158] sm:$0xff]
        %v2753 = vld [vmem:[#allocation4 + $0x168] sm:$0xff]
        %v2754 = vld [vmem:[#allocation4 + $0x170] sm:$0xff]
        %v2755 = vpack.c.bf16 %v2723, %v2723
        %v2756 = vpack.c.bf16 %v2724, %v2724
        %v2757 = vpack.c.bf16 %v2725, %v2725
        %v2758 = vpack.c.bf16 %v2726, %v2726
        %v2759 = vpack.c.bf16 %v2727, %v2727
        %v2760 = vpack.c.bf16 %v2728, %v2728
        %v2761 = vpack.c.bf16 %v2729, %v2729
        %v2762 = vpack.c.bf16 %v2730, %v2730
        %v2763 = vpack.c.bf16 %v2731, %v2731
        %v2764 = vpack.c.bf16 %v2732, %v2732
        %v2765 = vpack.c.bf16 %v2733, %v2733
        %v2766 = vpack.c.bf16 %v2734, %v2734
        %v2767 = vpack.c.bf16 %v2735, %v2735
        %v2768 = vpack.c.bf16 %v2736, %v2736
        %v2769 = vpack.c.bf16 %v2737, %v2737
        %v2770 = vpack.c.bf16 %v2738, %v2738
        %v2771 = vpack.c.bf16 %v2739, %v2739
        %v2772 = vpack.c.bf16 %v2740, %v2740
        %v2773 = vpack.c.bf16 %v2741, %v2741
        %v2774 = vpack.c.bf16 %v2742, %v2742
        %v2775 = vpack.c.bf16 %v2743, %v2743
        %v2776 = vpack.c.bf16 %v2744, %v2744
        %v2777 = vpack.c.bf16 %v2745, %v2745
        %v2778 = vpack.c.bf16 %v2746, %v2746
        %v2779 = vpack.c.bf16 %v2747, %v2747
        %v2780 = vpack.c.bf16 %v2748, %v2748
        %v2781 = vpack.c.bf16 %v2749, %v2749
        %v2782 = vpack.c.bf16 %v2750, %v2750
        %v2783 = vpack.c.bf16 %v2751, %v2751
        %v2784 = vpack.c.bf16 %v2752, %v2752
        %v2785 = vpack.c.bf16 %v2753, %v2753
        %v2786 = vpack.c.bf16 %v2754, %v2754
        %vm2787 = vcmask 60416
        %2788 = vst.msk [vmem:[#allocation5] sm:$0xf] %vm2787, %v2755
        %2789 = vst.msk [vmem:[#allocation5 + $0x4] sm:$0xf] %vm2787, %v2756
        %2790 = vst.msk [vmem:[#allocation5 + $0x8] sm:$0xf] %vm2787, %v2757
        %2791 = vst.msk [vmem:[#allocation5 + $0xc] sm:$0xf] %vm2787, %v2758
        %2792 = vst.msk [vmem:[#allocation5 + $0x10] sm:$0xf] %vm2787, %v2759
        %2793 = vst.msk [vmem:[#allocation5 + $0x14] sm:$0xf] %vm2787, %v2760
        %2794 = vst.msk [vmem:[#allocation5 + $0x18] sm:$0xf] %vm2787, %v2761
        %2795 = vst.msk [vmem:[#allocation5 + $0x1c] sm:$0xf] %vm2787, %v2762
        %2796 = vst.msk [vmem:[#allocation5 + $0x20] sm:$0xf] %vm2787, %v2763
        %2797 = vst.msk [vmem:[#allocation5 + $0x24] sm:$0xf] %vm2787, %v2764
        %2798 = vst.msk [vmem:[#allocation5 + $0x28] sm:$0xf] %vm2787, %v2765
        %2799 = vst.msk [vmem:[#allocation5 + $0x2c] sm:$0xf] %vm2787, %v2766
        %2800 = vst.msk [vmem:[#allocation5 + $0x30] sm:$0xf] %vm2787, %v2767
        %2801 = vst.msk [vmem:[#allocation5 + $0x34] sm:$0xf] %vm2787, %v2768
        %2802 = vst.msk [vmem:[#allocation5 + $0x38] sm:$0xf] %vm2787, %v2769
        %2803 = vst.msk [vmem:[#allocation5 + $0x3c] sm:$0xf] %vm2787, %v2770
        %2804 = vst.msk [vmem:[#allocation5 + $0x40] sm:$0xf] %vm2787, %v2771
        %2805 = vst.msk [vmem:[#allocation5 + $0x44] sm:$0xf] %vm2787, %v2772
        %2806 = vst.msk [vmem:[#allocation5 + $0x48] sm:$0xf] %vm2787, %v2773
        %2807 = vst.msk [vmem:[#allocation5 + $0x4c] sm:$0xf] %vm2787, %v2774
        %2808 = vst.msk [vmem:[#allocation5 + $0x50] sm:$0xf] %vm2787, %v2775
        %2809 = vst.msk [vmem:[#allocation5 + $0x54] sm:$0xf] %vm2787, %v2776
        %2810 = vst.msk [vmem:[#allocation5 + $0x58] sm:$0xf] %vm2787, %v2777
        %2811 = vst.msk [vmem:[#allocation5 + $0x5c] sm:$0xf] %vm2787, %v2778
        %2812 = vst.msk [vmem:[#allocation5 + $0x60] sm:$0xf] %vm2787, %v2779
        %2813 = vst.msk [vmem:[#allocation5 + $0x64] sm:$0xf] %vm2787, %v2780
        %2814 = vst.msk [vmem:[#allocation5 + $0x68] sm:$0xf] %vm2787, %v2781
        %2815 = vst.msk [vmem:[#allocation5 + $0x6c] sm:$0xf] %vm2787, %v2782
        %2816 = vst.msk [vmem:[#allocation5 + $0x70] sm:$0xf] %vm2787, %v2783
        %2817 = vst.msk [vmem:[#allocation5 + $0x74] sm:$0xf] %vm2787, %v2784
        %2818 = vst.msk [vmem:[#allocation5 + $0x78] sm:$0xf] %vm2787, %v2785
        %2819 = vst.msk [vmem:[#allocation5 + $0x7c] sm:$0xf] %vm2787, %v2786
        %v2820 = vld [vmem:[#allocation4 + $0x1] sm:$0xff]
        %v2821 = vld [vmem:[#allocation4 + $0x9] sm:$0xff]
        %v2822 = vld [vmem:[#allocation4 + $0x19] sm:$0xff]
        %v2823 = vld [vmem:[#allocation4 + $0x21] sm:$0xff]
        %v2824 = vld [vmem:[#allocation4 + $0x31] sm:$0xff]
        %v2825 = vld [vmem:[#allocation4 + $0x39] sm:$0xff]
        %v2826 = vld [vmem:[#allocation4 + $0x49] sm:$0xff]
        %v2827 = vld [vmem:[#allocation4 + $0x51] sm:$0xff]
        %v2828 = vld [vmem:[#allocation4 + $0x61] sm:$0xff]
        %v2829 = vld [vmem:[#allocation4 + $0x69] sm:$0xff]
        %v2830 = vld [vmem:[#allocation4 + $0x79] sm:$0xff]
        %v2831 = vld [vmem:[#allocation4 + $0x81] sm:$0xff]
        %v2832 = vld [vmem:[#allocation4 + $0x91] sm:$0xff]
        %v2833 = vld [vmem:[#allocation4 + $0x99] sm:$0xff]
        %v2834 = vld [vmem:[#allocation4 + $0xa9] sm:$0xff]
        %v2835 = vld [vmem:[#allocation4 + $0xb1] sm:$0xff]
        %v2836 = vld [vmem:[#allocation4 + $0xc1] sm:$0xff]
        %v2837 = vld [vmem:[#allocation4 + $0xc9] sm:$0xff]
        %v2838 = vld [vmem:[#allocation4 + $0xd9] sm:$0xff]
        %v2839 = vld [vmem:[#allocation4 + $0xe1] sm:$0xff]
        %v2840 = vld [vmem:[#allocation4 + $0xf1] sm:$0xff]
        %v2841 = vld [vmem:[#allocation4 + $0xf9] sm:$0xff]
        %v2842 = vld [vmem:[#allocation4 + $0x109] sm:$0xff]
        %v2843 = vld [vmem:[#allocation4 + $0x111] sm:$0xff]
        %v2844 = vld [vmem:[#allocation4 + $0x121] sm:$0xff]
        %v2845 = vld [vmem:[#allocation4 + $0x129] sm:$0xff]
        %v2846 = vld [vmem:[#allocation4 + $0x139] sm:$0xff]
        %v2847 = vld [vmem:[#allocation4 + $0x141] sm:$0xff]
        %v2848 = vld [vmem:[#allocation4 + $0x151] sm:$0xff]
        %v2849 = vld [vmem:[#allocation4 + $0x159] sm:$0xff]
        %v2850 = vld [vmem:[#allocation4 + $0x169] sm:$0xff]
        %v2851 = vld [vmem:[#allocation4 + $0x171] sm:$0xff]
        %v2852 = vpack.c.bf16 %v2820, %v2820
        %v2853 = vpack.c.bf16 %v2821, %v2821
        %v2854 = vpack.c.bf16 %v2822, %v2822
        %v2855 = vpack.c.bf16 %v2823, %v2823
        %v2856 = vpack.c.bf16 %v2824, %v2824
        %v2857 = vpack.c.bf16 %v2825, %v2825
        %v2858 = vpack.c.bf16 %v2826, %v2826
        %v2859 = vpack.c.bf16 %v2827, %v2827
        %v2860 = vpack.c.bf16 %v2828, %v2828
        %v2861 = vpack.c.bf16 %v2829, %v2829
        %v2862 = vpack.c.bf16 %v2830, %v2830
        %v2863 = vpack.c.bf16 %v2831, %v2831
        %v2864 = vpack.c.bf16 %v2832, %v2832
        %v2865 = vpack.c.bf16 %v2833, %v2833
        %v2866 = vpack.c.bf16 %v2834, %v2834
        %v2867 = vpack.c.bf16 %v2835, %v2835
        %v2868 = vpack.c.bf16 %v2836, %v2836
        %v2869 = vpack.c.bf16 %v2837, %v2837
        %v2870 = vpack.c.bf16 %v2838, %v2838
        %v2871 = vpack.c.bf16 %v2839, %v2839
        %v2872 = vpack.c.bf16 %v2840, %v2840
        %v2873 = vpack.c.bf16 %v2841, %v2841
        %v2874 = vpack.c.bf16 %v2842, %v2842
        %v2875 = vpack.c.bf16 %v2843, %v2843
        %v2876 = vpack.c.bf16 %v2844, %v2844
        %v2877 = vpack.c.bf16 %v2845, %v2845
        %v2878 = vpack.c.bf16 %v2846, %v2846
        %v2879 = vpack.c.bf16 %v2847, %v2847
        %v2880 = vpack.c.bf16 %v2848, %v2848
        %v2881 = vpack.c.bf16 %v2849, %v2849
        %v2882 = vpack.c.bf16 %v2850, %v2850
        %v2883 = vpack.c.bf16 %v2851, %v2851
        %2916 = vrot.lane.b32.xlu0 %v2852, 8
        %v2917 = vpop.permute.xlu0 %2916
        %2918 = vrot.lane.b32.xlu0 %v2853, 8
        %v2919 = vpop.permute.xlu0 %2918
        %2920 = vrot.lane.b32.xlu0 %v2854, 8
        %v2921 = vpop.permute.xlu0 %2920
        %2922 = vrot.lane.b32.xlu0 %v2855, 8
        %v2923 = vpop.permute.xlu0 %2922
        %2924 = vrot.lane.b32.xlu0 %v2856, 8
        %v2925 = vpop.permute.xlu0 %2924
        %2926 = vrot.lane.b32.xlu0 %v2857, 8
        %v2927 = vpop.permute.xlu0 %2926
        %2928 = vrot.lane.b32.xlu0 %v2858, 8
        %v2929 = vpop.permute.xlu0 %2928
        %2930 = vrot.lane.b32.xlu0 %v2859, 8
        %v2931 = vpop.permute.xlu0 %2930
        %2932 = vrot.lane.b32.xlu0 %v2860, 8
        %v2933 = vpop.permute.xlu0 %2932
        %2934 = vrot.lane.b32.xlu0 %v2861, 8
        %v2935 = vpop.permute.xlu0 %2934
        %2936 = vrot.lane.b32.xlu0 %v2862, 8
        %v2937 = vpop.permute.xlu0 %2936
        %2938 = vrot.lane.b32.xlu0 %v2863, 8
        %v2939 = vpop.permute.xlu0 %2938
        %2940 = vrot.lane.b32.xlu0 %v2864, 8
        %v2941 = vpop.permute.xlu0 %2940
        %2942 = vrot.lane.b32.xlu0 %v2865, 8
        %v2943 = vpop.permute.xlu0 %2942
        %2944 = vrot.lane.b32.xlu0 %v2866, 8
        %v2945 = vpop.permute.xlu0 %2944
        %2946 = vrot.lane.b32.xlu0 %v2867, 8
        %v2947 = vpop.permute.xlu0 %2946
        %2948 = vrot.lane.b32.xlu0 %v2868, 8
        %v2949 = vpop.permute.xlu0 %2948
        %2950 = vrot.lane.b32.xlu0 %v2869, 8
        %v2951 = vpop.permute.xlu0 %2950
        %2952 = vrot.lane.b32.xlu0 %v2870, 8
        %v2953 = vpop.permute.xlu0 %2952
        %2954 = vrot.lane.b32.xlu0 %v2871, 8
        %v2955 = vpop.permute.xlu0 %2954
        %2956 = vrot.lane.b32.xlu0 %v2872, 8
        %v2957 = vpop.permute.xlu0 %2956
        %2958 = vrot.lane.b32.xlu0 %v2873, 8
        %v2959 = vpop.permute.xlu0 %2958
        %2960 = vrot.lane.b32.xlu0 %v2874, 8
        %v2961 = vpop.permute.xlu0 %2960
        %2962 = vrot.lane.b32.xlu0 %v2875, 8
        %v2963 = vpop.permute.xlu0 %2962
        %2964 = vrot.lane.b32.xlu0 %v2876, 8
        %v2965 = vpop.permute.xlu0 %2964
        %2966 = vrot.lane.b32.xlu0 %v2877, 8
        %v2967 = vpop.permute.xlu0 %2966
        %2968 = vrot.lane.b32.xlu0 %v2878, 8
        %v2969 = vpop.permute.xlu0 %2968
        %2970 = vrot.lane.b32.xlu0 %v2879, 8
        %v2971 = vpop.permute.xlu0 %2970
        %2972 = vrot.lane.b32.xlu0 %v2880, 8
        %v2973 = vpop.permute.xlu0 %2972
        %2974 = vrot.lane.b32.xlu0 %v2881, 8
        %v2975 = vpop.permute.xlu0 %2974
        %2976 = vrot.lane.b32.xlu0 %v2882, 8
        %v2977 = vpop.permute.xlu0 %2976
        %2978 = vrot.lane.b32.xlu0 %v2883, 8
        %v2979 = vpop.permute.xlu0 %2978
        %vm3012 = vcmask 126016
        %3013 = vst.msk [vmem:[#allocation5] sm:$0xf] %vm3012, %v2917
        %3014 = vst.msk [vmem:[#allocation5 + $0x4] sm:$0xf] %vm3012, %v2919
        %3015 = vst.msk [vmem:[#allocation5 + $0x8] sm:$0xf] %vm3012, %v2921
        %3016 = vst.msk [vmem:[#allocation5 + $0xc] sm:$0xf] %vm3012, %v2923
        %3017 = vst.msk [vmem:[#allocation5 + $0x10] sm:$0xf] %vm3012, %v2925
        %3018 = vst.msk [vmem:[#allocation5 + $0x14] sm:$0xf] %vm3012, %v2927
        %3019 = vst.msk [vmem:[#allocation5 + $0x18] sm:$0xf] %vm3012, %v2929
        %3020 = vst.msk [vmem:[#allocation5 + $0x1c] sm:$0xf] %vm3012, %v2931
        %3021 = vst.msk [vmem:[#allocation5 + $0x20] sm:$0xf] %vm3012, %v2933
        %3022 = vst.msk [vmem:[#allocation5 + $0x24] sm:$0xf] %vm3012, %v2935
        %3023 = vst.msk [vmem:[#allocation5 + $0x28] sm:$0xf] %vm3012, %v2937
        %3024 = vst.msk [vmem:[#allocation5 + $0x2c] sm:$0xf] %vm3012, %v2939
        %3025 = vst.msk [vmem:[#allocation5 + $0x30] sm:$0xf] %vm3012, %v2941
        %3026 = vst.msk [vmem:[#allocation5 + $0x34] sm:$0xf] %vm3012, %v2943
        %3027 = vst.msk [vmem:[#allocation5 + $0x38] sm:$0xf] %vm3012, %v2945
        %3028 = vst.msk [vmem:[#allocation5 + $0x3c] sm:$0xf] %vm3012, %v2947
        %3029 = vst.msk [vmem:[#allocation5 + $0x40] sm:$0xf] %vm3012, %v2949
        %3030 = vst.msk [vmem:[#allocation5 + $0x44] sm:$0xf] %vm3012, %v2951
        %3031 = vst.msk [vmem:[#allocation5 + $0x48] sm:$0xf] %vm3012, %v2953
        %3032 = vst.msk [vmem:[#allocation5 + $0x4c] sm:$0xf] %vm3012, %v2955
        %3033 = vst.msk [vmem:[#allocation5 + $0x50] sm:$0xf] %vm3012, %v2957
        %3034 = vst.msk [vmem:[#allocation5 + $0x54] sm:$0xf] %vm3012, %v2959
        %3035 = vst.msk [vmem:[#allocation5 + $0x58] sm:$0xf] %vm3012, %v2961
        %3036 = vst.msk [vmem:[#allocation5 + $0x5c] sm:$0xf] %vm3012, %v2963
        %3037 = vst.msk [vmem:[#allocation5 + $0x60] sm:$0xf] %vm3012, %v2965
        %3038 = vst.msk [vmem:[#allocation5 + $0x64] sm:$0xf] %vm3012, %v2967
        %3039 = vst.msk [vmem:[#allocation5 + $0x68] sm:$0xf] %vm3012, %v2969
        %3040 = vst.msk [vmem:[#allocation5 + $0x6c] sm:$0xf] %vm3012, %v2971
        %3041 = vst.msk [vmem:[#allocation5 + $0x70] sm:$0xf] %vm3012, %v2973
        %3042 = vst.msk [vmem:[#allocation5 + $0x74] sm:$0xf] %vm3012, %v2975
        %3043 = vst.msk [vmem:[#allocation5 + $0x78] sm:$0xf] %vm3012, %v2977
        %3044 = vst.msk [vmem:[#allocation5 + $0x7c] sm:$0xf] %vm3012, %v2979
        %v3045 = vld [vmem:[#allocation4 + $0x2] sm:$0xff]
        %v3046 = vld [vmem:[#allocation4 + $0xa] sm:$0xff]
        %v3047 = vld [vmem:[#allocation4 + $0x1a] sm:$0xff]
        %v3048 = vld [vmem:[#allocation4 + $0x22] sm:$0xff]
        %v3049 = vld [vmem:[#allocation4 + $0x32] sm:$0xff]
        %v3050 = vld [vmem:[#allocation4 + $0x3a] sm:$0xff]
        %v3051 = vld [vmem:[#allocation4 + $0x4a] sm:$0xff]
        %v3052 = vld [vmem:[#allocation4 + $0x52] sm:$0xff]
        %v3053 = vld [vmem:[#allocation4 + $0x62] sm:$0xff]
        %v3054 = vld [vmem:[#allocation4 + $0x6a] sm:$0xff]
        %v3055 = vld [vmem:[#allocation4 + $0x7a] sm:$0xff]
        %v3056 = vld [vmem:[#allocation4 + $0x82] sm:$0xff]
        %v3057 = vld [vmem:[#allocation4 + $0x92] sm:$0xff]
        %v3058 = vld [vmem:[#allocation4 + $0x9a] sm:$0xff]
        %v3059 = vld [vmem:[#allocation4 + $0xaa] sm:$0xff]
        %v3060 = vld [vmem:[#allocation4 + $0xb2] sm:$0xff]
        %v3061 = vld [vmem:[#allocation4 + $0xc2] sm:$0xff]
        %v3062 = vld [vmem:[#allocation4 + $0xca] sm:$0xff]
        %v3063 = vld [vmem:[#allocation4 + $0xda] sm:$0xff]
        %v3064 = vld [vmem:[#allocation4 + $0xe2] sm:$0xff]
        %v3065 = vld [vmem:[#allocation4 + $0xf2] sm:$0xff]
        %v3066 = vld [vmem:[#allocation4 + $0xfa] sm:$0xff]
        %v3067 = vld [vmem:[#allocation4 + $0x10a] sm:$0xff]
        %v3068 = vld [vmem:[#allocation4 + $0x112] sm:$0xff]
        %v3069 = vld [vmem:[#allocation4 + $0x122] sm:$0xff]
        %v3070 = vld [vmem:[#allocation4 + $0x12a] sm:$0xff]
        %v3071 = vld [vmem:[#allocation4 + $0x13a] sm:$0xff]
        %v3072 = vld [vmem:[#allocation4 + $0x142] sm:$0xff]
        %v3073 = vld [vmem:[#allocation4 + $0x152] sm:$0xff]
        %v3074 = vld [vmem:[#allocation4 + $0x15a] sm:$0xff]
        %v3075 = vld [vmem:[#allocation4 + $0x16a] sm:$0xff]
        %v3076 = vld [vmem:[#allocation4 + $0x172] sm:$0xff]
        %v3077 = vpack.c.bf16 %v3045, %v3045
        %v3078 = vpack.c.bf16 %v3046, %v3046
        %v3079 = vpack.c.bf16 %v3047, %v3047
        %v3080 = vpack.c.bf16 %v3048, %v3048
        %v3081 = vpack.c.bf16 %v3049, %v3049
        %v3082 = vpack.c.bf16 %v3050, %v3050
        %v3083 = vpack.c.bf16 %v3051, %v3051
        %v3084 = vpack.c.bf16 %v3052, %v3052
        %v3085 = vpack.c.bf16 %v3053, %v3053
        %v3086 = vpack.c.bf16 %v3054, %v3054
        %v3087 = vpack.c.bf16 %v3055, %v3055
        %v3088 = vpack.c.bf16 %v3056, %v3056
        %v3089 = vpack.c.bf16 %v3057, %v3057
        %v3090 = vpack.c.bf16 %v3058, %v3058
        %v3091 = vpack.c.bf16 %v3059, %v3059
        %v3092 = vpack.c.bf16 %v3060, %v3060
        %v3093 = vpack.c.bf16 %v3061, %v3061
        %v3094 = vpack.c.bf16 %v3062, %v3062
        %v3095 = vpack.c.bf16 %v3063, %v3063
        %v3096 = vpack.c.bf16 %v3064, %v3064
        %v3097 = vpack.c.bf16 %v3065, %v3065
        %v3098 = vpack.c.bf16 %v3066, %v3066
        %v3099 = vpack.c.bf16 %v3067, %v3067
        %v3100 = vpack.c.bf16 %v3068, %v3068
        %v3101 = vpack.c.bf16 %v3069, %v3069
        %v3102 = vpack.c.bf16 %v3070, %v3070
        %v3103 = vpack.c.bf16 %v3071, %v3071
        %v3104 = vpack.c.bf16 %v3072, %v3072
        %v3105 = vpack.c.bf16 %v3073, %v3073
        %v3106 = vpack.c.bf16 %v3074, %v3074
        %v3107 = vpack.c.bf16 %v3075, %v3075
        %v3108 = vpack.c.bf16 %v3076, %v3076
        %3141 = vrot.lane.b32.xlu0 %v3077, 16
        %v3142 = vpop.permute.xlu0 %3141
        %3143 = vrot.lane.b32.xlu0 %v3078, 16
        %v3144 = vpop.permute.xlu0 %3143
        %3145 = vrot.lane.b32.xlu0 %v3079, 16
        %v3146 = vpop.permute.xlu0 %3145
        %3147 = vrot.lane.b32.xlu0 %v3080, 16
        %v3148 = vpop.permute.xlu0 %3147
        %3149 = vrot.lane.b32.xlu0 %v3081, 16
        %v3150 = vpop.permute.xlu0 %3149
        %3151 = vrot.lane.b32.xlu0 %v3082, 16
        %v3152 = vpop.permute.xlu0 %3151
        %3153 = vrot.lane.b32.xlu0 %v3083, 16
        %v3154 = vpop.permute.xlu0 %3153
        %3155 = vrot.lane.b32.xlu0 %v3084, 16
        %v3156 = vpop.permute.xlu0 %3155
        %3157 = vrot.lane.b32.xlu0 %v3085, 16
        %v3158 = vpop.permute.xlu0 %3157
        %3159 = vrot.lane.b32.xlu0 %v3086, 16
        %v3160 = vpop.permute.xlu0 %3159
        %3161 = vrot.lane.b32.xlu0 %v3087, 16
        %v3162 = vpop.permute.xlu0 %3161
        %3163 = vrot.lane.b32.xlu0 %v3088, 16
        %v3164 = vpop.permute.xlu0 %3163
        %3165 = vrot.lane.b32.xlu0 %v3089, 16
        %v3166 = vpop.permute.xlu0 %3165
        %3167 = vrot.lane.b32.xlu0 %v3090, 16
        %v3168 = vpop.permute.xlu0 %3167
        %3169 = vrot.lane.b32.xlu0 %v3091, 16
        %v3170 = vpop.permute.xlu0 %3169
        %3171 = vrot.lane.b32.xlu0 %v3092, 16
        %v3172 = vpop.permute.xlu0 %3171
        %3173 = vrot.lane.b32.xlu0 %v3093, 16
        %v3174 = vpop.permute.xlu0 %3173
        %3175 = vrot.lane.b32.xlu0 %v3094, 16
        %v3176 = vpop.permute.xlu0 %3175
        %3177 = vrot.lane.b32.xlu0 %v3095, 16
        %v3178 = vpop.permute.xlu0 %3177
        %3179 = vrot.lane.b32.xlu0 %v3096, 16
        %v3180 = vpop.permute.xlu0 %3179
        %3181 = vrot.lane.b32.xlu0 %v3097, 16
        %v3182 = vpop.permute.xlu0 %3181
        %3183 = vrot.lane.b32.xlu0 %v3098, 16
        %v3184 = vpop.permute.xlu0 %3183
        %3185 = vrot.lane.b32.xlu0 %v3099, 16
        %v3186 = vpop.permute.xlu0 %3185
        %3187 = vrot.lane.b32.xlu0 %v3100, 16
        %v3188 = vpop.permute.xlu0 %3187
        %3189 = vrot.lane.b32.xlu0 %v3101, 16
        %v3190 = vpop.permute.xlu0 %3189
        %3191 = vrot.lane.b32.xlu0 %v3102, 16
        %v3192 = vpop.permute.xlu0 %3191
        %3193 = vrot.lane.b32.xlu0 %v3103, 16
        %v3194 = vpop.permute.xlu0 %3193
        %3195 = vrot.lane.b32.xlu0 %v3104, 16
        %v3196 = vpop.permute.xlu0 %3195
        %3197 = vrot.lane.b32.xlu0 %v3105, 16
        %v3198 = vpop.permute.xlu0 %3197
        %3199 = vrot.lane.b32.xlu0 %v3106, 16
        %v3200 = vpop.permute.xlu0 %3199
        %3201 = vrot.lane.b32.xlu0 %v3107, 16
        %v3202 = vpop.permute.xlu0 %3201
        %3203 = vrot.lane.b32.xlu0 %v3108, 16
        %v3204 = vpop.permute.xlu0 %3203
        %vm3237 = vcmask 191616
        %3238 = vst.msk [vmem:[#allocation5] sm:$0xf] %vm3237, %v3142
        %3239 = vst.msk [vmem:[#allocation5 + $0x4] sm:$0xf] %vm3237, %v3144
        %3240 = vst.msk [vmem:[#allocation5 + $0x8] sm:$0xf] %vm3237, %v3146
        %3241 = vst.msk [vmem:[#allocation5 + $0xc] sm:$0xf] %vm3237, %v3148
        %3242 = vst.msk [vmem:[#allocation5 + $0x10] sm:$0xf] %vm3237, %v3150
        %3243 = vst.msk [vmem:[#allocation5 + $0x14] sm:$0xf] %vm3237, %v3152
        %3244 = vst.msk [vmem:[#allocation5 + $0x18] sm:$0xf] %vm3237, %v3154
        %3245 = vst.msk [vmem:[#allocation5 + $0x1c] sm:$0xf] %vm3237, %v3156
        %3246 = vst.msk [vmem:[#allocation5 + $0x20] sm:$0xf] %vm3237, %v3158
        %3247 = vst.msk [vmem:[#allocation5 + $0x24] sm:$0xf] %vm3237, %v3160
        %3248 = vst.msk [vmem:[#allocation5 + $0x28] sm:$0xf] %vm3237, %v3162
        %3249 = vst.msk [vmem:[#allocation5 + $0x2c] sm:$0xf] %vm3237, %v3164
        %3250 = vst.msk [vmem:[#allocation5 + $0x30] sm:$0xf] %vm3237, %v3166
        %3251 = vst.msk [vmem:[#allocation5 + $0x34] sm:$0xf] %vm3237, %v3168
        %3252 = vst.msk [vmem:[#allocation5 + $0x38] sm:$0xf] %vm3237, %v3170
        %3253 = vst.msk [vmem:[#allocation5 + $0x3c] sm:$0xf] %vm3237, %v3172
        %3254 = vst.msk [vmem:[#allocation5 + $0x40] sm:$0xf] %vm3237, %v3174
        %3255 = vst.msk [vmem:[#allocation5 + $0x44] sm:$0xf] %vm3237, %v3176
        %3256 = vst.msk [vmem:[#allocation5 + $0x48] sm:$0xf] %vm3237, %v3178
        %3257 = vst.msk [vmem:[#allocation5 + $0x4c] sm:$0xf] %vm3237, %v3180
        %3258 = vst.msk [vmem:[#allocation5 + $0x50] sm:$0xf] %vm3237, %v3182
        %3259 = vst.msk [vmem:[#allocation5 + $0x54] sm:$0xf] %vm3237, %v3184
        %3260 = vst.msk [vmem:[#allocation5 + $0x58] sm:$0xf] %vm3237, %v3186
        %3261 = vst.msk [vmem:[#allocation5 + $0x5c] sm:$0xf] %vm3237, %v3188
        %3262 = vst.msk [vmem:[#allocation5 + $0x60] sm:$0xf] %vm3237, %v3190
        %3263 = vst.msk [vmem:[#allocation5 + $0x64] sm:$0xf] %vm3237, %v3192
        %3264 = vst.msk [vmem:[#allocation5 + $0x68] sm:$0xf] %vm3237, %v3194
        %3265 = vst.msk [vmem:[#allocation5 + $0x6c] sm:$0xf] %vm3237, %v3196
        %3266 = vst.msk [vmem:[#allocation5 + $0x70] sm:$0xf] %vm3237, %v3198
        %3267 = vst.msk [vmem:[#allocation5 + $0x74] sm:$0xf] %vm3237, %v3200
        %3268 = vst.msk [vmem:[#allocation5 + $0x78] sm:$0xf] %vm3237, %v3202
        %3269 = vst.msk [vmem:[#allocation5 + $0x7c] sm:$0xf] %vm3237, %v3204
        %v3270 = vld [vmem:[%s2690] sm:$0xff]
        %v3271 = vld [vmem:[%s2690 + $0x8] sm:$0xff]
        %v3272 = vld [vmem:[%s2690 + $0x18] sm:$0xff]
        %v3273 = vld [vmem:[%s2690 + $0x20] sm:$0xff]
        %v3274 = vld [vmem:[%s2690 + $0x30] sm:$0xff]
        %v3275 = vld [vmem:[%s2690 + $0x38] sm:$0xff]
        %v3276 = vld [vmem:[%s2690 + $0x48] sm:$0xff]
        %v3277 = vld [vmem:[%s2690 + $0x50] sm:$0xff]
        %v3278 = vld [vmem:[%s2690 + $0x60] sm:$0xff]
        %v3279 = vld [vmem:[%s2690 + $0x68] sm:$0xff]
        %v3280 = vld [vmem:[%s2690 + $0x78] sm:$0xff]
        %v3281 = vld [vmem:[%s2690 + $0x80] sm:$0xff]
        %v3282 = vld [vmem:[%s2690 + $0x90] sm:$0xff]
        %v3283 = vld [vmem:[%s2690 + $0x98] sm:$0xff]
        %v3284 = vld [vmem:[%s2690 + $0xa8] sm:$0xff]
        %v3285 = vld [vmem:[%s2690 + $0xb0] sm:$0xff]
        %v3286 = vld [vmem:[%s2690 + $0xc0] sm:$0xff]
        %v3287 = vld [vmem:[%s2690 + $0xc8] sm:$0xff]
        %v3288 = vld [vmem:[%s2690 + $0xd8] sm:$0xff]
        %v3289 = vld [vmem:[%s2690 + $0xe0] sm:$0xff]
        %v3290 = vld [vmem:[%s2690 + $0xf0] sm:$0xff]
        %v3291 = vld [vmem:[%s2690 + $0xf8] sm:$0xff]
        %v3292 = vld [vmem:[%s2690 + $0x108] sm:$0xff]
        %v3293 = vld [vmem:[%s2690 + $0x110] sm:$0xff]
        %v3294 = vld [vmem:[%s2690 + $0x120] sm:$0xff]
        %v3295 = vld [vmem:[%s2690 + $0x128] sm:$0xff]
        %v3296 = vld [vmem:[%s2690 + $0x138] sm:$0xff]
        %v3297 = vld [vmem:[%s2690 + $0x140] sm:$0xff]
        %v3298 = vld [vmem:[%s2690 + $0x150] sm:$0xff]
        %v3299 = vld [vmem:[%s2690 + $0x158] sm:$0xff]
        %v3300 = vld [vmem:[%s2690 + $0x168] sm:$0xff]
        %v3301 = vld [vmem:[%s2690 + $0x170] sm:$0xff]
        %v3302 = vpack.c.bf16 %v3270, %v3270
        %v3303 = vpack.c.bf16 %v3271, %v3271
        %v3304 = vpack.c.bf16 %v3272, %v3272
        %v3305 = vpack.c.bf16 %v3273, %v3273
        %v3306 = vpack.c.bf16 %v3274, %v3274
        %v3307 = vpack.c.bf16 %v3275, %v3275
        %v3308 = vpack.c.bf16 %v3276, %v3276
        %v3309 = vpack.c.bf16 %v3277, %v3277
        %v3310 = vpack.c.bf16 %v3278, %v3278
        %v3311 = vpack.c.bf16 %v3279, %v3279
        %v3312 = vpack.c.bf16 %v3280, %v3280
        %v3313 = vpack.c.bf16 %v3281, %v3281
        %v3314 = vpack.c.bf16 %v3282, %v3282
        %v3315 = vpack.c.bf16 %v3283, %v3283
        %v3316 = vpack.c.bf16 %v3284, %v3284
        %v3317 = vpack.c.bf16 %v3285, %v3285
        %v3318 = vpack.c.bf16 %v3286, %v3286
        %v3319 = vpack.c.bf16 %v3287, %v3287
        %v3320 = vpack.c.bf16 %v3288, %v3288
        %v3321 = vpack.c.bf16 %v3289, %v3289
        %v3322 = vpack.c.bf16 %v3290, %v3290
        %v3323 = vpack.c.bf16 %v3291, %v3291
        %v3324 = vpack.c.bf16 %v3292, %v3292
        %v3325 = vpack.c.bf16 %v3293, %v3293
        %v3326 = vpack.c.bf16 %v3294, %v3294
        %v3327 = vpack.c.bf16 %v3295, %v3295
        %v3328 = vpack.c.bf16 %v3296, %v3296
        %v3329 = vpack.c.bf16 %v3297, %v3297
        %v3330 = vpack.c.bf16 %v3298, %v3298
        %v3331 = vpack.c.bf16 %v3299, %v3299
        %v3332 = vpack.c.bf16 %v3300, %v3300
        %v3333 = vpack.c.bf16 %v3301, %v3301
        %3366 = vrot.lane.b32.xlu0 %v3302, 24
        %v3367 = vpop.permute.xlu0 %3366
        %3368 = vrot.lane.b32.xlu0 %v3303, 24
        %v3369 = vpop.permute.xlu0 %3368
        %3370 = vrot.lane.b32.xlu0 %v3304, 24
        %v3371 = vpop.permute.xlu0 %3370
        %3372 = vrot.lane.b32.xlu0 %v3305, 24
        %v3373 = vpop.permute.xlu0 %3372
        %3374 = vrot.lane.b32.xlu0 %v3306, 24
        %v3375 = vpop.permute.xlu0 %3374
        %3376 = vrot.lane.b32.xlu0 %v3307, 24
        %v3377 = vpop.permute.xlu0 %3376
        %3378 = vrot.lane.b32.xlu0 %v3308, 24
        %v3379 = vpop.permute.xlu0 %3378
        %3380 = vrot.lane.b32.xlu0 %v3309, 24
        %v3381 = vpop.permute.xlu0 %3380
        %3382 = vrot.lane.b32.xlu0 %v3310, 24
        %v3383 = vpop.permute.xlu0 %3382
        %3384 = vrot.lane.b32.xlu0 %v3311, 24
        %v3385 = vpop.permute.xlu0 %3384
        %3386 = vrot.lane.b32.xlu0 %v3312, 24
        %v3387 = vpop.permute.xlu0 %3386
        %3388 = vrot.lane.b32.xlu0 %v3313, 24
        %v3389 = vpop.permute.xlu0 %3388
        %3390 = vrot.lane.b32.xlu0 %v3314, 24
        %v3391 = vpop.permute.xlu0 %3390
        %3392 = vrot.lane.b32.xlu0 %v3315, 24
        %v3393 = vpop.permute.xlu0 %3392
        %3394 = vrot.lane.b32.xlu0 %v3316, 24
        %v3395 = vpop.permute.xlu0 %3394
        %3396 = vrot.lane.b32.xlu0 %v3317, 24
        %v3397 = vpop.permute.xlu0 %3396
        %3398 = vrot.lane.b32.xlu0 %v3318, 24
        %v3399 = vpop.permute.xlu0 %3398
        %3400 = vrot.lane.b32.xlu0 %v3319, 24
        %v3401 = vpop.permute.xlu0 %3400
        %3402 = vrot.lane.b32.xlu0 %v3320, 24
        %v3403 = vpop.permute.xlu0 %3402
        %3404 = vrot.lane.b32.xlu0 %v3321, 24
        %v3405 = vpop.permute.xlu0 %3404
        %3406 = vrot.lane.b32.xlu0 %v3322, 24
        %v3407 = vpop.permute.xlu0 %3406
        %3408 = vrot.lane.b32.xlu0 %v3323, 24
        %v3409 = vpop.permute.xlu0 %3408
        %3410 = vrot.lane.b32.xlu0 %v3324, 24
        %v3411 = vpop.permute.xlu0 %3410
        %3412 = vrot.lane.b32.xlu0 %v3325, 24
        %v3413 = vpop.permute.xlu0 %3412
        %3414 = vrot.lane.b32.xlu0 %v3326, 24
        %v3415 = vpop.permute.xlu0 %3414
        %3416 = vrot.lane.b32.xlu0 %v3327, 24
        %v3417 = vpop.permute.xlu0 %3416
        %3418 = vrot.lane.b32.xlu0 %v3328, 24
        %v3419 = vpop.permute.xlu0 %3418
        %3420 = vrot.lane.b32.xlu0 %v3329, 24
        %v3421 = vpop.permute.xlu0 %3420
        %3422 = vrot.lane.b32.xlu0 %v3330, 24
        %v3423 = vpop.permute.xlu0 %3422
        %3424 = vrot.lane.b32.xlu0 %v3331, 24
        %v3425 = vpop.permute.xlu0 %3424
        %3426 = vrot.lane.b32.xlu0 %v3332, 24
        %v3427 = vpop.permute.xlu0 %3426
        %3428 = vrot.lane.b32.xlu0 %v3333, 24
        %v3429 = vpop.permute.xlu0 %3428
        %vm3462 = vcmask 257216
        %3463 = vst.msk [vmem:[#allocation5] sm:$0xf] %vm3462, %v3367
        %3464 = vst.msk [vmem:[#allocation5 + $0x4] sm:$0xf] %vm3462, %v3369
        %3465 = vst.msk [vmem:[#allocation5 + $0x8] sm:$0xf] %vm3462, %v3371
        %3466 = vst.msk [vmem:[#allocation5 + $0xc] sm:$0xf] %vm3462, %v3373
        %3467 = vst.msk [vmem:[#allocation5 + $0x10] sm:$0xf] %vm3462, %v3375
        %3468 = vst.msk [vmem:[#allocation5 + $0x14] sm:$0xf] %vm3462, %v3377
        %3469 = vst.msk [vmem:[#allocation5 + $0x18] sm:$0xf] %vm3462, %v3379
        %3470 = vst.msk [vmem:[#allocation5 + $0x1c] sm:$0xf] %vm3462, %v3381
        %3471 = vst.msk [vmem:[#allocation5 + $0x20] sm:$0xf] %vm3462, %v3383
        %3472 = vst.msk [vmem:[#allocation5 + $0x24] sm:$0xf] %vm3462, %v3385
        %3473 = vst.msk [vmem:[#allocation5 + $0x28] sm:$0xf] %vm3462, %v3387
        %3474 = vst.msk [vmem:[#allocation5 + $0x2c] sm:$0xf] %vm3462, %v3389
        %3475 = vst.msk [vmem:[#allocation5 + $0x30] sm:$0xf] %vm3462, %v3391
        %3476 = vst.msk [vmem:[#allocation5 + $0x34] sm:$0xf] %vm3462, %v3393
        %3477 = vst.msk [vmem:[#allocation5 + $0x38] sm:$0xf] %vm3462, %v3395
        %3478 = vst.msk [vmem:[#allocation5 + $0x3c] sm:$0xf] %vm3462, %v3397
        %3479 = vst.msk [vmem:[#allocation5 + $0x40] sm:$0xf] %vm3462, %v3399
        %3480 = vst.msk [vmem:[#allocation5 + $0x44] sm:$0xf] %vm3462, %v3401
        %3481 = vst.msk [vmem:[#allocation5 + $0x48] sm:$0xf] %vm3462, %v3403
        %3482 = vst.msk [vmem:[#allocation5 + $0x4c] sm:$0xf] %vm3462, %v3405
        %3483 = vst.msk [vmem:[#allocation5 + $0x50] sm:$0xf] %vm3462, %v3407
        %3484 = vst.msk [vmem:[#allocation5 + $0x54] sm:$0xf] %vm3462, %v3409
        %3485 = vst.msk [vmem:[#allocation5 + $0x58] sm:$0xf] %vm3462, %v3411
        %3486 = vst.msk [vmem:[#allocation5 + $0x5c] sm:$0xf] %vm3462, %v3413
        %3487 = vst.msk [vmem:[#allocation5 + $0x60] sm:$0xf] %vm3462, %v3415
        %3488 = vst.msk [vmem:[#allocation5 + $0x64] sm:$0xf] %vm3462, %v3417
        %3489 = vst.msk [vmem:[#allocation5 + $0x68] sm:$0xf] %vm3462, %v3419
        %3490 = vst.msk [vmem:[#allocation5 + $0x6c] sm:$0xf] %vm3462, %v3421
        %3491 = vst.msk [vmem:[#allocation5 + $0x70] sm:$0xf] %vm3462, %v3423
        %3492 = vst.msk [vmem:[#allocation5 + $0x74] sm:$0xf] %vm3462, %v3425
        %3493 = vst.msk [vmem:[#allocation5 + $0x78] sm:$0xf] %vm3462, %v3427
        %3494 = vst.msk [vmem:[#allocation5 + $0x7c] sm:$0xf] %vm3462, %v3429
        %v3495 = vld [vmem:[%s2690 + $0x1] sm:$0xff]
        %v3496 = vld [vmem:[%s2690 + $0x9] sm:$0xff]
        %v3497 = vld [vmem:[%s2690 + $0x19] sm:$0xff]
        %v3498 = vld [vmem:[%s2690 + $0x21] sm:$0xff]
        %v3499 = vld [vmem:[%s2690 + $0x31] sm:$0xff]
        %v3500 = vld [vmem:[%s2690 + $0x39] sm:$0xff]
        %v3501 = vld [vmem:[%s2690 + $0x49] sm:$0xff]
        %v3502 = vld [vmem:[%s2690 + $0x51] sm:$0xff]
        %v3503 = vld [vmem:[%s2690 + $0x61] sm:$0xff]
        %v3504 = vld [vmem:[%s2690 + $0x69] sm:$0xff]
        %v3505 = vld [vmem:[%s2690 + $0x79] sm:$0xff]
        %v3506 = vld [vmem:[%s2690 + $0x81] sm:$0xff]
        %v3507 = vld [vmem:[%s2690 + $0x91] sm:$0xff]
        %v3508 = vld [vmem:[%s2690 + $0x99] sm:$0xff]
        %v3509 = vld [vmem:[%s2690 + $0xa9] sm:$0xff]
        %v3510 = vld [vmem:[%s2690 + $0xb1] sm:$0xff]
        %v3511 = vld [vmem:[%s2690 + $0xc1] sm:$0xff]
        %v3512 = vld [vmem:[%s2690 + $0xc9] sm:$0xff]
        %v3513 = vld [vmem:[%s2690 + $0xd9] sm:$0xff]
        %v3514 = vld [vmem:[%s2690 + $0xe1] sm:$0xff]
        %v3515 = vld [vmem:[%s2690 + $0xf1] sm:$0xff]
        %v3516 = vld [vmem:[%s2690 + $0xf9] sm:$0xff]
        %v3517 = vld [vmem:[%s2690 + $0x109] sm:$0xff]
        %v3518 = vld [vmem:[%s2690 + $0x111] sm:$0xff]
        %v3519 = vld [vmem:[%s2690 + $0x121] sm:$0xff]
        %v3520 = vld [vmem:[%s2690 + $0x129] sm:$0xff]
        %v3521 = vld [vmem:[%s2690 + $0x139] sm:$0xff]
        %v3522 = vld [vmem:[%s2690 + $0x141] sm:$0xff]
        %v3523 = vld [vmem:[%s2690 + $0x151] sm:$0xff]
        %v3524 = vld [vmem:[%s2690 + $0x159] sm:$0xff]
        %v3525 = vld [vmem:[%s2690 + $0x169] sm:$0xff]
        %v3526 = vld [vmem:[%s2690 + $0x171] sm:$0xff]
        %v3527 = vpack.c.bf16 %v3495, %v3495
        %v3528 = vpack.c.bf16 %v3496, %v3496
        %v3529 = vpack.c.bf16 %v3497, %v3497
        %v3530 = vpack.c.bf16 %v3498, %v3498
        %v3531 = vpack.c.bf16 %v3499, %v3499
        %v3532 = vpack.c.bf16 %v3500, %v3500
        %v3533 = vpack.c.bf16 %v3501, %v3501
        %v3534 = vpack.c.bf16 %v3502, %v3502
        %v3535 = vpack.c.bf16 %v3503, %v3503
        %v3536 = vpack.c.bf16 %v3504, %v3504
        %v3537 = vpack.c.bf16 %v3505, %v3505
        %v3538 = vpack.c.bf16 %v3506, %v3506
        %v3539 = vpack.c.bf16 %v3507, %v3507
        %v3540 = vpack.c.bf16 %v3508, %v3508
        %v3541 = vpack.c.bf16 %v3509, %v3509
        %v3542 = vpack.c.bf16 %v3510, %v3510
        %v3543 = vpack.c.bf16 %v3511, %v3511
        %v3544 = vpack.c.bf16 %v3512, %v3512
        %v3545 = vpack.c.bf16 %v3513, %v3513
        %v3546 = vpack.c.bf16 %v3514, %v3514
        %v3547 = vpack.c.bf16 %v3515, %v3515
        %v3548 = vpack.c.bf16 %v3516, %v3516
        %v3549 = vpack.c.bf16 %v3517, %v3517
        %v3550 = vpack.c.bf16 %v3518, %v3518
        %v3551 = vpack.c.bf16 %v3519, %v3519
        %v3552 = vpack.c.bf16 %v3520, %v3520
        %v3553 = vpack.c.bf16 %v3521, %v3521
        %v3554 = vpack.c.bf16 %v3522, %v3522
        %v3555 = vpack.c.bf16 %v3523, %v3523
        %v3556 = vpack.c.bf16 %v3524, %v3524
        %v3557 = vpack.c.bf16 %v3525, %v3525
        %v3558 = vpack.c.bf16 %v3526, %v3526
        %3591 = vrot.lane.b32.xlu0 %v3527, 32
        %v3592 = vpop.permute.xlu0 %3591
        %3593 = vrot.lane.b32.xlu0 %v3528, 32
        %v3594 = vpop.permute.xlu0 %3593
        %3595 = vrot.lane.b32.xlu0 %v3529, 32
        %v3596 = vpop.permute.xlu0 %3595
        %3597 = vrot.lane.b32.xlu0 %v3530, 32
        %v3598 = vpop.permute.xlu0 %3597
        %3599 = vrot.lane.b32.xlu0 %v3531, 32
        %v3600 = vpop.permute.xlu0 %3599
        %3601 = vrot.lane.b32.xlu0 %v3532, 32
        %v3602 = vpop.permute.xlu0 %3601
        %3603 = vrot.lane.b32.xlu0 %v3533, 32
        %v3604 = vpop.permute.xlu0 %3603
        %3605 = vrot.lane.b32.xlu0 %v3534, 32
        %v3606 = vpop.permute.xlu0 %3605
        %3607 = vrot.lane.b32.xlu0 %v3535, 32
        %v3608 = vpop.permute.xlu0 %3607
        %3609 = vrot.lane.b32.xlu0 %v3536, 32
        %v3610 = vpop.permute.xlu0 %3609
        %3611 = vrot.lane.b32.xlu0 %v3537, 32
        %v3612 = vpop.permute.xlu0 %3611
        %3613 = vrot.lane.b32.xlu0 %v3538, 32
        %v3614 = vpop.permute.xlu0 %3613
        %3615 = vrot.lane.b32.xlu0 %v3539, 32
        %v3616 = vpop.permute.xlu0 %3615
        %3617 = vrot.lane.b32.xlu0 %v3540, 32
        %v3618 = vpop.permute.xlu0 %3617
        %3619 = vrot.lane.b32.xlu0 %v3541, 32
        %v3620 = vpop.permute.xlu0 %3619
        %3621 = vrot.lane.b32.xlu0 %v3542, 32
        %v3622 = vpop.permute.xlu0 %3621
        %3623 = vrot.lane.b32.xlu0 %v3543, 32
        %v3624 = vpop.permute.xlu0 %3623
        %3625 = vrot.lane.b32.xlu0 %v3544, 32
        %v3626 = vpop.permute.xlu0 %3625
        %3627 = vrot.lane.b32.xlu0 %v3545, 32
        %v3628 = vpop.permute.xlu0 %3627
        %3629 = vrot.lane.b32.xlu0 %v3546, 32
        %v3630 = vpop.permute.xlu0 %3629
        %3631 = vrot.lane.b32.xlu0 %v3547, 32
        %v3632 = vpop.permute.xlu0 %3631
        %3633 = vrot.lane.b32.xlu0 %v3548, 32
        %v3634 = vpop.permute.xlu0 %3633
        %3635 = vrot.lane.b32.xlu0 %v3549, 32
        %v3636 = vpop.permute.xlu0 %3635
        %3637 = vrot.lane.b32.xlu0 %v3550, 32
        %v3638 = vpop.permute.xlu0 %3637
        %3639 = vrot.lane.b32.xlu0 %v3551, 32
        %v3640 = vpop.permute.xlu0 %3639
        %3641 = vrot.lane.b32.xlu0 %v3552, 32
        %v3642 = vpop.permute.xlu0 %3641
        %3643 = vrot.lane.b32.xlu0 %v3553, 32
        %v3644 = vpop.permute.xlu0 %3643
        %3645 = vrot.lane.b32.xlu0 %v3554, 32
        %v3646 = vpop.permute.xlu0 %3645
        %3647 = vrot.lane.b32.xlu0 %v3555, 32
        %v3648 = vpop.permute.xlu0 %3647
        %3649 = vrot.lane.b32.xlu0 %v3556, 32
        %v3650 = vpop.permute.xlu0 %3649
        %3651 = vrot.lane.b32.xlu0 %v3557, 32
        %v3652 = vpop.permute.xlu0 %3651
        %3653 = vrot.lane.b32.xlu0 %v3558, 32
        %v3654 = vpop.permute.xlu0 %3653
        %vm3687 = vcmask 322816
        %3688 = vst.msk [vmem:[#allocation5] sm:$0xf] %vm3687, %v3592
        %3689 = vst.msk [vmem:[#allocation5 + $0x4] sm:$0xf] %vm3687, %v3594
        %3690 = vst.msk [vmem:[#allocation5 + $0x8] sm:$0xf] %vm3687, %v3596
        %3691 = vst.msk [vmem:[#allocation5 + $0xc] sm:$0xf] %vm3687, %v3598
        %3692 = vst.msk [vmem:[#allocation5 + $0x10] sm:$0xf] %vm3687, %v3600
        %3693 = vst.msk [vmem:[#allocation5 + $0x14] sm:$0xf] %vm3687, %v3602
        %3694 = vst.msk [vmem:[#allocation5 + $0x18] sm:$0xf] %vm3687, %v3604
        %3695 = vst.msk [vmem:[#allocation5 + $0x1c] sm:$0xf] %vm3687, %v3606
        %3696 = vst.msk [vmem:[#allocation5 + $0x20] sm:$0xf] %vm3687, %v3608
        %3697 = vst.msk [vmem:[#allocation5 + $0x24] sm:$0xf] %vm3687, %v3610
        %3698 = vst.msk [vmem:[#allocation5 + $0x28] sm:$0xf] %vm3687, %v3612
        %3699 = vst.msk [vmem:[#allocation5 + $0x2c] sm:$0xf] %vm3687, %v3614
        %3700 = vst.msk [vmem:[#allocation5 + $0x30] sm:$0xf] %vm3687, %v3616
        %3701 = vst.msk [vmem:[#allocation5 + $0x34] sm:$0xf] %vm3687, %v3618
        %3702 = vst.msk [vmem:[#allocation5 + $0x38] sm:$0xf] %vm3687, %v3620
        %3703 = vst.msk [vmem:[#allocation5 + $0x3c] sm:$0xf] %vm3687, %v3622
        %3704 = vst.msk [vmem:[#allocation5 + $0x40] sm:$0xf] %vm3687, %v3624
        %3705 = vst.msk [vmem:[#allocation5 + $0x44] sm:$0xf] %vm3687, %v3626
        %3706 = vst.msk [vmem:[#allocation5 + $0x48] sm:$0xf] %vm3687, %v3628
        %3707 = vst.msk [vmem:[#allocation5 + $0x4c] sm:$0xf] %vm3687, %v3630
        %3708 = vst.msk [vmem:[#allocation5 + $0x50] sm:$0xf] %vm3687, %v3632
        %3709 = vst.msk [vmem:[#allocation5 + $0x54] sm:$0xf] %vm3687, %v3634
        %3710 = vst.msk [vmem:[#allocation5 + $0x58] sm:$0xf] %vm3687, %v3636
        %3711 = vst.msk [vmem:[#allocation5 + $0x5c] sm:$0xf] %vm3687, %v3638
        %3712 = vst.msk [vmem:[#allocation5 + $0x60] sm:$0xf] %vm3687, %v3640
        %3713 = vst.msk [vmem:[#allocation5 + $0x64] sm:$0xf] %vm3687, %v3642
        %3714 = vst.msk [vmem:[#allocation5 + $0x68] sm:$0xf] %vm3687, %v3644
        %3715 = vst.msk [vmem:[#allocation5 + $0x6c] sm:$0xf] %vm3687, %v3646
        %3716 = vst.msk [vmem:[#allocation5 + $0x70] sm:$0xf] %vm3687, %v3648
        %3717 = vst.msk [vmem:[#allocation5 + $0x74] sm:$0xf] %vm3687, %v3650
        %3718 = vst.msk [vmem:[#allocation5 + $0x78] sm:$0xf] %vm3687, %v3652
        %3719 = vst.msk [vmem:[#allocation5 + $0x7c] sm:$0xf] %vm3687, %v3654
        %v3720 = vld [vmem:[%s2690 + $0x2] sm:$0xff]
        %v3721 = vld [vmem:[%s2690 + $0xa] sm:$0xff]
        %v3722 = vld [vmem:[%s2690 + $0x1a] sm:$0xff]
        %v3723 = vld [vmem:[%s2690 + $0x22] sm:$0xff]
        %v3724 = vld [vmem:[%s2690 + $0x32] sm:$0xff]
        %v3725 = vld [vmem:[%s2690 + $0x3a] sm:$0xff]
        %v3726 = vld [vmem:[%s2690 + $0x4a] sm:$0xff]
        %v3727 = vld [vmem:[%s2690 + $0x52] sm:$0xff]
        %v3728 = vld [vmem:[%s2690 + $0x62] sm:$0xff]
        %v3729 = vld [vmem:[%s2690 + $0x6a] sm:$0xff]
        %v3730 = vld [vmem:[%s2690 + $0x7a] sm:$0xff]
        %v3731 = vld [vmem:[%s2690 + $0x82] sm:$0xff]
        %v3732 = vld [vmem:[%s2690 + $0x92] sm:$0xff]
        %v3733 = vld [vmem:[%s2690 + $0x9a] sm:$0xff]
        %v3734 = vld [vmem:[%s2690 + $0xaa] sm:$0xff]
        %v3735 = vld [vmem:[%s2690 + $0xb2] sm:$0xff]
        %v3736 = vld [vmem:[%s2690 + $0xc2] sm:$0xff]
        %v3737 = vld [vmem:[%s2690 + $0xca] sm:$0xff]
        %v3738 = vld [vmem:[%s2690 + $0xda] sm:$0xff]
        %v3739 = vld [vmem:[%s2690 + $0xe2] sm:$0xff]
        %v3740 = vld [vmem:[%s2690 + $0xf2] sm:$0xff]
        %v3741 = vld [vmem:[%s2690 + $0xfa] sm:$0xff]
        %v3742 = vld [vmem:[%s2690 + $0x10a] sm:$0xff]
        %v3743 = vld [vmem:[%s2690 + $0x112] sm:$0xff]
        %v3744 = vld [vmem:[%s2690 + $0x122] sm:$0xff]
        %v3745 = vld [vmem:[%s2690 + $0x12a] sm:$0xff]
        %v3746 = vld [vmem:[%s2690 + $0x13a] sm:$0xff]
        %v3747 = vld [vmem:[%s2690 + $0x142] sm:$0xff]
        %v3748 = vld [vmem:[%s2690 + $0x152] sm:$0xff]
        %v3749 = vld [vmem:[%s2690 + $0x15a] sm:$0xff]
        %v3750 = vld [vmem:[%s2690 + $0x16a] sm:$0xff]
        %v3751 = vld [vmem:[%s2690 + $0x172] sm:$0xff]
        %v3752 = vpack.c.bf16 %v3720, %v3720
        %v3753 = vpack.c.bf16 %v3721, %v3721
        %v3754 = vpack.c.bf16 %v3722, %v3722
        %v3755 = vpack.c.bf16 %v3723, %v3723
        %v3756 = vpack.c.bf16 %v3724, %v3724
        %v3757 = vpack.c.bf16 %v3725, %v3725
        %v3758 = vpack.c.bf16 %v3726, %v3726
        %v3759 = vpack.c.bf16 %v3727, %v3727
        %v3760 = vpack.c.bf16 %v3728, %v3728
        %v3761 = vpack.c.bf16 %v3729, %v3729
        %v3762 = vpack.c.bf16 %v3730, %v3730
        %v3763 = vpack.c.bf16 %v3731, %v3731
        %v3764 = vpack.c.bf16 %v3732, %v3732
        %v3765 = vpack.c.bf16 %v3733, %v3733
        %v3766 = vpack.c.bf16 %v3734, %v3734
        %v3767 = vpack.c.bf16 %v3735, %v3735
        %v3768 = vpack.c.bf16 %v3736, %v3736
        %v3769 = vpack.c.bf16 %v3737, %v3737
        %v3770 = vpack.c.bf16 %v3738, %v3738
        %v3771 = vpack.c.bf16 %v3739, %v3739
        %v3772 = vpack.c.bf16 %v3740, %v3740
        %v3773 = vpack.c.bf16 %v3741, %v3741
        %v3774 = vpack.c.bf16 %v3742, %v3742
        %v3775 = vpack.c.bf16 %v3743, %v3743
        %v3776 = vpack.c.bf16 %v3744, %v3744
        %v3777 = vpack.c.bf16 %v3745, %v3745
        %v3778 = vpack.c.bf16 %v3746, %v3746
        %v3779 = vpack.c.bf16 %v3747, %v3747
        %v3780 = vpack.c.bf16 %v3748, %v3748
        %v3781 = vpack.c.bf16 %v3749, %v3749
        %v3782 = vpack.c.bf16 %v3750, %v3750
        %v3783 = vpack.c.bf16 %v3751, %v3751
        %3816 = vrot.lane.b32.xlu0 %v3752, 40
        %v3817 = vpop.permute.xlu0 %3816
        %3818 = vrot.lane.b32.xlu0 %v3753, 40
        %v3819 = vpop.permute.xlu0 %3818
        %3820 = vrot.lane.b32.xlu0 %v3754, 40
        %v3821 = vpop.permute.xlu0 %3820
        %3822 = vrot.lane.b32.xlu0 %v3755, 40
        %v3823 = vpop.permute.xlu0 %3822
        %3824 = vrot.lane.b32.xlu0 %v3756, 40
        %v3825 = vpop.permute.xlu0 %3824
        %3826 = vrot.lane.b32.xlu0 %v3757, 40
        %v3827 = vpop.permute.xlu0 %3826
        %3828 = vrot.lane.b32.xlu0 %v3758, 40
        %v3829 = vpop.permute.xlu0 %3828
        %3830 = vrot.lane.b32.xlu0 %v3759, 40
        %v3831 = vpop.permute.xlu0 %3830
        %3832 = vrot.lane.b32.xlu0 %v3760, 40
        %v3833 = vpop.permute.xlu0 %3832
        %3834 = vrot.lane.b32.xlu0 %v3761, 40
        %v3835 = vpop.permute.xlu0 %3834
        %3836 = vrot.lane.b32.xlu0 %v3762, 40
        %v3837 = vpop.permute.xlu0 %3836
        %3838 = vrot.lane.b32.xlu0 %v3763, 40
        %v3839 = vpop.permute.xlu0 %3838
        %3840 = vrot.lane.b32.xlu0 %v3764, 40
        %v3841 = vpop.permute.xlu0 %3840
        %3842 = vrot.lane.b32.xlu0 %v3765, 40
        %v3843 = vpop.permute.xlu0 %3842
        %3844 = vrot.lane.b32.xlu0 %v3766, 40
        %v3845 = vpop.permute.xlu0 %3844
        %3846 = vrot.lane.b32.xlu0 %v3767, 40
        %v3847 = vpop.permute.xlu0 %3846
        %3848 = vrot.lane.b32.xlu0 %v3768, 40
        %v3849 = vpop.permute.xlu0 %3848
        %3850 = vrot.lane.b32.xlu0 %v3769, 40
        %v3851 = vpop.permute.xlu0 %3850
        %3852 = vrot.lane.b32.xlu0 %v3770, 40
        %v3853 = vpop.permute.xlu0 %3852
        %3854 = vrot.lane.b32.xlu0 %v3771, 40
        %v3855 = vpop.permute.xlu0 %3854
        %3856 = vrot.lane.b32.xlu0 %v3772, 40
        %v3857 = vpop.permute.xlu0 %3856
        %3858 = vrot.lane.b32.xlu0 %v3773, 40
        %v3859 = vpop.permute.xlu0 %3858
        %3860 = vrot.lane.b32.xlu0 %v3774, 40
        %v3861 = vpop.permute.xlu0 %3860
        %3862 = vrot.lane.b32.xlu0 %v3775, 40
        %v3863 = vpop.permute.xlu0 %3862
        %3864 = vrot.lane.b32.xlu0 %v3776, 40
        %v3865 = vpop.permute.xlu0 %3864
        %3866 = vrot.lane.b32.xlu0 %v3777, 40
        %v3867 = vpop.permute.xlu0 %3866
        %3868 = vrot.lane.b32.xlu0 %v3778, 40
        %v3869 = vpop.permute.xlu0 %3868
        %3870 = vrot.lane.b32.xlu0 %v3779, 40
        %v3871 = vpop.permute.xlu0 %3870
        %3872 = vrot.lane.b32.xlu0 %v3780, 40
        %v3873 = vpop.permute.xlu0 %3872
        %3874 = vrot.lane.b32.xlu0 %v3781, 40
        %v3875 = vpop.permute.xlu0 %3874
        %3876 = vrot.lane.b32.xlu0 %v3782, 40
        %v3877 = vpop.permute.xlu0 %3876
        %3878 = vrot.lane.b32.xlu0 %v3783, 40
        %v3879 = vpop.permute.xlu0 %3878
        %vm3912 = vcmask 388416
        %3913 = vst.msk [vmem:[#allocation5] sm:$0xf] %vm3912, %v3817
        %3914 = vst.msk [vmem:[#allocation5 + $0x4] sm:$0xf] %vm3912, %v3819
        %3915 = vst.msk [vmem:[#allocation5 + $0x8] sm:$0xf] %vm3912, %v3821
        %3916 = vst.msk [vmem:[#allocation5 + $0xc] sm:$0xf] %vm3912, %v3823
        %3917 = vst.msk [vmem:[#allocation5 + $0x10] sm:$0xf] %vm3912, %v3825
        %3918 = vst.msk [vmem:[#allocation5 + $0x14] sm:$0xf] %vm3912, %v3827
        %3919 = vst.msk [vmem:[#allocation5 + $0x18] sm:$0xf] %vm3912, %v3829
        %3920 = vst.msk [vmem:[#allocation5 + $0x1c] sm:$0xf] %vm3912, %v3831
        %3921 = vst.msk [vmem:[#allocation5 + $0x20] sm:$0xf] %vm3912, %v3833
        %3922 = vst.msk [vmem:[#allocation5 + $0x24] sm:$0xf] %vm3912, %v3835
        %3923 = vst.msk [vmem:[#allocation5 + $0x28] sm:$0xf] %vm3912, %v3837
        %3924 = vst.msk [vmem:[#allocation5 + $0x2c] sm:$0xf] %vm3912, %v3839
        %3925 = vst.msk [vmem:[#allocation5 + $0x30] sm:$0xf] %vm3912, %v3841
        %3926 = vst.msk [vmem:[#allocation5 + $0x34] sm:$0xf] %vm3912, %v3843
        %3927 = vst.msk [vmem:[#allocation5 + $0x38] sm:$0xf] %vm3912, %v3845
        %3928 = vst.msk [vmem:[#allocation5 + $0x3c] sm:$0xf] %vm3912, %v3847
        %3929 = vst.msk [vmem:[#allocation5 + $0x40] sm:$0xf] %vm3912, %v3849
        %3930 = vst.msk [vmem:[#allocation5 + $0x44] sm:$0xf] %vm3912, %v3851
        %3931 = vst.msk [vmem:[#allocation5 + $0x48] sm:$0xf] %vm3912, %v3853
        %3932 = vst.msk [vmem:[#allocation5 + $0x4c] sm:$0xf] %vm3912, %v3855
        %3933 = vst.msk [vmem:[#allocation5 + $0x50] sm:$0xf] %vm3912, %v3857
        %3934 = vst.msk [vmem:[#allocation5 + $0x54] sm:$0xf] %vm3912, %v3859
        %3935 = vst.msk [vmem:[#allocation5 + $0x58] sm:$0xf] %vm3912, %v3861
        %3936 = vst.msk [vmem:[#allocation5 + $0x5c] sm:$0xf] %vm3912, %v3863
        %3937 = vst.msk [vmem:[#allocation5 + $0x60] sm:$0xf] %vm3912, %v3865
        %3938 = vst.msk [vmem:[#allocation5 + $0x64] sm:$0xf] %vm3912, %v3867
        %3939 = vst.msk [vmem:[#allocation5 + $0x68] sm:$0xf] %vm3912, %v3869
        %3940 = vst.msk [vmem:[#allocation5 + $0x6c] sm:$0xf] %vm3912, %v3871
        %3941 = vst.msk [vmem:[#allocation5 + $0x70] sm:$0xf] %vm3912, %v3873
        %3942 = vst.msk [vmem:[#allocation5 + $0x74] sm:$0xf] %vm3912, %v3875
        %3943 = vst.msk [vmem:[#allocation5 + $0x78] sm:$0xf] %vm3912, %v3877
        %3944 = vst.msk [vmem:[#allocation5 + $0x7c] sm:$0xf] %vm3912, %v3879
        %s3945 = scalar_lea.vmem [#allocation4], 48
        %v3946 = vld [vmem:[%s3945] sm:$0xff]
        %v3947 = vld [vmem:[%s3945 + $0x8] sm:$0xff]
        %v3948 = vld [vmem:[%s3945 + $0x18] sm:$0xff]
        %v3949 = vld [vmem:[%s3945 + $0x20] sm:$0xff]
        %v3950 = vld [vmem:[%s3945 + $0x30] sm:$0xff]
        %v3951 = vld [vmem:[%s3945 + $0x38] sm:$0xff]
        %v3952 = vld [vmem:[%s3945 + $0x48] sm:$0xff]
        %v3953 = vld [vmem:[%s3945 + $0x50] sm:$0xff]
        %v3954 = vld [vmem:[%s3945 + $0x60] sm:$0xff]
        %v3955 = vld [vmem:[%s3945 + $0x68] sm:$0xff]
        %v3956 = vld [vmem:[%s3945 + $0x78] sm:$0xff]
        %v3957 = vld [vmem:[%s3945 + $0x80] sm:$0xff]
        %v3958 = vld [vmem:[%s3945 + $0x90] sm:$0xff]
        %v3959 = vld [vmem:[%s3945 + $0x98] sm:$0xff]
        %v3960 = vld [vmem:[%s3945 + $0xa8] sm:$0xff]
        %v3961 = vld [vmem:[%s3945 + $0xb0] sm:$0xff]
        %v3962 = vld [vmem:[%s3945 + $0xc0] sm:$0xff]
        %v3963 = vld [vmem:[%s3945 + $0xc8] sm:$0xff]
        %v3964 = vld [vmem:[%s3945 + $0xd8] sm:$0xff]
        %v3965 = vld [vmem:[%s3945 + $0xe0] sm:$0xff]
        %v3966 = vld [vmem:[%s3945 + $0xf0] sm:$0xff]
        %v3967 = vld [vmem:[%s3945 + $0xf8] sm:$0xff]
        %v3968 = vld [vmem:[%s3945 + $0x108] sm:$0xff]
        %v3969 = vld [vmem:[%s3945 + $0x110] sm:$0xff]
        %v3970 = vld [vmem:[%s3945 + $0x120] sm:$0xff]
        %v3971 = vld [vmem:[%s3945 + $0x128] sm:$0xff]
        %v3972 = vld [vmem:[%s3945 + $0x138] sm:$0xff]
        %v3973 = vld [vmem:[%s3945 + $0x140] sm:$0xff]
        %v3974 = vld [vmem:[%s3945 + $0x150] sm:$0xff]
        %v3975 = vld [vmem:[%s3945 + $0x158] sm:$0xff]
        %v3976 = vld [vmem:[%s3945 + $0x168] sm:$0xff]
        %v3977 = vld [vmem:[%s3945 + $0x170] sm:$0xff]
        %v3978 = vpack.c.bf16 %v3946, %v3946
        %v3979 = vpack.c.bf16 %v3947, %v3947
        %v3980 = vpack.c.bf16 %v3948, %v3948
        %v3981 = vpack.c.bf16 %v3949, %v3949
        %v3982 = vpack.c.bf16 %v3950, %v3950
        %v3983 = vpack.c.bf16 %v3951, %v3951
        %v3984 = vpack.c.bf16 %v3952, %v3952
        %v3985 = vpack.c.bf16 %v3953, %v3953
        %v3986 = vpack.c.bf16 %v3954, %v3954
        %v3987 = vpack.c.bf16 %v3955, %v3955
        %v3988 = vpack.c.bf16 %v3956, %v3956
        %v3989 = vpack.c.bf16 %v3957, %v3957
        %v3990 = vpack.c.bf16 %v3958, %v3958
        %v3991 = vpack.c.bf16 %v3959, %v3959
        %v3992 = vpack.c.bf16 %v3960, %v3960
        %v3993 = vpack.c.bf16 %v3961, %v3961
        %v3994 = vpack.c.bf16 %v3962, %v3962
        %v3995 = vpack.c.bf16 %v3963, %v3963
        %v3996 = vpack.c.bf16 %v3964, %v3964
        %v3997 = vpack.c.bf16 %v3965, %v3965
        %v3998 = vpack.c.bf16 %v3966, %v3966
        %v3999 = vpack.c.bf16 %v3967, %v3967
        %v4000 = vpack.c.bf16 %v3968, %v3968
        %v4001 = vpack.c.bf16 %v3969, %v3969
        %v4002 = vpack.c.bf16 %v3970, %v3970
        %v4003 = vpack.c.bf16 %v3971, %v3971
        %v4004 = vpack.c.bf16 %v3972, %v3972
        %v4005 = vpack.c.bf16 %v3973, %v3973
        %v4006 = vpack.c.bf16 %v3974, %v3974
        %v4007 = vpack.c.bf16 %v3975, %v3975
        %v4008 = vpack.c.bf16 %v3976, %v3976
        %v4009 = vpack.c.bf16 %v3977, %v3977
        %4042 = vrot.lane.b32.xlu0 %v3978, 48
        %v4043 = vpop.permute.xlu0 %4042
        %4044 = vrot.lane.b32.xlu0 %v3979, 48
        %v4045 = vpop.permute.xlu0 %4044
        %4046 = vrot.lane.b32.xlu0 %v3980, 48
        %v4047 = vpop.permute.xlu0 %4046
        %4048 = vrot.lane.b32.xlu0 %v3981, 48
        %v4049 = vpop.permute.xlu0 %4048
        %4050 = vrot.lane.b32.xlu0 %v3982, 48
        %v4051 = vpop.permute.xlu0 %4050
        %4052 = vrot.lane.b32.xlu0 %v3983, 48
        %v4053 = vpop.permute.xlu0 %4052
        %4054 = vrot.lane.b32.xlu0 %v3984, 48
        %v4055 = vpop.permute.xlu0 %4054
        %4056 = vrot.lane.b32.xlu0 %v3985, 48
        %v4057 = vpop.permute.xlu0 %4056
        %4058 = vrot.lane.b32.xlu0 %v3986, 48
        %v4059 = vpop.permute.xlu0 %4058
        %4060 = vrot.lane.b32.xlu0 %v3987, 48
        %v4061 = vpop.permute.xlu0 %4060
        %4062 = vrot.lane.b32.xlu0 %v3988, 48
        %v4063 = vpop.permute.xlu0 %4062
        %4064 = vrot.lane.b32.xlu0 %v3989, 48
        %v4065 = vpop.permute.xlu0 %4064
        %4066 = vrot.lane.b32.xlu0 %v3990, 48
        %v4067 = vpop.permute.xlu0 %4066
        %4068 = vrot.lane.b32.xlu0 %v3991, 48
        %v4069 = vpop.permute.xlu0 %4068
        %4070 = vrot.lane.b32.xlu0 %v3992, 48
        %v4071 = vpop.permute.xlu0 %4070
        %4072 = vrot.lane.b32.xlu0 %v3993, 48
        %v4073 = vpop.permute.xlu0 %4072
        %4074 = vrot.lane.b32.xlu0 %v3994, 48
        %v4075 = vpop.permute.xlu0 %4074
        %4076 = vrot.lane.b32.xlu0 %v3995, 48
        %v4077 = vpop.permute.xlu0 %4076
        %4078 = vrot.lane.b32.xlu0 %v3996, 48
        %v4079 = vpop.permute.xlu0 %4078
        %4080 = vrot.lane.b32.xlu0 %v3997, 48
        %v4081 = vpop.permute.xlu0 %4080
        %4082 = vrot.lane.b32.xlu0 %v3998, 48
        %v4083 = vpop.permute.xlu0 %4082
        %4084 = vrot.lane.b32.xlu0 %v3999, 48
        %v4085 = vpop.permute.xlu0 %4084
        %4086 = vrot.lane.b32.xlu0 %v4000, 48
        %v4087 = vpop.permute.xlu0 %4086
        %4088 = vrot.lane.b32.xlu0 %v4001, 48
        %v4089 = vpop.permute.xlu0 %4088
        %4090 = vrot.lane.b32.xlu0 %v4002, 48
        %v4091 = vpop.permute.xlu0 %4090
        %4092 = vrot.lane.b32.xlu0 %v4003, 48
        %v4093 = vpop.permute.xlu0 %4092
        %4094 = vrot.lane.b32.xlu0 %v4004, 48
        %v4095 = vpop.permute.xlu0 %4094
        %4096 = vrot.lane.b32.xlu0 %v4005, 48
        %v4097 = vpop.permute.xlu0 %4096
        %4098 = vrot.lane.b32.xlu0 %v4006, 48
        %v4099 = vpop.permute.xlu0 %4098
        %4100 = vrot.lane.b32.xlu0 %v4007, 48
        %v4101 = vpop.permute.xlu0 %4100
        %4102 = vrot.lane.b32.xlu0 %v4008, 48
        %v4103 = vpop.permute.xlu0 %4102
        %4104 = vrot.lane.b32.xlu0 %v4009, 48
        %v4105 = vpop.permute.xlu0 %4104
        %vm4138 = vcmask 454016
        %4139 = vst.msk [vmem:[#allocation5] sm:$0xf] %vm4138, %v4043
        %4140 = vst.msk [vmem:[#allocation5 + $0x4] sm:$0xf] %vm4138, %v4045
        %4141 = vst.msk [vmem:[#allocation5 + $0x8] sm:$0xf] %vm4138, %v4047
        %4142 = vst.msk [vmem:[#allocation5 + $0xc] sm:$0xf] %vm4138, %v4049
        %4143 = vst.msk [vmem:[#allocation5 + $0x10] sm:$0xf] %vm4138, %v4051
        %4144 = vst.msk [vmem:[#allocation5 + $0x14] sm:$0xf] %vm4138, %v4053
        %4145 = vst.msk [vmem:[#allocation5 + $0x18] sm:$0xf] %vm4138, %v4055
        %4146 = vst.msk [vmem:[#allocation5 + $0x1c] sm:$0xf] %vm4138, %v4057
        %4147 = vst.msk [vmem:[#allocation5 + $0x20] sm:$0xf] %vm4138, %v4059
        %4148 = vst.msk [vmem:[#allocation5 + $0x24] sm:$0xf] %vm4138, %v4061
        %4149 = vst.msk [vmem:[#allocation5 + $0x28] sm:$0xf] %vm4138, %v4063
        %4150 = vst.msk [vmem:[#allocation5 + $0x2c] sm:$0xf] %vm4138, %v4065
        %4151 = vst.msk [vmem:[#allocation5 + $0x30] sm:$0xf] %vm4138, %v4067
        %4152 = vst.msk [vmem:[#allocation5 + $0x34] sm:$0xf] %vm4138, %v4069
        %4153 = vst.msk [vmem:[#allocation5 + $0x38] sm:$0xf] %vm4138, %v4071
        %4154 = vst.msk [vmem:[#allocation5 + $0x3c] sm:$0xf] %vm4138, %v4073
        %4155 = vst.msk [vmem:[#allocation5 + $0x40] sm:$0xf] %vm4138, %v4075
        %4156 = vst.msk [vmem:[#allocation5 + $0x44] sm:$0xf] %vm4138, %v4077
        %4157 = vst.msk [vmem:[#allocation5 + $0x48] sm:$0xf] %vm4138, %v4079
        %4158 = vst.msk [vmem:[#allocation5 + $0x4c] sm:$0xf] %vm4138, %v4081
        %4159 = vst.msk [vmem:[#allocation5 + $0x50] sm:$0xf] %vm4138, %v4083
        %4160 = vst.msk [vmem:[#allocation5 + $0x54] sm:$0xf] %vm4138, %v4085
        %4161 = vst.msk [vmem:[#allocation5 + $0x58] sm:$0xf] %vm4138, %v4087
        %4162 = vst.msk [vmem:[#allocation5 + $0x5c] sm:$0xf] %vm4138, %v4089
        %4163 = vst.msk [vmem:[#allocation5 + $0x60] sm:$0xf] %vm4138, %v4091
        %4164 = vst.msk [vmem:[#allocation5 + $0x64] sm:$0xf] %vm4138, %v4093
        %4165 = vst.msk [vmem:[#allocation5 + $0x68] sm:$0xf] %vm4138, %v4095
        %4166 = vst.msk [vmem:[#allocation5 + $0x6c] sm:$0xf] %vm4138, %v4097
        %4167 = vst.msk [vmem:[#allocation5 + $0x70] sm:$0xf] %vm4138, %v4099
        %4168 = vst.msk [vmem:[#allocation5 + $0x74] sm:$0xf] %vm4138, %v4101
        %4169 = vst.msk [vmem:[#allocation5 + $0x78] sm:$0xf] %vm4138, %v4103
        %4170 = vst.msk [vmem:[#allocation5 + $0x7c] sm:$0xf] %vm4138, %v4105
        %v4171 = vld [vmem:[%s3945 + $0x1] sm:$0xff]
        %v4172 = vld [vmem:[%s3945 + $0x9] sm:$0xff]
        %v4173 = vld [vmem:[%s3945 + $0x19] sm:$0xff]
        %v4174 = vld [vmem:[%s3945 + $0x21] sm:$0xff]
        %v4175 = vld [vmem:[%s3945 + $0x31] sm:$0xff]
        %v4176 = vld [vmem:[%s3945 + $0x39] sm:$0xff]
        %v4177 = vld [vmem:[%s3945 + $0x49] sm:$0xff]
        %v4178 = vld [vmem:[%s3945 + $0x51] sm:$0xff]
        %v4179 = vld [vmem:[%s3945 + $0x61] sm:$0xff]
        %v4180 = vld [vmem:[%s3945 + $0x69] sm:$0xff]
        %v4181 = vld [vmem:[%s3945 + $0x79] sm:$0xff]
        %v4182 = vld [vmem:[%s3945 + $0x81] sm:$0xff]
        %v4183 = vld [vmem:[%s3945 + $0x91] sm:$0xff]
        %v4184 = vld [vmem:[%s3945 + $0x99] sm:$0xff]
        %v4185 = vld [vmem:[%s3945 + $0xa9] sm:$0xff]
        %v4186 = vld [vmem:[%s3945 + $0xb1] sm:$0xff]
        %v4187 = vld [vmem:[%s3945 + $0xc1] sm:$0xff]
        %v4188 = vld [vmem:[%s3945 + $0xc9] sm:$0xff]
        %v4189 = vld [vmem:[%s3945 + $0xd9] sm:$0xff]
        %v4190 = vld [vmem:[%s3945 + $0xe1] sm:$0xff]
        %v4191 = vld [vmem:[%s3945 + $0xf1] sm:$0xff]
        %v4192 = vld [vmem:[%s3945 + $0xf9] sm:$0xff]
        %v4193 = vld [vmem:[%s3945 + $0x109] sm:$0xff]
        %v4194 = vld [vmem:[%s3945 + $0x111] sm:$0xff]
        %v4195 = vld [vmem:[%s3945 + $0x121] sm:$0xff]
        %v4196 = vld [vmem:[%s3945 + $0x129] sm:$0xff]
        %v4197 = vld [vmem:[%s3945 + $0x139] sm:$0xff]
        %v4198 = vld [vmem:[%s3945 + $0x141] sm:$0xff]
        %v4199 = vld [vmem:[%s3945 + $0x151] sm:$0xff]
        %v4200 = vld [vmem:[%s3945 + $0x159] sm:$0xff]
        %v4201 = vld [vmem:[%s3945 + $0x169] sm:$0xff]
        %v4202 = vld [vmem:[%s3945 + $0x171] sm:$0xff]
        %v4203 = vpack.c.bf16 %v4171, %v4171
        %v4204 = vpack.c.bf16 %v4172, %v4172
        %v4205 = vpack.c.bf16 %v4173, %v4173
        %v4206 = vpack.c.bf16 %v4174, %v4174
        %v4207 = vpack.c.bf16 %v4175, %v4175
        %v4208 = vpack.c.bf16 %v4176, %v4176
        %v4209 = vpack.c.bf16 %v4177, %v4177
        %v4210 = vpack.c.bf16 %v4178, %v4178
        %v4211 = vpack.c.bf16 %v4179, %v4179
        %v4212 = vpack.c.bf16 %v4180, %v4180
        %v4213 = vpack.c.bf16 %v4181, %v4181
        %v4214 = vpack.c.bf16 %v4182, %v4182
        %v4215 = vpack.c.bf16 %v4183, %v4183
        %v4216 = vpack.c.bf16 %v4184, %v4184
        %v4217 = vpack.c.bf16 %v4185, %v4185
        %v4218 = vpack.c.bf16 %v4186, %v4186
        %v4219 = vpack.c.bf16 %v4187, %v4187
        %v4220 = vpack.c.bf16 %v4188, %v4188
        %v4221 = vpack.c.bf16 %v4189, %v4189
        %v4222 = vpack.c.bf16 %v4190, %v4190
        %v4223 = vpack.c.bf16 %v4191, %v4191
        %v4224 = vpack.c.bf16 %v4192, %v4192
        %v4225 = vpack.c.bf16 %v4193, %v4193
        %v4226 = vpack.c.bf16 %v4194, %v4194
        %v4227 = vpack.c.bf16 %v4195, %v4195
        %v4228 = vpack.c.bf16 %v4196, %v4196
        %v4229 = vpack.c.bf16 %v4197, %v4197
        %v4230 = vpack.c.bf16 %v4198, %v4198
        %v4231 = vpack.c.bf16 %v4199, %v4199
        %v4232 = vpack.c.bf16 %v4200, %v4200
        %v4233 = vpack.c.bf16 %v4201, %v4201
        %v4234 = vpack.c.bf16 %v4202, %v4202
        %4267 = vrot.lane.b32.xlu0 %v4203, 56
        %v4268 = vpop.permute.xlu0 %4267
        %4269 = vrot.lane.b32.xlu0 %v4204, 56
        %v4270 = vpop.permute.xlu0 %4269
        %4271 = vrot.lane.b32.xlu0 %v4205, 56
        %v4272 = vpop.permute.xlu0 %4271
        %4273 = vrot.lane.b32.xlu0 %v4206, 56
        %v4274 = vpop.permute.xlu0 %4273
        %4275 = vrot.lane.b32.xlu0 %v4207, 56
        %v4276 = vpop.permute.xlu0 %4275
        %4277 = vrot.lane.b32.xlu0 %v4208, 56
        %v4278 = vpop.permute.xlu0 %4277
        %4279 = vrot.lane.b32.xlu0 %v4209, 56
        %v4280 = vpop.permute.xlu0 %4279
        %4281 = vrot.lane.b32.xlu0 %v4210, 56
        %v4282 = vpop.permute.xlu0 %4281
        %4283 = vrot.lane.b32.xlu0 %v4211, 56
        %v4284 = vpop.permute.xlu0 %4283
        %4285 = vrot.lane.b32.xlu0 %v4212, 56
        %v4286 = vpop.permute.xlu0 %4285
        %4287 = vrot.lane.b32.xlu0 %v4213, 56
        %v4288 = vpop.permute.xlu0 %4287
        %4289 = vrot.lane.b32.xlu0 %v4214, 56
        %v4290 = vpop.permute.xlu0 %4289
        %4291 = vrot.lane.b32.xlu0 %v4215, 56
        %v4292 = vpop.permute.xlu0 %4291
        %4293 = vrot.lane.b32.xlu0 %v4216, 56
        %v4294 = vpop.permute.xlu0 %4293
        %4295 = vrot.lane.b32.xlu0 %v4217, 56
        %v4296 = vpop.permute.xlu0 %4295
        %4297 = vrot.lane.b32.xlu0 %v4218, 56
        %v4298 = vpop.permute.xlu0 %4297
        %4299 = vrot.lane.b32.xlu0 %v4219, 56
        %v4300 = vpop.permute.xlu0 %4299
        %4301 = vrot.lane.b32.xlu0 %v4220, 56
        %v4302 = vpop.permute.xlu0 %4301
        %4303 = vrot.lane.b32.xlu0 %v4221, 56
        %v4304 = vpop.permute.xlu0 %4303
        %4305 = vrot.lane.b32.xlu0 %v4222, 56
        %v4306 = vpop.permute.xlu0 %4305
        %4307 = vrot.lane.b32.xlu0 %v4223, 56
        %v4308 = vpop.permute.xlu0 %4307
        %4309 = vrot.lane.b32.xlu0 %v4224, 56
        %v4310 = vpop.permute.xlu0 %4309
        %4311 = vrot.lane.b32.xlu0 %v4225, 56
        %v4312 = vpop.permute.xlu0 %4311
        %4313 = vrot.lane.b32.xlu0 %v4226, 56
        %v4314 = vpop.permute.xlu0 %4313
        %4315 = vrot.lane.b32.xlu0 %v4227, 56
        %v4316 = vpop.permute.xlu0 %4315
        %4317 = vrot.lane.b32.xlu0 %v4228, 56
        %v4318 = vpop.permute.xlu0 %4317
        %4319 = vrot.lane.b32.xlu0 %v4229, 56
        %v4320 = vpop.permute.xlu0 %4319
        %4321 = vrot.lane.b32.xlu0 %v4230, 56
        %v4322 = vpop.permute.xlu0 %4321
        %4323 = vrot.lane.b32.xlu0 %v4231, 56
        %v4324 = vpop.permute.xlu0 %4323
        %4325 = vrot.lane.b32.xlu0 %v4232, 56
        %v4326 = vpop.permute.xlu0 %4325
        %4327 = vrot.lane.b32.xlu0 %v4233, 56
        %v4328 = vpop.permute.xlu0 %4327
        %4329 = vrot.lane.b32.xlu0 %v4234, 56
        %v4330 = vpop.permute.xlu0 %4329
        %vm4363 = vcmask 519616
        %4364 = vst.msk [vmem:[#allocation5] sm:$0xf] %vm4363, %v4268
        %4365 = vst.msk [vmem:[#allocation5 + $0x4] sm:$0xf] %vm4363, %v4270
        %4366 = vst.msk [vmem:[#allocation5 + $0x8] sm:$0xf] %vm4363, %v4272
        %4367 = vst.msk [vmem:[#allocation5 + $0xc] sm:$0xf] %vm4363, %v4274
        %4368 = vst.msk [vmem:[#allocation5 + $0x10] sm:$0xf] %vm4363, %v4276
        %4369 = vst.msk [vmem:[#allocation5 + $0x14] sm:$0xf] %vm4363, %v4278
        %4370 = vst.msk [vmem:[#allocation5 + $0x18] sm:$0xf] %vm4363, %v4280
        %4371 = vst.msk [vmem:[#allocation5 + $0x1c] sm:$0xf] %vm4363, %v4282
        %4372 = vst.msk [vmem:[#allocation5 + $0x20] sm:$0xf] %vm4363, %v4284
        %4373 = vst.msk [vmem:[#allocation5 + $0x24] sm:$0xf] %vm4363, %v4286
        %4374 = vst.msk [vmem:[#allocation5 + $0x28] sm:$0xf] %vm4363, %v4288
        %4375 = vst.msk [vmem:[#allocation5 + $0x2c] sm:$0xf] %vm4363, %v4290
        %4376 = vst.msk [vmem:[#allocation5 + $0x30] sm:$0xf] %vm4363, %v4292
        %4377 = vst.msk [vmem:[#allocation5 + $0x34] sm:$0xf] %vm4363, %v4294
        %4378 = vst.msk [vmem:[#allocation5 + $0x38] sm:$0xf] %vm4363, %v4296
        %4379 = vst.msk [vmem:[#allocation5 + $0x3c] sm:$0xf] %vm4363, %v4298
        %4380 = vst.msk [vmem:[#allocation5 + $0x40] sm:$0xf] %vm4363, %v4300
        %4381 = vst.msk [vmem:[#allocation5 + $0x44] sm:$0xf] %vm4363, %v4302
        %4382 = vst.msk [vmem:[#allocation5 + $0x48] sm:$0xf] %vm4363, %v4304
        %4383 = vst.msk [vmem:[#allocation5 + $0x4c] sm:$0xf] %vm4363, %v4306
        %4384 = vst.msk [vmem:[#allocation5 + $0x50] sm:$0xf] %vm4363, %v4308
        %4385 = vst.msk [vmem:[#allocation5 + $0x54] sm:$0xf] %vm4363, %v4310
        %4386 = vst.msk [vmem:[#allocation5 + $0x58] sm:$0xf] %vm4363, %v4312
        %4387 = vst.msk [vmem:[#allocation5 + $0x5c] sm:$0xf] %vm4363, %v4314
        %4388 = vst.msk [vmem:[#allocation5 + $0x60] sm:$0xf] %vm4363, %v4316
        %4389 = vst.msk [vmem:[#allocation5 + $0x64] sm:$0xf] %vm4363, %v4318
        %4390 = vst.msk [vmem:[#allocation5 + $0x68] sm:$0xf] %vm4363, %v4320
        %4391 = vst.msk [vmem:[#allocation5 + $0x6c] sm:$0xf] %vm4363, %v4322
        %4392 = vst.msk [vmem:[#allocation5 + $0x70] sm:$0xf] %vm4363, %v4324
        %4393 = vst.msk [vmem:[#allocation5 + $0x74] sm:$0xf] %vm4363, %v4326
        %4394 = vst.msk [vmem:[#allocation5 + $0x78] sm:$0xf] %vm4363, %v4328
        %4395 = vst.msk [vmem:[#allocation5 + $0x7c] sm:$0xf] %vm4363, %v4330
        %v4396 = vld [vmem:[%s3945 + $0x2] sm:$0xff]
        %v4397 = vld [vmem:[%s3945 + $0xa] sm:$0xff]
        %v4398 = vld [vmem:[%s3945 + $0x1a] sm:$0xff]
        %v4399 = vld [vmem:[%s3945 + $0x22] sm:$0xff]
        %v4400 = vld [vmem:[%s3945 + $0x32] sm:$0xff]
        %v4401 = vld [vmem:[%s3945 + $0x3a] sm:$0xff]
        %v4402 = vld [vmem:[%s3945 + $0x4a] sm:$0xff]
        %v4403 = vld [vmem:[%s3945 + $0x52] sm:$0xff]
        %v4404 = vld [vmem:[%s3945 + $0x62] sm:$0xff]
        %v4405 = vld [vmem:[%s3945 + $0x6a] sm:$0xff]
        %v4406 = vld [vmem:[%s3945 + $0x7a] sm:$0xff]
        %v4407 = vld [vmem:[%s3945 + $0x82] sm:$0xff]
        %v4408 = vld [vmem:[%s3945 + $0x92] sm:$0xff]
        %v4409 = vld [vmem:[%s3945 + $0x9a] sm:$0xff]
        %v4410 = vld [vmem:[%s3945 + $0xaa] sm:$0xff]
        %v4411 = vld [vmem:[%s3945 + $0xb2] sm:$0xff]
        %v4412 = vld [vmem:[%s3945 + $0xc2] sm:$0xff]
        %v4413 = vld [vmem:[%s3945 + $0xca] sm:$0xff]
        %v4414 = vld [vmem:[%s3945 + $0xda] sm:$0xff]
        %v4415 = vld [vmem:[%s3945 + $0xe2] sm:$0xff]
        %v4416 = vld [vmem:[%s3945 + $0xf2] sm:$0xff]
        %v4417 = vld [vmem:[%s3945 + $0xfa] sm:$0xff]
        %v4418 = vld [vmem:[%s3945 + $0x10a] sm:$0xff]
        %v4419 = vld [vmem:[%s3945 + $0x112] sm:$0xff]
        %v4420 = vld [vmem:[%s3945 + $0x122] sm:$0xff]
        %v4421 = vld [vmem:[%s3945 + $0x12a] sm:$0xff]
        %v4422 = vld [vmem:[%s3945 + $0x13a] sm:$0xff]
        %v4423 = vld [vmem:[%s3945 + $0x142] sm:$0xff]
        %v4424 = vld [vmem:[%s3945 + $0x152] sm:$0xff]
        %v4425 = vld [vmem:[%s3945 + $0x15a] sm:$0xff]
        %v4426 = vld [vmem:[%s3945 + $0x16a] sm:$0xff]
        %v4427 = vld [vmem:[%s3945 + $0x172] sm:$0xff]
        %v4428 = vpack.c.bf16 %v4396, %v4396
        %v4429 = vpack.c.bf16 %v4397, %v4397
        %v4430 = vpack.c.bf16 %v4398, %v4398
        %v4431 = vpack.c.bf16 %v4399, %v4399
        %v4432 = vpack.c.bf16 %v4400, %v4400
        %v4433 = vpack.c.bf16 %v4401, %v4401
        %v4434 = vpack.c.bf16 %v4402, %v4402
        %v4435 = vpack.c.bf16 %v4403, %v4403
        %v4436 = vpack.c.bf16 %v4404, %v4404
        %v4437 = vpack.c.bf16 %v4405, %v4405
        %v4438 = vpack.c.bf16 %v4406, %v4406
        %v4439 = vpack.c.bf16 %v4407, %v4407
        %v4440 = vpack.c.bf16 %v4408, %v4408
        %v4441 = vpack.c.bf16 %v4409, %v4409
        %v4442 = vpack.c.bf16 %v4410, %v4410
        %v4443 = vpack.c.bf16 %v4411, %v4411
        %v4444 = vpack.c.bf16 %v4412, %v4412
        %v4445 = vpack.c.bf16 %v4413, %v4413
        %v4446 = vpack.c.bf16 %v4414, %v4414
        %v4447 = vpack.c.bf16 %v4415, %v4415
        %v4448 = vpack.c.bf16 %v4416, %v4416
        %v4449 = vpack.c.bf16 %v4417, %v4417
        %v4450 = vpack.c.bf16 %v4418, %v4418
        %v4451 = vpack.c.bf16 %v4419, %v4419
        %v4452 = vpack.c.bf16 %v4420, %v4420
        %v4453 = vpack.c.bf16 %v4421, %v4421
        %v4454 = vpack.c.bf16 %v4422, %v4422
        %v4455 = vpack.c.bf16 %v4423, %v4423
        %v4456 = vpack.c.bf16 %v4424, %v4424
        %v4457 = vpack.c.bf16 %v4425, %v4425
        %v4458 = vpack.c.bf16 %v4426, %v4426
        %v4459 = vpack.c.bf16 %v4427, %v4427
        %4492 = vrot.lane.b32.xlu0 %v4428, 64
        %v4493 = vpop.permute.xlu0 %4492
        %4494 = vrot.lane.b32.xlu0 %v4429, 64
        %v4495 = vpop.permute.xlu0 %4494
        %4496 = vrot.lane.b32.xlu0 %v4430, 64
        %v4497 = vpop.permute.xlu0 %4496
        %4498 = vrot.lane.b32.xlu0 %v4431, 64
        %v4499 = vpop.permute.xlu0 %4498
        %4500 = vrot.lane.b32.xlu0 %v4432, 64
        %v4501 = vpop.permute.xlu0 %4500
        %4502 = vrot.lane.b32.xlu0 %v4433, 64
        %v4503 = vpop.permute.xlu0 %4502
        %4504 = vrot.lane.b32.xlu0 %v4434, 64
        %v4505 = vpop.permute.xlu0 %4504
        %4506 = vrot.lane.b32.xlu0 %v4435, 64
        %v4507 = vpop.permute.xlu0 %4506
        %4508 = vrot.lane.b32.xlu0 %v4436, 64
        %v4509 = vpop.permute.xlu0 %4508
        %4510 = vrot.lane.b32.xlu0 %v4437, 64
        %v4511 = vpop.permute.xlu0 %4510
        %4512 = vrot.lane.b32.xlu0 %v4438, 64
        %v4513 = vpop.permute.xlu0 %4512
        %4514 = vrot.lane.b32.xlu0 %v4439, 64
        %v4515 = vpop.permute.xlu0 %4514
        %4516 = vrot.lane.b32.xlu0 %v4440, 64
        %v4517 = vpop.permute.xlu0 %4516
        %4518 = vrot.lane.b32.xlu0 %v4441, 64
        %v4519 = vpop.permute.xlu0 %4518
        %4520 = vrot.lane.b32.xlu0 %v4442, 64
        %v4521 = vpop.permute.xlu0 %4520
        %4522 = vrot.lane.b32.xlu0 %v4443, 64
        %v4523 = vpop.permute.xlu0 %4522
        %4524 = vrot.lane.b32.xlu0 %v4444, 64
        %v4525 = vpop.permute.xlu0 %4524
        %4526 = vrot.lane.b32.xlu0 %v4445, 64
        %v4527 = vpop.permute.xlu0 %4526
        %4528 = vrot.lane.b32.xlu0 %v4446, 64
        %v4529 = vpop.permute.xlu0 %4528
        %4530 = vrot.lane.b32.xlu0 %v4447, 64
        %v4531 = vpop.permute.xlu0 %4530
        %4532 = vrot.lane.b32.xlu0 %v4448, 64
        %v4533 = vpop.permute.xlu0 %4532
        %4534 = vrot.lane.b32.xlu0 %v4449, 64
        %v4535 = vpop.permute.xlu0 %4534
        %4536 = vrot.lane.b32.xlu0 %v4450, 64
        %v4537 = vpop.permute.xlu0 %4536
        %4538 = vrot.lane.b32.xlu0 %v4451, 64
        %v4539 = vpop.permute.xlu0 %4538
        %4540 = vrot.lane.b32.xlu0 %v4452, 64
        %v4541 = vpop.permute.xlu0 %4540
        %4542 = vrot.lane.b32.xlu0 %v4453, 64
        %v4543 = vpop.permute.xlu0 %4542
        %4544 = vrot.lane.b32.xlu0 %v4454, 64
        %v4545 = vpop.permute.xlu0 %4544
        %4546 = vrot.lane.b32.xlu0 %v4455, 64
        %v4547 = vpop.permute.xlu0 %4546
        %4548 = vrot.lane.b32.xlu0 %v4456, 64
        %v4549 = vpop.permute.xlu0 %4548
        %4550 = vrot.lane.b32.xlu0 %v4457, 64
        %v4551 = vpop.permute.xlu0 %4550
        %4552 = vrot.lane.b32.xlu0 %v4458, 64
        %v4553 = vpop.permute.xlu0 %4552
        %4554 = vrot.lane.b32.xlu0 %v4459, 64
        %v4555 = vpop.permute.xlu0 %4554
        %vm4588 = vcmask 585216
        %4589 = vst.msk [vmem:[#allocation5] sm:$0xf] %vm4588, %v4493
        %4590 = vst.msk [vmem:[#allocation5 + $0x4] sm:$0xf] %vm4588, %v4495
        %4591 = vst.msk [vmem:[#allocation5 + $0x8] sm:$0xf] %vm4588, %v4497
        %4592 = vst.msk [vmem:[#allocation5 + $0xc] sm:$0xf] %vm4588, %v4499
        %4593 = vst.msk [vmem:[#allocation5 + $0x10] sm:$0xf] %vm4588, %v4501
        %4594 = vst.msk [vmem:[#allocation5 + $0x14] sm:$0xf] %vm4588, %v4503
        %4595 = vst.msk [vmem:[#allocation5 + $0x18] sm:$0xf] %vm4588, %v4505
        %4596 = vst.msk [vmem:[#allocation5 + $0x1c] sm:$0xf] %vm4588, %v4507
        %4597 = vst.msk [vmem:[#allocation5 + $0x20] sm:$0xf] %vm4588, %v4509
        %4598 = vst.msk [vmem:[#allocation5 + $0x24] sm:$0xf] %vm4588, %v4511
        %4599 = vst.msk [vmem:[#allocation5 + $0x28] sm:$0xf] %vm4588, %v4513
        %4600 = vst.msk [vmem:[#allocation5 + $0x2c] sm:$0xf] %vm4588, %v4515
        %4601 = vst.msk [vmem:[#allocation5 + $0x30] sm:$0xf] %vm4588, %v4517
        %4602 = vst.msk [vmem:[#allocation5 + $0x34] sm:$0xf] %vm4588, %v4519
        %4603 = vst.msk [vmem:[#allocation5 + $0x38] sm:$0xf] %vm4588, %v4521
        %4604 = vst.msk [vmem:[#allocation5 + $0x3c] sm:$0xf] %vm4588, %v4523
        %4605 = vst.msk [vmem:[#allocation5 + $0x40] sm:$0xf] %vm4588, %v4525
        %4606 = vst.msk [vmem:[#allocation5 + $0x44] sm:$0xf] %vm4588, %v4527
        %4607 = vst.msk [vmem:[#allocation5 + $0x48] sm:$0xf] %vm4588, %v4529
        %4608 = vst.msk [vmem:[#allocation5 + $0x4c] sm:$0xf] %vm4588, %v4531
        %4609 = vst.msk [vmem:[#allocation5 + $0x50] sm:$0xf] %vm4588, %v4533
        %4610 = vst.msk [vmem:[#allocation5 + $0x54] sm:$0xf] %vm4588, %v4535
        %4611 = vst.msk [vmem:[#allocation5 + $0x58] sm:$0xf] %vm4588, %v4537
        %4612 = vst.msk [vmem:[#allocation5 + $0x5c] sm:$0xf] %vm4588, %v4539
        %4613 = vst.msk [vmem:[#allocation5 + $0x60] sm:$0xf] %vm4588, %v4541
        %4614 = vst.msk [vmem:[#allocation5 + $0x64] sm:$0xf] %vm4588, %v4543
        %4615 = vst.msk [vmem:[#allocation5 + $0x68] sm:$0xf] %vm4588, %v4545
        %4616 = vst.msk [vmem:[#allocation5 + $0x6c] sm:$0xf] %vm4588, %v4547
        %4617 = vst.msk [vmem:[#allocation5 + $0x70] sm:$0xf] %vm4588, %v4549
        %4618 = vst.msk [vmem:[#allocation5 + $0x74] sm:$0xf] %vm4588, %v4551
        %4619 = vst.msk [vmem:[#allocation5 + $0x78] sm:$0xf] %vm4588, %v4553
        %4620 = vst.msk [vmem:[#allocation5 + $0x7c] sm:$0xf] %vm4588, %v4555
        %v4621 = vld [vmem:[#allocation5] sm:$0xf]
        %v4622 = vld [vmem:[#allocation5 + $0x4] sm:$0xf]
        %v4623 = vld [vmem:[#allocation5 + $0x8] sm:$0xf]
        %v4624 = vld [vmem:[#allocation5 + $0xc] sm:$0xf]
        %v4625 = vld [vmem:[#allocation5 + $0x10] sm:$0xf]
        %v4626 = vld [vmem:[#allocation5 + $0x14] sm:$0xf]
        %v4627 = vld [vmem:[#allocation5 + $0x18] sm:$0xf]
        %v4628 = vld [vmem:[#allocation5 + $0x1c] sm:$0xf]
        %v4629 = vld [vmem:[#allocation5 + $0x20] sm:$0xf]
        %v4630 = vld [vmem:[#allocation5 + $0x24] sm:$0xf]
        %v4631 = vld [vmem:[#allocation5 + $0x28] sm:$0xf]
        %v4632 = vld [vmem:[#allocation5 + $0x2c] sm:$0xf]
        %v4633 = vld [vmem:[#allocation5 + $0x30] sm:$0xf]
        %v4634 = vld [vmem:[#allocation5 + $0x34] sm:$0xf]
        %v4635 = vld [vmem:[#allocation5 + $0x38] sm:$0xf]
        %v4636 = vld [vmem:[#allocation5 + $0x3c] sm:$0xf]
        %v4637 = vld [vmem:[#allocation5 + $0x40] sm:$0xf]
        %v4638 = vld [vmem:[#allocation5 + $0x44] sm:$0xf]
        %v4639 = vld [vmem:[#allocation5 + $0x48] sm:$0xf]
        %v4640 = vld [vmem:[#allocation5 + $0x4c] sm:$0xf]
        %v4641 = vld [vmem:[#allocation5 + $0x50] sm:$0xf]
        %v4642 = vld [vmem:[#allocation5 + $0x54] sm:$0xf]
        %v4643 = vld [vmem:[#allocation5 + $0x58] sm:$0xf]
        %v4644 = vld [vmem:[#allocation5 + $0x5c] sm:$0xf]
        %v4645 = vld [vmem:[#allocation5 + $0x60] sm:$0xf]
        %v4646 = vld [vmem:[#allocation5 + $0x64] sm:$0xf]
        %v4647 = vld [vmem:[#allocation5 + $0x68] sm:$0xf]
        %v4648 = vld [vmem:[#allocation5 + $0x6c] sm:$0xf]
        %v4649 = vld [vmem:[#allocation5 + $0x70] sm:$0xf]
        %v4650 = vld [vmem:[#allocation5 + $0x74] sm:$0xf]
        %v4651 = vld [vmem:[#allocation5 + $0x78] sm:$0xf]
        %v4652 = vld [vmem:[#allocation5 + $0x7c] sm:$0xf]
        %v4653 = vld [vmem:[%s3] sm:$0xf]
        %v4654 = vld [vmem:[%s3 + $0x4] sm:$0xf]
        %v4655 = vld [vmem:[%s3 + $0x8] sm:$0xf]
        %v4656 = vld [vmem:[%s3 + $0xc] sm:$0xf]
        %v4657 = vld [vmem:[%s3 + $0x10] sm:$0xf]
        %v4658 = vld [vmem:[%s3 + $0x14] sm:$0xf]
        %v4659 = vld [vmem:[%s3 + $0x18] sm:$0xf]
        %v4660 = vld [vmem:[%s3 + $0x1c] sm:$0xf]
        %v4661 = vld [vmem:[%s3 + $0x20] sm:$0xf]
        %v4694 = vunpack.c.l.b16 %v4621
        %v4695 = vunpack.c.l.b16 %v4622
        %v4696 = vunpack.c.l.b16 %v4623
        %v4697 = vunpack.c.l.b16 %v4624
        %v4698 = vunpack.c.l.b16 %v4625
        %v4699 = vunpack.c.l.b16 %v4626
        %v4700 = vunpack.c.l.b16 %v4627
        %v4701 = vunpack.c.l.b16 %v4628
        %v4702 = vunpack.c.l.b16 %v4629
        %v4703 = vunpack.c.l.b16 %v4630
        %v4704 = vunpack.c.l.b16 %v4631
        %v4705 = vunpack.c.l.b16 %v4632
        %v4706 = vunpack.c.l.b16 %v4633
        %v4707 = vunpack.c.l.b16 %v4634
        %v4708 = vunpack.c.l.b16 %v4635
        %v4709 = vunpack.c.l.b16 %v4636
        %v4710 = vunpack.c.l.b16 %v4637
        %v4711 = vunpack.c.l.b16 %v4638
        %v4712 = vunpack.c.l.b16 %v4639
        %v4713 = vunpack.c.l.b16 %v4640
        %v4714 = vunpack.c.l.b16 %v4641
        %v4715 = vunpack.c.l.b16 %v4642
        %v4716 = vunpack.c.l.b16 %v4643
        %v4717 = vunpack.c.l.b16 %v4644
        %v4718 = vunpack.c.l.b16 %v4645
        %v4719 = vunpack.c.l.b16 %v4646
        %v4720 = vunpack.c.l.b16 %v4647
        %v4721 = vunpack.c.l.b16 %v4648
        %v4722 = vunpack.c.l.b16 %v4649
        %v4723 = vunpack.c.l.b16 %v4650
        %v4724 = vunpack.c.l.b16 %v4651
        %v4725 = vunpack.c.l.b16 %v4652
        %v4726 = vpack.c.b16 %v4695, %v4694
        %v4727 = vpack.c.b16 %v4697, %v4696
        %v4728 = vpack.c.b16 %v4699, %v4698
        %v4729 = vpack.c.b16 %v4701, %v4700
        %v4730 = vpack.c.b16 %v4703, %v4702
        %v4731 = vpack.c.b16 %v4705, %v4704
        %v4732 = vpack.c.b16 %v4707, %v4706
        %v4733 = vpack.c.b16 %v4709, %v4708
        %v4734 = vpack.c.b16 %v4711, %v4710
        %v4735 = vpack.c.b16 %v4713, %v4712
        %v4736 = vpack.c.b16 %v4715, %v4714
        %v4737 = vpack.c.b16 %v4717, %v4716
        %v4738 = vpack.c.b16 %v4719, %v4718
        %v4739 = vpack.c.b16 %v4721, %v4720
        %v4740 = vpack.c.b16 %v4723, %v4722
        %v4741 = vpack.c.b16 %v4725, %v4724
        %v4751 = vunpack.c.l.b16 %v4653
        %v4752 = vunpack.c.l.b16 %v4654
        %v4753 = vunpack.c.l.b16 %v4655
        %v4754 = vunpack.c.l.b16 %v4656
        %v4755 = vunpack.c.l.b16 %v4657
        %v4756 = vunpack.c.l.b16 %v4658
        %v4757 = vunpack.c.l.b16 %v4659
        %v4758 = vunpack.c.l.b16 %v4660
        %v4759 = vunpack.c.l.b16 %v4661
        %v4760 = vpack.c.b16 %v4752, %v4751
        %v4761 = vpack.c.b16 %v4754, %v4753
        %v4762 = vpack.c.b16 %v4756, %v4755
        %v4763 = vpack.c.b16 %v4758, %v4757
        %v4764 = vpack.c.b16 %v4759, %v4759
        %vm4769 = vcmask 588800
        %v4771 = vsel %vm4769, %v4726, 0
        %v4774 = vsel %vm4769, %v4727, 0
        %v4777 = vsel %vm4769, %v4728, 0
        %v4780 = vsel %vm4769, %v4729, 0
        %v4783 = vsel %vm4769, %v4730, 0
        %v4786 = vsel %vm4769, %v4731, 0
        %v4789 = vsel %vm4769, %v4732, 0
        %v4792 = vsel %vm4769, %v4733, 0
        %v4795 = vsel %vm4769, %v4734, 0
        %v4798 = vsel %vm4769, %v4735, 0
        %v4801 = vsel %vm4769, %v4736, 0
        %v4804 = vsel %vm4769, %v4737, 0
        %v4807 = vsel %vm4769, %v4738, 0
        %v4810 = vsel %vm4769, %v4739, 0
        %v4813 = vsel %vm4769, %v4740, 0
        %v4816 = vsel %vm4769, %v4741, 0
        %vm4818 = vcmask 1043456
        %v4820 = vsel %vm4818, %v4764, 0
        %4822 = vmatpush.bf16.msra.mxu0 0
        %4823 = vmatpush.bf16.msra.mxu0 0
        %4824 = vmatpush.bf16.msra.mxu0 0
        %4825 = vmatpush.bf16.msra.mxu0 %v4820
        %4826 = vmatpush.bf16.msra.mxu0 %v4763
        %4827 = vmatpush.bf16.msra.mxu0 %v4762
        %4828 = vmatpush.bf16.msra.mxu0 %v4761
        %4829 = vmatpush.bf16.msra.mxu0 %v4760
        %4830 = vmatmul.bf16.gmra.mxu0 %v4771
        %v4831 = vpop.f32.mrf.mxu0
        %v4832 = vadd.f32 0.0, %v4831
        %v4833 = vpop.f32.mrf.mxu0
        %v4834 = vadd.f32 0.0, %v4833
        %4835 = vmatmul.bf16.gmra.mxu0 %v4774
        %v4836 = vpop.f32.mrf.mxu0
        %v4837 = vadd.f32 0.0, %v4836
        %v4838 = vpop.f32.mrf.mxu0
        %v4839 = vadd.f32 0.0, %v4838
        %4840 = vmatmul.bf16.gmra.mxu0 %v4777
        %v4841 = vpop.f32.mrf.mxu0
        %v4842 = vadd.f32 0.0, %v4841
        %v4843 = vpop.f32.mrf.mxu0
        %v4844 = vadd.f32 0.0, %v4843
        %4845 = vmatmul.bf16.gmra.mxu0 %v4780
        %v4846 = vpop.f32.mrf.mxu0
        %v4847 = vadd.f32 0.0, %v4846
        %v4848 = vpop.f32.mrf.mxu0
        %v4849 = vadd.f32 0.0, %v4848
        %4850 = vmatmul.bf16.gmra.mxu0 %v4783
        %v4851 = vpop.f32.mrf.mxu0
        %v4852 = vadd.f32 0.0, %v4851
        %v4853 = vpop.f32.mrf.mxu0
        %v4854 = vadd.f32 0.0, %v4853
        %4855 = vmatmul.bf16.gmra.mxu0 %v4786
        %v4856 = vpop.f32.mrf.mxu0
        %v4857 = vadd.f32 0.0, %v4856
        %v4858 = vpop.f32.mrf.mxu0
        %v4859 = vadd.f32 0.0, %v4858
        %4860 = vmatmul.bf16.gmra.mxu0 %v4789
        %v4861 = vpop.f32.mrf.mxu0
        %v4862 = vadd.f32 0.0, %v4861
        %v4863 = vpop.f32.mrf.mxu0
        %v4864 = vadd.f32 0.0, %v4863
        %4865 = vmatmul.bf16.gmra.mxu0 %v4792
        %v4866 = vpop.f32.mrf.mxu0
        %v4867 = vadd.f32 0.0, %v4866
        %v4868 = vpop.f32.mrf.mxu0
        %v4869 = vadd.f32 0.0, %v4868
        %4870 = vmatmul.bf16.gmra.mxu0 %v4795
        %v4871 = vpop.f32.mrf.mxu0
        %v4872 = vadd.f32 0.0, %v4871
        %v4873 = vpop.f32.mrf.mxu0
        %v4874 = vadd.f32 0.0, %v4873
        %4875 = vmatmul.bf16.gmra.mxu0 %v4798
        %v4876 = vpop.f32.mrf.mxu0
        %v4877 = vadd.f32 0.0, %v4876
        %v4878 = vpop.f32.mrf.mxu0
        %v4879 = vadd.f32 0.0, %v4878
        %4880 = vmatmul.bf16.gmra.mxu0 %v4801
        %v4881 = vpop.f32.mrf.mxu0
        %v4882 = vadd.f32 0.0, %v4881
        %v4883 = vpop.f32.mrf.mxu0
        %v4884 = vadd.f32 0.0, %v4883
        %4885 = vmatmul.bf16.gmra.mxu0 %v4804
        %v4886 = vpop.f32.mrf.mxu0
        %v4887 = vadd.f32 0.0, %v4886
        %v4888 = vpop.f32.mrf.mxu0
        %v4889 = vadd.f32 0.0, %v4888
        %4890 = vmatmul.bf16.gmra.mxu0 %v4807
        %v4891 = vpop.f32.mrf.mxu0
        %v4892 = vadd.f32 0.0, %v4891
        %v4893 = vpop.f32.mrf.mxu0
        %v4894 = vadd.f32 0.0, %v4893
        %4895 = vmatmul.bf16.gmra.mxu0 %v4810
        %v4896 = vpop.f32.mrf.mxu0
        %v4897 = vadd.f32 0.0, %v4896
        %v4898 = vpop.f32.mrf.mxu0
        %v4899 = vadd.f32 0.0, %v4898
        %4900 = vmatmul.bf16.gmra.mxu0 %v4813
        %v4901 = vpop.f32.mrf.mxu0
        %v4902 = vadd.f32 0.0, %v4901
        %v4903 = vpop.f32.mrf.mxu0
        %v4904 = vadd.f32 0.0, %v4903
        %4905 = vmatmul.bf16.gmra.mxu0 %v4816
        %v4906 = vpop.f32.mrf.mxu0
        %v4907 = vadd.f32 0.0, %v4906
        %v4908 = vpop.f32.mrf.mxu0
        %v4909 = vadd.f32 0.0, %v4908
        %4910 = vdwg.mxu0
        %v4911 = vld [vmem:[%s4] sm:$0x1]
        %v4913 = vperm.slane %v4911, 0
        %v4915 = vmul.f32 %v4832, %v4913
        %v4916 = vmul.f32 %v4834, %v4913
        %v4917 = vmul.f32 %v4837, %v4913
        %v4918 = vmul.f32 %v4839, %v4913
        %v4919 = vmul.f32 %v4842, %v4913
        %v4920 = vmul.f32 %v4844, %v4913
        %v4921 = vmul.f32 %v4847, %v4913
        %v4922 = vmul.f32 %v4849, %v4913
        %v4923 = vmul.f32 %v4852, %v4913
        %v4924 = vmul.f32 %v4854, %v4913
        %v4925 = vmul.f32 %v4857, %v4913
        %v4926 = vmul.f32 %v4859, %v4913
        %v4927 = vmul.f32 %v4862, %v4913
        %v4928 = vmul.f32 %v4864, %v4913
        %v4929 = vmul.f32 %v4867, %v4913
        %v4930 = vmul.f32 %v4869, %v4913
        %v4931 = vmul.f32 %v4872, %v4913
        %v4932 = vmul.f32 %v4874, %v4913
        %v4933 = vmul.f32 %v4877, %v4913
        %v4934 = vmul.f32 %v4879, %v4913
        %v4935 = vmul.f32 %v4882, %v4913
        %v4936 = vmul.f32 %v4884, %v4913
        %v4937 = vmul.f32 %v4887, %v4913
        %v4938 = vmul.f32 %v4889, %v4913
        %v4939 = vmul.f32 %v4892, %v4913
        %v4940 = vmul.f32 %v4894, %v4913
        %v4941 = vmul.f32 %v4897, %v4913
        %v4942 = vmul.f32 %v4899, %v4913
        %v4943 = vmul.f32 %v4902, %v4913
        %v4944 = vmul.f32 %v4904, %v4913
        %v4945 = vmul.f32 %v4907, %v4913
        %v4946 = vmul.f32 %v4909, %v4913
        %v4947 = vld [vmem:[%s5] sm:$0x1]
        %v4949 = vperm.slane %v4947, 0
        %v4951 = vadd.f32 %v4915, %v4949
        %v4952 = vadd.f32 %v4916, %v4949
        %v4953 = vadd.f32 %v4917, %v4949
        %v4954 = vadd.f32 %v4918, %v4949
        %v4955 = vadd.f32 %v4919, %v4949
        %v4956 = vadd.f32 %v4920, %v4949
        %v4957 = vadd.f32 %v4921, %v4949
        %v4958 = vadd.f32 %v4922, %v4949
        %v4959 = vadd.f32 %v4923, %v4949
        %v4960 = vadd.f32 %v4924, %v4949
        %v4961 = vadd.f32 %v4925, %v4949
        %v4962 = vadd.f32 %v4926, %v4949
        %v4963 = vadd.f32 %v4927, %v4949
        %v4964 = vadd.f32 %v4928, %v4949
        %v4965 = vadd.f32 %v4929, %v4949
        %v4966 = vadd.f32 %v4930, %v4949
        %v4967 = vadd.f32 %v4931, %v4949
        %v4968 = vadd.f32 %v4932, %v4949
        %v4969 = vadd.f32 %v4933, %v4949
        %v4970 = vadd.f32 %v4934, %v4949
        %v4971 = vadd.f32 %v4935, %v4949
        %v4972 = vadd.f32 %v4936, %v4949
        %v4973 = vadd.f32 %v4937, %v4949
        %v4974 = vadd.f32 %v4938, %v4949
        %v4975 = vadd.f32 %v4939, %v4949
        %v4976 = vadd.f32 %v4940, %v4949
        %v4977 = vadd.f32 %v4941, %v4949
        %v4978 = vadd.f32 %v4942, %v4949
        %v4979 = vadd.f32 %v4943, %v4949
        %v4980 = vadd.f32 %v4944, %v4949
        %v4981 = vadd.f32 %v4945, %v4949
        %v4982 = vadd.f32 %v4946, %v4949
        %v4983 = vmax.f32 %v4951, 0.0
        %v4984 = vmax.f32 %v4952, 0.0
        %v4985 = vmax.f32 %v4953, 0.0
        %v4986 = vmax.f32 %v4954, 0.0
        %v4987 = vmax.f32 %v4955, 0.0
        %v4988 = vmax.f32 %v4956, 0.0
        %v4989 = vmax.f32 %v4957, 0.0
        %v4990 = vmax.f32 %v4958, 0.0
        %v4991 = vmax.f32 %v4959, 0.0
        %v4992 = vmax.f32 %v4960, 0.0
        %v4993 = vmax.f32 %v4961, 0.0
        %v4994 = vmax.f32 %v4962, 0.0
        %v4995 = vmax.f32 %v4963, 0.0
        %v4996 = vmax.f32 %v4964, 0.0
        %v4997 = vmax.f32 %v4965, 0.0
        %v4998 = vmax.f32 %v4966, 0.0
        %v4999 = vmax.f32 %v4967, 0.0
        %v5000 = vmax.f32 %v4968, 0.0
        %v5001 = vmax.f32 %v4969, 0.0
        %v5002 = vmax.f32 %v4970, 0.0
        %v5003 = vmax.f32 %v4971, 0.0
        %v5004 = vmax.f32 %v4972, 0.0
        %v5005 = vmax.f32 %v4973, 0.0
        %v5006 = vmax.f32 %v4974, 0.0
        %v5007 = vmax.f32 %v4975, 0.0
        %v5008 = vmax.f32 %v4976, 0.0
        %v5009 = vmax.f32 %v4977, 0.0
        %v5010 = vmax.f32 %v4978, 0.0
        %v5011 = vmax.f32 %v4979, 0.0
        %v5012 = vmax.f32 %v4980, 0.0
        %v5013 = vmax.f32 %v4981, 0.0
        %v5014 = vmax.f32 %v4982, 0.0
        %5015 = vst.msk [vmem:[%s2690 + $0x1] sm:$0xff] %vm305, %v4983
        %5016 = vst.msk [vmem:[%s2690 + $0x9] sm:$0xff] %vm305, %v4984
        %5017 = vst.msk [vmem:[%s2690 + $0x19] sm:$0xff] %vm305, %v4985
        %5018 = vst.msk [vmem:[%s2690 + $0x21] sm:$0xff] %vm305, %v4986
        %5019 = vst.msk [vmem:[%s2690 + $0x31] sm:$0xff] %vm305, %v4987
        %5020 = vst.msk [vmem:[%s2690 + $0x39] sm:$0xff] %vm305, %v4988
        %5021 = vst.msk [vmem:[%s2690 + $0x49] sm:$0xff] %vm305, %v4989
        %5022 = vst.msk [vmem:[%s2690 + $0x51] sm:$0xff] %vm305, %v4990
        %5023 = vst.msk [vmem:[%s2690 + $0x61] sm:$0xff] %vm305, %v4991
        %5024 = vst.msk [vmem:[%s2690 + $0x69] sm:$0xff] %vm305, %v4992
        %5025 = vst.msk [vmem:[%s2690 + $0x79] sm:$0xff] %vm305, %v4993
        %5026 = vst.msk [vmem:[%s2690 + $0x81] sm:$0xff] %vm305, %v4994
        %5027 = vst.msk [vmem:[%s2690 + $0x91] sm:$0xff] %vm305, %v4995
        %5028 = vst.msk [vmem:[%s2690 + $0x99] sm:$0xff] %vm305, %v4996
        %5029 = vst.msk [vmem:[%s2690 + $0xa9] sm:$0xff] %vm305, %v4997
        %5030 = vst.msk [vmem:[%s2690 + $0xb1] sm:$0xff] %vm305, %v4998
        %5031 = vst.msk [vmem:[%s2690 + $0xc1] sm:$0xff] %vm305, %v4999
        %5032 = vst.msk [vmem:[%s2690 + $0xc9] sm:$0xff] %vm305, %v5000
        %5033 = vst.msk [vmem:[%s2690 + $0xd9] sm:$0xff] %vm305, %v5001
        %5034 = vst.msk [vmem:[%s2690 + $0xe1] sm:$0xff] %vm305, %v5002
        %5035 = vst.msk [vmem:[%s2690 + $0xf1] sm:$0xff] %vm305, %v5003
        %5036 = vst.msk [vmem:[%s2690 + $0xf9] sm:$0xff] %vm305, %v5004
        %5037 = vst.msk [vmem:[%s2690 + $0x109] sm:$0xff] %vm305, %v5005
        %5038 = vst.msk [vmem:[%s2690 + $0x111] sm:$0xff] %vm305, %v5006
        %5039 = vst.msk [vmem:[%s2690 + $0x121] sm:$0xff] %vm305, %v5007
        %5040 = vst.msk [vmem:[%s2690 + $0x129] sm:$0xff] %vm305, %v5008
        %5041 = vst.msk [vmem:[%s2690 + $0x139] sm:$0xff] %vm305, %v5009
        %5042 = vst.msk [vmem:[%s2690 + $0x141] sm:$0xff] %vm305, %v5010
        %5043 = vst.msk [vmem:[%s2690 + $0x151] sm:$0xff] %vm305, %v5011
        %5044 = vst.msk [vmem:[%s2690 + $0x159] sm:$0xff] %vm305, %v5012
        %5045 = vst.msk [vmem:[%s2690 + $0x169] sm:$0xff] %vm305, %v5013
        %5046 = vst.msk [vmem:[%s2690 + $0x171] sm:$0xff] %vm305, %v5014
        %v5047 = vld [vmem:[#allocation4] sm:$0xff]
        %v5048 = vld [vmem:[#allocation4 + $0x8] sm:$0xff]
        %v5049 = vld [vmem:[#allocation4 + $0x18] sm:$0xff]
        %v5050 = vld [vmem:[#allocation4 + $0x20] sm:$0xff]
        %v5051 = vld [vmem:[#allocation4 + $0x30] sm:$0xff]
        %v5052 = vld [vmem:[#allocation4 + $0x38] sm:$0xff]
        %v5053 = vld [vmem:[#allocation4 + $0x48] sm:$0xff]
        %v5054 = vld [vmem:[#allocation4 + $0x50] sm:$0xff]
        %v5055 = vld [vmem:[#allocation4 + $0x60] sm:$0xff]
        %v5056 = vld [vmem:[#allocation4 + $0x68] sm:$0xff]
        %v5057 = vld [vmem:[#allocation4 + $0x78] sm:$0xff]
        %v5058 = vld [vmem:[#allocation4 + $0x80] sm:$0xff]
        %v5059 = vld [vmem:[#allocation4 + $0x90] sm:$0xff]
        %v5060 = vld [vmem:[#allocation4 + $0x98] sm:$0xff]
        %v5061 = vld [vmem:[#allocation4 + $0xa8] sm:$0xff]
        %v5062 = vld [vmem:[#allocation4 + $0xb0] sm:$0xff]
        %v5063 = vld [vmem:[#allocation4 + $0xc0] sm:$0xff]
        %v5064 = vld [vmem:[#allocation4 + $0xc8] sm:$0xff]
        %v5065 = vld [vmem:[#allocation4 + $0xd8] sm:$0xff]
        %v5066 = vld [vmem:[#allocation4 + $0xe0] sm:$0xff]
        %v5067 = vld [vmem:[#allocation4 + $0xf0] sm:$0xff]
        %v5068 = vld [vmem:[#allocation4 + $0xf8] sm:$0xff]
        %v5069 = vld [vmem:[#allocation4 + $0x108] sm:$0xff]
        %v5070 = vld [vmem:[#allocation4 + $0x110] sm:$0xff]
        %v5071 = vld [vmem:[#allocation4 + $0x120] sm:$0xff]
        %v5072 = vld [vmem:[#allocation4 + $0x128] sm:$0xff]
        %v5073 = vld [vmem:[#allocation4 + $0x138] sm:$0xff]
        %v5074 = vld [vmem:[#allocation4 + $0x140] sm:$0xff]
        %v5075 = vld [vmem:[#allocation4 + $0x150] sm:$0xff]
        %v5076 = vld [vmem:[#allocation4 + $0x158] sm:$0xff]
        %v5077 = vld [vmem:[#allocation4 + $0x168] sm:$0xff]
        %v5078 = vld [vmem:[#allocation4 + $0x170] sm:$0xff]
        %v5079 = vpack.c.bf16 %v5047, %v5047
        %v5080 = vpack.c.bf16 %v5048, %v5048
        %v5081 = vpack.c.bf16 %v5049, %v5049
        %v5082 = vpack.c.bf16 %v5050, %v5050
        %v5083 = vpack.c.bf16 %v5051, %v5051
        %v5084 = vpack.c.bf16 %v5052, %v5052
        %v5085 = vpack.c.bf16 %v5053, %v5053
        %v5086 = vpack.c.bf16 %v5054, %v5054
        %v5087 = vpack.c.bf16 %v5055, %v5055
        %v5088 = vpack.c.bf16 %v5056, %v5056
        %v5089 = vpack.c.bf16 %v5057, %v5057
        %v5090 = vpack.c.bf16 %v5058, %v5058
        %v5091 = vpack.c.bf16 %v5059, %v5059
        %v5092 = vpack.c.bf16 %v5060, %v5060
        %v5093 = vpack.c.bf16 %v5061, %v5061
        %v5094 = vpack.c.bf16 %v5062, %v5062
        %v5095 = vpack.c.bf16 %v5063, %v5063
        %v5096 = vpack.c.bf16 %v5064, %v5064
        %v5097 = vpack.c.bf16 %v5065, %v5065
        %v5098 = vpack.c.bf16 %v5066, %v5066
        %v5099 = vpack.c.bf16 %v5067, %v5067
        %v5100 = vpack.c.bf16 %v5068, %v5068
        %v5101 = vpack.c.bf16 %v5069, %v5069
        %v5102 = vpack.c.bf16 %v5070, %v5070
        %v5103 = vpack.c.bf16 %v5071, %v5071
        %v5104 = vpack.c.bf16 %v5072, %v5072
        %v5105 = vpack.c.bf16 %v5073, %v5073
        %v5106 = vpack.c.bf16 %v5074, %v5074
        %v5107 = vpack.c.bf16 %v5075, %v5075
        %v5108 = vpack.c.bf16 %v5076, %v5076
        %v5109 = vpack.c.bf16 %v5077, %v5077
        %v5110 = vpack.c.bf16 %v5078, %v5078
        %5111 = vst.msk [vmem:[#allocation5] sm:$0xf] %vm2787, %v5079
        %5112 = vst.msk [vmem:[#allocation5 + $0x4] sm:$0xf] %vm2787, %v5080
        %5113 = vst.msk [vmem:[#allocation5 + $0x8] sm:$0xf] %vm2787, %v5081
        %5114 = vst.msk [vmem:[#allocation5 + $0xc] sm:$0xf] %vm2787, %v5082
        %5115 = vst.msk [vmem:[#allocation5 + $0x10] sm:$0xf] %vm2787, %v5083
        %5116 = vst.msk [vmem:[#allocation5 + $0x14] sm:$0xf] %vm2787, %v5084
        %5117 = vst.msk [vmem:[#allocation5 + $0x18] sm:$0xf] %vm2787, %v5085
        %5118 = vst.msk [vmem:[#allocation5 + $0x1c] sm:$0xf] %vm2787, %v5086
        %5119 = vst.msk [vmem:[#allocation5 + $0x20] sm:$0xf] %vm2787, %v5087
        %5120 = vst.msk [vmem:[#allocation5 + $0x24] sm:$0xf] %vm2787, %v5088
        %5121 = vst.msk [vmem:[#allocation5 + $0x28] sm:$0xf] %vm2787, %v5089
        %5122 = vst.msk [vmem:[#allocation5 + $0x2c] sm:$0xf] %vm2787, %v5090
        %5123 = vst.msk [vmem:[#allocation5 + $0x30] sm:$0xf] %vm2787, %v5091
        %5124 = vst.msk [vmem:[#allocation5 + $0x34] sm:$0xf] %vm2787, %v5092
        %5125 = vst.msk [vmem:[#allocation5 + $0x38] sm:$0xf] %vm2787, %v5093
        %5126 = vst.msk [vmem:[#allocation5 + $0x3c] sm:$0xf] %vm2787, %v5094
        %5127 = vst.msk [vmem:[#allocation5 + $0x40] sm:$0xf] %vm2787, %v5095
        %5128 = vst.msk [vmem:[#allocation5 + $0x44] sm:$0xf] %vm2787, %v5096
        %5129 = vst.msk [vmem:[#allocation5 + $0x48] sm:$0xf] %vm2787, %v5097
        %5130 = vst.msk [vmem:[#allocation5 + $0x4c] sm:$0xf] %vm2787, %v5098
        %5131 = vst.msk [vmem:[#allocation5 + $0x50] sm:$0xf] %vm2787, %v5099
        %5132 = vst.msk [vmem:[#allocation5 + $0x54] sm:$0xf] %vm2787, %v5100
        %5133 = vst.msk [vmem:[#allocation5 + $0x58] sm:$0xf] %vm2787, %v5101
        %5134 = vst.msk [vmem:[#allocation5 + $0x5c] sm:$0xf] %vm2787, %v5102
        %5135 = vst.msk [vmem:[#allocation5 + $0x60] sm:$0xf] %vm2787, %v5103
        %5136 = vst.msk [vmem:[#allocation5 + $0x64] sm:$0xf] %vm2787, %v5104
        %5137 = vst.msk [vmem:[#allocation5 + $0x68] sm:$0xf] %vm2787, %v5105
        %5138 = vst.msk [vmem:[#allocation5 + $0x6c] sm:$0xf] %vm2787, %v5106
        %5139 = vst.msk [vmem:[#allocation5 + $0x70] sm:$0xf] %vm2787, %v5107
        %5140 = vst.msk [vmem:[#allocation5 + $0x74] sm:$0xf] %vm2787, %v5108
        %5141 = vst.msk [vmem:[#allocation5 + $0x78] sm:$0xf] %vm2787, %v5109
        %5142 = vst.msk [vmem:[#allocation5 + $0x7c] sm:$0xf] %vm2787, %v5110
        %v5143 = vld [vmem:[#allocation4 + $0x1] sm:$0xff]
        %v5144 = vld [vmem:[#allocation4 + $0x9] sm:$0xff]
        %v5145 = vld [vmem:[#allocation4 + $0x19] sm:$0xff]
        %v5146 = vld [vmem:[#allocation4 + $0x21] sm:$0xff]
        %v5147 = vld [vmem:[#allocation4 + $0x31] sm:$0xff]
        %v5148 = vld [vmem:[#allocation4 + $0x39] sm:$0xff]
        %v5149 = vld [vmem:[#allocation4 + $0x49] sm:$0xff]
        %v5150 = vld [vmem:[#allocation4 + $0x51] sm:$0xff]
        %v5151 = vld [vmem:[#allocation4 + $0x61] sm:$0xff]
        %v5152 = vld [vmem:[#allocation4 + $0x69] sm:$0xff]
        %v5153 = vld [vmem:[#allocation4 + $0x79] sm:$0xff]
        %v5154 = vld [vmem:[#allocation4 + $0x81] sm:$0xff]
        %v5155 = vld [vmem:[#allocation4 + $0x91] sm:$0xff]
        %v5156 = vld [vmem:[#allocation4 + $0x99] sm:$0xff]
        %v5157 = vld [vmem:[#allocation4 + $0xa9] sm:$0xff]
        %v5158 = vld [vmem:[#allocation4 + $0xb1] sm:$0xff]
        %v5159 = vld [vmem:[#allocation4 + $0xc1] sm:$0xff]
        %v5160 = vld [vmem:[#allocation4 + $0xc9] sm:$0xff]
        %v5161 = vld [vmem:[#allocation4 + $0xd9] sm:$0xff]
        %v5162 = vld [vmem:[#allocation4 + $0xe1] sm:$0xff]
        %v5163 = vld [vmem:[#allocation4 + $0xf1] sm:$0xff]
        %v5164 = vld [vmem:[#allocation4 + $0xf9] sm:$0xff]
        %v5165 = vld [vmem:[#allocation4 + $0x109] sm:$0xff]
        %v5166 = vld [vmem:[#allocation4 + $0x111] sm:$0xff]
        %v5167 = vld [vmem:[#allocation4 + $0x121] sm:$0xff]
        %v5168 = vld [vmem:[#allocation4 + $0x129] sm:$0xff]
        %v5169 = vld [vmem:[#allocation4 + $0x139] sm:$0xff]
        %v5170 = vld [vmem:[#allocation4 + $0x141] sm:$0xff]
        %v5171 = vld [vmem:[#allocation4 + $0x151] sm:$0xff]
        %v5172 = vld [vmem:[#allocation4 + $0x159] sm:$0xff]
        %v5173 = vld [vmem:[#allocation4 + $0x169] sm:$0xff]
        %v5174 = vld [vmem:[#allocation4 + $0x171] sm:$0xff]
        %v5175 = vpack.c.bf16 %v5143, %v5143
        %v5176 = vpack.c.bf16 %v5144, %v5144
        %v5177 = vpack.c.bf16 %v5145, %v5145
        %v5178 = vpack.c.bf16 %v5146, %v5146
        %v5179 = vpack.c.bf16 %v5147, %v5147
        %v5180 = vpack.c.bf16 %v5148, %v5148
        %v5181 = vpack.c.bf16 %v5149, %v5149
        %v5182 = vpack.c.bf16 %v5150, %v5150
        %v5183 = vpack.c.bf16 %v5151, %v5151
        %v5184 = vpack.c.bf16 %v5152, %v5152
        %v5185 = vpack.c.bf16 %v5153, %v5153
        %v5186 = vpack.c.bf16 %v5154, %v5154
        %v5187 = vpack.c.bf16 %v5155, %v5155
        %v5188 = vpack.c.bf16 %v5156, %v5156
        %v5189 = vpack.c.bf16 %v5157, %v5157
        %v5190 = vpack.c.bf16 %v5158, %v5158
        %v5191 = vpack.c.bf16 %v5159, %v5159
        %v5192 = vpack.c.bf16 %v5160, %v5160
        %v5193 = vpack.c.bf16 %v5161, %v5161
        %v5194 = vpack.c.bf16 %v5162, %v5162
        %v5195 = vpack.c.bf16 %v5163, %v5163
        %v5196 = vpack.c.bf16 %v5164, %v5164
        %v5197 = vpack.c.bf16 %v5165, %v5165
        %v5198 = vpack.c.bf16 %v5166, %v5166
        %v5199 = vpack.c.bf16 %v5167, %v5167
        %v5200 = vpack.c.bf16 %v5168, %v5168
        %v5201 = vpack.c.bf16 %v5169, %v5169
        %v5202 = vpack.c.bf16 %v5170, %v5170
        %v5203 = vpack.c.bf16 %v5171, %v5171
        %v5204 = vpack.c.bf16 %v5172, %v5172
        %v5205 = vpack.c.bf16 %v5173, %v5173
        %v5206 = vpack.c.bf16 %v5174, %v5174
        %5239 = vrot.lane.b32.xlu0 %v5175, 8
        %v5240 = vpop.permute.xlu0 %5239
        %5241 = vrot.lane.b32.xlu0 %v5176, 8
        %v5242 = vpop.permute.xlu0 %5241
        %5243 = vrot.lane.b32.xlu0 %v5177, 8
        %v5244 = vpop.permute.xlu0 %5243
        %5245 = vrot.lane.b32.xlu0 %v5178, 8
        %v5246 = vpop.permute.xlu0 %5245
        %5247 = vrot.lane.b32.xlu0 %v5179, 8
        %v5248 = vpop.permute.xlu0 %5247
        %5249 = vrot.lane.b32.xlu0 %v5180, 8
        %v5250 = vpop.permute.xlu0 %5249
        %5251 = vrot.lane.b32.xlu0 %v5181, 8
        %v5252 = vpop.permute.xlu0 %5251
        %5253 = vrot.lane.b32.xlu0 %v5182, 8
        %v5254 = vpop.permute.xlu0 %5253
        %5255 = vrot.lane.b32.xlu0 %v5183, 8
        %v5256 = vpop.permute.xlu0 %5255
        %5257 = vrot.lane.b32.xlu0 %v5184, 8
        %v5258 = vpop.permute.xlu0 %5257
        %5259 = vrot.lane.b32.xlu0 %v5185, 8
        %v5260 = vpop.permute.xlu0 %5259
        %5261 = vrot.lane.b32.xlu0 %v5186, 8
        %v5262 = vpop.permute.xlu0 %5261
        %5263 = vrot.lane.b32.xlu0 %v5187, 8
        %v5264 = vpop.permute.xlu0 %5263
        %5265 = vrot.lane.b32.xlu0 %v5188, 8
        %v5266 = vpop.permute.xlu0 %5265
        %5267 = vrot.lane.b32.xlu0 %v5189, 8
        %v5268 = vpop.permute.xlu0 %5267
        %5269 = vrot.lane.b32.xlu0 %v5190, 8
        %v5270 = vpop.permute.xlu0 %5269
        %5271 = vrot.lane.b32.xlu0 %v5191, 8
        %v5272 = vpop.permute.xlu0 %5271
        %5273 = vrot.lane.b32.xlu0 %v5192, 8
        %v5274 = vpop.permute.xlu0 %5273
        %5275 = vrot.lane.b32.xlu0 %v5193, 8
        %v5276 = vpop.permute.xlu0 %5275
        %5277 = vrot.lane.b32.xlu0 %v5194, 8
        %v5278 = vpop.permute.xlu0 %5277
        %5279 = vrot.lane.b32.xlu0 %v5195, 8
        %v5280 = vpop.permute.xlu0 %5279
        %5281 = vrot.lane.b32.xlu0 %v5196, 8
        %v5282 = vpop.permute.xlu0 %5281
        %5283 = vrot.lane.b32.xlu0 %v5197, 8
        %v5284 = vpop.permute.xlu0 %5283
        %5285 = vrot.lane.b32.xlu0 %v5198, 8
        %v5286 = vpop.permute.xlu0 %5285
        %5287 = vrot.lane.b32.xlu0 %v5199, 8
        %v5288 = vpop.permute.xlu0 %5287
        %5289 = vrot.lane.b32.xlu0 %v5200, 8
        %v5290 = vpop.permute.xlu0 %5289
        %5291 = vrot.lane.b32.xlu0 %v5201, 8
        %v5292 = vpop.permute.xlu0 %5291
        %5293 = vrot.lane.b32.xlu0 %v5202, 8
        %v5294 = vpop.permute.xlu0 %5293
        %5295 = vrot.lane.b32.xlu0 %v5203, 8
        %v5296 = vpop.permute.xlu0 %5295
        %5297 = vrot.lane.b32.xlu0 %v5204, 8
        %v5298 = vpop.permute.xlu0 %5297
        %5299 = vrot.lane.b32.xlu0 %v5205, 8
        %v5300 = vpop.permute.xlu0 %5299
        %5301 = vrot.lane.b32.xlu0 %v5206, 8
        %v5302 = vpop.permute.xlu0 %5301
        %5335 = vst.msk [vmem:[#allocation5] sm:$0xf] %vm3012, %v5240
        %5336 = vst.msk [vmem:[#allocation5 + $0x4] sm:$0xf] %vm3012, %v5242
        %5337 = vst.msk [vmem:[#allocation5 + $0x8] sm:$0xf] %vm3012, %v5244
        %5338 = vst.msk [vmem:[#allocation5 + $0xc] sm:$0xf] %vm3012, %v5246
        %5339 = vst.msk [vmem:[#allocation5 + $0x10] sm:$0xf] %vm3012, %v5248
        %5340 = vst.msk [vmem:[#allocation5 + $0x14] sm:$0xf] %vm3012, %v5250
        %5341 = vst.msk [vmem:[#allocation5 + $0x18] sm:$0xf] %vm3012, %v5252
        %5342 = vst.msk [vmem:[#allocation5 + $0x1c] sm:$0xf] %vm3012, %v5254
        %5343 = vst.msk [vmem:[#allocation5 + $0x20] sm:$0xf] %vm3012, %v5256
        %5344 = vst.msk [vmem:[#allocation5 + $0x24] sm:$0xf] %vm3012, %v5258
        %5345 = vst.msk [vmem:[#allocation5 + $0x28] sm:$0xf] %vm3012, %v5260
        %5346 = vst.msk [vmem:[#allocation5 + $0x2c] sm:$0xf] %vm3012, %v5262
        %5347 = vst.msk [vmem:[#allocation5 + $0x30] sm:$0xf] %vm3012, %v5264
        %5348 = vst.msk [vmem:[#allocation5 + $0x34] sm:$0xf] %vm3012, %v5266
        %5349 = vst.msk [vmem:[#allocation5 + $0x38] sm:$0xf] %vm3012, %v5268
        %5350 = vst.msk [vmem:[#allocation5 + $0x3c] sm:$0xf] %vm3012, %v5270
        %5351 = vst.msk [vmem:[#allocation5 + $0x40] sm:$0xf] %vm3012, %v5272
        %5352 = vst.msk [vmem:[#allocation5 + $0x44] sm:$0xf] %vm3012, %v5274
        %5353 = vst.msk [vmem:[#allocation5 + $0x48] sm:$0xf] %vm3012, %v5276
        %5354 = vst.msk [vmem:[#allocation5 + $0x4c] sm:$0xf] %vm3012, %v5278
        %5355 = vst.msk [vmem:[#allocation5 + $0x50] sm:$0xf] %vm3012, %v5280
        %5356 = vst.msk [vmem:[#allocation5 + $0x54] sm:$0xf] %vm3012, %v5282
        %5357 = vst.msk [vmem:[#allocation5 + $0x58] sm:$0xf] %vm3012, %v5284
        %5358 = vst.msk [vmem:[#allocation5 + $0x5c] sm:$0xf] %vm3012, %v5286
        %5359 = vst.msk [vmem:[#allocation5 + $0x60] sm:$0xf] %vm3012, %v5288
        %5360 = vst.msk [vmem:[#allocation5 + $0x64] sm:$0xf] %vm3012, %v5290
        %5361 = vst.msk [vmem:[#allocation5 + $0x68] sm:$0xf] %vm3012, %v5292
        %5362 = vst.msk [vmem:[#allocation5 + $0x6c] sm:$0xf] %vm3012, %v5294
        %5363 = vst.msk [vmem:[#allocation5 + $0x70] sm:$0xf] %vm3012, %v5296
        %5364 = vst.msk [vmem:[#allocation5 + $0x74] sm:$0xf] %vm3012, %v5298
        %5365 = vst.msk [vmem:[#allocation5 + $0x78] sm:$0xf] %vm3012, %v5300
        %5366 = vst.msk [vmem:[#allocation5 + $0x7c] sm:$0xf] %vm3012, %v5302
        %v5367 = vld [vmem:[#allocation4 + $0x2] sm:$0xff]
        %v5368 = vld [vmem:[#allocation4 + $0xa] sm:$0xff]
        %v5369 = vld [vmem:[#allocation4 + $0x1a] sm:$0xff]
        %v5370 = vld [vmem:[#allocation4 + $0x22] sm:$0xff]
        %v5371 = vld [vmem:[#allocation4 + $0x32] sm:$0xff]
        %v5372 = vld [vmem:[#allocation4 + $0x3a] sm:$0xff]
        %v5373 = vld [vmem:[#allocation4 + $0x4a] sm:$0xff]
        %v5374 = vld [vmem:[#allocation4 + $0x52] sm:$0xff]
        %v5375 = vld [vmem:[#allocation4 + $0x62] sm:$0xff]
        %v5376 = vld [vmem:[#allocation4 + $0x6a] sm:$0xff]
        %v5377 = vld [vmem:[#allocation4 + $0x7a] sm:$0xff]
        %v5378 = vld [vmem:[#allocation4 + $0x82] sm:$0xff]
        %v5379 = vld [vmem:[#allocation4 + $0x92] sm:$0xff]
        %v5380 = vld [vmem:[#allocation4 + $0x9a] sm:$0xff]
        %v5381 = vld [vmem:[#allocation4 + $0xaa] sm:$0xff]
        %v5382 = vld [vmem:[#allocation4 + $0xb2] sm:$0xff]
        %v5383 = vld [vmem:[#allocation4 + $0xc2] sm:$0xff]
        %v5384 = vld [vmem:[#allocation4 + $0xca] sm:$0xff]
        %v5385 = vld [vmem:[#allocation4 + $0xda] sm:$0xff]
        %v5386 = vld [vmem:[#allocation4 + $0xe2] sm:$0xff]
        %v5387 = vld [vmem:[#allocation4 + $0xf2] sm:$0xff]
        %v5388 = vld [vmem:[#allocation4 + $0xfa] sm:$0xff]
        %v5389 = vld [vmem:[#allocation4 + $0x10a] sm:$0xff]
        %v5390 = vld [vmem:[#allocation4 + $0x112] sm:$0xff]
        %v5391 = vld [vmem:[#allocation4 + $0x122] sm:$0xff]
        %v5392 = vld [vmem:[#allocation4 + $0x12a] sm:$0xff]
        %v5393 = vld [vmem:[#allocation4 + $0x13a] sm:$0xff]
        %v5394 = vld [vmem:[#allocation4 + $0x142] sm:$0xff]
        %v5395 = vld [vmem:[#allocation4 + $0x152] sm:$0xff]
        %v5396 = vld [vmem:[#allocation4 + $0x15a] sm:$0xff]
        %v5397 = vld [vmem:[#allocation4 + $0x16a] sm:$0xff]
        %v5398 = vld [vmem:[#allocation4 + $0x172] sm:$0xff]
        %v5399 = vpack.c.bf16 %v5367, %v5367
        %v5400 = vpack.c.bf16 %v5368, %v5368
        %v5401 = vpack.c.bf16 %v5369, %v5369
        %v5402 = vpack.c.bf16 %v5370, %v5370
        %v5403 = vpack.c.bf16 %v5371, %v5371
        %v5404 = vpack.c.bf16 %v5372, %v5372
        %v5405 = vpack.c.bf16 %v5373, %v5373
        %v5406 = vpack.c.bf16 %v5374, %v5374
        %v5407 = vpack.c.bf16 %v5375, %v5375
        %v5408 = vpack.c.bf16 %v5376, %v5376
        %v5409 = vpack.c.bf16 %v5377, %v5377
        %v5410 = vpack.c.bf16 %v5378, %v5378
        %v5411 = vpack.c.bf16 %v5379, %v5379
        %v5412 = vpack.c.bf16 %v5380, %v5380
        %v5413 = vpack.c.bf16 %v5381, %v5381
        %v5414 = vpack.c.bf16 %v5382, %v5382
        %v5415 = vpack.c.bf16 %v5383, %v5383
        %v5416 = vpack.c.bf16 %v5384, %v5384
        %v5417 = vpack.c.bf16 %v5385, %v5385
        %v5418 = vpack.c.bf16 %v5386, %v5386
        %v5419 = vpack.c.bf16 %v5387, %v5387
        %v5420 = vpack.c.bf16 %v5388, %v5388
        %v5421 = vpack.c.bf16 %v5389, %v5389
        %v5422 = vpack.c.bf16 %v5390, %v5390
        %v5423 = vpack.c.bf16 %v5391, %v5391
        %v5424 = vpack.c.bf16 %v5392, %v5392
        %v5425 = vpack.c.bf16 %v5393, %v5393
        %v5426 = vpack.c.bf16 %v5394, %v5394
        %v5427 = vpack.c.bf16 %v5395, %v5395
        %v5428 = vpack.c.bf16 %v5396, %v5396
        %v5429 = vpack.c.bf16 %v5397, %v5397
        %v5430 = vpack.c.bf16 %v5398, %v5398
        %5463 = vrot.lane.b32.xlu0 %v5399, 16
        %v5464 = vpop.permute.xlu0 %5463
        %5465 = vrot.lane.b32.xlu0 %v5400, 16
        %v5466 = vpop.permute.xlu0 %5465
        %5467 = vrot.lane.b32.xlu0 %v5401, 16
        %v5468 = vpop.permute.xlu0 %5467
        %5469 = vrot.lane.b32.xlu0 %v5402, 16
        %v5470 = vpop.permute.xlu0 %5469
        %5471 = vrot.lane.b32.xlu0 %v5403, 16
        %v5472 = vpop.permute.xlu0 %5471
        %5473 = vrot.lane.b32.xlu0 %v5404, 16
        %v5474 = vpop.permute.xlu0 %5473
        %5475 = vrot.lane.b32.xlu0 %v5405, 16
        %v5476 = vpop.permute.xlu0 %5475
        %5477 = vrot.lane.b32.xlu0 %v5406, 16
        %v5478 = vpop.permute.xlu0 %5477
        %5479 = vrot.lane.b32.xlu0 %v5407, 16
        %v5480 = vpop.permute.xlu0 %5479
        %5481 = vrot.lane.b32.xlu0 %v5408, 16
        %v5482 = vpop.permute.xlu0 %5481
        %5483 = vrot.lane.b32.xlu0 %v5409, 16
        %v5484 = vpop.permute.xlu0 %5483
        %5485 = vrot.lane.b32.xlu0 %v5410, 16
        %v5486 = vpop.permute.xlu0 %5485
        %5487 = vrot.lane.b32.xlu0 %v5411, 16
        %v5488 = vpop.permute.xlu0 %5487
        %5489 = vrot.lane.b32.xlu0 %v5412, 16
        %v5490 = vpop.permute.xlu0 %5489
        %5491 = vrot.lane.b32.xlu0 %v5413, 16
        %v5492 = vpop.permute.xlu0 %5491
        %5493 = vrot.lane.b32.xlu0 %v5414, 16
        %v5494 = vpop.permute.xlu0 %5493
        %5495 = vrot.lane.b32.xlu0 %v5415, 16
        %v5496 = vpop.permute.xlu0 %5495
        %5497 = vrot.lane.b32.xlu0 %v5416, 16
        %v5498 = vpop.permute.xlu0 %5497
        %5499 = vrot.lane.b32.xlu0 %v5417, 16
        %v5500 = vpop.permute.xlu0 %5499
        %5501 = vrot.lane.b32.xlu0 %v5418, 16
        %v5502 = vpop.permute.xlu0 %5501
        %5503 = vrot.lane.b32.xlu0 %v5419, 16
        %v5504 = vpop.permute.xlu0 %5503
        %5505 = vrot.lane.b32.xlu0 %v5420, 16
        %v5506 = vpop.permute.xlu0 %5505
        %5507 = vrot.lane.b32.xlu0 %v5421, 16
        %v5508 = vpop.permute.xlu0 %5507
        %5509 = vrot.lane.b32.xlu0 %v5422, 16
        %v5510 = vpop.permute.xlu0 %5509
        %5511 = vrot.lane.b32.xlu0 %v5423, 16
        %v5512 = vpop.permute.xlu0 %5511
        %5513 = vrot.lane.b32.xlu0 %v5424, 16
        %v5514 = vpop.permute.xlu0 %5513
        %5515 = vrot.lane.b32.xlu0 %v5425, 16
        %v5516 = vpop.permute.xlu0 %5515
        %5517 = vrot.lane.b32.xlu0 %v5426, 16
        %v5518 = vpop.permute.xlu0 %5517
        %5519 = vrot.lane.b32.xlu0 %v5427, 16
        %v5520 = vpop.permute.xlu0 %5519
        %5521 = vrot.lane.b32.xlu0 %v5428, 16
        %v5522 = vpop.permute.xlu0 %5521
        %5523 = vrot.lane.b32.xlu0 %v5429, 16
        %v5524 = vpop.permute.xlu0 %5523
        %5525 = vrot.lane.b32.xlu0 %v5430, 16
        %v5526 = vpop.permute.xlu0 %5525
        %5559 = vst.msk [vmem:[#allocation5] sm:$0xf] %vm3237, %v5464
        %5560 = vst.msk [vmem:[#allocation5 + $0x4] sm:$0xf] %vm3237, %v5466
        %5561 = vst.msk [vmem:[#allocation5 + $0x8] sm:$0xf] %vm3237, %v5468
        %5562 = vst.msk [vmem:[#allocation5 + $0xc] sm:$0xf] %vm3237, %v5470
        %5563 = vst.msk [vmem:[#allocation5 + $0x10] sm:$0xf] %vm3237, %v5472
        %5564 = vst.msk [vmem:[#allocation5 + $0x14] sm:$0xf] %vm3237, %v5474
        %5565 = vst.msk [vmem:[#allocation5 + $0x18] sm:$0xf] %vm3237, %v5476
        %5566 = vst.msk [vmem:[#allocation5 + $0x1c] sm:$0xf] %vm3237, %v5478
        %5567 = vst.msk [vmem:[#allocation5 + $0x20] sm:$0xf] %vm3237, %v5480
        %5568 = vst.msk [vmem:[#allocation5 + $0x24] sm:$0xf] %vm3237, %v5482
        %5569 = vst.msk [vmem:[#allocation5 + $0x28] sm:$0xf] %vm3237, %v5484
        %5570 = vst.msk [vmem:[#allocation5 + $0x2c] sm:$0xf] %vm3237, %v5486
        %5571 = vst.msk [vmem:[#allocation5 + $0x30] sm:$0xf] %vm3237, %v5488
        %5572 = vst.msk [vmem:[#allocation5 + $0x34] sm:$0xf] %vm3237, %v5490
        %5573 = vst.msk [vmem:[#allocation5 + $0x38] sm:$0xf] %vm3237, %v5492
        %5574 = vst.msk [vmem:[#allocation5 + $0x3c] sm:$0xf] %vm3237, %v5494
        %5575 = vst.msk [vmem:[#allocation5 + $0x40] sm:$0xf] %vm3237, %v5496
        %5576 = vst.msk [vmem:[#allocation5 + $0x44] sm:$0xf] %vm3237, %v5498
        %5577 = vst.msk [vmem:[#allocation5 + $0x48] sm:$0xf] %vm3237, %v5500
        %5578 = vst.msk [vmem:[#allocation5 + $0x4c] sm:$0xf] %vm3237, %v5502
        %5579 = vst.msk [vmem:[#allocation5 + $0x50] sm:$0xf] %vm3237, %v5504
        %5580 = vst.msk [vmem:[#allocation5 + $0x54] sm:$0xf] %vm3237, %v5506
        %5581 = vst.msk [vmem:[#allocation5 + $0x58] sm:$0xf] %vm3237, %v5508
        %5582 = vst.msk [vmem:[#allocation5 + $0x5c] sm:$0xf] %vm3237, %v5510
        %5583 = vst.msk [vmem:[#allocation5 + $0x60] sm:$0xf] %vm3237, %v5512
        %5584 = vst.msk [vmem:[#allocation5 + $0x64] sm:$0xf] %vm3237, %v5514
        %5585 = vst.msk [vmem:[#allocation5 + $0x68] sm:$0xf] %vm3237, %v5516
        %5586 = vst.msk [vmem:[#allocation5 + $0x6c] sm:$0xf] %vm3237, %v5518
        %5587 = vst.msk [vmem:[#allocation5 + $0x70] sm:$0xf] %vm3237, %v5520
        %5588 = vst.msk [vmem:[#allocation5 + $0x74] sm:$0xf] %vm3237, %v5522
        %5589 = vst.msk [vmem:[#allocation5 + $0x78] sm:$0xf] %vm3237, %v5524
        %5590 = vst.msk [vmem:[#allocation5 + $0x7c] sm:$0xf] %vm3237, %v5526
        %v5591 = vld [vmem:[%s2690] sm:$0xff]
        %v5592 = vld [vmem:[%s2690 + $0x8] sm:$0xff]
        %v5593 = vld [vmem:[%s2690 + $0x18] sm:$0xff]
        %v5594 = vld [vmem:[%s2690 + $0x20] sm:$0xff]
        %v5595 = vld [vmem:[%s2690 + $0x30] sm:$0xff]
        %v5596 = vld [vmem:[%s2690 + $0x38] sm:$0xff]
        %v5597 = vld [vmem:[%s2690 + $0x48] sm:$0xff]
        %v5598 = vld [vmem:[%s2690 + $0x50] sm:$0xff]
        %v5599 = vld [vmem:[%s2690 + $0x60] sm:$0xff]
        %v5600 = vld [vmem:[%s2690 + $0x68] sm:$0xff]
        %v5601 = vld [vmem:[%s2690 + $0x78] sm:$0xff]
        %v5602 = vld [vmem:[%s2690 + $0x80] sm:$0xff]
        %v5603 = vld [vmem:[%s2690 + $0x90] sm:$0xff]
        %v5604 = vld [vmem:[%s2690 + $0x98] sm:$0xff]
        %v5605 = vld [vmem:[%s2690 + $0xa8] sm:$0xff]
        %v5606 = vld [vmem:[%s2690 + $0xb0] sm:$0xff]
        %v5607 = vld [vmem:[%s2690 + $0xc0] sm:$0xff]
        %v5608 = vld [vmem:[%s2690 + $0xc8] sm:$0xff]
        %v5609 = vld [vmem:[%s2690 + $0xd8] sm:$0xff]
        %v5610 = vld [vmem:[%s2690 + $0xe0] sm:$0xff]
        %v5611 = vld [vmem:[%s2690 + $0xf0] sm:$0xff]
        %v5612 = vld [vmem:[%s2690 + $0xf8] sm:$0xff]
        %v5613 = vld [vmem:[%s2690 + $0x108] sm:$0xff]
        %v5614 = vld [vmem:[%s2690 + $0x110] sm:$0xff]
        %v5615 = vld [vmem:[%s2690 + $0x120] sm:$0xff]
        %v5616 = vld [vmem:[%s2690 + $0x128] sm:$0xff]
        %v5617 = vld [vmem:[%s2690 + $0x138] sm:$0xff]
        %v5618 = vld [vmem:[%s2690 + $0x140] sm:$0xff]
        %v5619 = vld [vmem:[%s2690 + $0x150] sm:$0xff]
        %v5620 = vld [vmem:[%s2690 + $0x158] sm:$0xff]
        %v5621 = vld [vmem:[%s2690 + $0x168] sm:$0xff]
        %v5622 = vld [vmem:[%s2690 + $0x170] sm:$0xff]
        %v5623 = vpack.c.bf16 %v5591, %v5591
        %v5624 = vpack.c.bf16 %v5592, %v5592
        %v5625 = vpack.c.bf16 %v5593, %v5593
        %v5626 = vpack.c.bf16 %v5594, %v5594
        %v5627 = vpack.c.bf16 %v5595, %v5595
        %v5628 = vpack.c.bf16 %v5596, %v5596
        %v5629 = vpack.c.bf16 %v5597, %v5597
        %v5630 = vpack.c.bf16 %v5598, %v5598
        %v5631 = vpack.c.bf16 %v5599, %v5599
        %v5632 = vpack.c.bf16 %v5600, %v5600
        %v5633 = vpack.c.bf16 %v5601, %v5601
        %v5634 = vpack.c.bf16 %v5602, %v5602
        %v5635 = vpack.c.bf16 %v5603, %v5603
        %v5636 = vpack.c.bf16 %v5604, %v5604
        %v5637 = vpack.c.bf16 %v5605, %v5605
        %v5638 = vpack.c.bf16 %v5606, %v5606
        %v5639 = vpack.c.bf16 %v5607, %v5607
        %v5640 = vpack.c.bf16 %v5608, %v5608
        %v5641 = vpack.c.bf16 %v5609, %v5609
        %v5642 = vpack.c.bf16 %v5610, %v5610
        %v5643 = vpack.c.bf16 %v5611, %v5611
        %v5644 = vpack.c.bf16 %v5612, %v5612
        %v5645 = vpack.c.bf16 %v5613, %v5613
        %v5646 = vpack.c.bf16 %v5614, %v5614
        %v5647 = vpack.c.bf16 %v5615, %v5615
        %v5648 = vpack.c.bf16 %v5616, %v5616
        %v5649 = vpack.c.bf16 %v5617, %v5617
        %v5650 = vpack.c.bf16 %v5618, %v5618
        %v5651 = vpack.c.bf16 %v5619, %v5619
        %v5652 = vpack.c.bf16 %v5620, %v5620
        %v5653 = vpack.c.bf16 %v5621, %v5621
        %v5654 = vpack.c.bf16 %v5622, %v5622
        %5687 = vrot.lane.b32.xlu0 %v5623, 24
        %v5688 = vpop.permute.xlu0 %5687
        %5689 = vrot.lane.b32.xlu0 %v5624, 24
        %v5690 = vpop.permute.xlu0 %5689
        %5691 = vrot.lane.b32.xlu0 %v5625, 24
        %v5692 = vpop.permute.xlu0 %5691
        %5693 = vrot.lane.b32.xlu0 %v5626, 24
        %v5694 = vpop.permute.xlu0 %5693
        %5695 = vrot.lane.b32.xlu0 %v5627, 24
        %v5696 = vpop.permute.xlu0 %5695
        %5697 = vrot.lane.b32.xlu0 %v5628, 24
        %v5698 = vpop.permute.xlu0 %5697
        %5699 = vrot.lane.b32.xlu0 %v5629, 24
        %v5700 = vpop.permute.xlu0 %5699
        %5701 = vrot.lane.b32.xlu0 %v5630, 24
        %v5702 = vpop.permute.xlu0 %5701
        %5703 = vrot.lane.b32.xlu0 %v5631, 24
        %v5704 = vpop.permute.xlu0 %5703
        %5705 = vrot.lane.b32.xlu0 %v5632, 24
        %v5706 = vpop.permute.xlu0 %5705
        %5707 = vrot.lane.b32.xlu0 %v5633, 24
        %v5708 = vpop.permute.xlu0 %5707
        %5709 = vrot.lane.b32.xlu0 %v5634, 24
        %v5710 = vpop.permute.xlu0 %5709
        %5711 = vrot.lane.b32.xlu0 %v5635, 24
        %v5712 = vpop.permute.xlu0 %5711
        %5713 = vrot.lane.b32.xlu0 %v5636, 24
        %v5714 = vpop.permute.xlu0 %5713
        %5715 = vrot.lane.b32.xlu0 %v5637, 24
        %v5716 = vpop.permute.xlu0 %5715
        %5717 = vrot.lane.b32.xlu0 %v5638, 24
        %v5718 = vpop.permute.xlu0 %5717
        %5719 = vrot.lane.b32.xlu0 %v5639, 24
        %v5720 = vpop.permute.xlu0 %5719
        %5721 = vrot.lane.b32.xlu0 %v5640, 24
        %v5722 = vpop.permute.xlu0 %5721
        %5723 = vrot.lane.b32.xlu0 %v5641, 24
        %v5724 = vpop.permute.xlu0 %5723
        %5725 = vrot.lane.b32.xlu0 %v5642, 24
        %v5726 = vpop.permute.xlu0 %5725
        %5727 = vrot.lane.b32.xlu0 %v5643, 24
        %v5728 = vpop.permute.xlu0 %5727
        %5729 = vrot.lane.b32.xlu0 %v5644, 24
        %v5730 = vpop.permute.xlu0 %5729
        %5731 = vrot.lane.b32.xlu0 %v5645, 24
        %v5732 = vpop.permute.xlu0 %5731
        %5733 = vrot.lane.b32.xlu0 %v5646, 24
        %v5734 = vpop.permute.xlu0 %5733
        %5735 = vrot.lane.b32.xlu0 %v5647, 24
        %v5736 = vpop.permute.xlu0 %5735
        %5737 = vrot.lane.b32.xlu0 %v5648, 24
        %v5738 = vpop.permute.xlu0 %5737
        %5739 = vrot.lane.b32.xlu0 %v5649, 24
        %v5740 = vpop.permute.xlu0 %5739
        %5741 = vrot.lane.b32.xlu0 %v5650, 24
        %v5742 = vpop.permute.xlu0 %5741
        %5743 = vrot.lane.b32.xlu0 %v5651, 24
        %v5744 = vpop.permute.xlu0 %5743
        %5745 = vrot.lane.b32.xlu0 %v5652, 24
        %v5746 = vpop.permute.xlu0 %5745
        %5747 = vrot.lane.b32.xlu0 %v5653, 24
        %v5748 = vpop.permute.xlu0 %5747
        %5749 = vrot.lane.b32.xlu0 %v5654, 24
        %v5750 = vpop.permute.xlu0 %5749
        %5783 = vst.msk [vmem:[#allocation5] sm:$0xf] %vm3462, %v5688
        %5784 = vst.msk [vmem:[#allocation5 + $0x4] sm:$0xf] %vm3462, %v5690
        %5785 = vst.msk [vmem:[#allocation5 + $0x8] sm:$0xf] %vm3462, %v5692
        %5786 = vst.msk [vmem:[#allocation5 + $0xc] sm:$0xf] %vm3462, %v5694
        %5787 = vst.msk [vmem:[#allocation5 + $0x10] sm:$0xf] %vm3462, %v5696
        %5788 = vst.msk [vmem:[#allocation5 + $0x14] sm:$0xf] %vm3462, %v5698
        %5789 = vst.msk [vmem:[#allocation5 + $0x18] sm:$0xf] %vm3462, %v5700
        %5790 = vst.msk [vmem:[#allocation5 + $0x1c] sm:$0xf] %vm3462, %v5702
        %5791 = vst.msk [vmem:[#allocation5 + $0x20] sm:$0xf] %vm3462, %v5704
        %5792 = vst.msk [vmem:[#allocation5 + $0x24] sm:$0xf] %vm3462, %v5706
        %5793 = vst.msk [vmem:[#allocation5 + $0x28] sm:$0xf] %vm3462, %v5708
        %5794 = vst.msk [vmem:[#allocation5 + $0x2c] sm:$0xf] %vm3462, %v5710
        %5795 = vst.msk [vmem:[#allocation5 + $0x30] sm:$0xf] %vm3462, %v5712
        %5796 = vst.msk [vmem:[#allocation5 + $0x34] sm:$0xf] %vm3462, %v5714
        %5797 = vst.msk [vmem:[#allocation5 + $0x38] sm:$0xf] %vm3462, %v5716
        %5798 = vst.msk [vmem:[#allocation5 + $0x3c] sm:$0xf] %vm3462, %v5718
        %5799 = vst.msk [vmem:[#allocation5 + $0x40] sm:$0xf] %vm3462, %v5720
        %5800 = vst.msk [vmem:[#allocation5 + $0x44] sm:$0xf] %vm3462, %v5722
        %5801 = vst.msk [vmem:[#allocation5 + $0x48] sm:$0xf] %vm3462, %v5724
        %5802 = vst.msk [vmem:[#allocation5 + $0x4c] sm:$0xf] %vm3462, %v5726
        %5803 = vst.msk [vmem:[#allocation5 + $0x50] sm:$0xf] %vm3462, %v5728
        %5804 = vst.msk [vmem:[#allocation5 + $0x54] sm:$0xf] %vm3462, %v5730
        %5805 = vst.msk [vmem:[#allocation5 + $0x58] sm:$0xf] %vm3462, %v5732
        %5806 = vst.msk [vmem:[#allocation5 + $0x5c] sm:$0xf] %vm3462, %v5734
        %5807 = vst.msk [vmem:[#allocation5 + $0x60] sm:$0xf] %vm3462, %v5736
        %5808 = vst.msk [vmem:[#allocation5 + $0x64] sm:$0xf] %vm3462, %v5738
        %5809 = vst.msk [vmem:[#allocation5 + $0x68] sm:$0xf] %vm3462, %v5740
        %5810 = vst.msk [vmem:[#allocation5 + $0x6c] sm:$0xf] %vm3462, %v5742
        %5811 = vst.msk [vmem:[#allocation5 + $0x70] sm:$0xf] %vm3462, %v5744
        %5812 = vst.msk [vmem:[#allocation5 + $0x74] sm:$0xf] %vm3462, %v5746
        %5813 = vst.msk [vmem:[#allocation5 + $0x78] sm:$0xf] %vm3462, %v5748
        %5814 = vst.msk [vmem:[#allocation5 + $0x7c] sm:$0xf] %vm3462, %v5750
        %v5815 = vld [vmem:[%s2690 + $0x1] sm:$0xff]
        %v5816 = vld [vmem:[%s2690 + $0x9] sm:$0xff]
        %v5817 = vld [vmem:[%s2690 + $0x19] sm:$0xff]
        %v5818 = vld [vmem:[%s2690 + $0x21] sm:$0xff]
        %v5819 = vld [vmem:[%s2690 + $0x31] sm:$0xff]
        %v5820 = vld [vmem:[%s2690 + $0x39] sm:$0xff]
        %v5821 = vld [vmem:[%s2690 + $0x49] sm:$0xff]
        %v5822 = vld [vmem:[%s2690 + $0x51] sm:$0xff]
        %v5823 = vld [vmem:[%s2690 + $0x61] sm:$0xff]
        %v5824 = vld [vmem:[%s2690 + $0x69] sm:$0xff]
        %v5825 = vld [vmem:[%s2690 + $0x79] sm:$0xff]
        %v5826 = vld [vmem:[%s2690 + $0x81] sm:$0xff]
        %v5827 = vld [vmem:[%s2690 + $0x91] sm:$0xff]
        %v5828 = vld [vmem:[%s2690 + $0x99] sm:$0xff]
        %v5829 = vld [vmem:[%s2690 + $0xa9] sm:$0xff]
        %v5830 = vld [vmem:[%s2690 + $0xb1] sm:$0xff]
        %v5831 = vld [vmem:[%s2690 + $0xc1] sm:$0xff]
        %v5832 = vld [vmem:[%s2690 + $0xc9] sm:$0xff]
        %v5833 = vld [vmem:[%s2690 + $0xd9] sm:$0xff]
        %v5834 = vld [vmem:[%s2690 + $0xe1] sm:$0xff]
        %v5835 = vld [vmem:[%s2690 + $0xf1] sm:$0xff]
        %v5836 = vld [vmem:[%s2690 + $0xf9] sm:$0xff]
        %v5837 = vld [vmem:[%s2690 + $0x109] sm:$0xff]
        %v5838 = vld [vmem:[%s2690 + $0x111] sm:$0xff]
        %v5839 = vld [vmem:[%s2690 + $0x121] sm:$0xff]
        %v5840 = vld [vmem:[%s2690 + $0x129] sm:$0xff]
        %v5841 = vld [vmem:[%s2690 + $0x139] sm:$0xff]
        %v5842 = vld [vmem:[%s2690 + $0x141] sm:$0xff]
        %v5843 = vld [vmem:[%s2690 + $0x151] sm:$0xff]
        %v5844 = vld [vmem:[%s2690 + $0x159] sm:$0xff]
        %v5845 = vld [vmem:[%s2690 + $0x169] sm:$0xff]
        %v5846 = vld [vmem:[%s2690 + $0x171] sm:$0xff]
        %v5847 = vpack.c.bf16 %v5815, %v5815
        %v5848 = vpack.c.bf16 %v5816, %v5816
        %v5849 = vpack.c.bf16 %v5817, %v5817
        %v5850 = vpack.c.bf16 %v5818, %v5818
        %v5851 = vpack.c.bf16 %v5819, %v5819
        %v5852 = vpack.c.bf16 %v5820, %v5820
        %v5853 = vpack.c.bf16 %v5821, %v5821
        %v5854 = vpack.c.bf16 %v5822, %v5822
        %v5855 = vpack.c.bf16 %v5823, %v5823
        %v5856 = vpack.c.bf16 %v5824, %v5824
        %v5857 = vpack.c.bf16 %v5825, %v5825
        %v5858 = vpack.c.bf16 %v5826, %v5826
        %v5859 = vpack.c.bf16 %v5827, %v5827
        %v5860 = vpack.c.bf16 %v5828, %v5828
        %v5861 = vpack.c.bf16 %v5829, %v5829
        %v5862 = vpack.c.bf16 %v5830, %v5830
        %v5863 = vpack.c.bf16 %v5831, %v5831
        %v5864 = vpack.c.bf16 %v5832, %v5832
        %v5865 = vpack.c.bf16 %v5833, %v5833
        %v5866 = vpack.c.bf16 %v5834, %v5834
        %v5867 = vpack.c.bf16 %v5835, %v5835
        %v5868 = vpack.c.bf16 %v5836, %v5836
        %v5869 = vpack.c.bf16 %v5837, %v5837
        %v5870 = vpack.c.bf16 %v5838, %v5838
        %v5871 = vpack.c.bf16 %v5839, %v5839
        %v5872 = vpack.c.bf16 %v5840, %v5840
        %v5873 = vpack.c.bf16 %v5841, %v5841
        %v5874 = vpack.c.bf16 %v5842, %v5842
        %v5875 = vpack.c.bf16 %v5843, %v5843
        %v5876 = vpack.c.bf16 %v5844, %v5844
        %v5877 = vpack.c.bf16 %v5845, %v5845
        %v5878 = vpack.c.bf16 %v5846, %v5846
        %5911 = vrot.lane.b32.xlu0 %v5847, 32
        %v5912 = vpop.permute.xlu0 %5911
        %5913 = vrot.lane.b32.xlu0 %v5848, 32
        %v5914 = vpop.permute.xlu0 %5913
        %5915 = vrot.lane.b32.xlu0 %v5849, 32
        %v5916 = vpop.permute.xlu0 %5915
        %5917 = vrot.lane.b32.xlu0 %v5850, 32
        %v5918 = vpop.permute.xlu0 %5917
        %5919 = vrot.lane.b32.xlu0 %v5851, 32
        %v5920 = vpop.permute.xlu0 %5919
        %5921 = vrot.lane.b32.xlu0 %v5852, 32
        %v5922 = vpop.permute.xlu0 %5921
        %5923 = vrot.lane.b32.xlu0 %v5853, 32
        %v5924 = vpop.permute.xlu0 %5923
        %5925 = vrot.lane.b32.xlu0 %v5854, 32
        %v5926 = vpop.permute.xlu0 %5925
        %5927 = vrot.lane.b32.xlu0 %v5855, 32
        %v5928 = vpop.permute.xlu0 %5927
        %5929 = vrot.lane.b32.xlu0 %v5856, 32
        %v5930 = vpop.permute.xlu0 %5929
        %5931 = vrot.lane.b32.xlu0 %v5857, 32
        %v5932 = vpop.permute.xlu0 %5931
        %5933 = vrot.lane.b32.xlu0 %v5858, 32
        %v5934 = vpop.permute.xlu0 %5933
        %5935 = vrot.lane.b32.xlu0 %v5859, 32
        %v5936 = vpop.permute.xlu0 %5935
        %5937 = vrot.lane.b32.xlu0 %v5860, 32
        %v5938 = vpop.permute.xlu0 %5937
        %5939 = vrot.lane.b32.xlu0 %v5861, 32
        %v5940 = vpop.permute.xlu0 %5939
        %5941 = vrot.lane.b32.xlu0 %v5862, 32
        %v5942 = vpop.permute.xlu0 %5941
        %5943 = vrot.lane.b32.xlu0 %v5863, 32
        %v5944 = vpop.permute.xlu0 %5943
        %5945 = vrot.lane.b32.xlu0 %v5864, 32
        %v5946 = vpop.permute.xlu0 %5945
        %5947 = vrot.lane.b32.xlu0 %v5865, 32
        %v5948 = vpop.permute.xlu0 %5947
        %5949 = vrot.lane.b32.xlu0 %v5866, 32
        %v5950 = vpop.permute.xlu0 %5949
        %5951 = vrot.lane.b32.xlu0 %v5867, 32
        %v5952 = vpop.permute.xlu0 %5951
        %5953 = vrot.lane.b32.xlu0 %v5868, 32
        %v5954 = vpop.permute.xlu0 %5953
        %5955 = vrot.lane.b32.xlu0 %v5869, 32
        %v5956 = vpop.permute.xlu0 %5955
        %5957 = vrot.lane.b32.xlu0 %v5870, 32
        %v5958 = vpop.permute.xlu0 %5957
        %5959 = vrot.lane.b32.xlu0 %v5871, 32
        %v5960 = vpop.permute.xlu0 %5959
        %5961 = vrot.lane.b32.xlu0 %v5872, 32
        %v5962 = vpop.permute.xlu0 %5961
        %5963 = vrot.lane.b32.xlu0 %v5873, 32
        %v5964 = vpop.permute.xlu0 %5963
        %5965 = vrot.lane.b32.xlu0 %v5874, 32
        %v5966 = vpop.permute.xlu0 %5965
        %5967 = vrot.lane.b32.xlu0 %v5875, 32
        %v5968 = vpop.permute.xlu0 %5967
        %5969 = vrot.lane.b32.xlu0 %v5876, 32
        %v5970 = vpop.permute.xlu0 %5969
        %5971 = vrot.lane.b32.xlu0 %v5877, 32
        %v5972 = vpop.permute.xlu0 %5971
        %5973 = vrot.lane.b32.xlu0 %v5878, 32
        %v5974 = vpop.permute.xlu0 %5973
        %6007 = vst.msk [vmem:[#allocation5] sm:$0xf] %vm3687, %v5912
        %6008 = vst.msk [vmem:[#allocation5 + $0x4] sm:$0xf] %vm3687, %v5914
        %6009 = vst.msk [vmem:[#allocation5 + $0x8] sm:$0xf] %vm3687, %v5916
        %6010 = vst.msk [vmem:[#allocation5 + $0xc] sm:$0xf] %vm3687, %v5918
        %6011 = vst.msk [vmem:[#allocation5 + $0x10] sm:$0xf] %vm3687, %v5920
        %6012 = vst.msk [vmem:[#allocation5 + $0x14] sm:$0xf] %vm3687, %v5922
        %6013 = vst.msk [vmem:[#allocation5 + $0x18] sm:$0xf] %vm3687, %v5924
        %6014 = vst.msk [vmem:[#allocation5 + $0x1c] sm:$0xf] %vm3687, %v5926
        %6015 = vst.msk [vmem:[#allocation5 + $0x20] sm:$0xf] %vm3687, %v5928
        %6016 = vst.msk [vmem:[#allocation5 + $0x24] sm:$0xf] %vm3687, %v5930
        %6017 = vst.msk [vmem:[#allocation5 + $0x28] sm:$0xf] %vm3687, %v5932
        %6018 = vst.msk [vmem:[#allocation5 + $0x2c] sm:$0xf] %vm3687, %v5934
        %6019 = vst.msk [vmem:[#allocation5 + $0x30] sm:$0xf] %vm3687, %v5936
        %6020 = vst.msk [vmem:[#allocation5 + $0x34] sm:$0xf] %vm3687, %v5938
        %6021 = vst.msk [vmem:[#allocation5 + $0x38] sm:$0xf] %vm3687, %v5940
        %6022 = vst.msk [vmem:[#allocation5 + $0x3c] sm:$0xf] %vm3687, %v5942
        %6023 = vst.msk [vmem:[#allocation5 + $0x40] sm:$0xf] %vm3687, %v5944
        %6024 = vst.msk [vmem:[#allocation5 + $0x44] sm:$0xf] %vm3687, %v5946
        %6025 = vst.msk [vmem:[#allocation5 + $0x48] sm:$0xf] %vm3687, %v5948
        %6026 = vst.msk [vmem:[#allocation5 + $0x4c] sm:$0xf] %vm3687, %v5950
        %6027 = vst.msk [vmem:[#allocation5 + $0x50] sm:$0xf] %vm3687, %v5952
        %6028 = vst.msk [vmem:[#allocation5 + $0x54] sm:$0xf] %vm3687, %v5954
        %6029 = vst.msk [vmem:[#allocation5 + $0x58] sm:$0xf] %vm3687, %v5956
        %6030 = vst.msk [vmem:[#allocation5 + $0x5c] sm:$0xf] %vm3687, %v5958
        %6031 = vst.msk [vmem:[#allocation5 + $0x60] sm:$0xf] %vm3687, %v5960
        %6032 = vst.msk [vmem:[#allocation5 + $0x64] sm:$0xf] %vm3687, %v5962
        %6033 = vst.msk [vmem:[#allocation5 + $0x68] sm:$0xf] %vm3687, %v5964
        %6034 = vst.msk [vmem:[#allocation5 + $0x6c] sm:$0xf] %vm3687, %v5966
        %6035 = vst.msk [vmem:[#allocation5 + $0x70] sm:$0xf] %vm3687, %v5968
        %6036 = vst.msk [vmem:[#allocation5 + $0x74] sm:$0xf] %vm3687, %v5970
        %6037 = vst.msk [vmem:[#allocation5 + $0x78] sm:$0xf] %vm3687, %v5972
        %6038 = vst.msk [vmem:[#allocation5 + $0x7c] sm:$0xf] %vm3687, %v5974
        %v6039 = vld [vmem:[%s2690 + $0x2] sm:$0xff]
        %v6040 = vld [vmem:[%s2690 + $0xa] sm:$0xff]
        %v6041 = vld [vmem:[%s2690 + $0x1a] sm:$0xff]
        %v6042 = vld [vmem:[%s2690 + $0x22] sm:$0xff]
        %v6043 = vld [vmem:[%s2690 + $0x32] sm:$0xff]
        %v6044 = vld [vmem:[%s2690 + $0x3a] sm:$0xff]
        %v6045 = vld [vmem:[%s2690 + $0x4a] sm:$0xff]
        %v6046 = vld [vmem:[%s2690 + $0x52] sm:$0xff]
        %v6047 = vld [vmem:[%s2690 + $0x62] sm:$0xff]
        %v6048 = vld [vmem:[%s2690 + $0x6a] sm:$0xff]
        %v6049 = vld [vmem:[%s2690 + $0x7a] sm:$0xff]
        %v6050 = vld [vmem:[%s2690 + $0x82] sm:$0xff]
        %v6051 = vld [vmem:[%s2690 + $0x92] sm:$0xff]
        %v6052 = vld [vmem:[%s2690 + $0x9a] sm:$0xff]
        %v6053 = vld [vmem:[%s2690 + $0xaa] sm:$0xff]
        %v6054 = vld [vmem:[%s2690 + $0xb2] sm:$0xff]
        %v6055 = vld [vmem:[%s2690 + $0xc2] sm:$0xff]
        %v6056 = vld [vmem:[%s2690 + $0xca] sm:$0xff]
        %v6057 = vld [vmem:[%s2690 + $0xda] sm:$0xff]
        %v6058 = vld [vmem:[%s2690 + $0xe2] sm:$0xff]
        %v6059 = vld [vmem:[%s2690 + $0xf2] sm:$0xff]
        %v6060 = vld [vmem:[%s2690 + $0xfa] sm:$0xff]
        %v6061 = vld [vmem:[%s2690 + $0x10a] sm:$0xff]
        %v6062 = vld [vmem:[%s2690 + $0x112] sm:$0xff]
        %v6063 = vld [vmem:[%s2690 + $0x122] sm:$0xff]
        %v6064 = vld [vmem:[%s2690 + $0x12a] sm:$0xff]
        %v6065 = vld [vmem:[%s2690 + $0x13a] sm:$0xff]
        %v6066 = vld [vmem:[%s2690 + $0x142] sm:$0xff]
        %v6067 = vld [vmem:[%s2690 + $0x152] sm:$0xff]
        %v6068 = vld [vmem:[%s2690 + $0x15a] sm:$0xff]
        %v6069 = vld [vmem:[%s2690 + $0x16a] sm:$0xff]
        %v6070 = vld [vmem:[%s2690 + $0x172] sm:$0xff]
        %v6071 = vpack.c.bf16 %v6039, %v6039
        %v6072 = vpack.c.bf16 %v6040, %v6040
        %v6073 = vpack.c.bf16 %v6041, %v6041
        %v6074 = vpack.c.bf16 %v6042, %v6042
        %v6075 = vpack.c.bf16 %v6043, %v6043
        %v6076 = vpack.c.bf16 %v6044, %v6044
        %v6077 = vpack.c.bf16 %v6045, %v6045
        %v6078 = vpack.c.bf16 %v6046, %v6046
        %v6079 = vpack.c.bf16 %v6047, %v6047
        %v6080 = vpack.c.bf16 %v6048, %v6048
        %v6081 = vpack.c.bf16 %v6049, %v6049
        %v6082 = vpack.c.bf16 %v6050, %v6050
        %v6083 = vpack.c.bf16 %v6051, %v6051
        %v6084 = vpack.c.bf16 %v6052, %v6052
        %v6085 = vpack.c.bf16 %v6053, %v6053
        %v6086 = vpack.c.bf16 %v6054, %v6054
        %v6087 = vpack.c.bf16 %v6055, %v6055
        %v6088 = vpack.c.bf16 %v6056, %v6056
        %v6089 = vpack.c.bf16 %v6057, %v6057
        %v6090 = vpack.c.bf16 %v6058, %v6058
        %v6091 = vpack.c.bf16 %v6059, %v6059
        %v6092 = vpack.c.bf16 %v6060, %v6060
        %v6093 = vpack.c.bf16 %v6061, %v6061
        %v6094 = vpack.c.bf16 %v6062, %v6062
        %v6095 = vpack.c.bf16 %v6063, %v6063
        %v6096 = vpack.c.bf16 %v6064, %v6064
        %v6097 = vpack.c.bf16 %v6065, %v6065
        %v6098 = vpack.c.bf16 %v6066, %v6066
        %v6099 = vpack.c.bf16 %v6067, %v6067
        %v6100 = vpack.c.bf16 %v6068, %v6068
        %v6101 = vpack.c.bf16 %v6069, %v6069
        %v6102 = vpack.c.bf16 %v6070, %v6070
        %6135 = vrot.lane.b32.xlu0 %v6071, 40
        %v6136 = vpop.permute.xlu0 %6135
        %6137 = vrot.lane.b32.xlu0 %v6072, 40
        %v6138 = vpop.permute.xlu0 %6137
        %6139 = vrot.lane.b32.xlu0 %v6073, 40
        %v6140 = vpop.permute.xlu0 %6139
        %6141 = vrot.lane.b32.xlu0 %v6074, 40
        %v6142 = vpop.permute.xlu0 %6141
        %6143 = vrot.lane.b32.xlu0 %v6075, 40
        %v6144 = vpop.permute.xlu0 %6143
        %6145 = vrot.lane.b32.xlu0 %v6076, 40
        %v6146 = vpop.permute.xlu0 %6145
        %6147 = vrot.lane.b32.xlu0 %v6077, 40
        %v6148 = vpop.permute.xlu0 %6147
        %6149 = vrot.lane.b32.xlu0 %v6078, 40
        %v6150 = vpop.permute.xlu0 %6149
        %6151 = vrot.lane.b32.xlu0 %v6079, 40
        %v6152 = vpop.permute.xlu0 %6151
        %6153 = vrot.lane.b32.xlu0 %v6080, 40
        %v6154 = vpop.permute.xlu0 %6153
        %6155 = vrot.lane.b32.xlu0 %v6081, 40
        %v6156 = vpop.permute.xlu0 %6155
        %6157 = vrot.lane.b32.xlu0 %v6082, 40
        %v6158 = vpop.permute.xlu0 %6157
        %6159 = vrot.lane.b32.xlu0 %v6083, 40
        %v6160 = vpop.permute.xlu0 %6159
        %6161 = vrot.lane.b32.xlu0 %v6084, 40
        %v6162 = vpop.permute.xlu0 %6161
        %6163 = vrot.lane.b32.xlu0 %v6085, 40
        %v6164 = vpop.permute.xlu0 %6163
        %6165 = vrot.lane.b32.xlu0 %v6086, 40
        %v6166 = vpop.permute.xlu0 %6165
        %6167 = vrot.lane.b32.xlu0 %v6087, 40
        %v6168 = vpop.permute.xlu0 %6167
        %6169 = vrot.lane.b32.xlu0 %v6088, 40
        %v6170 = vpop.permute.xlu0 %6169
        %6171 = vrot.lane.b32.xlu0 %v6089, 40
        %v6172 = vpop.permute.xlu0 %6171
        %6173 = vrot.lane.b32.xlu0 %v6090, 40
        %v6174 = vpop.permute.xlu0 %6173
        %6175 = vrot.lane.b32.xlu0 %v6091, 40
        %v6176 = vpop.permute.xlu0 %6175
        %6177 = vrot.lane.b32.xlu0 %v6092, 40
        %v6178 = vpop.permute.xlu0 %6177
        %6179 = vrot.lane.b32.xlu0 %v6093, 40
        %v6180 = vpop.permute.xlu0 %6179
        %6181 = vrot.lane.b32.xlu0 %v6094, 40
        %v6182 = vpop.permute.xlu0 %6181
        %6183 = vrot.lane.b32.xlu0 %v6095, 40
        %v6184 = vpop.permute.xlu0 %6183
        %6185 = vrot.lane.b32.xlu0 %v6096, 40
        %v6186 = vpop.permute.xlu0 %6185
        %6187 = vrot.lane.b32.xlu0 %v6097, 40
        %v6188 = vpop.permute.xlu0 %6187
        %6189 = vrot.lane.b32.xlu0 %v6098, 40
        %v6190 = vpop.permute.xlu0 %6189
        %6191 = vrot.lane.b32.xlu0 %v6099, 40
        %v6192 = vpop.permute.xlu0 %6191
        %6193 = vrot.lane.b32.xlu0 %v6100, 40
        %v6194 = vpop.permute.xlu0 %6193
        %6195 = vrot.lane.b32.xlu0 %v6101, 40
        %v6196 = vpop.permute.xlu0 %6195
        %6197 = vrot.lane.b32.xlu0 %v6102, 40
        %v6198 = vpop.permute.xlu0 %6197
        %6231 = vst.msk [vmem:[#allocation5] sm:$0xf] %vm3912, %v6136
        %6232 = vst.msk [vmem:[#allocation5 + $0x4] sm:$0xf] %vm3912, %v6138
        %6233 = vst.msk [vmem:[#allocation5 + $0x8] sm:$0xf] %vm3912, %v6140
        %6234 = vst.msk [vmem:[#allocation5 + $0xc] sm:$0xf] %vm3912, %v6142
        %6235 = vst.msk [vmem:[#allocation5 + $0x10] sm:$0xf] %vm3912, %v6144
        %6236 = vst.msk [vmem:[#allocation5 + $0x14] sm:$0xf] %vm3912, %v6146
        %6237 = vst.msk [vmem:[#allocation5 + $0x18] sm:$0xf] %vm3912, %v6148
        %6238 = vst.msk [vmem:[#allocation5 + $0x1c] sm:$0xf] %vm3912, %v6150
        %6239 = vst.msk [vmem:[#allocation5 + $0x20] sm:$0xf] %vm3912, %v6152
        %6240 = vst.msk [vmem:[#allocation5 + $0x24] sm:$0xf] %vm3912, %v6154
        %6241 = vst.msk [vmem:[#allocation5 + $0x28] sm:$0xf] %vm3912, %v6156
        %6242 = vst.msk [vmem:[#allocation5 + $0x2c] sm:$0xf] %vm3912, %v6158
        %6243 = vst.msk [vmem:[#allocation5 + $0x30] sm:$0xf] %vm3912, %v6160
        %6244 = vst.msk [vmem:[#allocation5 + $0x34] sm:$0xf] %vm3912, %v6162
        %6245 = vst.msk [vmem:[#allocation5 + $0x38] sm:$0xf] %vm3912, %v6164
        %6246 = vst.msk [vmem:[#allocation5 + $0x3c] sm:$0xf] %vm3912, %v6166
        %6247 = vst.msk [vmem:[#allocation5 + $0x40] sm:$0xf] %vm3912, %v6168
        %6248 = vst.msk [vmem:[#allocation5 + $0x44] sm:$0xf] %vm3912, %v6170
        %6249 = vst.msk [vmem:[#allocation5 + $0x48] sm:$0xf] %vm3912, %v6172
        %6250 = vst.msk [vmem:[#allocation5 + $0x4c] sm:$0xf] %vm3912, %v6174
        %6251 = vst.msk [vmem:[#allocation5 + $0x50] sm:$0xf] %vm3912, %v6176
        %6252 = vst.msk [vmem:[#allocation5 + $0x54] sm:$0xf] %vm3912, %v6178
        %6253 = vst.msk [vmem:[#allocation5 + $0x58] sm:$0xf] %vm3912, %v6180
        %6254 = vst.msk [vmem:[#allocation5 + $0x5c] sm:$0xf] %vm3912, %v6182
        %6255 = vst.msk [vmem:[#allocation5 + $0x60] sm:$0xf] %vm3912, %v6184
        %6256 = vst.msk [vmem:[#allocation5 + $0x64] sm:$0xf] %vm3912, %v6186
        %6257 = vst.msk [vmem:[#allocation5 + $0x68] sm:$0xf] %vm3912, %v6188
        %6258 = vst.msk [vmem:[#allocation5 + $0x6c] sm:$0xf] %vm3912, %v6190
        %6259 = vst.msk [vmem:[#allocation5 + $0x70] sm:$0xf] %vm3912, %v6192
        %6260 = vst.msk [vmem:[#allocation5 + $0x74] sm:$0xf] %vm3912, %v6194
        %6261 = vst.msk [vmem:[#allocation5 + $0x78] sm:$0xf] %vm3912, %v6196
        %6262 = vst.msk [vmem:[#allocation5 + $0x7c] sm:$0xf] %vm3912, %v6198
        %v6263 = vld [vmem:[%s3945] sm:$0xff]
        %v6264 = vld [vmem:[%s3945 + $0x8] sm:$0xff]
        %v6265 = vld [vmem:[%s3945 + $0x18] sm:$0xff]
        %v6266 = vld [vmem:[%s3945 + $0x20] sm:$0xff]
        %v6267 = vld [vmem:[%s3945 + $0x30] sm:$0xff]
        %v6268 = vld [vmem:[%s3945 + $0x38] sm:$0xff]
        %v6269 = vld [vmem:[%s3945 + $0x48] sm:$0xff]
        %v6270 = vld [vmem:[%s3945 + $0x50] sm:$0xff]
        %v6271 = vld [vmem:[%s3945 + $0x60] sm:$0xff]
        %v6272 = vld [vmem:[%s3945 + $0x68] sm:$0xff]
        %v6273 = vld [vmem:[%s3945 + $0x78] sm:$0xff]
        %v6274 = vld [vmem:[%s3945 + $0x80] sm:$0xff]
        %v6275 = vld [vmem:[%s3945 + $0x90] sm:$0xff]
        %v6276 = vld [vmem:[%s3945 + $0x98] sm:$0xff]
        %v6277 = vld [vmem:[%s3945 + $0xa8] sm:$0xff]
        %v6278 = vld [vmem:[%s3945 + $0xb0] sm:$0xff]
        %v6279 = vld [vmem:[%s3945 + $0xc0] sm:$0xff]
        %v6280 = vld [vmem:[%s3945 + $0xc8] sm:$0xff]
        %v6281 = vld [vmem:[%s3945 + $0xd8] sm:$0xff]
        %v6282 = vld [vmem:[%s3945 + $0xe0] sm:$0xff]
        %v6283 = vld [vmem:[%s3945 + $0xf0] sm:$0xff]
        %v6284 = vld [vmem:[%s3945 + $0xf8] sm:$0xff]
        %v6285 = vld [vmem:[%s3945 + $0x108] sm:$0xff]
        %v6286 = vld [vmem:[%s3945 + $0x110] sm:$0xff]
        %v6287 = vld [vmem:[%s3945 + $0x120] sm:$0xff]
        %v6288 = vld [vmem:[%s3945 + $0x128] sm:$0xff]
        %v6289 = vld [vmem:[%s3945 + $0x138] sm:$0xff]
        %v6290 = vld [vmem:[%s3945 + $0x140] sm:$0xff]
        %v6291 = vld [vmem:[%s3945 + $0x150] sm:$0xff]
        %v6292 = vld [vmem:[%s3945 + $0x158] sm:$0xff]
        %v6293 = vld [vmem:[%s3945 + $0x168] sm:$0xff]
        %v6294 = vld [vmem:[%s3945 + $0x170] sm:$0xff]
        %v6295 = vpack.c.bf16 %v6263, %v6263
        %v6296 = vpack.c.bf16 %v6264, %v6264
        %v6297 = vpack.c.bf16 %v6265, %v6265
        %v6298 = vpack.c.bf16 %v6266, %v6266
        %v6299 = vpack.c.bf16 %v6267, %v6267
        %v6300 = vpack.c.bf16 %v6268, %v6268
        %v6301 = vpack.c.bf16 %v6269, %v6269
        %v6302 = vpack.c.bf16 %v6270, %v6270
        %v6303 = vpack.c.bf16 %v6271, %v6271
        %v6304 = vpack.c.bf16 %v6272, %v6272
        %v6305 = vpack.c.bf16 %v6273, %v6273
        %v6306 = vpack.c.bf16 %v6274, %v6274
        %v6307 = vpack.c.bf16 %v6275, %v6275
        %v6308 = vpack.c.bf16 %v6276, %v6276
        %v6309 = vpack.c.bf16 %v6277, %v6277
        %v6310 = vpack.c.bf16 %v6278, %v6278
        %v6311 = vpack.c.bf16 %v6279, %v6279
        %v6312 = vpack.c.bf16 %v6280, %v6280
        %v6313 = vpack.c.bf16 %v6281, %v6281
        %v6314 = vpack.c.bf16 %v6282, %v6282
        %v6315 = vpack.c.bf16 %v6283, %v6283
        %v6316 = vpack.c.bf16 %v6284, %v6284
        %v6317 = vpack.c.bf16 %v6285, %v6285
        %v6318 = vpack.c.bf16 %v6286, %v6286
        %v6319 = vpack.c.bf16 %v6287, %v6287
        %v6320 = vpack.c.bf16 %v6288, %v6288
        %v6321 = vpack.c.bf16 %v6289, %v6289
        %v6322 = vpack.c.bf16 %v6290, %v6290
        %v6323 = vpack.c.bf16 %v6291, %v6291
        %v6324 = vpack.c.bf16 %v6292, %v6292
        %v6325 = vpack.c.bf16 %v6293, %v6293
        %v6326 = vpack.c.bf16 %v6294, %v6294
        %6359 = vrot.lane.b32.xlu0 %v6295, 48
        %v6360 = vpop.permute.xlu0 %6359
        %6361 = vrot.lane.b32.xlu0 %v6296, 48
        %v6362 = vpop.permute.xlu0 %6361
        %6363 = vrot.lane.b32.xlu0 %v6297, 48
        %v6364 = vpop.permute.xlu0 %6363
        %6365 = vrot.lane.b32.xlu0 %v6298, 48
        %v6366 = vpop.permute.xlu0 %6365
        %6367 = vrot.lane.b32.xlu0 %v6299, 48
        %v6368 = vpop.permute.xlu0 %6367
        %6369 = vrot.lane.b32.xlu0 %v6300, 48
        %v6370 = vpop.permute.xlu0 %6369
        %6371 = vrot.lane.b32.xlu0 %v6301, 48
        %v6372 = vpop.permute.xlu0 %6371
        %6373 = vrot.lane.b32.xlu0 %v6302, 48
        %v6374 = vpop.permute.xlu0 %6373
        %6375 = vrot.lane.b32.xlu0 %v6303, 48
        %v6376 = vpop.permute.xlu0 %6375
        %6377 = vrot.lane.b32.xlu0 %v6304, 48
        %v6378 = vpop.permute.xlu0 %6377
        %6379 = vrot.lane.b32.xlu0 %v6305, 48
        %v6380 = vpop.permute.xlu0 %6379
        %6381 = vrot.lane.b32.xlu0 %v6306, 48
        %v6382 = vpop.permute.xlu0 %6381
        %6383 = vrot.lane.b32.xlu0 %v6307, 48
        %v6384 = vpop.permute.xlu0 %6383
        %6385 = vrot.lane.b32.xlu0 %v6308, 48
        %v6386 = vpop.permute.xlu0 %6385
        %6387 = vrot.lane.b32.xlu0 %v6309, 48
        %v6388 = vpop.permute.xlu0 %6387
        %6389 = vrot.lane.b32.xlu0 %v6310, 48
        %v6390 = vpop.permute.xlu0 %6389
        %6391 = vrot.lane.b32.xlu0 %v6311, 48
        %v6392 = vpop.permute.xlu0 %6391
        %6393 = vrot.lane.b32.xlu0 %v6312, 48
        %v6394 = vpop.permute.xlu0 %6393
        %6395 = vrot.lane.b32.xlu0 %v6313, 48
        %v6396 = vpop.permute.xlu0 %6395
        %6397 = vrot.lane.b32.xlu0 %v6314, 48
        %v6398 = vpop.permute.xlu0 %6397
        %6399 = vrot.lane.b32.xlu0 %v6315, 48
        %v6400 = vpop.permute.xlu0 %6399
        %6401 = vrot.lane.b32.xlu0 %v6316, 48
        %v6402 = vpop.permute.xlu0 %6401
        %6403 = vrot.lane.b32.xlu0 %v6317, 48
        %v6404 = vpop.permute.xlu0 %6403
        %6405 = vrot.lane.b32.xlu0 %v6318, 48
        %v6406 = vpop.permute.xlu0 %6405
        %6407 = vrot.lane.b32.xlu0 %v6319, 48
        %v6408 = vpop.permute.xlu0 %6407
        %6409 = vrot.lane.b32.xlu0 %v6320, 48
        %v6410 = vpop.permute.xlu0 %6409
        %6411 = vrot.lane.b32.xlu0 %v6321, 48
        %v6412 = vpop.permute.xlu0 %6411
        %6413 = vrot.lane.b32.xlu0 %v6322, 48
        %v6414 = vpop.permute.xlu0 %6413
        %6415 = vrot.lane.b32.xlu0 %v6323, 48
        %v6416 = vpop.permute.xlu0 %6415
        %6417 = vrot.lane.b32.xlu0 %v6324, 48
        %v6418 = vpop.permute.xlu0 %6417
        %6419 = vrot.lane.b32.xlu0 %v6325, 48
        %v6420 = vpop.permute.xlu0 %6419
        %6421 = vrot.lane.b32.xlu0 %v6326, 48
        %v6422 = vpop.permute.xlu0 %6421
        %6455 = vst.msk [vmem:[#allocation5] sm:$0xf] %vm4138, %v6360
        %6456 = vst.msk [vmem:[#allocation5 + $0x4] sm:$0xf] %vm4138, %v6362
        %6457 = vst.msk [vmem:[#allocation5 + $0x8] sm:$0xf] %vm4138, %v6364
        %6458 = vst.msk [vmem:[#allocation5 + $0xc] sm:$0xf] %vm4138, %v6366
        %6459 = vst.msk [vmem:[#allocation5 + $0x10] sm:$0xf] %vm4138, %v6368
        %6460 = vst.msk [vmem:[#allocation5 + $0x14] sm:$0xf] %vm4138, %v6370
        %6461 = vst.msk [vmem:[#allocation5 + $0x18] sm:$0xf] %vm4138, %v6372
        %6462 = vst.msk [vmem:[#allocation5 + $0x1c] sm:$0xf] %vm4138, %v6374
        %6463 = vst.msk [vmem:[#allocation5 + $0x20] sm:$0xf] %vm4138, %v6376
        %6464 = vst.msk [vmem:[#allocation5 + $0x24] sm:$0xf] %vm4138, %v6378
        %6465 = vst.msk [vmem:[#allocation5 + $0x28] sm:$0xf] %vm4138, %v6380
        %6466 = vst.msk [vmem:[#allocation5 + $0x2c] sm:$0xf] %vm4138, %v6382
        %6467 = vst.msk [vmem:[#allocation5 + $0x30] sm:$0xf] %vm4138, %v6384
        %6468 = vst.msk [vmem:[#allocation5 + $0x34] sm:$0xf] %vm4138, %v6386
        %6469 = vst.msk [vmem:[#allocation5 + $0x38] sm:$0xf] %vm4138, %v6388
        %6470 = vst.msk [vmem:[#allocation5 + $0x3c] sm:$0xf] %vm4138, %v6390
        %6471 = vst.msk [vmem:[#allocation5 + $0x40] sm:$0xf] %vm4138, %v6392
        %6472 = vst.msk [vmem:[#allocation5 + $0x44] sm:$0xf] %vm4138, %v6394
        %6473 = vst.msk [vmem:[#allocation5 + $0x48] sm:$0xf] %vm4138, %v6396
        %6474 = vst.msk [vmem:[#allocation5 + $0x4c] sm:$0xf] %vm4138, %v6398
        %6475 = vst.msk [vmem:[#allocation5 + $0x50] sm:$0xf] %vm4138, %v6400
        %6476 = vst.msk [vmem:[#allocation5 + $0x54] sm:$0xf] %vm4138, %v6402
        %6477 = vst.msk [vmem:[#allocation5 + $0x58] sm:$0xf] %vm4138, %v6404
        %6478 = vst.msk [vmem:[#allocation5 + $0x5c] sm:$0xf] %vm4138, %v6406
        %6479 = vst.msk [vmem:[#allocation5 + $0x60] sm:$0xf] %vm4138, %v6408
        %6480 = vst.msk [vmem:[#allocation5 + $0x64] sm:$0xf] %vm4138, %v6410
        %6481 = vst.msk [vmem:[#allocation5 + $0x68] sm:$0xf] %vm4138, %v6412
        %6482 = vst.msk [vmem:[#allocation5 + $0x6c] sm:$0xf] %vm4138, %v6414
        %6483 = vst.msk [vmem:[#allocation5 + $0x70] sm:$0xf] %vm4138, %v6416
        %6484 = vst.msk [vmem:[#allocation5 + $0x74] sm:$0xf] %vm4138, %v6418
        %6485 = vst.msk [vmem:[#allocation5 + $0x78] sm:$0xf] %vm4138, %v6420
        %6486 = vst.msk [vmem:[#allocation5 + $0x7c] sm:$0xf] %vm4138, %v6422
        %v6487 = vld [vmem:[%s3945 + $0x1] sm:$0xff]
        %v6488 = vld [vmem:[%s3945 + $0x9] sm:$0xff]
        %v6489 = vld [vmem:[%s3945 + $0x19] sm:$0xff]
        %v6490 = vld [vmem:[%s3945 + $0x21] sm:$0xff]
        %v6491 = vld [vmem:[%s3945 + $0x31] sm:$0xff]
        %v6492 = vld [vmem:[%s3945 + $0x39] sm:$0xff]
        %v6493 = vld [vmem:[%s3945 + $0x49] sm:$0xff]
        %v6494 = vld [vmem:[%s3945 + $0x51] sm:$0xff]
        %v6495 = vld [vmem:[%s3945 + $0x61] sm:$0xff]
        %v6496 = vld [vmem:[%s3945 + $0x69] sm:$0xff]
        %v6497 = vld [vmem:[%s3945 + $0x79] sm:$0xff]
        %v6498 = vld [vmem:[%s3945 + $0x81] sm:$0xff]
        %v6499 = vld [vmem:[%s3945 + $0x91] sm:$0xff]
        %v6500 = vld [vmem:[%s3945 + $0x99] sm:$0xff]
        %v6501 = vld [vmem:[%s3945 + $0xa9] sm:$0xff]
        %v6502 = vld [vmem:[%s3945 + $0xb1] sm:$0xff]
        %v6503 = vld [vmem:[%s3945 + $0xc1] sm:$0xff]
        %v6504 = vld [vmem:[%s3945 + $0xc9] sm:$0xff]
        %v6505 = vld [vmem:[%s3945 + $0xd9] sm:$0xff]
        %v6506 = vld [vmem:[%s3945 + $0xe1] sm:$0xff]
        %v6507 = vld [vmem:[%s3945 + $0xf1] sm:$0xff]
        %v6508 = vld [vmem:[%s3945 + $0xf9] sm:$0xff]
        %v6509 = vld [vmem:[%s3945 + $0x109] sm:$0xff]
        %v6510 = vld [vmem:[%s3945 + $0x111] sm:$0xff]
        %v6511 = vld [vmem:[%s3945 + $0x121] sm:$0xff]
        %v6512 = vld [vmem:[%s3945 + $0x129] sm:$0xff]
        %v6513 = vld [vmem:[%s3945 + $0x139] sm:$0xff]
        %v6514 = vld [vmem:[%s3945 + $0x141] sm:$0xff]
        %v6515 = vld [vmem:[%s3945 + $0x151] sm:$0xff]
        %v6516 = vld [vmem:[%s3945 + $0x159] sm:$0xff]
        %v6517 = vld [vmem:[%s3945 + $0x169] sm:$0xff]
        %v6518 = vld [vmem:[%s3945 + $0x171] sm:$0xff]
        %v6519 = vpack.c.bf16 %v6487, %v6487
        %v6520 = vpack.c.bf16 %v6488, %v6488
        %v6521 = vpack.c.bf16 %v6489, %v6489
        %v6522 = vpack.c.bf16 %v6490, %v6490
        %v6523 = vpack.c.bf16 %v6491, %v6491
        %v6524 = vpack.c.bf16 %v6492, %v6492
        %v6525 = vpack.c.bf16 %v6493, %v6493
        %v6526 = vpack.c.bf16 %v6494, %v6494
        %v6527 = vpack.c.bf16 %v6495, %v6495
        %v6528 = vpack.c.bf16 %v6496, %v6496
        %v6529 = vpack.c.bf16 %v6497, %v6497
        %v6530 = vpack.c.bf16 %v6498, %v6498
        %v6531 = vpack.c.bf16 %v6499, %v6499
        %v6532 = vpack.c.bf16 %v6500, %v6500
        %v6533 = vpack.c.bf16 %v6501, %v6501
        %v6534 = vpack.c.bf16 %v6502, %v6502
        %v6535 = vpack.c.bf16 %v6503, %v6503
        %v6536 = vpack.c.bf16 %v6504, %v6504
        %v6537 = vpack.c.bf16 %v6505, %v6505
        %v6538 = vpack.c.bf16 %v6506, %v6506
        %v6539 = vpack.c.bf16 %v6507, %v6507
        %v6540 = vpack.c.bf16 %v6508, %v6508
        %v6541 = vpack.c.bf16 %v6509, %v6509
        %v6542 = vpack.c.bf16 %v6510, %v6510
        %v6543 = vpack.c.bf16 %v6511, %v6511
        %v6544 = vpack.c.bf16 %v6512, %v6512
        %v6545 = vpack.c.bf16 %v6513, %v6513
        %v6546 = vpack.c.bf16 %v6514, %v6514
        %v6547 = vpack.c.bf16 %v6515, %v6515
        %v6548 = vpack.c.bf16 %v6516, %v6516
        %v6549 = vpack.c.bf16 %v6517, %v6517
        %v6550 = vpack.c.bf16 %v6518, %v6518
        %6583 = vrot.lane.b32.xlu0 %v6519, 56
        %v6584 = vpop.permute.xlu0 %6583
        %6585 = vrot.lane.b32.xlu0 %v6520, 56
        %v6586 = vpop.permute.xlu0 %6585
        %6587 = vrot.lane.b32.xlu0 %v6521, 56
        %v6588 = vpop.permute.xlu0 %6587
        %6589 = vrot.lane.b32.xlu0 %v6522, 56
        %v6590 = vpop.permute.xlu0 %6589
        %6591 = vrot.lane.b32.xlu0 %v6523, 56
        %v6592 = vpop.permute.xlu0 %6591
        %6593 = vrot.lane.b32.xlu0 %v6524, 56
        %v6594 = vpop.permute.xlu0 %6593
        %6595 = vrot.lane.b32.xlu0 %v6525, 56
        %v6596 = vpop.permute.xlu0 %6595
        %6597 = vrot.lane.b32.xlu0 %v6526, 56
        %v6598 = vpop.permute.xlu0 %6597
        %6599 = vrot.lane.b32.xlu0 %v6527, 56
        %v6600 = vpop.permute.xlu0 %6599
        %6601 = vrot.lane.b32.xlu0 %v6528, 56
        %v6602 = vpop.permute.xlu0 %6601
        %6603 = vrot.lane.b32.xlu0 %v6529, 56
        %v6604 = vpop.permute.xlu0 %6603
        %6605 = vrot.lane.b32.xlu0 %v6530, 56
        %v6606 = vpop.permute.xlu0 %6605
        %6607 = vrot.lane.b32.xlu0 %v6531, 56
        %v6608 = vpop.permute.xlu0 %6607
        %6609 = vrot.lane.b32.xlu0 %v6532, 56
        %v6610 = vpop.permute.xlu0 %6609
        %6611 = vrot.lane.b32.xlu0 %v6533, 56
        %v6612 = vpop.permute.xlu0 %6611
        %6613 = vrot.lane.b32.xlu0 %v6534, 56
        %v6614 = vpop.permute.xlu0 %6613
        %6615 = vrot.lane.b32.xlu0 %v6535, 56
        %v6616 = vpop.permute.xlu0 %6615
        %6617 = vrot.lane.b32.xlu0 %v6536, 56
        %v6618 = vpop.permute.xlu0 %6617
        %6619 = vrot.lane.b32.xlu0 %v6537, 56
        %v6620 = vpop.permute.xlu0 %6619
        %6621 = vrot.lane.b32.xlu0 %v6538, 56
        %v6622 = vpop.permute.xlu0 %6621
        %6623 = vrot.lane.b32.xlu0 %v6539, 56
        %v6624 = vpop.permute.xlu0 %6623
        %6625 = vrot.lane.b32.xlu0 %v6540, 56
        %v6626 = vpop.permute.xlu0 %6625
        %6627 = vrot.lane.b32.xlu0 %v6541, 56
        %v6628 = vpop.permute.xlu0 %6627
        %6629 = vrot.lane.b32.xlu0 %v6542, 56
        %v6630 = vpop.permute.xlu0 %6629
        %6631 = vrot.lane.b32.xlu0 %v6543, 56
        %v6632 = vpop.permute.xlu0 %6631
        %6633 = vrot.lane.b32.xlu0 %v6544, 56
        %v6634 = vpop.permute.xlu0 %6633
        %6635 = vrot.lane.b32.xlu0 %v6545, 56
        %v6636 = vpop.permute.xlu0 %6635
        %6637 = vrot.lane.b32.xlu0 %v6546, 56
        %v6638 = vpop.permute.xlu0 %6637
        %6639 = vrot.lane.b32.xlu0 %v6547, 56
        %v6640 = vpop.permute.xlu0 %6639
        %6641 = vrot.lane.b32.xlu0 %v6548, 56
        %v6642 = vpop.permute.xlu0 %6641
        %6643 = vrot.lane.b32.xlu0 %v6549, 56
        %v6644 = vpop.permute.xlu0 %6643
        %6645 = vrot.lane.b32.xlu0 %v6550, 56
        %v6646 = vpop.permute.xlu0 %6645
        %6679 = vst.msk [vmem:[#allocation5] sm:$0xf] %vm4363, %v6584
        %6680 = vst.msk [vmem:[#allocation5 + $0x4] sm:$0xf] %vm4363, %v6586
        %6681 = vst.msk [vmem:[#allocation5 + $0x8] sm:$0xf] %vm4363, %v6588
        %6682 = vst.msk [vmem:[#allocation5 + $0xc] sm:$0xf] %vm4363, %v6590
        %6683 = vst.msk [vmem:[#allocation5 + $0x10] sm:$0xf] %vm4363, %v6592
        %6684 = vst.msk [vmem:[#allocation5 + $0x14] sm:$0xf] %vm4363, %v6594
        %6685 = vst.msk [vmem:[#allocation5 + $0x18] sm:$0xf] %vm4363, %v6596
        %6686 = vst.msk [vmem:[#allocation5 + $0x1c] sm:$0xf] %vm4363, %v6598
        %6687 = vst.msk [vmem:[#allocation5 + $0x20] sm:$0xf] %vm4363, %v6600
        %6688 = vst.msk [vmem:[#allocation5 + $0x24] sm:$0xf] %vm4363, %v6602
        %6689 = vst.msk [vmem:[#allocation5 + $0x28] sm:$0xf] %vm4363, %v6604
        %6690 = vst.msk [vmem:[#allocation5 + $0x2c] sm:$0xf] %vm4363, %v6606
        %6691 = vst.msk [vmem:[#allocation5 + $0x30] sm:$0xf] %vm4363, %v6608
        %6692 = vst.msk [vmem:[#allocation5 + $0x34] sm:$0xf] %vm4363, %v6610
        %6693 = vst.msk [vmem:[#allocation5 + $0x38] sm:$0xf] %vm4363, %v6612
        %6694 = vst.msk [vmem:[#allocation5 + $0x3c] sm:$0xf] %vm4363, %v6614
        %6695 = vst.msk [vmem:[#allocation5 + $0x40] sm:$0xf] %vm4363, %v6616
        %6696 = vst.msk [vmem:[#allocation5 + $0x44] sm:$0xf] %vm4363, %v6618
        %6697 = vst.msk [vmem:[#allocation5 + $0x48] sm:$0xf] %vm4363, %v6620
        %6698 = vst.msk [vmem:[#allocation5 + $0x4c] sm:$0xf] %vm4363, %v6622
        %6699 = vst.msk [vmem:[#allocation5 + $0x50] sm:$0xf] %vm4363, %v6624
        %6700 = vst.msk [vmem:[#allocation5 + $0x54] sm:$0xf] %vm4363, %v6626
        %6701 = vst.msk [vmem:[#allocation5 + $0x58] sm:$0xf] %vm4363, %v6628
        %6702 = vst.msk [vmem:[#allocation5 + $0x5c] sm:$0xf] %vm4363, %v6630
        %6703 = vst.msk [vmem:[#allocation5 + $0x60] sm:$0xf] %vm4363, %v6632
        %6704 = vst.msk [vmem:[#allocation5 + $0x64] sm:$0xf] %vm4363, %v6634
        %6705 = vst.msk [vmem:[#allocation5 + $0x68] sm:$0xf] %vm4363, %v6636
        %6706 = vst.msk [vmem:[#allocation5 + $0x6c] sm:$0xf] %vm4363, %v6638
        %6707 = vst.msk [vmem:[#allocation5 + $0x70] sm:$0xf] %vm4363, %v6640
        %6708 = vst.msk [vmem:[#allocation5 + $0x74] sm:$0xf] %vm4363, %v6642
        %6709 = vst.msk [vmem:[#allocation5 + $0x78] sm:$0xf] %vm4363, %v6644
        %6710 = vst.msk [vmem:[#allocation5 + $0x7c] sm:$0xf] %vm4363, %v6646
        %v6711 = vld [vmem:[%s3945 + $0x2] sm:$0xff]
        %v6712 = vld [vmem:[%s3945 + $0xa] sm:$0xff]
        %v6713 = vld [vmem:[%s3945 + $0x1a] sm:$0xff]
        %v6714 = vld [vmem:[%s3945 + $0x22] sm:$0xff]
        %v6715 = vld [vmem:[%s3945 + $0x32] sm:$0xff]
        %v6716 = vld [vmem:[%s3945 + $0x3a] sm:$0xff]
        %v6717 = vld [vmem:[%s3945 + $0x4a] sm:$0xff]
        %v6718 = vld [vmem:[%s3945 + $0x52] sm:$0xff]
        %v6719 = vld [vmem:[%s3945 + $0x62] sm:$0xff]
        %v6720 = vld [vmem:[%s3945 + $0x6a] sm:$0xff]
        %v6721 = vld [vmem:[%s3945 + $0x7a] sm:$0xff]
        %v6722 = vld [vmem:[%s3945 + $0x82] sm:$0xff]
        %v6723 = vld [vmem:[%s3945 + $0x92] sm:$0xff]
        %v6724 = vld [vmem:[%s3945 + $0x9a] sm:$0xff]
        %v6725 = vld [vmem:[%s3945 + $0xaa] sm:$0xff]
        %v6726 = vld [vmem:[%s3945 + $0xb2] sm:$0xff]
        %v6727 = vld [vmem:[%s3945 + $0xc2] sm:$0xff]
        %v6728 = vld [vmem:[%s3945 + $0xca] sm:$0xff]
        %v6729 = vld [vmem:[%s3945 + $0xda] sm:$0xff]
        %v6730 = vld [vmem:[%s3945 + $0xe2] sm:$0xff]
        %v6731 = vld [vmem:[%s3945 + $0xf2] sm:$0xff]
        %v6732 = vld [vmem:[%s3945 + $0xfa] sm:$0xff]
        %v6733 = vld [vmem:[%s3945 + $0x10a] sm:$0xff]
        %v6734 = vld [vmem:[%s3945 + $0x112] sm:$0xff]
        %v6735 = vld [vmem:[%s3945 + $0x122] sm:$0xff]
        %v6736 = vld [vmem:[%s3945 + $0x12a] sm:$0xff]
        %v6737 = vld [vmem:[%s3945 + $0x13a] sm:$0xff]
        %v6738 = vld [vmem:[%s3945 + $0x142] sm:$0xff]
        %v6739 = vld [vmem:[%s3945 + $0x152] sm:$0xff]
        %v6740 = vld [vmem:[%s3945 + $0x15a] sm:$0xff]
        %v6741 = vld [vmem:[%s3945 + $0x16a] sm:$0xff]
        %v6742 = vld [vmem:[%s3945 + $0x172] sm:$0xff]
        %v6743 = vpack.c.bf16 %v6711, %v6711
        %v6744 = vpack.c.bf16 %v6712, %v6712
        %v6745 = vpack.c.bf16 %v6713, %v6713
        %v6746 = vpack.c.bf16 %v6714, %v6714
        %v6747 = vpack.c.bf16 %v6715, %v6715
        %v6748 = vpack.c.bf16 %v6716, %v6716
        %v6749 = vpack.c.bf16 %v6717, %v6717
        %v6750 = vpack.c.bf16 %v6718, %v6718
        %v6751 = vpack.c.bf16 %v6719, %v6719
        %v6752 = vpack.c.bf16 %v6720, %v6720
        %v6753 = vpack.c.bf16 %v6721, %v6721
        %v6754 = vpack.c.bf16 %v6722, %v6722
        %v6755 = vpack.c.bf16 %v6723, %v6723
        %v6756 = vpack.c.bf16 %v6724, %v6724
        %v6757 = vpack.c.bf16 %v6725, %v6725
        %v6758 = vpack.c.bf16 %v6726, %v6726
        %v6759 = vpack.c.bf16 %v6727, %v6727
        %v6760 = vpack.c.bf16 %v6728, %v6728
        %v6761 = vpack.c.bf16 %v6729, %v6729
        %v6762 = vpack.c.bf16 %v6730, %v6730
        %v6763 = vpack.c.bf16 %v6731, %v6731
        %v6764 = vpack.c.bf16 %v6732, %v6732
        %v6765 = vpack.c.bf16 %v6733, %v6733
        %v6766 = vpack.c.bf16 %v6734, %v6734
        %v6767 = vpack.c.bf16 %v6735, %v6735
        %v6768 = vpack.c.bf16 %v6736, %v6736
        %v6769 = vpack.c.bf16 %v6737, %v6737
        %v6770 = vpack.c.bf16 %v6738, %v6738
        %v6771 = vpack.c.bf16 %v6739, %v6739
        %v6772 = vpack.c.bf16 %v6740, %v6740
        %v6773 = vpack.c.bf16 %v6741, %v6741
        %v6774 = vpack.c.bf16 %v6742, %v6742
        %6807 = vrot.lane.b32.xlu0 %v6743, 64
        %v6808 = vpop.permute.xlu0 %6807
        %6809 = vrot.lane.b32.xlu0 %v6744, 64
        %v6810 = vpop.permute.xlu0 %6809
        %6811 = vrot.lane.b32.xlu0 %v6745, 64
        %v6812 = vpop.permute.xlu0 %6811
        %6813 = vrot.lane.b32.xlu0 %v6746, 64
        %v6814 = vpop.permute.xlu0 %6813
        %6815 = vrot.lane.b32.xlu0 %v6747, 64
        %v6816 = vpop.permute.xlu0 %6815
        %6817 = vrot.lane.b32.xlu0 %v6748, 64
        %v6818 = vpop.permute.xlu0 %6817
        %6819 = vrot.lane.b32.xlu0 %v6749, 64
        %v6820 = vpop.permute.xlu0 %6819
        %6821 = vrot.lane.b32.xlu0 %v6750, 64
        %v6822 = vpop.permute.xlu0 %6821
        %6823 = vrot.lane.b32.xlu0 %v6751, 64
        %v6824 = vpop.permute.xlu0 %6823
        %6825 = vrot.lane.b32.xlu0 %v6752, 64
        %v6826 = vpop.permute.xlu0 %6825
        %6827 = vrot.lane.b32.xlu0 %v6753, 64
        %v6828 = vpop.permute.xlu0 %6827
        %6829 = vrot.lane.b32.xlu0 %v6754, 64
        %v6830 = vpop.permute.xlu0 %6829
        %6831 = vrot.lane.b32.xlu0 %v6755, 64
        %v6832 = vpop.permute.xlu0 %6831
        %6833 = vrot.lane.b32.xlu0 %v6756, 64
        %v6834 = vpop.permute.xlu0 %6833
        %6835 = vrot.lane.b32.xlu0 %v6757, 64
        %v6836 = vpop.permute.xlu0 %6835
        %6837 = vrot.lane.b32.xlu0 %v6758, 64
        %v6838 = vpop.permute.xlu0 %6837
        %6839 = vrot.lane.b32.xlu0 %v6759, 64
        %v6840 = vpop.permute.xlu0 %6839
        %6841 = vrot.lane.b32.xlu0 %v6760, 64
        %v6842 = vpop.permute.xlu0 %6841
        %6843 = vrot.lane.b32.xlu0 %v6761, 64
        %v6844 = vpop.permute.xlu0 %6843
        %6845 = vrot.lane.b32.xlu0 %v6762, 64
        %v6846 = vpop.permute.xlu0 %6845
        %6847 = vrot.lane.b32.xlu0 %v6763, 64
        %v6848 = vpop.permute.xlu0 %6847
        %6849 = vrot.lane.b32.xlu0 %v6764, 64
        %v6850 = vpop.permute.xlu0 %6849
        %6851 = vrot.lane.b32.xlu0 %v6765, 64
        %v6852 = vpop.permute.xlu0 %6851
        %6853 = vrot.lane.b32.xlu0 %v6766, 64
        %v6854 = vpop.permute.xlu0 %6853
        %6855 = vrot.lane.b32.xlu0 %v6767, 64
        %v6856 = vpop.permute.xlu0 %6855
        %6857 = vrot.lane.b32.xlu0 %v6768, 64
        %v6858 = vpop.permute.xlu0 %6857
        %6859 = vrot.lane.b32.xlu0 %v6769, 64
        %v6860 = vpop.permute.xlu0 %6859
        %6861 = vrot.lane.b32.xlu0 %v6770, 64
        %v6862 = vpop.permute.xlu0 %6861
        %6863 = vrot.lane.b32.xlu0 %v6771, 64
        %v6864 = vpop.permute.xlu0 %6863
        %6865 = vrot.lane.b32.xlu0 %v6772, 64
        %v6866 = vpop.permute.xlu0 %6865
        %6867 = vrot.lane.b32.xlu0 %v6773, 64
        %v6868 = vpop.permute.xlu0 %6867
        %6869 = vrot.lane.b32.xlu0 %v6774, 64
        %v6870 = vpop.permute.xlu0 %6869
        %6903 = vst.msk [vmem:[#allocation5] sm:$0xf] %vm4588, %v6808
        %6904 = vst.msk [vmem:[#allocation5 + $0x4] sm:$0xf] %vm4588, %v6810
        %6905 = vst.msk [vmem:[#allocation5 + $0x8] sm:$0xf] %vm4588, %v6812
        %6906 = vst.msk [vmem:[#allocation5 + $0xc] sm:$0xf] %vm4588, %v6814
        %6907 = vst.msk [vmem:[#allocation5 + $0x10] sm:$0xf] %vm4588, %v6816
        %6908 = vst.msk [vmem:[#allocation5 + $0x14] sm:$0xf] %vm4588, %v6818
        %6909 = vst.msk [vmem:[#allocation5 + $0x18] sm:$0xf] %vm4588, %v6820
        %6910 = vst.msk [vmem:[#allocation5 + $0x1c] sm:$0xf] %vm4588, %v6822
        %6911 = vst.msk [vmem:[#allocation5 + $0x20] sm:$0xf] %vm4588, %v6824
        %6912 = vst.msk [vmem:[#allocation5 + $0x24] sm:$0xf] %vm4588, %v6826
        %6913 = vst.msk [vmem:[#allocation5 + $0x28] sm:$0xf] %vm4588, %v6828
        %6914 = vst.msk [vmem:[#allocation5 + $0x2c] sm:$0xf] %vm4588, %v6830
        %6915 = vst.msk [vmem:[#allocation5 + $0x30] sm:$0xf] %vm4588, %v6832
        %6916 = vst.msk [vmem:[#allocation5 + $0x34] sm:$0xf] %vm4588, %v6834
        %6917 = vst.msk [vmem:[#allocation5 + $0x38] sm:$0xf] %vm4588, %v6836
        %6918 = vst.msk [vmem:[#allocation5 + $0x3c] sm:$0xf] %vm4588, %v6838
        %6919 = vst.msk [vmem:[#allocation5 + $0x40] sm:$0xf] %vm4588, %v6840
        %6920 = vst.msk [vmem:[#allocation5 + $0x44] sm:$0xf] %vm4588, %v6842
        %6921 = vst.msk [vmem:[#allocation5 + $0x48] sm:$0xf] %vm4588, %v6844
        %6922 = vst.msk [vmem:[#allocation5 + $0x4c] sm:$0xf] %vm4588, %v6846
        %6923 = vst.msk [vmem:[#allocation5 + $0x50] sm:$0xf] %vm4588, %v6848
        %6924 = vst.msk [vmem:[#allocation5 + $0x54] sm:$0xf] %vm4588, %v6850
        %6925 = vst.msk [vmem:[#allocation5 + $0x58] sm:$0xf] %vm4588, %v6852
        %6926 = vst.msk [vmem:[#allocation5 + $0x5c] sm:$0xf] %vm4588, %v6854
        %6927 = vst.msk [vmem:[#allocation5 + $0x60] sm:$0xf] %vm4588, %v6856
        %6928 = vst.msk [vmem:[#allocation5 + $0x64] sm:$0xf] %vm4588, %v6858
        %6929 = vst.msk [vmem:[#allocation5 + $0x68] sm:$0xf] %vm4588, %v6860
        %6930 = vst.msk [vmem:[#allocation5 + $0x6c] sm:$0xf] %vm4588, %v6862
        %6931 = vst.msk [vmem:[#allocation5 + $0x70] sm:$0xf] %vm4588, %v6864
        %6932 = vst.msk [vmem:[#allocation5 + $0x74] sm:$0xf] %vm4588, %v6866
        %6933 = vst.msk [vmem:[#allocation5 + $0x78] sm:$0xf] %vm4588, %v6868
        %6934 = vst.msk [vmem:[#allocation5 + $0x7c] sm:$0xf] %vm4588, %v6870
        %v6935 = vld [vmem:[#allocation5] sm:$0xf]
        %v6936 = vld [vmem:[#allocation5 + $0x4] sm:$0xf]
        %v6937 = vld [vmem:[#allocation5 + $0x8] sm:$0xf]
        %v6938 = vld [vmem:[#allocation5 + $0xc] sm:$0xf]
        %v6939 = vld [vmem:[#allocation5 + $0x10] sm:$0xf]
        %v6940 = vld [vmem:[#allocation5 + $0x14] sm:$0xf]
        %v6941 = vld [vmem:[#allocation5 + $0x18] sm:$0xf]
        %v6942 = vld [vmem:[#allocation5 + $0x1c] sm:$0xf]
        %v6943 = vld [vmem:[#allocation5 + $0x20] sm:$0xf]
        %v6944 = vld [vmem:[#allocation5 + $0x24] sm:$0xf]
        %v6945 = vld [vmem:[#allocation5 + $0x28] sm:$0xf]
        %v6946 = vld [vmem:[#allocation5 + $0x2c] sm:$0xf]
        %v6947 = vld [vmem:[#allocation5 + $0x30] sm:$0xf]
        %v6948 = vld [vmem:[#allocation5 + $0x34] sm:$0xf]
        %v6949 = vld [vmem:[#allocation5 + $0x38] sm:$0xf]
        %v6950 = vld [vmem:[#allocation5 + $0x3c] sm:$0xf]
        %v6951 = vld [vmem:[#allocation5 + $0x40] sm:$0xf]
        %v6952 = vld [vmem:[#allocation5 + $0x44] sm:$0xf]
        %v6953 = vld [vmem:[#allocation5 + $0x48] sm:$0xf]
        %v6954 = vld [vmem:[#allocation5 + $0x4c] sm:$0xf]
        %v6955 = vld [vmem:[#allocation5 + $0x50] sm:$0xf]
        %v6956 = vld [vmem:[#allocation5 + $0x54] sm:$0xf]
        %v6957 = vld [vmem:[#allocation5 + $0x58] sm:$0xf]
        %v6958 = vld [vmem:[#allocation5 + $0x5c] sm:$0xf]
        %v6959 = vld [vmem:[#allocation5 + $0x60] sm:$0xf]
        %v6960 = vld [vmem:[#allocation5 + $0x64] sm:$0xf]
        %v6961 = vld [vmem:[#allocation5 + $0x68] sm:$0xf]
        %v6962 = vld [vmem:[#allocation5 + $0x6c] sm:$0xf]
        %v6963 = vld [vmem:[#allocation5 + $0x70] sm:$0xf]
        %v6964 = vld [vmem:[#allocation5 + $0x74] sm:$0xf]
        %v6965 = vld [vmem:[#allocation5 + $0x78] sm:$0xf]
        %v6966 = vld [vmem:[#allocation5 + $0x7c] sm:$0xf]
        %v6967 = vld [vmem:[%s3] sm:$0xf]
        %v6968 = vld [vmem:[%s3 + $0x4] sm:$0xf]
        %v6969 = vld [vmem:[%s3 + $0x8] sm:$0xf]
        %v6970 = vld [vmem:[%s3 + $0xc] sm:$0xf]
        %v6971 = vld [vmem:[%s3 + $0x10] sm:$0xf]
        %v6972 = vld [vmem:[%s3 + $0x14] sm:$0xf]
        %v6973 = vld [vmem:[%s3 + $0x18] sm:$0xf]
        %v6974 = vld [vmem:[%s3 + $0x1c] sm:$0xf]
        %v6975 = vld [vmem:[%s3 + $0x20] sm:$0xf]
        %v7008 = vunpack.c.l.b16 %v6935
        %v7009 = vunpack.c.l.b16 %v6936
        %v7010 = vunpack.c.l.b16 %v6937
        %v7011 = vunpack.c.l.b16 %v6938
        %v7012 = vunpack.c.l.b16 %v6939
        %v7013 = vunpack.c.l.b16 %v6940
        %v7014 = vunpack.c.l.b16 %v6941
        %v7015 = vunpack.c.l.b16 %v6942
        %v7016 = vunpack.c.l.b16 %v6943
        %v7017 = vunpack.c.l.b16 %v6944
        %v7018 = vunpack.c.l.b16 %v6945
        %v7019 = vunpack.c.l.b16 %v6946
        %v7020 = vunpack.c.l.b16 %v6947
        %v7021 = vunpack.c.l.b16 %v6948
        %v7022 = vunpack.c.l.b16 %v6949
        %v7023 = vunpack.c.l.b16 %v6950
        %v7024 = vunpack.c.l.b16 %v6951
        %v7025 = vunpack.c.l.b16 %v6952
        %v7026 = vunpack.c.l.b16 %v6953
        %v7027 = vunpack.c.l.b16 %v6954
        %v7028 = vunpack.c.l.b16 %v6955
        %v7029 = vunpack.c.l.b16 %v6956
        %v7030 = vunpack.c.l.b16 %v6957
        %v7031 = vunpack.c.l.b16 %v6958
        %v7032 = vunpack.c.l.b16 %v6959
        %v7033 = vunpack.c.l.b16 %v6960
        %v7034 = vunpack.c.l.b16 %v6961
        %v7035 = vunpack.c.l.b16 %v6962
        %v7036 = vunpack.c.l.b16 %v6963
        %v7037 = vunpack.c.l.b16 %v6964
        %v7038 = vunpack.c.l.b16 %v6965
        %v7039 = vunpack.c.l.b16 %v6966
        %v7040 = vpack.c.b16 %v7009, %v7008
        %v7041 = vpack.c.b16 %v7011, %v7010
        %v7042 = vpack.c.b16 %v7013, %v7012
        %v7043 = vpack.c.b16 %v7015, %v7014
        %v7044 = vpack.c.b16 %v7017, %v7016
        %v7045 = vpack.c.b16 %v7019, %v7018
        %v7046 = vpack.c.b16 %v7021, %v7020
        %v7047 = vpack.c.b16 %v7023, %v7022
        %v7048 = vpack.c.b16 %v7025, %v7024
        %v7049 = vpack.c.b16 %v7027, %v7026
        %v7050 = vpack.c.b16 %v7029, %v7028
        %v7051 = vpack.c.b16 %v7031, %v7030
        %v7052 = vpack.c.b16 %v7033, %v7032
        %v7053 = vpack.c.b16 %v7035, %v7034
        %v7054 = vpack.c.b16 %v7037, %v7036
        %v7055 = vpack.c.b16 %v7039, %v7038
        %v7065 = vunpack.c.l.b16 %v6967
        %v7066 = vunpack.c.l.b16 %v6968
        %v7067 = vunpack.c.l.b16 %v6969
        %v7068 = vunpack.c.l.b16 %v6970
        %v7069 = vunpack.c.l.b16 %v6971
        %v7070 = vunpack.c.l.b16 %v6972
        %v7071 = vunpack.c.l.b16 %v6973
        %v7072 = vunpack.c.l.b16 %v6974
        %v7073 = vunpack.c.l.b16 %v6975
        %v7074 = vpack.c.b16 %v7066, %v7065
        %v7075 = vpack.c.b16 %v7068, %v7067
        %v7076 = vpack.c.b16 %v7070, %v7069
        %v7077 = vpack.c.b16 %v7072, %v7071
        %v7078 = vpack.c.b16 %v7073, %v7073
        %v7084 = vsel %vm4769, %v7040, 0
        %v7087 = vsel %vm4769, %v7041, 0
        %v7090 = vsel %vm4769, %v7042, 0
        %v7093 = vsel %vm4769, %v7043, 0
        %v7096 = vsel %vm4769, %v7044, 0
        %v7099 = vsel %vm4769, %v7045, 0
        %v7102 = vsel %vm4769, %v7046, 0
        %v7105 = vsel %vm4769, %v7047, 0
        %v7108 = vsel %vm4769, %v7048, 0
        %v7111 = vsel %vm4769, %v7049, 0
        %v7114 = vsel %vm4769, %v7050, 0
        %v7117 = vsel %vm4769, %v7051, 0
        %v7120 = vsel %vm4769, %v7052, 0
        %v7123 = vsel %vm4769, %v7053, 0
        %v7126 = vsel %vm4769, %v7054, 0
        %v7129 = vsel %vm4769, %v7055, 0
        %v7132 = vsel %vm4818, %v7078, 0
        %7134 = vmatpush.bf16.msra.mxu0 0
        %7135 = vmatpush.bf16.msra.mxu0 0
        %7136 = vmatpush.bf16.msra.mxu0 0
        %7137 = vmatpush.bf16.msra.mxu0 %v7132
        %7138 = vmatpush.bf16.msra.mxu0 %v7077
        %7139 = vmatpush.bf16.msra.mxu0 %v7076
        %7140 = vmatpush.bf16.msra.mxu0 %v7075
        %7141 = vmatpush.bf16.msra.mxu0 %v7074
        %7142 = vmatmul.bf16.gmra.mxu0 %v7084
        %v7143 = vpop.f32.mrf.mxu0
        %v7144 = vadd.f32 0.0, %v7143
        %v7145 = vpop.f32.mrf.mxu0
        %v7146 = vadd.f32 0.0, %v7145
        %7147 = vmatmul.bf16.gmra.mxu0 %v7087
        %v7148 = vpop.f32.mrf.mxu0
        %v7149 = vadd.f32 0.0, %v7148
        %v7150 = vpop.f32.mrf.mxu0
        %v7151 = vadd.f32 0.0, %v7150
        %7152 = vmatmul.bf16.gmra.mxu0 %v7090
        %v7153 = vpop.f32.mrf.mxu0
        %v7154 = vadd.f32 0.0, %v7153
        %v7155 = vpop.f32.mrf.mxu0
        %v7156 = vadd.f32 0.0, %v7155
        %7157 = vmatmul.bf16.gmra.mxu0 %v7093
        %v7158 = vpop.f32.mrf.mxu0
        %v7159 = vadd.f32 0.0, %v7158
        %v7160 = vpop.f32.mrf.mxu0
        %v7161 = vadd.f32 0.0, %v7160
        %7162 = vmatmul.bf16.gmra.mxu0 %v7096
        %v7163 = vpop.f32.mrf.mxu0
        %v7164 = vadd.f32 0.0, %v7163
        %v7165 = vpop.f32.mrf.mxu0
        %v7166 = vadd.f32 0.0, %v7165
        %7167 = vmatmul.bf16.gmra.mxu0 %v7099
        %v7168 = vpop.f32.mrf.mxu0
        %v7169 = vadd.f32 0.0, %v7168
        %v7170 = vpop.f32.mrf.mxu0
        %v7171 = vadd.f32 0.0, %v7170
        %7172 = vmatmul.bf16.gmra.mxu0 %v7102
        %v7173 = vpop.f32.mrf.mxu0
        %v7174 = vadd.f32 0.0, %v7173
        %v7175 = vpop.f32.mrf.mxu0
        %v7176 = vadd.f32 0.0, %v7175
        %7177 = vmatmul.bf16.gmra.mxu0 %v7105
        %v7178 = vpop.f32.mrf.mxu0
        %v7179 = vadd.f32 0.0, %v7178
        %v7180 = vpop.f32.mrf.mxu0
        %v7181 = vadd.f32 0.0, %v7180
        %7182 = vmatmul.bf16.gmra.mxu0 %v7108
        %v7183 = vpop.f32.mrf.mxu0
        %v7184 = vadd.f32 0.0, %v7183
        %v7185 = vpop.f32.mrf.mxu0
        %v7186 = vadd.f32 0.0, %v7185
        %7187 = vmatmul.bf16.gmra.mxu0 %v7111
        %v7188 = vpop.f32.mrf.mxu0
        %v7189 = vadd.f32 0.0, %v7188
        %v7190 = vpop.f32.mrf.mxu0
        %v7191 = vadd.f32 0.0, %v7190
        %7192 = vmatmul.bf16.gmra.mxu0 %v7114
        %v7193 = vpop.f32.mrf.mxu0
        %v7194 = vadd.f32 0.0, %v7193
        %v7195 = vpop.f32.mrf.mxu0
        %v7196 = vadd.f32 0.0, %v7195
        %7197 = vmatmul.bf16.gmra.mxu0 %v7117
        %v7198 = vpop.f32.mrf.mxu0
        %v7199 = vadd.f32 0.0, %v7198
        %v7200 = vpop.f32.mrf.mxu0
        %v7201 = vadd.f32 0.0, %v7200
        %7202 = vmatmul.bf16.gmra.mxu0 %v7120
        %v7203 = vpop.f32.mrf.mxu0
        %v7204 = vadd.f32 0.0, %v7203
        %v7205 = vpop.f32.mrf.mxu0
        %v7206 = vadd.f32 0.0, %v7205
        %7207 = vmatmul.bf16.gmra.mxu0 %v7123
        %v7208 = vpop.f32.mrf.mxu0
        %v7209 = vadd.f32 0.0, %v7208
        %v7210 = vpop.f32.mrf.mxu0
        %v7211 = vadd.f32 0.0, %v7210
        %7212 = vmatmul.bf16.gmra.mxu0 %v7126
        %v7213 = vpop.f32.mrf.mxu0
        %v7214 = vadd.f32 0.0, %v7213
        %v7215 = vpop.f32.mrf.mxu0
        %v7216 = vadd.f32 0.0, %v7215
        %7217 = vmatmul.bf16.gmra.mxu0 %v7129
        %v7218 = vpop.f32.mrf.mxu0
        %v7219 = vadd.f32 0.0, %v7218
        %v7220 = vpop.f32.mrf.mxu0
        %v7221 = vadd.f32 0.0, %v7220
        %7222 = vdwg.mxu0
        %v7223 = vld [vmem:[%s6] sm:$0x1]
        %v7225 = vperm.slane %v7223, 0
        %v7227 = vmul.f32 %v7144, %v7225
        %v7228 = vmul.f32 %v7146, %v7225
        %v7229 = vmul.f32 %v7149, %v7225
        %v7230 = vmul.f32 %v7151, %v7225
        %v7231 = vmul.f32 %v7154, %v7225
        %v7232 = vmul.f32 %v7156, %v7225
        %v7233 = vmul.f32 %v7159, %v7225
        %v7234 = vmul.f32 %v7161, %v7225
        %v7235 = vmul.f32 %v7164, %v7225
        %v7236 = vmul.f32 %v7166, %v7225
        %v7237 = vmul.f32 %v7169, %v7225
        %v7238 = vmul.f32 %v7171, %v7225
        %v7239 = vmul.f32 %v7174, %v7225
        %v7240 = vmul.f32 %v7176, %v7225
        %v7241 = vmul.f32 %v7179, %v7225
        %v7242 = vmul.f32 %v7181, %v7225
        %v7243 = vmul.f32 %v7184, %v7225
        %v7244 = vmul.f32 %v7186, %v7225
        %v7245 = vmul.f32 %v7189, %v7225
        %v7246 = vmul.f32 %v7191, %v7225
        %v7247 = vmul.f32 %v7194, %v7225
        %v7248 = vmul.f32 %v7196, %v7225
        %v7249 = vmul.f32 %v7199, %v7225
        %v7250 = vmul.f32 %v7201, %v7225
        %v7251 = vmul.f32 %v7204, %v7225
        %v7252 = vmul.f32 %v7206, %v7225
        %v7253 = vmul.f32 %v7209, %v7225
        %v7254 = vmul.f32 %v7211, %v7225
        %v7255 = vmul.f32 %v7214, %v7225
        %v7256 = vmul.f32 %v7216, %v7225
        %v7257 = vmul.f32 %v7219, %v7225
        %v7258 = vmul.f32 %v7221, %v7225
        %v7259 = vld [vmem:[%s7] sm:$0x1]
        %v7261 = vperm.slane %v7259, 0
        %v7263 = vadd.f32 %v7227, %v7261
        %v7264 = vadd.f32 %v7228, %v7261
        %v7265 = vadd.f32 %v7229, %v7261
        %v7266 = vadd.f32 %v7230, %v7261
        %v7267 = vadd.f32 %v7231, %v7261
        %v7268 = vadd.f32 %v7232, %v7261
        %v7269 = vadd.f32 %v7233, %v7261
        %v7270 = vadd.f32 %v7234, %v7261
        %v7271 = vadd.f32 %v7235, %v7261
        %v7272 = vadd.f32 %v7236, %v7261
        %v7273 = vadd.f32 %v7237, %v7261
        %v7274 = vadd.f32 %v7238, %v7261
        %v7275 = vadd.f32 %v7239, %v7261
        %v7276 = vadd.f32 %v7240, %v7261
        %v7277 = vadd.f32 %v7241, %v7261
        %v7278 = vadd.f32 %v7242, %v7261
        %v7279 = vadd.f32 %v7243, %v7261
        %v7280 = vadd.f32 %v7244, %v7261
        %v7281 = vadd.f32 %v7245, %v7261
        %v7282 = vadd.f32 %v7246, %v7261
        %v7283 = vadd.f32 %v7247, %v7261
        %v7284 = vadd.f32 %v7248, %v7261
        %v7285 = vadd.f32 %v7249, %v7261
        %v7286 = vadd.f32 %v7250, %v7261
        %v7287 = vadd.f32 %v7251, %v7261
        %v7288 = vadd.f32 %v7252, %v7261
        %v7289 = vadd.f32 %v7253, %v7261
        %v7290 = vadd.f32 %v7254, %v7261
        %v7291 = vadd.f32 %v7255, %v7261
        %v7292 = vadd.f32 %v7256, %v7261
        %v7293 = vadd.f32 %v7257, %v7261
        %v7294 = vadd.f32 %v7258, %v7261
        %v7295 = vadd.f32 %v7263, %v2658
        %v7296 = vadd.f32 %v7264, %v2659
        %v7297 = vadd.f32 %v7265, %v2660
        %v7298 = vadd.f32 %v7266, %v2661
        %v7299 = vadd.f32 %v7267, %v2662
        %v7300 = vadd.f32 %v7268, %v2663
        %v7301 = vadd.f32 %v7269, %v2664
        %v7302 = vadd.f32 %v7270, %v2665
        %v7303 = vadd.f32 %v7271, %v2666
        %v7304 = vadd.f32 %v7272, %v2667
        %v7305 = vadd.f32 %v7273, %v2668
        %v7306 = vadd.f32 %v7274, %v2669
        %v7307 = vadd.f32 %v7275, %v2670
        %v7308 = vadd.f32 %v7276, %v2671
        %v7309 = vadd.f32 %v7277, %v2672
        %v7310 = vadd.f32 %v7278, %v2673
        %v7311 = vadd.f32 %v7279, %v2674
        %v7312 = vadd.f32 %v7280, %v2675
        %v7313 = vadd.f32 %v7281, %v2676
        %v7314 = vadd.f32 %v7282, %v2677
        %v7315 = vadd.f32 %v7283, %v2678
        %v7316 = vadd.f32 %v7284, %v2679
        %v7317 = vadd.f32 %v7285, %v2680
        %v7318 = vadd.f32 %v7286, %v2681
        %v7319 = vadd.f32 %v7287, %v2682
        %v7320 = vadd.f32 %v7288, %v2683
        %v7321 = vadd.f32 %v7289, %v2684
        %v7322 = vadd.f32 %v7290, %v2685
        %v7323 = vadd.f32 %v7291, %v2686
        %v7324 = vadd.f32 %v7292, %v2687
        %v7325 = vadd.f32 %v7293, %v2688
        %v7326 = vadd.f32 %v7294, %v2689
        %v7327 = vmax.f32 %v7295, 0.0
        %v7328 = vmax.f32 %v7296, 0.0
        %v7329 = vmax.f32 %v7297, 0.0
        %v7330 = vmax.f32 %v7298, 0.0
        %v7331 = vmax.f32 %v7299, 0.0
        %v7332 = vmax.f32 %v7300, 0.0
        %v7333 = vmax.f32 %v7301, 0.0
        %v7334 = vmax.f32 %v7302, 0.0
        %v7335 = vmax.f32 %v7303, 0.0
        %v7336 = vmax.f32 %v7304, 0.0
        %v7337 = vmax.f32 %v7305, 0.0
        %v7338 = vmax.f32 %v7306, 0.0
        %v7339 = vmax.f32 %v7307, 0.0
        %v7340 = vmax.f32 %v7308, 0.0
        %v7341 = vmax.f32 %v7309, 0.0
        %v7342 = vmax.f32 %v7310, 0.0
        %v7343 = vmax.f32 %v7311, 0.0
        %v7344 = vmax.f32 %v7312, 0.0
        %v7345 = vmax.f32 %v7313, 0.0
        %v7346 = vmax.f32 %v7314, 0.0
        %v7347 = vmax.f32 %v7315, 0.0
        %v7348 = vmax.f32 %v7316, 0.0
        %v7349 = vmax.f32 %v7317, 0.0
        %v7350 = vmax.f32 %v7318, 0.0
        %v7351 = vmax.f32 %v7319, 0.0
        %v7352 = vmax.f32 %v7320, 0.0
        %v7353 = vmax.f32 %v7321, 0.0
        %v7354 = vmax.f32 %v7322, 0.0
        %v7355 = vmax.f32 %v7323, 0.0
        %v7356 = vmax.f32 %v7324, 0.0
        %v7357 = vmax.f32 %v7325, 0.0
        %v7358 = vmax.f32 %v7326, 0.0
        %v7375 = vrot.slane %v7329, 7
        %vm7376 = vcmask 1041409
        %v7377 = vsel %vm7376, %v7375, %v7327
        %v7378 = vrot.slane %v7331, 6
        %vm7379 = vcmask 1042434
        %v7380 = vsel %vm7379, %v7378, %v7377
        %v7381 = vrot.slane %v7333, 5
        %vm7382 = vcmask 1043459
        %v7383 = vsel %vm7382, %v7381, %v7380
        %v7384 = vrot.slane %v7335, 4
        %vm7385 = vcmask 1044484
        %v7386 = vsel %vm7385, %v7384, %v7383
        %v7387 = vrot.slane %v7337, 3
        %vm7388 = vcmask 1045509
        %v7389 = vsel %vm7388, %v7387, %v7386
        %v7390 = vrot.slane %v7339, 2
        %vm7391 = vcmask 1046534
        %v7392 = vsel %vm7391, %v7390, %v7389
        %v7393 = vrot.slane %v7341, 1
        %vm7394 = vcmask 1047559
        %v7395 = vsel %vm7394, %v7393, %v7392
        %v7396 = vrot.slane %v7345, 7
        %v7397 = vsel %vm7376, %v7396, %v7343
        %v7398 = vrot.slane %v7347, 6
        %v7399 = vsel %vm7379, %v7398, %v7397
        %v7400 = vrot.slane %v7349, 5
        %v7401 = vsel %vm7382, %v7400, %v7399
        %v7402 = vrot.slane %v7351, 4
        %v7403 = vsel %vm7385, %v7402, %v7401
        %v7404 = vrot.slane %v7353, 3
        %v7405 = vsel %vm7388, %v7404, %v7403
        %v7406 = vrot.slane %v7355, 2
        %v7407 = vsel %vm7391, %v7406, %v7405
        %v7408 = vrot.slane %v7357, 1
        %v7409 = vsel %vm7394, %v7408, %v7407
        %v7412 = vrot.slane %v7327, 1
        %v7413 = vsel %vm7376, %v7329, %v7412
        %v7414 = vrot.slane %v7331, 7
        %v7415 = vsel %vm7379, %v7414, %v7413
        %v7416 = vrot.slane %v7333, 6
        %v7417 = vsel %vm7382, %v7416, %v7415
        %v7418 = vrot.slane %v7335, 5
        %v7419 = vsel %vm7385, %v7418, %v7417
        %v7420 = vrot.slane %v7337, 4
        %v7421 = vsel %vm7388, %v7420, %v7419
        %v7422 = vrot.slane %v7339, 3
        %v7423 = vsel %vm7391, %v7422, %v7421
        %v7424 = vrot.slane %v7341, 2
        %v7425 = vsel %vm7394, %v7424, %v7423
        %v7426 = vrot.slane %v7343, 1
        %v7427 = vsel %vm7376, %v7345, %v7426
        %v7428 = vrot.slane %v7347, 7
        %v7429 = vsel %vm7379, %v7428, %v7427
        %v7430 = vrot.slane %v7349, 6
        %v7431 = vsel %vm7382, %v7430, %v7429
        %v7432 = vrot.slane %v7351, 5
        %v7433 = vsel %vm7385, %v7432, %v7431
        %v7434 = vrot.slane %v7353, 4
        %v7435 = vsel %vm7388, %v7434, %v7433
        %v7436 = vrot.slane %v7355, 3
        %v7437 = vsel %vm7391, %v7436, %v7435
        %v7438 = vrot.slane %v7357, 2
        %v7439 = vsel %vm7394, %v7438, %v7437
        %7440 = vrot.lane.b32.xlu0 %v7425, 8
        %v7441 = vpop.permute.xlu0 %7440
        %7442 = vrot.lane.b32.xlu0 %v7439, 8
        %v7443 = vpop.permute.xlu0 %7442
        %v7446 = vrot.slane %v7327, 2
        %v7447 = vrot.slane %v7329, 1
        %v7448 = vsel %vm7376, %v7447, %v7446
        %v7449 = vsel %vm7379, %v7331, %v7448
        %v7450 = vrot.slane %v7333, 7
        %v7451 = vsel %vm7382, %v7450, %v7449
        %v7452 = vrot.slane %v7335, 6
        %v7453 = vsel %vm7385, %v7452, %v7451
        %v7454 = vrot.slane %v7337, 5
        %v7455 = vsel %vm7388, %v7454, %v7453
        %v7456 = vrot.slane %v7339, 4
        %v7457 = vsel %vm7391, %v7456, %v7455
        %v7458 = vrot.slane %v7341, 3
        %v7459 = vsel %vm7394, %v7458, %v7457
        %v7460 = vrot.slane %v7343, 2
        %v7461 = vrot.slane %v7345, 1
        %v7462 = vsel %vm7376, %v7461, %v7460
        %v7463 = vsel %vm7379, %v7347, %v7462
        %v7464 = vrot.slane %v7349, 7
        %v7465 = vsel %vm7382, %v7464, %v7463
        %v7466 = vrot.slane %v7351, 6
        %v7467 = vsel %vm7385, %v7466, %v7465
        %v7468 = vrot.slane %v7353, 5
        %v7469 = vsel %vm7388, %v7468, %v7467
        %v7470 = vrot.slane %v7355, 4
        %v7471 = vsel %vm7391, %v7470, %v7469
        %v7472 = vrot.slane %v7357, 3
        %v7473 = vsel %vm7394, %v7472, %v7471
        %7474 = vrot.lane.b32.xlu0 %v7459, 16
        %v7475 = vpop.permute.xlu0 %7474
        %7476 = vrot.lane.b32.xlu0 %v7473, 16
        %v7477 = vpop.permute.xlu0 %7476
        %v7480 = vrot.slane %v7327, 3
        %v7481 = vrot.slane %v7329, 2
        %v7482 = vsel %vm7376, %v7481, %v7480
        %v7483 = vrot.slane %v7331, 1
        %v7484 = vsel %vm7379, %v7483, %v7482
        %v7485 = vsel %vm7382, %v7333, %v7484
        %v7486 = vrot.slane %v7335, 7
        %v7487 = vsel %vm7385, %v7486, %v7485
        %v7488 = vrot.slane %v7337, 6
        %v7489 = vsel %vm7388, %v7488, %v7487
        %v7490 = vrot.slane %v7339, 5
        %v7491 = vsel %vm7391, %v7490, %v7489
        %v7492 = vrot.slane %v7341, 4
        %v7493 = vsel %vm7394, %v7492, %v7491
        %v7494 = vrot.slane %v7343, 3
        %v7495 = vrot.slane %v7345, 2
        %v7496 = vsel %vm7376, %v7495, %v7494
        %v7497 = vrot.slane %v7347, 1
        %v7498 = vsel %vm7379, %v7497, %v7496
        %v7499 = vsel %vm7382, %v7349, %v7498
        %v7500 = vrot.slane %v7351, 7
        %v7501 = vsel %vm7385, %v7500, %v7499
        %v7502 = vrot.slane %v7353, 6
        %v7503 = vsel %vm7388, %v7502, %v7501
        %v7504 = vrot.slane %v7355, 5
        %v7505 = vsel %vm7391, %v7504, %v7503
        %v7506 = vrot.slane %v7357, 4
        %v7507 = vsel %vm7394, %v7506, %v7505
        %7508 = vrot.lane.b32.xlu0 %v7493, 24
        %v7509 = vpop.permute.xlu0 %7508
        %7510 = vrot.lane.b32.xlu0 %v7507, 24
        %v7511 = vpop.permute.xlu0 %7510
        %v7514 = vrot.slane %v7327, 4
        %v7515 = vrot.slane %v7329, 3
        %v7516 = vsel %vm7376, %v7515, %v7514
        %v7517 = vrot.slane %v7331, 2
        %v7518 = vsel %vm7379, %v7517, %v7516
        %v7519 = vrot.slane %v7333, 1
        %v7520 = vsel %vm7382, %v7519, %v7518
        %v7521 = vsel %vm7385, %v7335, %v7520
        %v7522 = vrot.slane %v7337, 7
        %v7523 = vsel %vm7388, %v7522, %v7521
        %v7524 = vrot.slane %v7339, 6
        %v7525 = vsel %vm7391, %v7524, %v7523
        %v7526 = vrot.slane %v7341, 5
        %v7527 = vsel %vm7394, %v7526, %v7525
        %v7528 = vrot.slane %v7343, 4
        %v7529 = vrot.slane %v7345, 3
        %v7530 = vsel %vm7376, %v7529, %v7528
        %v7531 = vrot.slane %v7347, 2
        %v7532 = vsel %vm7379, %v7531, %v7530
        %v7533 = vrot.slane %v7349, 1
        %v7534 = vsel %vm7382, %v7533, %v7532
        %v7535 = vsel %vm7385, %v7351, %v7534
        %v7536 = vrot.slane %v7353, 7
        %v7537 = vsel %vm7388, %v7536, %v7535
        %v7538 = vrot.slane %v7355, 6
        %v7539 = vsel %vm7391, %v7538, %v7537
        %v7540 = vrot.slane %v7357, 5
        %v7541 = vsel %vm7394, %v7540, %v7539
        %7542 = vrot.lane.b32.xlu0 %v7527, 32
        %v7543 = vpop.permute.xlu0 %7542
        %7544 = vrot.lane.b32.xlu0 %v7541, 32
        %v7545 = vpop.permute.xlu0 %7544
        %v7548 = vrot.slane %v7327, 5
        %v7549 = vrot.slane %v7329, 4
        %v7550 = vsel %vm7376, %v7549, %v7548
        %v7551 = vrot.slane %v7331, 3
        %v7552 = vsel %vm7379, %v7551, %v7550
        %v7553 = vrot.slane %v7333, 2
        %v7554 = vsel %vm7382, %v7553, %v7552
        %v7555 = vrot.slane %v7335, 1
        %v7556 = vsel %vm7385, %v7555, %v7554
        %v7557 = vsel %vm7388, %v7337, %v7556
        %v7558 = vrot.slane %v7339, 7
        %v7559 = vsel %vm7391, %v7558, %v7557
        %v7560 = vrot.slane %v7341, 6
        %v7561 = vsel %vm7394, %v7560, %v7559
        %v7562 = vrot.slane %v7343, 5
        %v7563 = vrot.slane %v7345, 4
        %v7564 = vsel %vm7376, %v7563, %v7562
        %v7565 = vrot.slane %v7347, 3
        %v7566 = vsel %vm7379, %v7565, %v7564
        %v7567 = vrot.slane %v7349, 2
        %v7568 = vsel %vm7382, %v7567, %v7566
        %v7569 = vrot.slane %v7351, 1
        %v7570 = vsel %vm7385, %v7569, %v7568
        %v7571 = vsel %vm7388, %v7353, %v7570
        %v7572 = vrot.slane %v7355, 7
        %v7573 = vsel %vm7391, %v7572, %v7571
        %v7574 = vrot.slane %v7357, 6
        %v7575 = vsel %vm7394, %v7574, %v7573
        %7576 = vrot.lane.b32.xlu0 %v7561, 40
        %v7577 = vpop.permute.xlu0 %7576
        %7578 = vrot.lane.b32.xlu0 %v7575, 40
        %v7579 = vpop.permute.xlu0 %7578
        %v7582 = vrot.slane %v7327, 6
        %v7583 = vrot.slane %v7329, 5
        %v7584 = vsel %vm7376, %v7583, %v7582
        %v7585 = vrot.slane %v7331, 4
        %v7586 = vsel %vm7379, %v7585, %v7584
        %v7587 = vrot.slane %v7333, 3
        %v7588 = vsel %vm7382, %v7587, %v7586
        %v7589 = vrot.slane %v7335, 2
        %v7590 = vsel %vm7385, %v7589, %v7588
        %v7591 = vrot.slane %v7337, 1
        %v7592 = vsel %vm7388, %v7591, %v7590
        %v7593 = vsel %vm7391, %v7339, %v7592
        %v7594 = vrot.slane %v7341, 7
        %v7595 = vsel %vm7394, %v7594, %v7593
        %v7596 = vrot.slane %v7343, 6
        %v7597 = vrot.slane %v7345, 5
        %v7598 = vsel %vm7376, %v7597, %v7596
        %v7599 = vrot.slane %v7347, 4
        %v7600 = vsel %vm7379, %v7599, %v7598
        %v7601 = vrot.slane %v7349, 3
        %v7602 = vsel %vm7382, %v7601, %v7600
        %v7603 = vrot.slane %v7351, 2
        %v7604 = vsel %vm7385, %v7603, %v7602
        %v7605 = vrot.slane %v7353, 1
        %v7606 = vsel %vm7388, %v7605, %v7604
        %v7607 = vsel %vm7391, %v7355, %v7606
        %v7608 = vrot.slane %v7357, 7
        %v7609 = vsel %vm7394, %v7608, %v7607
        %7610 = vrot.lane.b32.xlu0 %v7595, 48
        %v7611 = vpop.permute.xlu0 %7610
        %7612 = vrot.lane.b32.xlu0 %v7609, 48
        %v7613 = vpop.permute.xlu0 %7612
        %v7616 = vrot.slane %v7327, 7
        %v7617 = vrot.slane %v7329, 6
        %v7618 = vsel %vm7376, %v7617, %v7616
        %v7619 = vrot.slane %v7331, 5
        %v7620 = vsel %vm7379, %v7619, %v7618
        %v7621 = vrot.slane %v7333, 4
        %v7622 = vsel %vm7382, %v7621, %v7620
        %v7623 = vrot.slane %v7335, 3
        %v7624 = vsel %vm7385, %v7623, %v7622
        %v7625 = vrot.slane %v7337, 2
        %v7626 = vsel %vm7388, %v7625, %v7624
        %v7627 = vrot.slane %v7339, 1
        %v7628 = vsel %vm7391, %v7627, %v7626
        %v7629 = vsel %vm7394, %v7341, %v7628
        %v7630 = vrot.slane %v7343, 7
        %v7631 = vrot.slane %v7345, 6
        %v7632 = vsel %vm7376, %v7631, %v7630
        %v7633 = vrot.slane %v7347, 5
        %v7634 = vsel %vm7379, %v7633, %v7632
        %v7635 = vrot.slane %v7349, 4
        %v7636 = vsel %vm7382, %v7635, %v7634
        %v7637 = vrot.slane %v7351, 3
        %v7638 = vsel %vm7385, %v7637, %v7636
        %v7639 = vrot.slane %v7353, 2
        %v7640 = vsel %vm7388, %v7639, %v7638
        %v7641 = vrot.slane %v7355, 1
        %v7642 = vsel %vm7391, %v7641, %v7640
        %v7643 = vsel %vm7394, %v7357, %v7642
        %7644 = vrot.lane.b32.xlu0 %v7629, 56
        %v7645 = vpop.permute.xlu0 %7644
        %7646 = vrot.lane.b32.xlu0 %v7643, 56
        %v7647 = vpop.permute.xlu0 %7646
        %v7666 = vrot.slane %v7330, 7
        %v7667 = vsel %vm7376, %v7666, %v7328
        %v7668 = vrot.slane %v7332, 6
        %v7669 = vsel %vm7379, %v7668, %v7667
        %v7670 = vrot.slane %v7334, 5
        %v7671 = vsel %vm7382, %v7670, %v7669
        %v7672 = vrot.slane %v7336, 4
        %v7673 = vsel %vm7385, %v7672, %v7671
        %v7674 = vrot.slane %v7338, 3
        %v7675 = vsel %vm7388, %v7674, %v7673
        %v7676 = vrot.slane %v7340, 2
        %v7677 = vsel %vm7391, %v7676, %v7675
        %v7678 = vrot.slane %v7342, 1
        %v7679 = vsel %vm7394, %v7678, %v7677
        %v7680 = vrot.slane %v7346, 7
        %v7681 = vsel %vm7376, %v7680, %v7344
        %v7682 = vrot.slane %v7348, 6
        %v7683 = vsel %vm7379, %v7682, %v7681
        %v7684 = vrot.slane %v7350, 5
        %v7685 = vsel %vm7382, %v7684, %v7683
        %v7686 = vrot.slane %v7352, 4
        %v7687 = vsel %vm7385, %v7686, %v7685
        %v7688 = vrot.slane %v7354, 3
        %v7689 = vsel %vm7388, %v7688, %v7687
        %v7690 = vrot.slane %v7356, 2
        %v7691 = vsel %vm7391, %v7690, %v7689
        %v7692 = vrot.slane %v7358, 1
        %v7693 = vsel %vm7394, %v7692, %v7691
        %7694 = vrot.lane.b32.xlu0 %v7679, 64
        %v7695 = vpop.permute.xlu0 %7694
        %7696 = vrot.lane.b32.xlu0 %v7693, 64
        %v7697 = vpop.permute.xlu0 %7696
        %v7700 = vrot.slane %v7328, 1
        %v7701 = vsel %vm7376, %v7330, %v7700
        %v7702 = vrot.slane %v7332, 7
        %v7703 = vsel %vm7379, %v7702, %v7701
        %v7704 = vrot.slane %v7334, 6
        %v7705 = vsel %vm7382, %v7704, %v7703
        %v7706 = vrot.slane %v7336, 5
        %v7707 = vsel %vm7385, %v7706, %v7705
        %v7708 = vrot.slane %v7338, 4
        %v7709 = vsel %vm7388, %v7708, %v7707
        %v7710 = vrot.slane %v7340, 3
        %v7711 = vsel %vm7391, %v7710, %v7709
        %v7712 = vrot.slane %v7342, 2
        %v7713 = vsel %vm7394, %v7712, %v7711
        %v7714 = vrot.slane %v7344, 1
        %v7715 = vsel %vm7376, %v7346, %v7714
        %v7716 = vrot.slane %v7348, 7
        %v7717 = vsel %vm7379, %v7716, %v7715
        %v7718 = vrot.slane %v7350, 6
        %v7719 = vsel %vm7382, %v7718, %v7717
        %v7720 = vrot.slane %v7352, 5
        %v7721 = vsel %vm7385, %v7720, %v7719
        %v7722 = vrot.slane %v7354, 4
        %v7723 = vsel %vm7388, %v7722, %v7721
        %v7724 = vrot.slane %v7356, 3
        %v7725 = vsel %vm7391, %v7724, %v7723
        %v7726 = vrot.slane %v7358, 2
        %v7727 = vsel %vm7394, %v7726, %v7725
        %7728 = vrot.lane.b32.xlu0 %v7713, 72
        %v7729 = vpop.permute.xlu0 %7728
        %7730 = vrot.lane.b32.xlu0 %v7727, 72
        %v7731 = vpop.permute.xlu0 %7730
        %v7734 = vrot.slane %v7328, 2
        %v7735 = vrot.slane %v7330, 1
        %v7736 = vsel %vm7376, %v7735, %v7734
        %v7737 = vsel %vm7379, %v7332, %v7736
        %v7738 = vrot.slane %v7334, 7
        %v7739 = vsel %vm7382, %v7738, %v7737
        %v7740 = vrot.slane %v7336, 6
        %v7741 = vsel %vm7385, %v7740, %v7739
        %v7742 = vrot.slane %v7338, 5
        %v7743 = vsel %vm7388, %v7742, %v7741
        %v7744 = vrot.slane %v7340, 4
        %v7745 = vsel %vm7391, %v7744, %v7743
        %v7746 = vrot.slane %v7342, 3
        %v7747 = vsel %vm7394, %v7746, %v7745
        %v7748 = vrot.slane %v7344, 2
        %v7749 = vrot.slane %v7346, 1
        %v7750 = vsel %vm7376, %v7749, %v7748
        %v7751 = vsel %vm7379, %v7348, %v7750
        %v7752 = vrot.slane %v7350, 7
        %v7753 = vsel %vm7382, %v7752, %v7751
        %v7754 = vrot.slane %v7352, 6
        %v7755 = vsel %vm7385, %v7754, %v7753
        %v7756 = vrot.slane %v7354, 5
        %v7757 = vsel %vm7388, %v7756, %v7755
        %v7758 = vrot.slane %v7356, 4
        %v7759 = vsel %vm7391, %v7758, %v7757
        %v7760 = vrot.slane %v7358, 3
        %v7761 = vsel %vm7394, %v7760, %v7759
        %7762 = vrot.lane.b32.xlu0 %v7747, 80
        %v7763 = vpop.permute.xlu0 %7762
        %7764 = vrot.lane.b32.xlu0 %v7761, 80
        %v7765 = vpop.permute.xlu0 %7764
        %v7768 = vrot.slane %v7328, 3
        %v7769 = vrot.slane %v7330, 2
        %v7770 = vsel %vm7376, %v7769, %v7768
        %v7771 = vrot.slane %v7332, 1
        %v7772 = vsel %vm7379, %v7771, %v7770
        %v7773 = vsel %vm7382, %v7334, %v7772
        %v7774 = vrot.slane %v7336, 7
        %v7775 = vsel %vm7385, %v7774, %v7773
        %v7776 = vrot.slane %v7338, 6
        %v7777 = vsel %vm7388, %v7776, %v7775
        %v7778 = vrot.slane %v7340, 5
        %v7779 = vsel %vm7391, %v7778, %v7777
        %v7780 = vrot.slane %v7342, 4
        %v7781 = vsel %vm7394, %v7780, %v7779
        %v7782 = vrot.slane %v7344, 3
        %v7783 = vrot.slane %v7346, 2
        %v7784 = vsel %vm7376, %v7783, %v7782
        %v7785 = vrot.slane %v7348, 1
        %v7786 = vsel %vm7379, %v7785, %v7784
        %v7787 = vsel %vm7382, %v7350, %v7786
        %v7788 = vrot.slane %v7352, 7
        %v7789 = vsel %vm7385, %v7788, %v7787
        %v7790 = vrot.slane %v7354, 6
        %v7791 = vsel %vm7388, %v7790, %v7789
        %v7792 = vrot.slane %v7356, 5
        %v7793 = vsel %vm7391, %v7792, %v7791
        %v7794 = vrot.slane %v7358, 4
        %v7795 = vsel %vm7394, %v7794, %v7793
        %7796 = vrot.lane.b32.xlu0 %v7781, 88
        %v7797 = vpop.permute.xlu0 %7796
        %7798 = vrot.lane.b32.xlu0 %v7795, 88
        %v7799 = vpop.permute.xlu0 %7798
        %v7802 = vrot.slane %v7328, 4
        %v7803 = vrot.slane %v7330, 3
        %v7804 = vsel %vm7376, %v7803, %v7802
        %v7805 = vrot.slane %v7332, 2
        %v7806 = vsel %vm7379, %v7805, %v7804
        %v7807 = vrot.slane %v7334, 1
        %v7808 = vsel %vm7382, %v7807, %v7806
        %v7809 = vsel %vm7385, %v7336, %v7808
        %v7810 = vrot.slane %v7338, 7
        %v7811 = vsel %vm7388, %v7810, %v7809
        %v7812 = vrot.slane %v7340, 6
        %v7813 = vsel %vm7391, %v7812, %v7811
        %v7814 = vrot.slane %v7342, 5
        %v7815 = vsel %vm7394, %v7814, %v7813
        %v7816 = vrot.slane %v7344, 4
        %v7817 = vrot.slane %v7346, 3
        %v7818 = vsel %vm7376, %v7817, %v7816
        %v7819 = vrot.slane %v7348, 2
        %v7820 = vsel %vm7379, %v7819, %v7818
        %v7821 = vrot.slane %v7350, 1
        %v7822 = vsel %vm7382, %v7821, %v7820
        %v7823 = vsel %vm7385, %v7352, %v7822
        %v7824 = vrot.slane %v7354, 7
        %v7825 = vsel %vm7388, %v7824, %v7823
        %v7826 = vrot.slane %v7356, 6
        %v7827 = vsel %vm7391, %v7826, %v7825
        %v7828 = vrot.slane %v7358, 5
        %v7829 = vsel %vm7394, %v7828, %v7827
        %7830 = vrot.lane.b32.xlu0 %v7815, 96
        %v7831 = vpop.permute.xlu0 %7830
        %7832 = vrot.lane.b32.xlu0 %v7829, 96
        %v7833 = vpop.permute.xlu0 %7832
        %v7836 = vrot.slane %v7328, 5
        %v7837 = vrot.slane %v7330, 4
        %v7838 = vsel %vm7376, %v7837, %v7836
        %v7839 = vrot.slane %v7332, 3
        %v7840 = vsel %vm7379, %v7839, %v7838
        %v7841 = vrot.slane %v7334, 2
        %v7842 = vsel %vm7382, %v7841, %v7840
        %v7843 = vrot.slane %v7336, 1
        %v7844 = vsel %vm7385, %v7843, %v7842
        %v7845 = vsel %vm7388, %v7338, %v7844
        %v7846 = vrot.slane %v7340, 7
        %v7847 = vsel %vm7391, %v7846, %v7845
        %v7848 = vrot.slane %v7342, 6
        %v7849 = vsel %vm7394, %v7848, %v7847
        %v7850 = vrot.slane %v7344, 5
        %v7851 = vrot.slane %v7346, 4
        %v7852 = vsel %vm7376, %v7851, %v7850
        %v7853 = vrot.slane %v7348, 3
        %v7854 = vsel %vm7379, %v7853, %v7852
        %v7855 = vrot.slane %v7350, 2
        %v7856 = vsel %vm7382, %v7855, %v7854
        %v7857 = vrot.slane %v7352, 1
        %v7858 = vsel %vm7385, %v7857, %v7856
        %v7859 = vsel %vm7388, %v7354, %v7858
        %v7860 = vrot.slane %v7356, 7
        %v7861 = vsel %vm7391, %v7860, %v7859
        %v7862 = vrot.slane %v7358, 6
        %v7863 = vsel %vm7394, %v7862, %v7861
        %7864 = vrot.lane.b32.xlu0 %v7849, 104
        %v7865 = vpop.permute.xlu0 %7864
        %7866 = vrot.lane.b32.xlu0 %v7863, 104
        %v7867 = vpop.permute.xlu0 %7866
        %v7870 = vrot.slane %v7328, 6
        %v7871 = vrot.slane %v7330, 5
        %v7872 = vsel %vm7376, %v7871, %v7870
        %v7873 = vrot.slane %v7332, 4
        %v7874 = vsel %vm7379, %v7873, %v7872
        %v7875 = vrot.slane %v7334, 3
        %v7876 = vsel %vm7382, %v7875, %v7874
        %v7877 = vrot.slane %v7336, 2
        %v7878 = vsel %vm7385, %v7877, %v7876
        %v7879 = vrot.slane %v7338, 1
        %v7880 = vsel %vm7388, %v7879, %v7878
        %v7881 = vsel %vm7391, %v7340, %v7880
        %v7882 = vrot.slane %v7342, 7
        %v7883 = vsel %vm7394, %v7882, %v7881
        %v7884 = vrot.slane %v7344, 6
        %v7885 = vrot.slane %v7346, 5
        %v7886 = vsel %vm7376, %v7885, %v7884
        %v7887 = vrot.slane %v7348, 4
        %v7888 = vsel %vm7379, %v7887, %v7886
        %v7889 = vrot.slane %v7350, 3
        %v7890 = vsel %vm7382, %v7889, %v7888
        %v7891 = vrot.slane %v7352, 2
        %v7892 = vsel %vm7385, %v7891, %v7890
        %v7893 = vrot.slane %v7354, 1
        %v7894 = vsel %vm7388, %v7893, %v7892
        %v7895 = vsel %vm7391, %v7356, %v7894
        %v7896 = vrot.slane %v7358, 7
        %v7897 = vsel %vm7394, %v7896, %v7895
        %7898 = vrot.lane.b32.xlu0 %v7883, 112
        %v7899 = vpop.permute.xlu0 %7898
        %7900 = vrot.lane.b32.xlu0 %v7897, 112
        %v7901 = vpop.permute.xlu0 %7900
        %v7904 = vrot.slane %v7328, 7
        %v7905 = vrot.slane %v7330, 6
        %v7906 = vsel %vm7376, %v7905, %v7904
        %v7907 = vrot.slane %v7332, 5
        %v7908 = vsel %vm7379, %v7907, %v7906
        %v7909 = vrot.slane %v7334, 4
        %v7910 = vsel %vm7382, %v7909, %v7908
        %v7911 = vrot.slane %v7336, 3
        %v7912 = vsel %vm7385, %v7911, %v7910
        %v7913 = vrot.slane %v7338, 2
        %v7914 = vsel %vm7388, %v7913, %v7912
        %v7915 = vrot.slane %v7340, 1
        %v7916 = vsel %vm7391, %v7915, %v7914
        %v7917 = vsel %vm7394, %v7342, %v7916
        %v7918 = vrot.slane %v7344, 7
        %v7919 = vrot.slane %v7346, 6
        %v7920 = vsel %vm7376, %v7919, %v7918
        %v7921 = vrot.slane %v7348, 5
        %v7922 = vsel %vm7379, %v7921, %v7920
        %v7923 = vrot.slane %v7350, 4
        %v7924 = vsel %vm7382, %v7923, %v7922
        %v7925 = vrot.slane %v7352, 3
        %v7926 = vsel %vm7385, %v7925, %v7924
        %v7927 = vrot.slane %v7354, 2
        %v7928 = vsel %vm7388, %v7927, %v7926
        %v7929 = vrot.slane %v7356, 1
        %v7930 = vsel %vm7391, %v7929, %v7928
        %v7931 = vsel %vm7394, %v7358, %v7930
        %7932 = vrot.lane.b32.xlu0 %v7917, 120
        %v7933 = vpop.permute.xlu0 %7932
        %7934 = vrot.lane.b32.xlu0 %v7931, 120
        %v7935 = vpop.permute.xlu0 %7934
        %v7938 = vsel %vm305, %v7395, %v7441
        %v7939 = vsel %vm305, %v7409, %v7443
        %vm7940 = vcmask 130048
        %v7941 = vsel %vm7940, %v7938, %v7475
        %v7942 = vsel %vm7940, %v7939, %v7477
        %vm7943 = vcmask 195584
        %v7944 = vsel %vm7943, %v7941, %v7509
        %v7945 = vsel %vm7943, %v7942, %v7511
        %vm7946 = vcmask 261120
        %v7947 = vsel %vm7946, %v7944, %v7543
        %v7948 = vsel %vm7946, %v7945, %v7545
        %vm7949 = vcmask 326656
        %v7950 = vsel %vm7949, %v7947, %v7577
        %v7951 = vsel %vm7949, %v7948, %v7579
        %vm7952 = vcmask 392192
        %v7953 = vsel %vm7952, %v7950, %v7611
        %v7954 = vsel %vm7952, %v7951, %v7613
        %vm7955 = vcmask 457728
        %v7956 = vsel %vm7955, %v7953, %v7645
        %v7957 = vsel %vm7955, %v7954, %v7647
        %vm7958 = vcmask 523264
        %v7959 = vsel %vm7958, %v7956, %v7695
        %v7960 = vsel %vm7958, %v7957, %v7697
        %v7961 = vsel %vm4769, %v7959, %v7729
        %v7962 = vsel %vm4769, %v7960, %v7731
        %vm7963 = vcmask 654336
        %v7964 = vsel %vm7963, %v7961, %v7763
        %v7965 = vsel %vm7963, %v7962, %v7765
        %vm7966 = vcmask 719872
        %v7967 = vsel %vm7966, %v7964, %v7797
        %v7968 = vsel %vm7966, %v7965, %v7799
        %vm7969 = vcmask 785408
        %v7970 = vsel %vm7969, %v7967, %v7831
        %v7971 = vsel %vm7969, %v7968, %v7833
        %vm7972 = vcmask 850944
        %v7973 = vsel %vm7972, %v7970, %v7865
        %v7974 = vsel %vm7972, %v7971, %v7867
        %vm7975 = vcmask 916480
        %v7976 = vsel %vm7975, %v7973, %v7899
        %v7977 = vsel %vm7975, %v7974, %v7901
        %vm7978 = vcmask 982016
        %v7979 = vsel %vm7978, %v7976, %v7933
        %v7980 = vsel %vm7978, %v7977, %v7935
        %7981 = vst [vmem:[%s298] sm:$0xff] %v7979
        %7982 = vst [vmem:[%s298 + $0x8] sm:$0xff] %v7980
        %s7983 = sand.u32 %s203, 1
        %s7984 = scalar_lea.sflag [#allocation7], %s7983
        %s7985 = sand.u32 %s203, 1
        %s7986 = smul.addr %s7985, 16
        %s7987 = scalar_lea.vmem [#allocation6], %s7986
        // Predicated region
        $region53: #{tpu_custom_call.1} parent=51 // pred_check
          %p7988 = pneg %p213
        $region54: #{tpu_custom_call.1} parent=51 // pred_check_branch
          %7990 = sbr.rel (%p7988) target = $region56
        $region55: #{tpu_custom_call.1} parent=51 // pred_region
          %7992 = vsyncadd %s7984, 0
          %s7993 = smul.addr %s22, 2
          %s7994 = smul.addr %s7993, 8
          %s7995 = scalar_lea.hbm %s8, %s7994
          %s7996 = sshll.u32 %s7987, 4
          %s7997 = int_to_ptr.vmem [resolvable:$true] %s7996
          %s7998 = sshll.u32 %s7995, 4
          %s7999 = int_to_ptr.hbm [resolvable:$true] %s7998
          %8004 = dma.vmem_to_hbm [thread:$0]  %s7997, 256, %s7999, %s7984, 128, 128, 8
        $region56: #{tpu_custom_call.1} parent=51 // pred_fallthru
          _
      $region52: #{tpu_custom_call.1} parent=5 // pred_fallthru
        _
      %p8005 = scmp.le.s32.totalorder 2, %s17
      // Predicated region
      $region57: #{tpu_custom_call.1} parent=5 // pred_check
        %p8006 = pneg %p8005
      $region58: #{tpu_custom_call.1} parent=5 // pred_check_branch
        %8008 = sbr.rel (%p8006) target = $region60
      $region59: #{tpu_custom_call.1} parent=5 // pred_region
        %s8009 = ssub.s32 %s17, 2
        // Predicated region
        $region61: #{tpu_custom_call.1} parent=59 // pred_check
          %p8010 = pneg %p219
        $region62: #{tpu_custom_call.1} parent=59 // pred_check_branch
          %8012 = sbr.rel (%p8010) target = $region64
        $region63: #{tpu_custom_call.1} parent=59 // pred_region
          %s8013 = sand.u32 %s204, 1
          %s8014 = scalar_lea.sflag [#allocation7], %s8013
          %s8015 = sand.u32 %s204, 1
          %s8016 = smul.addr %s8015, 16
          %s8017 = scalar_lea.vmem [#allocation6], %s8016
          %8019 = dma.done %s8014, 256
        $region64: #{tpu_custom_call.1} parent=59 // pred_fallthru
          _
      $region60: #{tpu_custom_call.1} parent=5 // pred_fallthru
        _
    $region6: #{tpu_custom_call.1} parent=1 // loop_footer
      %s21 = sadd.s32 1, %s17
    $region7: #{tpu_custom_call.1} parent=1 // loop_footer_branch
      %16 = sbr.rel target = $region3
    $region8: #{tpu_custom_call.1} parent=1 // loop_exit
      _
    %8020 = vsyncpa [#allocation7], 1
    %s8021 = scalar_lea.sflag [#allocation7], 1
    %8022 = vsyncpa %s8021, 1

</llo_original>
